<compile_context>
chip_gen: v7x
topology: tpu7x:2x2x1
jax: 0.10.0
libtpu: 0.0.40
codegen_flags: <defaults>
</compile_context>

<pallas_src>
import functools
import math

import jax
import jax.numpy as jnp
import numpy as np
from jax import lax
from jax.experimental import pallas as pl
from jax.experimental.pallas import tpu as pltpu

MUL = 8                        # multiplicity per irrep
DIM_FLAT = MUL * 1 + MUL * 3   # 32
INV_SQRT_MUL = 1.0 / math.sqrt(MUL)
CHUNK = 256                    # lanes per inner compute chunk (caps live vregs)
BLOCK_N = 1024                 # nodes per grid step (DMA amortization)


def _make_tp_coeffs():
    # Instruction order: 0:(0e,0e->0e) 1:(0e,1e->1e) 2:(1e,0e->1e) 3:(1e,1e->0e) 4:(1e,1e->1e)
    x_total = 5.0
    pw0 = math.sqrt(1.0 / x_total)
    pw1 = math.sqrt(3.0 / x_total)
    a0 = (1.0 / 2.0) * pw0
    a1 = (3.0 / 3.0) * pw1
    c0 = math.sqrt(a0)
    c1 = math.sqrt(a1)
    return (
        c0 * 1.0,                  # w3j(0,0,0) = 1
        c1 / math.sqrt(3.0),       # w3j(0,1,1)
        c1 / math.sqrt(3.0),       # w3j(1,0,1)
        c0 / math.sqrt(3.0),       # w3j(1,1,0)
        c1 / math.sqrt(6.0),       # w3j(1,1,1)
    )


TP_C = _make_tp_coeffs()


# ---------------------- internal channel order / permutation ------------------
# internal row r:  r<8 -> scalar r ;  r=8+m*8+u -> component m of vector channel u
# flat column c :  c<8 -> scalar c ;  c=8+u*3+m -> component m of vector channel u
def _perm_matrix():
    perm = np.arange(DIM_FLAT, dtype=np.int64)
    for m in range(3):
        for u in range(MUL):
            perm[MUL + m * MUL + u] = MUL + u * 3 + m
    P = np.zeros((DIM_FLAT, DIM_FLAT), np.float32)
    P[np.arange(DIM_FLAT), perm] = 1.0
    return P


_PMAT = _perm_matrix()

# Packed-weight slab (width 64, zero-padded columns).
_R_P = 0          # (32, 32) channel permutation (flat -> internal)
_R_W1PAIR = 32    # (32, 16) fused ng1+ng2 first layer, transposed
_R_W2PAIR = 64    # (32, 32) fused ng1+ng2 second layer, block-diagonal, transposed
_R_W1O = 96       # (16, 16) output norm-gate first layer
_R_W2O = 112      # (16, 16) output norm-gate second layer
_R_W12 = 128      # (64, 64) fused o3.Linear 1&2 block-diag, 1/sqrt(8) folded
_R_M3 = 192       # (32, 32) output o3.Linear fused with inverse permutation: W3^T @ P
_R_B3F = 224      # row 0 = output-linear bias already in flat layout (1, 32)
_WM_ROWS = 232
_WM_COLS = 64

# Packed bias / TP-weight slab (pre-broadcast to CHUNK lanes, resident in VMEM).
_B_B1PAIR = 0     # 32 = [ng1_b1, ng2_b1]
_B_B2PAIR = 32    # 32 = [ng1_b2, ng2_b2]
_B_B12 = 64       # 16 = [l1_b0, l2_b0]
_B_B1O = 80       # 16
_B_B2O = 96       # 16
_B_TP = 112       # 40 = 5 paths x 8 channels, pre-scaled by TP_C
_BV_ROWS = 152

_NT_DIMS = (((1,), (1,)), ((), ()))   # A @ B^T
_TN_DIMS = (((0,), (0,)), ((), ()))   # A^T @ B


# ----------------------------- Pallas kernel ----------------------------------
def _selfnet_kernel(x_ref, f_ref, wm_ref, bv_ref, out_ref):
    f32 = jnp.float32
    n_chunks = x_ref.shape[0] // CHUNK   # static (block_n is a multiple of CHUNK)

    def mm(a, b):
        return jnp.dot(a, b, preferred_element_type=f32)

    def chunk_body(j, carry):
        off = pl.multiple_of(j * CHUNK, CHUNK)
        x = x_ref[pl.ds(off, CHUNK), :]                         # (C, 32) flat layout

        # ---- relayout: channels -> sublanes, nodes -> lanes (lane-dense) ------
        P = wm_ref[_R_P:_R_P + DIM_FLAT, 0:DIM_FLAT]            # (32, 32)
        xp = lax.dot_general(P, x, _NT_DIMS, preferred_element_type=f32)  # (32, C)
        s0 = xp[0:MUL]                                           # raw scalars   (8, C)
        v0 = xp[MUL:2 * MUL]                                     # raw l=1 comps (8, C)
        v1 = xp[2 * MUL:3 * MUL]
        v2 = xp[3 * MUL:4 * MUL]

        # ---- fused NormGate 1 & 2 (shared [scalars | norms] input) ------------
        nrm = jnp.sqrt(v0 * v0 + v1 * v1 + v2 * v2)              # (8, C)
        fcat = jnp.concatenate([s0, nrm], axis=0)                # (16, C)
        h = mm(wm_ref[_R_W1PAIR:_R_W1PAIR + 32, 0:16], fcat) \
            + bv_ref[_B_B1PAIR:_B_B1PAIR + 32, :]
        h = h * jax.nn.sigmoid(h)                                # SiLU
        g = mm(wm_ref[_R_W2PAIR:_R_W2PAIR + 32, 0:32], h) \
            + bv_ref[_B_B2PAIR:_B_B2PAIR + 32, :]                # (32, C)
        g1v = g[8:16]
        g2v = g[24:32]

        # ---- fused o3.Linear 1 & 2 (one 64x64 block-diag, 1/sqrt(8) folded) ---
        act12 = jnp.concatenate([g[0:8], g[16:24],
                                 v0 * g1v, v1 * g1v, v2 * g1v,
                                 v0 * g2v, v1 * g2v, v2 * g2v], axis=0)   # (64, C)
        z = mm(wm_ref[_R_W12:_R_W12 + 64, 0:64], act12)          # (64, C)
        zb = z[0:16] + bv_ref[_B_B12:_B_B12 + 16, :]             # scalar biases only
        xl0 = zb[0:8]
        xr0 = zb[8:16]
        xl1 = (z[16:24], z[24:32], z[32:40])
        xr1 = (z[40:48], z[48:56], z[56:64])

        # ---- TensorProduct (uuu) with TP_C folded into per-channel weights ----
        w000 = bv_ref[_B_TP + 0:_B_TP + 8, :]
        w011 = bv_ref[_B_TP + 8:_B_TP + 16, :]
        w101 = bv_ref[_B_TP + 16:_B_TP + 24, :]
        w110 = bv_ref[_B_TP + 24:_B_TP + 32, :]
        w111 = bv_ref[_B_TP + 32:_B_TP + 40, :]

        dot_lr = xl1[0] * xr1[0] + xl1[1] * xr1[1] + xl1[2] * xr1[2]
        t0 = w000 * (xl0 * xr0) + w110 * dot_lr + s0             # + resnet (raw scalars)
        cross = (xl1[1] * xr1[2] - xl1[2] * xr1[1],
                 xl1[2] * xr1[0] - xl1[0] * xr1[2],
                 xl1[0] * xr1[1] - xl1[1] * xr1[0])
        vraw = (v0, v1, v2)
        t1 = tuple(w011 * (xl0 * xr1[c]) + w101 * (xl1[c] * xr0)
                   + w111 * cross[c] + vraw[c] for c in range(3))  # + resnet (raw vectors)

        # ---- output NormGate ---------------------------------------------------
        nrm_o = jnp.sqrt(t1[0] * t1[0] + t1[1] * t1[1] + t1[2] * t1[2])
        fo = jnp.concatenate([t0, nrm_o], axis=0)                # (16, C)
        ho = mm(wm_ref[_R_W1O:_R_W1O + 16, 0:16], fo) + bv_ref[_B_B1O:_B_B1O + 16, :]
        ho = ho * jax.nn.sigmoid(ho)
        go = mm(wm_ref[_R_W2O:_R_W2O + 16, 0:16], ho) + bv_ref[_B_B2O:_B_B2O + 16, :]
        g0 = go[0:8]
        gov = go[8:16]

        # ---- output o3.Linear fused with the inverse permutation --------------
        # out = act3^T @ (W3^T @ P) + bias_flat + old_fii
        act3 = jnp.concatenate([g0, t1[0] * gov, t1[1] * gov, t1[2] * gov], axis=0)
        M3 = wm_ref[_R_M3:_R_M3 + 32, 0:32]                      # (32, 32)
        out_flat = lax.dot_general(act3, M3, _TN_DIMS,
                                   preferred_element_type=f32)   # (C, 32)
        b3f = wm_ref[_R_B3F:_R_B3F + 1, 0:DIM_FLAT]              # (1, 32), flat layout
        fch = f_ref[pl.ds(off, CHUNK), :]                        # resnet with old_fii
        out_ref[pl.ds(off, CHUNK), :] = out_flat + b3f + fch
        return carry

    lax.fori_loop(0, n_chunks, chunk_body, 0, unroll=True)


# ------------------------------- wrapper ---------------------------------------
@functools.partial(jax.jit, static_argnames=("block_n",))
def selfnet_layer(x_flat, old_fii_flat, packed, *, block_n=BLOCK_N):
    wmats, bvecs = packed
    n = x_flat.shape[0]
    x_flat = x_flat.astype(jnp.float32)
    old_fii_flat = old_fii_flat.astype(jnp.float32)

    assert block_n % CHUNK == 0
    # keep at least two grid blocks when possible so both v7x TensorCores get work
    while block_n > CHUNK and n > CHUNK and pl.cdiv(n, block_n) < 2:
        block_n //= 2

    grid_n = pl.cdiv(n, block_n)   # no wrapper-side pad: tail-block writes are masked

    return pl.pallas_call(
        _selfnet_kernel,
        out_shape=jax.ShapeDtypeStruct((n, DIM_FLAT), jnp.float32),
        grid=(grid_n,),
        in_specs=[
            pl.BlockSpec((block_n, DIM_FLAT), lambda i: (i, 0)),    # x block
            pl.BlockSpec((block_n, DIM_FLAT), lambda i: (i, 0)),    # old_fii block
            pl.BlockSpec((_WM_ROWS, _WM_COLS), lambda i: (0, 0)),   # packed matrices (resident)
            pl.BlockSpec((_BV_ROWS, CHUNK), lambda i: (0, 0)),      # lane-dense biases / TP w
        ],
        out_specs=pl.BlockSpec((block_n, DIM_FLAT), lambda i: (i, 0)),
        compiler_params=pltpu.CompilerParams(
            dimension_semantics=("parallel",),
        ),
    )(x_flat, old_fii_flat, wmats, bvecs)


# ----------------------------- parameter packing --------------------------------
def pack_params(params, chunk=CHUNK):
    (ng1_w1, ng1_b1, ng1_w2, ng1_b2,
     ng2_w1, ng2_b1, ng2_w2, ng2_b2,
     ngo_w1, ngo_b1, ngo_w2, ngo_b2,
     l1_w0, l1_b0, l1_wv,
     l2_w0, l2_b0, l2_wv,
     l3_w0, l3_b0, l3_wv,
     tpw) = [jnp.asarray(p, jnp.float32) for p in params]

    s = INV_SQRT_MUL
    eye3 = jnp.eye(3, dtype=jnp.float32)
    P = jnp.asarray(_PMAT)

    def pad_cols(a, width=_WM_COLS):
        return jnp.pad(a, ((0, 0), (0, width - a.shape[1])))

    def blockdiag(*mats):
        rows = sum(m.shape[0] for m in mats)
        cols = sum(m.shape[1] for m in mats)
        out = jnp.zeros((rows, cols), jnp.float32)
        r = c = 0
        for m in mats:
            out = out.at[r:r + m.shape[0], c:c + m.shape[1]].set(m)
            r += m.shape[0]
            c += m.shape[1]
        return out

    w1pair = jnp.concatenate([ng1_w1.T, ng2_w1.T], axis=0)            # (32, 16)
    w2pair = blockdiag(ng1_w2.T, ng2_w2.T)                            # (32, 32)
    w12 = blockdiag(l1_w0.T * s, l2_w0.T * s,
                    jnp.kron(eye3, l1_wv.T) * s,
                    jnp.kron(eye3, l2_wv.T) * s)                      # (64, 64)
    w3 = blockdiag(l3_w0.T * s, jnp.kron(eye3, l3_wv.T) * s)          # (32, 32)
    m3 = w3.T @ P                                                     # fold inverse perm
    b3_flat = jnp.concatenate(
        [l3_b0.reshape(1, MUL), jnp.zeros((1, 3 * MUL), jnp.float32)], axis=1)  # (1, 32)
    b3f_rows = jnp.pad(b3_flat, ((0, 7), (0, 0)))                     # (8, 32)

    wmats = jnp.concatenate([
        pad_cols(P),          # _R_P
        pad_cols(w1pair),     # _R_W1PAIR
        pad_cols(w2pair),     # _R_W2PAIR
        pad_cols(ngo_w1.T),   # _R_W1O
        pad_cols(ngo_w2.T),   # _R_W2O
        w12,                  # _R_W12 (already width 64)
        pad_cols(m3),         # _R_M3
        pad_cols(b3f_rows),   # _R_B3F
    ], axis=0)
    assert wmats.shape == (_WM_ROWS, _WM_COLS)

    tp_scaled = tpw * jnp.asarray(TP_C, jnp.float32)[:, None]         # (5, 8)
    bcol = jnp.concatenate([
        ng1_b1.reshape(-1), ng2_b1.reshape(-1),                       # _B_B1PAIR
        ng1_b2.reshape(-1), ng2_b2.reshape(-1),                       # _B_B2PAIR
        l1_b0.reshape(-1), l2_b0.reshape(-1),                         # _B_B12
        ngo_b1.reshape(-1),                                           # _B_B1O
        ngo_b2.reshape(-1),                                           # _B_B2O
        tp_scaled.reshape(-1),                                        # _B_TP
    ]).reshape(-1, 1)
    assert bcol.shape[0] == _BV_ROWS
    bvecs = jnp.asarray(jnp.broadcast_to(bcol, (_BV_ROWS, chunk)))    # lane-dense, resident
    return wmats, bvecs


# ----------------------------- raw parameters -----------------------------------
def init_params(key):
    ks = jax.random.split(key, 7)

    def normgate_params(k):
        k1, k2, k3, k4 = jax.random.split(k, 4)
        d = 2 * MUL
        w1 = jax.random.normal(k1, (d, d), jnp.float32) / math.sqrt(d)
        b1 = jax.random.normal(k2, (1, d), jnp.float32) * 0.1
        w2 = jax.random.normal(k3, (d, d), jnp.float32) / math.sqrt(d)
        b2 = jax.random.normal(k4, (1, d), jnp.float32) * 0.1
        return [w1, b1, w2, b2]

    def linear_params(k):
        k1, k2, k3 = jax.random.split(k, 3)
        w0 = jax.random.normal(k1, (MUL, MUL), jnp.float32)
        b0 = jax.random.normal(k2, (1, MUL), jnp.float32) * 0.1
        wv = jax.random.normal(k3, (MUL, MUL), jnp.float32)
        return [w0, b0, wv]

    p = []
    p += normgate_params(ks[0])   # norm_gate_1
    p += normgate_params(ks[1])   # norm_gate_2
    p += normgate_params(ks[2])   # norm_gate (output)
    p += linear_params(ks[3])     # linear_node_1
    p += linear_params(ks[4])     # linear_node_2
    p += linear_params(ks[5])     # linear_node_3
    p += [jax.random.normal(ks[6], (5, MUL), jnp.float32)]  # uuu TP weights
    return tuple(p)


# ------------------------- pure-JAX reference ------------------------------------
def _split_flat(z):
    n = z.shape[0]
    s = z[:, :MUL]
    v = z[:, MUL:].reshape(n, MUL, 3).transpose(2, 0, 1)  # (3, N, MUL)
    return s, v


def reference_forward(x_flat, old_fii_flat, params):
    m = MUL
    x0, x1 = _split_flat(x_flat)
    f0, f1 = _split_flat(old_fii_flat)
    (ng1_w1, ng1_b1, ng1_w2, ng1_b2,
     ng2_w1, ng2_b1, ng2_w2, ng2_b2,
     ngo_w1, ngo_b1, ngo_w2, ngo_b2,
     l1_w0, l1_b0, l1_wv,
     l2_w0, l2_b0, l2_wv,
     l3_w0, l3_b0, l3_wv,
     tpw) = params

    def norm_gate(s, v, w1, b1, w2, b2):
        nrm = jnp.sqrt(v[0] ** 2 + v[1] ** 2 + v[2] ** 2)
        f = jnp.concatenate([s, nrm], axis=-1)
        h = jax.nn.silu(f @ w1 + b1)
        g = h @ w2 + b2
        return g[:, :m], tuple(vc * g[:, m:] for vc in v)

    def o3_linear(s, v, w0, b0, wv):
        return s @ w0 * INV_SQRT_MUL + b0, tuple(vc @ wv * INV_SQRT_MUL for vc in v)

    xl0, xl1 = norm_gate(x0, x1, ng1_w1, ng1_b1, ng1_w2, ng1_b2)
    xl0, xl1 = o3_linear(xl0, xl1, l1_w0, l1_b0, l1_wv)
    xr0, xr1 = norm_gate(x0, x1, ng2_w1, ng2_b1, ng2_w2, ng2_b2)
    xr0, xr1 = o3_linear(xr0, xr1, l2_w0, l2_b0, l2_wv)

    dot_lr = sum(xl1[c] * xr1[c] for c in range(3))
    t0 = TP_C[0] * tpw[0] * (xl0 * xr0) + TP_C[3] * tpw[3] * dot_lr
    cross = (xl1[1] * xr1[2] - xl1[2] * xr1[1],
             xl1[2] * xr1[0] - xl1[0] * xr1[2],
             xl1[0] * xr1[1] - xl1[1] * xr1[0])
    t1 = tuple(TP_C[1] * tpw[1] * (xl0 * xr1[c])
               + TP_C[2] * tpw[2] * (xl1[c] * xr0)
               + TP_C[4] * tpw[4] * cross[c] for c in range(3))
    t0 = t0 + x0
    t1 = tuple(t1[c] + x1[c] for c in range(3))
    g0, g1 = norm_gate(t0, t1, ngo_w1, ngo_b1, ngo_w2, ngo_b2)
    y0, y1 = o3_linear(g0, g1, l3_w0, l3_b0, l3_wv)
    out0 = y0 + f0
    out1 = jnp.stack([y1[c] + f1[c] for c in range(3)], axis=0)
    n = x_flat.shape[0]
    return jnp.concatenate([out0, out1.transpose(1, 2, 0).reshape(n, 3 * m)], axis=-1)


if __name__ == "__main__":
    key = jax.random.PRNGKey(0)
    kx, kf, kp = jax.random.split(key, 3)
    n_nodes = 2500                      # small demo; 3 grid blocks, masked tail block
    x = jax.random.normal(kx, (n_nodes, DIM_FLAT), jnp.float32)
    old_fii = jax.random.normal(kf, (n_nodes, DIM_FLAT), jnp.float32)
    params = init_params(kp)
    packed = pack_params(params)

    out = jax.block_until_ready(selfnet_layer(x, old_fii, packed))

    ref = reference_forward(x, old_fii, params)
    assert out.shape == (n_nodes, DIM_FLAT)
    np.testing.assert_allclose(np.asarray(out), np.asarray(ref), rtol=5e-3, atol=5e-3)
    print("KERNEL_OK")
</pallas_src>

<mosaic_0001>
module attributes {stable_mosaic.version = 11 : i64} {
  func.func @_selfnet_kernel(%arg0: i32, %arg1: memref<1024x32xf32, #tpu.memory_space<vmem>>, %arg2: memref<1024x32xf32, #tpu.memory_space<vmem>>, %arg3: memref<232x64xf32, #tpu.memory_space<vmem>>, %arg4: memref<152x256xf32, #tpu.memory_space<vmem>>, %arg5: memref<1024x32xf32, #tpu.memory_space<vmem>>) attributes {dimension_semantics = [#tpu.dimension_semantics<parallel>], iteration_bounds = array<i64: 3>, scalar_prefetch = 0 : i64, scratch_operands = 0 : i64, tpu.core_type = #tpu.core_type<tc>, window_params = [{transform_indices = @transform_0, window_bounds = array<i64: 1024, 32>}, {transform_indices = @transform_1, window_bounds = array<i64: 1024, 32>}, {pipeline_mode = #tpu.pipeline_mode<synchronous>, transform_indices = @transform_2, window_bounds = array<i64: 232, 64>}, {pipeline_mode = #tpu.pipeline_mode<synchronous>, transform_indices = @transform_3, window_bounds = array<i64: 152, 256>}, {transform_indices = @transform_4, window_bounds = array<i64: 1024, 32>}]} {
    %c0_i32 = arith.constant 0 : i32
    %c256_i32 = arith.constant 256 : i32
    %0 = arith.muli %c0_i32, %c256_i32 : i32
    %1 = tpu.assume_multiple %0, 256 : i32
    %2 = arith.index_cast %1 : i32 to index
    %c0 = arith.constant 0 : index
    %3 = vector.load %arg1[%2, %c0] : memref<1024x32xf32, #tpu.memory_space<vmem>>, vector<256x32xf32>
    %c0_0 = arith.constant 0 : index
    %c0_1 = arith.constant 0 : index
    %4 = vector.load %arg3[%c0_0, %c0_1] : memref<232x64xf32, #tpu.memory_space<vmem>>, vector<32x32xf32>
    %cst = arith.constant dense<0.000000e+00> : vector<32x256xf32>
    %5 = tpu.matmul %4, %3, %cst {dimension_numbers = #tpu.dot_dimension_numbers<[1], [1], [0], [0], [0, 0, 1, 0], [], []>} : vector<32x32xf32>, vector<256x32xf32>, vector<32x256xf32> -> vector<32x256xf32>
    %6 = vector.extract_strided_slice %5 {offsets = [0, 0], sizes = [8, 256], strides = [1, 1]} : vector<32x256xf32> to vector<8x256xf32>
    %7 = vector.extract_strided_slice %5 {offsets = [8, 0], sizes = [8, 256], strides = [1, 1]} : vector<32x256xf32> to vector<8x256xf32>
    %8 = vector.extract_strided_slice %5 {offsets = [16, 0], sizes = [8, 256], strides = [1, 1]} : vector<32x256xf32> to vector<8x256xf32>
    %9 = vector.extract_strided_slice %5 {offsets = [24, 0], sizes = [8, 256], strides = [1, 1]} : vector<32x256xf32> to vector<8x256xf32>
    %10 = arith.mulf %7, %7 : vector<8x256xf32>
    %11 = arith.mulf %8, %8 : vector<8x256xf32>
    %12 = arith.addf %10, %11 : vector<8x256xf32>
    %13 = arith.mulf %9, %9 : vector<8x256xf32>
    %14 = arith.addf %12, %13 : vector<8x256xf32>
    %15 = math.sqrt %14 : vector<8x256xf32>
    %16 = tpu.concatenate %6, %15 in 0 : vector<8x256xf32>, vector<8x256xf32> -> vector<16x256xf32>
    %c32 = arith.constant 32 : index
    %c0_2 = arith.constant 0 : index
    %17 = vector.load %arg3[%c32, %c0_2] : memref<232x64xf32, #tpu.memory_space<vmem>>, vector<32x16xf32>
    %cst_3 = arith.constant dense<0.000000e+00> : vector<32x256xf32>
    %18 = tpu.matmul %17, %16, %cst_3 {dimension_numbers = #tpu.dot_dimension_numbers<[1], [0], [0], [1], [0, 0, 1, 1], [], []>} : vector<32x16xf32>, vector<16x256xf32>, vector<32x256xf32> -> vector<32x256xf32>
    %c0_4 = arith.constant 0 : index
    %c0_5 = arith.constant 0 : index
    %19 = vector.load %arg4[%c0_4, %c0_5] : memref<152x256xf32, #tpu.memory_space<vmem>>, vector<32x256xf32>
    %20 = arith.addf %18, %19 : vector<32x256xf32>
    %21 = arith.negf %20 : vector<32x256xf32>
    %22 = math.exp %21 : vector<32x256xf32>
    %cst_6 = arith.constant 1.000000e+00 : f32
    %23 = vector.broadcast %cst_6 : f32 to vector<32x256xf32>
    %24 = arith.addf %23, %22 : vector<32x256xf32>
    %25 = arith.divf %23, %24 : vector<32x256xf32>
    %26 = arith.mulf %20, %25 : vector<32x256xf32>
    %c64 = arith.constant 64 : index
    %c0_7 = arith.constant 0 : index
    %27 = vector.load %arg3[%c64, %c0_7] : memref<232x64xf32, #tpu.memory_space<vmem>>, vector<32x32xf32>
    %cst_8 = arith.constant dense<0.000000e+00> : vector<32x256xf32>
    %28 = tpu.matmul %27, %26, %cst_8 {dimension_numbers = #tpu.dot_dimension_numbers<[1], [0], [0], [1], [0, 0, 1, 1], [], []>} : vector<32x32xf32>, vector<32x256xf32>, vector<32x256xf32> -> vector<32x256xf32>
    %c32_9 = arith.constant 32 : index
    %c0_10 = arith.constant 0 : index
    %29 = vector.load %arg4[%c32_9, %c0_10] : memref<152x256xf32, #tpu.memory_space<vmem>>, vector<32x256xf32>
    %30 = arith.addf %28, %29 : vector<32x256xf32>
    %31 = vector.extract_strided_slice %30 {offsets = [8, 0], sizes = [8, 256], strides = [1, 1]} : vector<32x256xf32> to vector<8x256xf32>
    %32 = vector.extract_strided_slice %30 {offsets = [24, 0], sizes = [8, 256], strides = [1, 1]} : vector<32x256xf32> to vector<8x256xf32>
    %33 = vector.extract_strided_slice %30 {offsets = [0, 0], sizes = [8, 256], strides = [1, 1]} : vector<32x256xf32> to vector<8x256xf32>
    %34 = vector.extract_strided_slice %30 {offsets = [16, 0], sizes = [8, 256], strides = [1, 1]} : vector<32x256xf32> to vector<8x256xf32>
    %35 = arith.mulf %7, %31 : vector<8x256xf32>
    %36 = arith.mulf %8, %31 : vector<8x256xf32>
    %37 = arith.mulf %9, %31 : vector<8x256xf32>
    %38 = arith.mulf %7, %32 : vector<8x256xf32>
    %39 = arith.mulf %8, %32 : vector<8x256xf32>
    %40 = arith.mulf %9, %32 : vector<8x256xf32>
    %41 = tpu.concatenate %33, %34, %35, %36, %37, %38, %39, %40 in 0 : vector<8x256xf32>, vector<8x256xf32>, vector<8x256xf32>, vector<8x256xf32>, vector<8x256xf32>, vector<8x256xf32>, vector<8x256xf32>, vector<8x256xf32> -> vector<64x256xf32>
    %c128 = arith.constant 128 : index
    %c0_11 = arith.constant 0 : index
    %42 = vector.load %arg3[%c128, %c0_11] : memref<232x64xf32, #tpu.memory_space<vmem>>, vector<64x64xf32>
    %cst_12 = arith.constant dense<0.000000e+00> : vector<64x256xf32>
    %43 = tpu.matmul %42, %41, %cst_12 {dimension_numbers = #tpu.dot_dimension_numbers<[1], [0], [0], [1], [0, 0, 1, 1], [], []>} : vector<64x64xf32>, vector<64x256xf32>, vector<64x256xf32> -> vector<64x256xf32>
    %44 = vector.extract_strided_slice %43 {offsets = [0, 0], sizes = [16, 256], strides = [1, 1]} : vector<64x256xf32> to vector<16x256xf32>
    %c64_13 = arith.constant 64 : index
    %c0_14 = arith.constant 0 : index
    %45 = vector.load %arg4[%c64_13, %c0_14] : memref<152x256xf32, #tpu.memory_space<vmem>>, vector<16x256xf32>
    %46 = arith.addf %44, %45 : vector<16x256xf32>
    %47 = vector.extract_strided_slice %46 {offsets = [0, 0], sizes = [8, 256], strides = [1, 1]} : vector<16x256xf32> to vector<8x256xf32>
    %48 = vector.extract_strided_slice %46 {offsets = [8, 0], sizes = [8, 256], strides = [1, 1]} : vector<16x256xf32> to vector<8x256xf32>
    %49 = vector.extract_strided_slice %43 {offsets = [16, 0], sizes = [8, 256], strides = [1, 1]} : vector<64x256xf32> to vector<8x256xf32>
    %50 = vector.extract_strided_slice %43 {offsets = [24, 0], sizes = [8, 256], strides = [1, 1]} : vector<64x256xf32> to vector<8x256xf32>
    %51 = vector.extract_strided_slice %43 {offsets = [32, 0], sizes = [8, 256], strides = [1, 1]} : vector<64x256xf32> to vector<8x256xf32>
    %52 = vector.extract_strided_slice %43 {offsets = [40, 0], sizes = [8, 256], strides = [1, 1]} : vector<64x256xf32> to vector<8x256xf32>
    %53 = vector.extract_strided_slice %43 {offsets = [48, 0], sizes = [8, 256], strides = [1, 1]} : vector<64x256xf32> to vector<8x256xf32>
    %54 = vector.extract_strided_slice %43 {offsets = [56, 0], sizes = [8, 256], strides = [1, 1]} : vector<64x256xf32> to vector<8x256xf32>
    %c112 = arith.constant 112 : index
    %c0_15 = arith.constant 0 : index
    %55 = vector.load %arg4[%c112, %c0_15] : memref<152x256xf32, #tpu.memory_space<vmem>>, vector<8x256xf32>
    %c120 = arith.constant 120 : index
    %c0_16 = arith.constant 0 : index
    %56 = vector.load %arg4[%c120, %c0_16] : memref<152x256xf32, #tpu.memory_space<vmem>>, vector<8x256xf32>
    %c128_17 = arith.constant 128 : index
    %c0_18 = arith.constant 0 : index
    %57 = vector.load %arg4[%c128_17, %c0_18] : memref<152x256xf32, #tpu.memory_space<vmem>>, vector<8x256xf32>
    %c136 = arith.constant 136 : index
    %c0_19 = arith.constant 0 : index
    %58 = vector.load %arg4[%c136, %c0_19] : memref<152x256xf32, #tpu.memory_space<vmem>>, vector<8x256xf32>
    %c144 = arith.constant 144 : index
    %c0_20 = arith.constant 0 : index
    %59 = vector.load %arg4[%c144, %c0_20] : memref<152x256xf32, #tpu.memory_space<vmem>>, vector<8x256xf32>
    %60 = arith.mulf %49, %52 : vector<8x256xf32>
    %61 = arith.mulf %50, %53 : vector<8x256xf32>
    %62 = arith.addf %60, %61 : vector<8x256xf32>
    %63 = arith.mulf %51, %54 : vector<8x256xf32>
    %64 = arith.addf %62, %63 : vector<8x256xf32>
    %65 = arith.mulf %47, %48 : vector<8x256xf32>
    %66 = arith.mulf %55, %65 : vector<8x256xf32>
    %67 = arith.mulf %58, %64 : vector<8x256xf32>
    %68 = arith.addf %66, %67 : vector<8x256xf32>
    %69 = arith.addf %68, %6 : vector<8x256xf32>
    %70 = arith.mulf %50, %54 : vector<8x256xf32>
    %71 = arith.mulf %51, %53 : vector<8x256xf32>
    %72 = arith.subf %70, %71 : vector<8x256xf32>
    %73 = arith.mulf %51, %52 : vector<8x256xf32>
    %74 = arith.mulf %49, %54 : vector<8x256xf32>
    %75 = arith.subf %73, %74 : vector<8x256xf32>
    %76 = arith.mulf %49, %53 : vector<8x256xf32>
    %77 = arith.mulf %50, %52 : vector<8x256xf32>
    %78 = arith.subf %76, %77 : vector<8x256xf32>
    %79 = arith.mulf %47, %52 : vector<8x256xf32>
    %80 = arith.mulf %56, %79 : vector<8x256xf32>
    %81 = arith.mulf %49, %48 : vector<8x256xf32>
    %82 = arith.mulf %57, %81 : vector<8x256xf32>
    %83 = arith.addf %80, %82 : vector<8x256xf32>
    %84 = arith.mulf %59, %72 : vector<8x256xf32>
    %85 = arith.addf %83, %84 : vector<8x256xf32>
    %86 = arith.addf %85, %7 : vector<8x256xf32>
    %87 = arith.mulf %47, %53 : vector<8x256xf32>
    %88 = arith.mulf %56, %87 : vector<8x256xf32>
    %89 = arith.mulf %50, %48 : vector<8x256xf32>
    %90 = arith.mulf %57, %89 : vector<8x256xf32>
    %91 = arith.addf %88, %90 : vector<8x256xf32>
    %92 = arith.mulf %59, %75 : vector<8x256xf32>
    %93 = arith.addf %91, %92 : vector<8x256xf32>
    %94 = arith.addf %93, %8 : vector<8x256xf32>
    %95 = arith.mulf %47, %54 : vector<8x256xf32>
    %96 = arith.mulf %56, %95 : vector<8x256xf32>
    %97 = arith.mulf %51, %48 : vector<8x256xf32>
    %98 = arith.mulf %57, %97 : vector<8x256xf32>
    %99 = arith.addf %96, %98 : vector<8x256xf32>
    %100 = arith.mulf %59, %78 : vector<8x256xf32>
    %101 = arith.addf %99, %100 : vector<8x256xf32>
    %102 = arith.addf %101, %9 : vector<8x256xf32>
    %103 = arith.mulf %86, %86 : vector<8x256xf32>
    %104 = arith.mulf %94, %94 : vector<8x256xf32>
    %105 = arith.addf %103, %104 : vector<8x256xf32>
    %106 = arith.mulf %102, %102 : vector<8x256xf32>
    %107 = arith.addf %105, %106 : vector<8x256xf32>
    %108 = math.sqrt %107 : vector<8x256xf32>
    %109 = tpu.concatenate %69, %108 in 0 : vector<8x256xf32>, vector<8x256xf32> -> vector<16x256xf32>
    %c96 = arith.constant 96 : index
    %c0_21 = arith.constant 0 : index
    %110 = vector.load %arg3[%c96, %c0_21] : memref<232x64xf32, #tpu.memory_space<vmem>>, vector<16x16xf32>
    %cst_22 = arith.constant dense<0.000000e+00> : vector<16x256xf32>
    %111 = tpu.matmul %110, %109, %cst_22 {dimension_numbers = #tpu.dot_dimension_numbers<[1], [0], [0], [1], [0, 0, 1, 1], [], []>} : vector<16x16xf32>, vector<16x256xf32>, vector<16x256xf32> -> vector<16x256xf32>
    %c80 = arith.constant 80 : index
    %c0_23 = arith.constant 0 : index
    %112 = vector.load %arg4[%c80, %c0_23] : memref<152x256xf32, #tpu.memory_space<vmem>>, vector<16x256xf32>
    %113 = arith.addf %111, %112 : vector<16x256xf32>
    %114 = arith.negf %113 : vector<16x256xf32>
    %115 = math.exp %114 : vector<16x256xf32>
    %cst_24 = arith.constant 1.000000e+00 : f32
    %116 = vector.broadcast %cst_24 : f32 to vector<16x256xf32>
    %117 = arith.addf %116, %115 : vector<16x256xf32>
    %118 = arith.divf %116, %117 : vector<16x256xf32>
    %119 = arith.mulf %113, %118 : vector<16x256xf32>
    %c112_25 = arith.constant 112 : index
    %c0_26 = arith.constant 0 : index
    %120 = vector.load %arg3[%c112_25, %c0_26] : memref<232x64xf32, #tpu.memory_space<vmem>>, vector<16x16xf32>
    %cst_27 = arith.constant dense<0.000000e+00> : vector<16x256xf32>
    %121 = tpu.matmul %120, %119, %cst_27 {dimension_numbers = #tpu.dot_dimension_numbers<[1], [0], [0], [1], [0, 0, 1, 1], [], []>} : vector<16x16xf32>, vector<16x256xf32>, vector<16x256xf32> -> vector<16x256xf32>
    %c96_28 = arith.constant 96 : index
    %c0_29 = arith.constant 0 : index
    %122 = vector.load %arg4[%c96_28, %c0_29] : memref<152x256xf32, #tpu.memory_space<vmem>>, vector<16x256xf32>
    %123 = arith.addf %121, %122 : vector<16x256xf32>
    %124 = vector.extract_strided_slice %123 {offsets = [0, 0], sizes = [8, 256], strides = [1, 1]} : vector<16x256xf32> to vector<8x256xf32>
    %125 = vector.extract_strided_slice %123 {offsets = [8, 0], sizes = [8, 256], strides = [1, 1]} : vector<16x256xf32> to vector<8x256xf32>
    %126 = arith.mulf %86, %125 : vector<8x256xf32>
    %127 = arith.mulf %94, %125 : vector<8x256xf32>
    %128 = arith.mulf %102, %125 : vector<8x256xf32>
    %129 = tpu.concatenate %124, %126, %127, %128 in 0 : vector<8x256xf32>, vector<8x256xf32>, vector<8x256xf32>, vector<8x256xf32> -> vector<32x256xf32>
    %c192 = arith.constant 192 : index
    %c0_30 = arith.constant 0 : index
    %130 = vector.load %arg3[%c192, %c0_30] : memref<232x64xf32, #tpu.memory_space<vmem>>, vector<32x32xf32>
    %cst_31 = arith.constant dense<0.000000e+00> : vector<256x32xf32>
    %131 = tpu.matmul %129, %130, %cst_31 {dimension_numbers = #tpu.dot_dimension_numbers<[0], [0], [1], [1], [0, 1, 1, 1], [], []>} : vector<32x256xf32>, vector<32x32xf32>, vector<256x32xf32> -> vector<256x32xf32>
    %c224 = arith.constant 224 : index
    %c0_32 = arith.constant 0 : index
    %132 = vector.load %arg3[%c224, %c0_32] : memref<232x64xf32, #tpu.memory_space<vmem>>, vector<1x32xf32>
    %133 = arith.index_cast %1 : i32 to index
    %c0_33 = arith.constant 0 : index
    %134 = vector.load %arg2[%133, %c0_33] : memref<1024x32xf32, #tpu.memory_space<vmem>>, vector<256x32xf32>
    %135 = vector.broadcast %132 : vector<1x32xf32> to vector<256x32xf32>
    %136 = arith.addf %131, %135 : vector<256x32xf32>
    %137 = arith.addf %136, %134 : vector<256x32xf32>
    %138 = arith.index_cast %1 : i32 to index
    %c0_34 = arith.constant 0 : index
    %139 = vector.load %arg5[%138, %c0_34] : memref<1024x32xf32, #tpu.memory_space<vmem>>, vector<256x32xf32>
    tpu.vector_store %arg5[%138, %c0_34], %137 {strides = array<i32>} : memref<1024x32xf32, #tpu.memory_space<vmem>>, vector<256x32xf32>,
    %c1_i32 = arith.constant 1 : i32
    %c256_i32_35 = arith.constant 256 : i32
    %140 = arith.muli %c1_i32, %c256_i32_35 : i32
    %141 = tpu.assume_multiple %140, 256 : i32
    %142 = arith.index_cast %141 : i32 to index
    %c0_36 = arith.constant 0 : index
    %143 = vector.load %arg1[%142, %c0_36] : memref<1024x32xf32, #tpu.memory_space<vmem>>, vector<256x32xf32>
    %c0_37 = arith.constant 0 : index
    %c0_38 = arith.constant 0 : index
    %144 = vector.load %arg3[%c0_37, %c0_38] : memref<232x64xf32, #tpu.memory_space<vmem>>, vector<32x32xf32>
    %cst_39 = arith.constant dense<0.000000e+00> : vector<32x256xf32>
    %145 = tpu.matmul %144, %143, %cst_39 {dimension_numbers = #tpu.dot_dimension_numbers<[1], [1], [0], [0], [0, 0, 1, 0], [], []>} : vector<32x32xf32>, vector<256x32xf32>, vector<32x256xf32> -> vector<32x256xf32>
    %146 = vector.extract_strided_slice %145 {offsets = [0, 0], sizes = [8, 256], strides = [1, 1]} : vector<32x256xf32> to vector<8x256xf32>
    %147 = vector.extract_strided_slice %145 {offsets = [8, 0], sizes = [8, 256], strides = [1, 1]} : vector<32x256xf32> to vector<8x256xf32>
    %148 = vector.extract_strided_slice %145 {offsets = [16, 0], sizes = [8, 256], strides = [1, 1]} : vector<32x256xf32> to vector<8x256xf32>
    %149 = vector.extract_strided_slice %145 {offsets = [24, 0], sizes = [8, 256], strides = [1, 1]} : vector<32x256xf32> to vector<8x256xf32>
    %150 = arith.mulf %147, %147 : vector<8x256xf32>
    %151 = arith.mulf %148, %148 : vector<8x256xf32>
    %152 = arith.addf %150, %151 : vector<8x256xf32>
    %153 = arith.mulf %149, %149 : vector<8x256xf32>
    %154 = arith.addf %152, %153 : vector<8x256xf32>
    %155 = math.sqrt %154 : vector<8x256xf32>
    %156 = tpu.concatenate %146, %155 in 0 : vector<8x256xf32>, vector<8x256xf32> -> vector<16x256xf32>
    %c32_40 = arith.constant 32 : index
    %c0_41 = arith.constant 0 : index
    %157 = vector.load %arg3[%c32_40, %c0_41] : memref<232x64xf32, #tpu.memory_space<vmem>>, vector<32x16xf32>
    %cst_42 = arith.constant dense<0.000000e+00> : vector<32x256xf32>
    %158 = tpu.matmul %157, %156, %cst_42 {dimension_numbers = #tpu.dot_dimension_numbers<[1], [0], [0], [1], [0, 0, 1, 1], [], []>} : vector<32x16xf32>, vector<16x256xf32>, vector<32x256xf32> -> vector<32x256xf32>
    %c0_43 = arith.constant 0 : index
    %c0_44 = arith.constant 0 : index
    %159 = vector.load %arg4[%c0_43, %c0_44] : memref<152x256xf32, #tpu.memory_space<vmem>>, vector<32x256xf32>
    %160 = arith.addf %158, %159 : vector<32x256xf32>
    %161 = arith.negf %160 : vector<32x256xf32>
    %162 = math.exp %161 : vector<32x256xf32>
    %cst_45 = arith.constant 1.000000e+00 : f32
    %163 = vector.broadcast %cst_45 : f32 to vector<32x256xf32>
    %164 = arith.addf %163, %162 : vector<32x256xf32>
    %165 = arith.divf %163, %164 : vector<32x256xf32>
    %166 = arith.mulf %160, %165 : vector<32x256xf32>
    %c64_46 = arith.constant 64 : index
    %c0_47 = arith.constant 0 : index
    %167 = vector.load %arg3[%c64_46, %c0_47] : memref<232x64xf32, #tpu.memory_space<vmem>>, vector<32x32xf32>
    %cst_48 = arith.constant dense<0.000000e+00> : vector<32x256xf32>
    %168 = tpu.matmul %167, %166, %cst_48 {dimension_numbers = #tpu.dot_dimension_numbers<[1], [0], [0], [1], [0, 0, 1, 1], [], []>} : vector<32x32xf32>, vector<32x256xf32>, vector<32x256xf32> -> vector<32x256xf32>
    %c32_49 = arith.constant 32 : index
    %c0_50 = arith.constant 0 : index
    %169 = vector.load %arg4[%c32_49, %c0_50] : memref<152x256xf32, #tpu.memory_space<vmem>>, vector<32x256xf32>
    %170 = arith.addf %168, %169 : vector<32x256xf32>
    %171 = vector.extract_strided_slice %170 {offsets = [8, 0], sizes = [8, 256], strides = [1, 1]} : vector<32x256xf32> to vector<8x256xf32>
    %172 = vector.extract_strided_slice %170 {offsets = [24, 0], sizes = [8, 256], strides = [1, 1]} : vector<32x256xf32> to vector<8x256xf32>
    %173 = vector.extract_strided_slice %170 {offsets = [0, 0], sizes = [8, 256], strides = [1, 1]} : vector<32x256xf32> to vector<8x256xf32>
    %174 = vector.extract_strided_slice %170 {offsets = [16, 0], sizes = [8, 256], strides = [1, 1]} : vector<32x256xf32> to vector<8x256xf32>
    %175 = arith.mulf %147, %171 : vector<8x256xf32>
    %176 = arith.mulf %148, %171 : vector<8x256xf32>
    %177 = arith.mulf %149, %171 : vector<8x256xf32>
    %178 = arith.mulf %147, %172 : vector<8x256xf32>
    %179 = arith.mulf %148, %172 : vector<8x256xf32>
    %180 = arith.mulf %149, %172 : vector<8x256xf32>
    %181 = tpu.concatenate %173, %174, %175, %176, %177, %178, %179, %180 in 0 : vector<8x256xf32>, vector<8x256xf32>, vector<8x256xf32>, vector<8x256xf32>, vector<8x256xf32>, vector<8x256xf32>, vector<8x256xf32>, vector<8x256xf32> -> vector<64x256xf32>
    %c128_51 = arith.constant 128 : index
    %c0_52 = arith.constant 0 : index
    %182 = vector.load %arg3[%c128_51, %c0_52] : memref<232x64xf32, #tpu.memory_space<vmem>>, vector<64x64xf32>
    %cst_53 = arith.constant dense<0.000000e+00> : vector<64x256xf32>
    %183 = tpu.matmul %182, %181, %cst_53 {dimension_numbers = #tpu.dot_dimension_numbers<[1], [0], [0], [1], [0, 0, 1, 1], [], []>} : vector<64x64xf32>, vector<64x256xf32>, vector<64x256xf32> -> vector<64x256xf32>
    %184 = vector.extract_strided_slice %183 {offsets = [0, 0], sizes = [16, 256], strides = [1, 1]} : vector<64x256xf32> to vector<16x256xf32>
    %c64_54 = arith.constant 64 : index
    %c0_55 = arith.constant 0 : index
    %185 = vector.load %arg4[%c64_54, %c0_55] : memref<152x256xf32, #tpu.memory_space<vmem>>, vector<16x256xf32>
    %186 = arith.addf %184, %185 : vector<16x256xf32>
    %187 = vector.extract_strided_slice %186 {offsets = [0, 0], sizes = [8, 256], strides = [1, 1]} : vector<16x256xf32> to vector<8x256xf32>
    %188 = vector.extract_strided_slice %186 {offsets = [8, 0], sizes = [8, 256], strides = [1, 1]} : vector<16x256xf32> to vector<8x256xf32>
    %189 = vector.extract_strided_slice %183 {offsets = [16, 0], sizes = [8, 256], strides = [1, 1]} : vector<64x256xf32> to vector<8x256xf32>
    %190 = vector.extract_strided_slice %183 {offsets = [24, 0], sizes = [8, 256], strides = [1, 1]} : vector<64x256xf32> to vector<8x256xf32>
    %191 = vector.extract_strided_slice %183 {offsets = [32, 0], sizes = [8, 256], strides = [1, 1]} : vector<64x256xf32> to vector<8x256xf32>
    %192 = vector.extract_strided_slice %183 {offsets = [40, 0], sizes = [8, 256], strides = [1, 1]} : vector<64x256xf32> to vector<8x256xf32>
    %193 = vector.extract_strided_slice %183 {offsets = [48, 0], sizes = [8, 256], strides = [1, 1]} : vector<64x256xf32> to vector<8x256xf32>
    %194 = vector.extract_strided_slice %183 {offsets = [56, 0], sizes = [8, 256], strides = [1, 1]} : vector<64x256xf32> to vector<8x256xf32>
    %c112_56 = arith.constant 112 : index
    %c0_57 = arith.constant 0 : index
    %195 = vector.load %arg4[%c112_56, %c0_57] : memref<152x256xf32, #tpu.memory_space<vmem>>, vector<8x256xf32>
    %c120_58 = arith.constant 120 : index
    %c0_59 = arith.constant 0 : index
    %196 = vector.load %arg4[%c120_58, %c0_59] : memref<152x256xf32, #tpu.memory_space<vmem>>, vector<8x256xf32>
    %c128_60 = arith.constant 128 : index
    %c0_61 = arith.constant 0 : index
    %197 = vector.load %arg4[%c128_60, %c0_61] : memref<152x256xf32, #tpu.memory_space<vmem>>, vector<8x256xf32>
    %c136_62 = arith.constant 136 : index
    %c0_63 = arith.constant 0 : index
    %198 = vector.load %arg4[%c136_62, %c0_63] : memref<152x256xf32, #tpu.memory_space<vmem>>, vector<8x256xf32>
    %c144_64 = arith.constant 144 : index
    %c0_65 = arith.constant 0 : index
    %199 = vector.load %arg4[%c144_64, %c0_65] : memref<152x256xf32, #tpu.memory_space<vmem>>, vector<8x256xf32>
    %200 = arith.mulf %189, %192 : vector<8x256xf32>
    %201 = arith.mulf %190, %193 : vector<8x256xf32>
    %202 = arith.addf %200, %201 : vector<8x256xf32>
    %203 = arith.mulf %191, %194 : vector<8x256xf32>
    %204 = arith.addf %202, %203 : vector<8x256xf32>
    %205 = arith.mulf %187, %188 : vector<8x256xf32>
    %206 = arith.mulf %195, %205 : vector<8x256xf32>
    %207 = arith.mulf %198, %204 : vector<8x256xf32>
    %208 = arith.addf %206, %207 : vector<8x256xf32>
    %209 = arith.addf %208, %146 : vector<8x256xf32>
    %210 = arith.mulf %190, %194 : vector<8x256xf32>
    %211 = arith.mulf %191, %193 : vector<8x256xf32>
    %212 = arith.subf %210, %211 : vector<8x256xf32>
    %213 = arith.mulf %191, %192 : vector<8x256xf32>
    %214 = arith.mulf %189, %194 : vector<8x256xf32>
    %215 = arith.subf %213, %214 : vector<8x256xf32>
    %216 = arith.mulf %189, %193 : vector<8x256xf32>
    %217 = arith.mulf %190, %192 : vector<8x256xf32>
    %218 = arith.subf %216, %217 : vector<8x256xf32>
    %219 = arith.mulf %187, %192 : vector<8x256xf32>
    %220 = arith.mulf %196, %219 : vector<8x256xf32>
    %221 = arith.mulf %189, %188 : vector<8x256xf32>
    %222 = arith.mulf %197, %221 : vector<8x256xf32>
    %223 = arith.addf %220, %222 : vector<8x256xf32>
    %224 = arith.mulf %199, %212 : vector<8x256xf32>
    %225 = arith.addf %223, %224 : vector<8x256xf32>
    %226 = arith.addf %225, %147 : vector<8x256xf32>
    %227 = arith.mulf %187, %193 : vector<8x256xf32>
    %228 = arith.mulf %196, %227 : vector<8x256xf32>
    %229 = arith.mulf %190, %188 : vector<8x256xf32>
    %230 = arith.mulf %197, %229 : vector<8x256xf32>
    %231 = arith.addf %228, %230 : vector<8x256xf32>
    %232 = arith.mulf %199, %215 : vector<8x256xf32>
    %233 = arith.addf %231, %232 : vector<8x256xf32>
    %234 = arith.addf %233, %148 : vector<8x256xf32>
    %235 = arith.mulf %187, %194 : vector<8x256xf32>
    %236 = arith.mulf %196, %235 : vector<8x256xf32>
    %237 = arith.mulf %191, %188 : vector<8x256xf32>
    %238 = arith.mulf %197, %237 : vector<8x256xf32>
    %239 = arith.addf %236, %238 : vector<8x256xf32>
    %240 = arith.mulf %199, %218 : vector<8x256xf32>
    %241 = arith.addf %239, %240 : vector<8x256xf32>
    %242 = arith.addf %241, %149 : vector<8x256xf32>
    %243 = arith.mulf %226, %226 : vector<8x256xf32>
    %244 = arith.mulf %234, %234 : vector<8x256xf32>
    %245 = arith.addf %243, %244 : vector<8x256xf32>
    %246 = arith.mulf %242, %242 : vector<8x256xf32>
    %247 = arith.addf %245, %246 : vector<8x256xf32>
    %248 = math.sqrt %247 : vector<8x256xf32>
    %249 = tpu.concatenate %209, %248 in 0 : vector<8x256xf32>, vector<8x256xf32> -> vector<16x256xf32>
    %c96_66 = arith.constant 96 : index
    %c0_67 = arith.constant 0 : index
    %250 = vector.load %arg3[%c96_66, %c0_67] : memref<232x64xf32, #tpu.memory_space<vmem>>, vector<16x16xf32>
    %cst_68 = arith.constant dense<0.000000e+00> : vector<16x256xf32>
    %251 = tpu.matmul %250, %249, %cst_68 {dimension_numbers = #tpu.dot_dimension_numbers<[1], [0], [0], [1], [0, 0, 1, 1], [], []>} : vector<16x16xf32>, vector<16x256xf32>, vector<16x256xf32> -> vector<16x256xf32>
    %c80_69 = arith.constant 80 : index
    %c0_70 = arith.constant 0 : index
    %252 = vector.load %arg4[%c80_69, %c0_70] : memref<152x256xf32, #tpu.memory_space<vmem>>, vector<16x256xf32>
    %253 = arith.addf %251, %252 : vector<16x256xf32>
    %254 = arith.negf %253 : vector<16x256xf32>
    %255 = math.exp %254 : vector<16x256xf32>
    %cst_71 = arith.constant 1.000000e+00 : f32
    %256 = vector.broadcast %cst_71 : f32 to vector<16x256xf32>
    %257 = arith.addf %256, %255 : vector<16x256xf32>
    %258 = arith.divf %256, %257 : vector<16x256xf32>
    %259 = arith.mulf %253, %258 : vector<16x256xf32>
    %c112_72 = arith.constant 112 : index
    %c0_73 = arith.constant 0 : index
    %260 = vector.load %arg3[%c112_72, %c0_73] : memref<232x64xf32, #tpu.memory_space<vmem>>, vector<16x16xf32>
    %cst_74 = arith.constant dense<0.000000e+00> : vector<16x256xf32>
    %261 = tpu.matmul %260, %259, %cst_74 {dimension_numbers = #tpu.dot_dimension_numbers<[1], [0], [0], [1], [0, 0, 1, 1], [], []>} : vector<16x16xf32>, vector<16x256xf32>, vector<16x256xf32> -> vector<16x256xf32>
    %c96_75 = arith.constant 96 : index
    %c0_76 = arith.constant 0 : index
    %262 = vector.load %arg4[%c96_75, %c0_76] : memref<152x256xf32, #tpu.memory_space<vmem>>, vector<16x256xf32>
    %263 = arith.addf %261, %262 : vector<16x256xf32>
    %264 = vector.extract_strided_slice %263 {offsets = [0, 0], sizes = [8, 256], strides = [1, 1]} : vector<16x256xf32> to vector<8x256xf32>
    %265 = vector.extract_strided_slice %263 {offsets = [8, 0], sizes = [8, 256], strides = [1, 1]} : vector<16x256xf32> to vector<8x256xf32>
    %266 = arith.mulf %226, %265 : vector<8x256xf32>
    %267 = arith.mulf %234, %265 : vector<8x256xf32>
    %268 = arith.mulf %242, %265 : vector<8x256xf32>
    %269 = tpu.concatenate %264, %266, %267, %268 in 0 : vector<8x256xf32>, vector<8x256xf32>, vector<8x256xf32>, vector<8x256xf32> -> vector<32x256xf32>
    %c192_77 = arith.constant 192 : index
    %c0_78 = arith.constant 0 : index
    %270 = vector.load %arg3[%c192_77, %c0_78] : memref<232x64xf32, #tpu.memory_space<vmem>>, vector<32x32xf32>
    %cst_79 = arith.constant dense<0.000000e+00> : vector<256x32xf32>
    %271 = tpu.matmul %269, %270, %cst_79 {dimension_numbers = #tpu.dot_dimension_numbers<[0], [0], [1], [1], [0, 1, 1, 1], [], []>} : vector<32x256xf32>, vector<32x32xf32>, vector<256x32xf32> -> vector<256x32xf32>
    %c224_80 = arith.constant 224 : index
    %c0_81 = arith.constant 0 : index
    %272 = vector.load %arg3[%c224_80, %c0_81] : memref<232x64xf32, #tpu.memory_space<vmem>>, vector<1x32xf32>
    %273 = arith.index_cast %141 : i32 to index
    %c0_82 = arith.constant 0 : index
    %274 = vector.load %arg2[%273, %c0_82] : memref<1024x32xf32, #tpu.memory_space<vmem>>, vector<256x32xf32>
    %275 = vector.broadcast %272 : vector<1x32xf32> to vector<256x32xf32>
    %276 = arith.addf %271, %275 : vector<256x32xf32>
    %277 = arith.addf %276, %274 : vector<256x32xf32>
    %278 = arith.index_cast %141 : i32 to index
    %c0_83 = arith.constant 0 : index
    %279 = vector.load %arg5[%278, %c0_83] : memref<1024x32xf32, #tpu.memory_space<vmem>>, vector<256x32xf32>
    tpu.vector_store %arg5[%278, %c0_83], %277 {strides = array<i32>} : memref<1024x32xf32, #tpu.memory_space<vmem>>, vector<256x32xf32>,
    %c2_i32 = arith.constant 2 : i32
    %c256_i32_84 = arith.constant 256 : i32
    %280 = arith.muli %c2_i32, %c256_i32_84 : i32
    %281 = tpu.assume_multiple %280, 256 : i32
    %282 = arith.index_cast %281 : i32 to index
    %c0_85 = arith.constant 0 : index
    %283 = vector.load %arg1[%282, %c0_85] : memref<1024x32xf32, #tpu.memory_space<vmem>>, vector<256x32xf32>
    %c0_86 = arith.constant 0 : index
    %c0_87 = arith.constant 0 : index
    %284 = vector.load %arg3[%c0_86, %c0_87] : memref<232x64xf32, #tpu.memory_space<vmem>>, vector<32x32xf32>
    %cst_88 = arith.constant dense<0.000000e+00> : vector<32x256xf32>
    %285 = tpu.matmul %284, %283, %cst_88 {dimension_numbers = #tpu.dot_dimension_numbers<[1], [1], [0], [0], [0, 0, 1, 0], [], []>} : vector<32x32xf32>, vector<256x32xf32>, vector<32x256xf32> -> vector<32x256xf32>
    %286 = vector.extract_strided_slice %285 {offsets = [0, 0], sizes = [8, 256], strides = [1, 1]} : vector<32x256xf32> to vector<8x256xf32>
    %287 = vector.extract_strided_slice %285 {offsets = [8, 0], sizes = [8, 256], strides = [1, 1]} : vector<32x256xf32> to vector<8x256xf32>
    %288 = vector.extract_strided_slice %285 {offsets = [16, 0], sizes = [8, 256], strides = [1, 1]} : vector<32x256xf32> to vector<8x256xf32>
    %289 = vector.extract_strided_slice %285 {offsets = [24, 0], sizes = [8, 256], strides = [1, 1]} : vector<32x256xf32> to vector<8x256xf32>
    %290 = arith.mulf %287, %287 : vector<8x256xf32>
    %291 = arith.mulf %288, %288 : vector<8x256xf32>
    %292 = arith.addf %290, %291 : vector<8x256xf32>
    %293 = arith.mulf %289, %289 : vector<8x256xf32>
    %294 = arith.addf %292, %293 : vector<8x256xf32>
    %295 = math.sqrt %294 : vector<8x256xf32>
    %296 = tpu.concatenate %286, %295 in 0 : vector<8x256xf32>, vector<8x256xf32> -> vector<16x256xf32>
    %c32_89 = arith.constant 32 : index
    %c0_90 = arith.constant 0 : index
    %297 = vector.load %arg3[%c32_89, %c0_90] : memref<232x64xf32, #tpu.memory_space<vmem>>, vector<32x16xf32>
    %cst_91 = arith.constant dense<0.000000e+00> : vector<32x256xf32>
    %298 = tpu.matmul %297, %296, %cst_91 {dimension_numbers = #tpu.dot_dimension_numbers<[1], [0], [0], [1], [0, 0, 1, 1], [], []>} : vector<32x16xf32>, vector<16x256xf32>, vector<32x256xf32> -> vector<32x256xf32>
    %c0_92 = arith.constant 0 : index
    %c0_93 = arith.constant 0 : index
    %299 = vector.load %arg4[%c0_92, %c0_93] : memref<152x256xf32, #tpu.memory_space<vmem>>, vector<32x256xf32>
    %300 = arith.addf %298, %299 : vector<32x256xf32>
    %301 = arith.negf %300 : vector<32x256xf32>
    %302 = math.exp %301 : vector<32x256xf32>
    %cst_94 = arith.constant 1.000000e+00 : f32
    %303 = vector.broadcast %cst_94 : f32 to vector<32x256xf32>
    %304 = arith.addf %303, %302 : vector<32x256xf32>
    %305 = arith.divf %303, %304 : vector<32x256xf32>
    %306 = arith.mulf %300, %305 : vector<32x256xf32>
    %c64_95 = arith.constant 64 : index
    %c0_96 = arith.constant 0 : index
    %307 = vector.load %arg3[%c64_95, %c0_96] : memref<232x64xf32, #tpu.memory_space<vmem>>, vector<32x32xf32>
    %cst_97 = arith.constant dense<0.000000e+00> : vector<32x256xf32>
    %308 = tpu.matmul %307, %306, %cst_97 {dimension_numbers = #tpu.dot_dimension_numbers<[1], [0], [0], [1], [0, 0, 1, 1], [], []>} : vector<32x32xf32>, vector<32x256xf32>, vector<32x256xf32> -> vector<32x256xf32>
    %c32_98 = arith.constant 32 : index
    %c0_99 = arith.constant 0 : index
    %309 = vector.load %arg4[%c32_98, %c0_99] : memref<152x256xf32, #tpu.memory_space<vmem>>, vector<32x256xf32>
    %310 = arith.addf %308, %309 : vector<32x256xf32>
    %311 = vector.extract_strided_slice %310 {offsets = [8, 0], sizes = [8, 256], strides = [1, 1]} : vector<32x256xf32> to vector<8x256xf32>
    %312 = vector.extract_strided_slice %310 {offsets = [24, 0], sizes = [8, 256], strides = [1, 1]} : vector<32x256xf32> to vector<8x256xf32>
    %313 = vector.extract_strided_slice %310 {offsets = [0, 0], sizes = [8, 256], strides = [1, 1]} : vector<32x256xf32> to vector<8x256xf32>
    %314 = vector.extract_strided_slice %310 {offsets = [16, 0], sizes = [8, 256], strides = [1, 1]} : vector<32x256xf32> to vector<8x256xf32>
    %315 = arith.mulf %287, %311 : vector<8x256xf32>
    %316 = arith.mulf %288, %311 : vector<8x256xf32>
    %317 = arith.mulf %289, %311 : vector<8x256xf32>
    %318 = arith.mulf %287, %312 : vector<8x256xf32>
    %319 = arith.mulf %288, %312 : vector<8x256xf32>
    %320 = arith.mulf %289, %312 : vector<8x256xf32>
    %321 = tpu.concatenate %313, %314, %315, %316, %317, %318, %319, %320 in 0 : vector<8x256xf32>, vector<8x256xf32>, vector<8x256xf32>, vector<8x256xf32>, vector<8x256xf32>, vector<8x256xf32>, vector<8x256xf32>, vector<8x256xf32> -> vector<64x256xf32>
    %c128_100 = arith.constant 128 : index
    %c0_101 = arith.constant 0 : index
    %322 = vector.load %arg3[%c128_100, %c0_101] : memref<232x64xf32, #tpu.memory_space<vmem>>, vector<64x64xf32>
    %cst_102 = arith.constant dense<0.000000e+00> : vector<64x256xf32>
    %323 = tpu.matmul %322, %321, %cst_102 {dimension_numbers = #tpu.dot_dimension_numbers<[1], [0], [0], [1], [0, 0, 1, 1], [], []>} : vector<64x64xf32>, vector<64x256xf32>, vector<64x256xf32> -> vector<64x256xf32>
    %324 = vector.extract_strided_slice %323 {offsets = [0, 0], sizes = [16, 256], strides = [1, 1]} : vector<64x256xf32> to vector<16x256xf32>
    %c64_103 = arith.constant 64 : index
    %c0_104 = arith.constant 0 : index
    %325 = vector.load %arg4[%c64_103, %c0_104] : memref<152x256xf32, #tpu.memory_space<vmem>>, vector<16x256xf32>
    %326 = arith.addf %324, %325 : vector<16x256xf32>
    %327 = vector.extract_strided_slice %326 {offsets = [0, 0], sizes = [8, 256], strides = [1, 1]} : vector<16x256xf32> to vector<8x256xf32>
    %328 = vector.extract_strided_slice %326 {offsets = [8, 0], sizes = [8, 256], strides = [1, 1]} : vector<16x256xf32> to vector<8x256xf32>
    %329 = vector.extract_strided_slice %323 {offsets = [16, 0], sizes = [8, 256], strides = [1, 1]} : vector<64x256xf32> to vector<8x256xf32>
    %330 = vector.extract_strided_slice %323 {offsets = [24, 0], sizes = [8, 256], strides = [1, 1]} : vector<64x256xf32> to vector<8x256xf32>
    %331 = vector.extract_strided_slice %323 {offsets = [32, 0], sizes = [8, 256], strides = [1, 1]} : vector<64x256xf32> to vector<8x256xf32>
    %332 = vector.extract_strided_slice %323 {offsets = [40, 0], sizes = [8, 256], strides = [1, 1]} : vector<64x256xf32> to vector<8x256xf32>
    %333 = vector.extract_strided_slice %323 {offsets = [48, 0], sizes = [8, 256], strides = [1, 1]} : vector<64x256xf32> to vector<8x256xf32>
    %334 = vector.extract_strided_slice %323 {offsets = [56, 0], sizes = [8, 256], strides = [1, 1]} : vector<64x256xf32> to vector<8x256xf32>
    %c112_105 = arith.constant 112 : index
    %c0_106 = arith.constant 0 : index
    %335 = vector.load %arg4[%c112_105, %c0_106] : memref<152x256xf32, #tpu.memory_space<vmem>>, vector<8x256xf32>
    %c120_107 = arith.constant 120 : index
    %c0_108 = arith.constant 0 : index
    %336 = vector.load %arg4[%c120_107, %c0_108] : memref<152x256xf32, #tpu.memory_space<vmem>>, vector<8x256xf32>
    %c128_109 = arith.constant 128 : index
    %c0_110 = arith.constant 0 : index
    %337 = vector.load %arg4[%c128_109, %c0_110] : memref<152x256xf32, #tpu.memory_space<vmem>>, vector<8x256xf32>
    %c136_111 = arith.constant 136 : index
    %c0_112 = arith.constant 0 : index
    %338 = vector.load %arg4[%c136_111, %c0_112] : memref<152x256xf32, #tpu.memory_space<vmem>>, vector<8x256xf32>
    %c144_113 = arith.constant 144 : index
    %c0_114 = arith.constant 0 : index
    %339 = vector.load %arg4[%c144_113, %c0_114] : memref<152x256xf32, #tpu.memory_space<vmem>>, vector<8x256xf32>
    %340 = arith.mulf %329, %332 : vector<8x256xf32>
    %341 = arith.mulf %330, %333 : vector<8x256xf32>
    %342 = arith.addf %340, %341 : vector<8x256xf32>
    %343 = arith.mulf %331, %334 : vector<8x256xf32>
    %344 = arith.addf %342, %343 : vector<8x256xf32>
    %345 = arith.mulf %327, %328 : vector<8x256xf32>
    %346 = arith.mulf %335, %345 : vector<8x256xf32>
    %347 = arith.mulf %338, %344 : vector<8x256xf32>
    %348 = arith.addf %346, %347 : vector<8x256xf32>
    %349 = arith.addf %348, %286 : vector<8x256xf32>
    %350 = arith.mulf %330, %334 : vector<8x256xf32>
    %351 = arith.mulf %331, %333 : vector<8x256xf32>
    %352 = arith.subf %350, %351 : vector<8x256xf32>
    %353 = arith.mulf %331, %332 : vector<8x256xf32>
    %354 = arith.mulf %329, %334 : vector<8x256xf32>
    %355 = arith.subf %353, %354 : vector<8x256xf32>
    %356 = arith.mulf %329, %333 : vector<8x256xf32>
    %357 = arith.mulf %330, %332 : vector<8x256xf32>
    %358 = arith.subf %356, %357 : vector<8x256xf32>
    %359 = arith.mulf %327, %332 : vector<8x256xf32>
    %360 = arith.mulf %336, %359 : vector<8x256xf32>
    %361 = arith.mulf %329, %328 : vector<8x256xf32>
    %362 = arith.mulf %337, %361 : vector<8x256xf32>
    %363 = arith.addf %360, %362 : vector<8x256xf32>
    %364 = arith.mulf %339, %352 : vector<8x256xf32>
    %365 = arith.addf %363, %364 : vector<8x256xf32>
    %366 = arith.addf %365, %287 : vector<8x256xf32>
    %367 = arith.mulf %327, %333 : vector<8x256xf32>
    %368 = arith.mulf %336, %367 : vector<8x256xf32>
    %369 = arith.mulf %330, %328 : vector<8x256xf32>
    %370 = arith.mulf %337, %369 : vector<8x256xf32>
    %371 = arith.addf %368, %370 : vector<8x256xf32>
    %372 = arith.mulf %339, %355 : vector<8x256xf32>
    %373 = arith.addf %371, %372 : vector<8x256xf32>
    %374 = arith.addf %373, %288 : vector<8x256xf32>
    %375 = arith.mulf %327, %334 : vector<8x256xf32>
    %376 = arith.mulf %336, %375 : vector<8x256xf32>
    %377 = arith.mulf %331, %328 : vector<8x256xf32>
    %378 = arith.mulf %337, %377 : vector<8x256xf32>
    %379 = arith.addf %376, %378 : vector<8x256xf32>
    %380 = arith.mulf %339, %358 : vector<8x256xf32>
    %381 = arith.addf %379, %380 : vector<8x256xf32>
    %382 = arith.addf %381, %289 : vector<8x256xf32>
    %383 = arith.mulf %366, %366 : vector<8x256xf32>
    %384 = arith.mulf %374, %374 : vector<8x256xf32>
    %385 = arith.addf %383, %384 : vector<8x256xf32>
    %386 = arith.mulf %382, %382 : vector<8x256xf32>
    %387 = arith.addf %385, %386 : vector<8x256xf32>
    %388 = math.sqrt %387 : vector<8x256xf32>
    %389 = tpu.concatenate %349, %388 in 0 : vector<8x256xf32>, vector<8x256xf32> -> vector<16x256xf32>
    %c96_115 = arith.constant 96 : index
    %c0_116 = arith.constant 0 : index
    %390 = vector.load %arg3[%c96_115, %c0_116] : memref<232x64xf32, #tpu.memory_space<vmem>>, vector<16x16xf32>
    %cst_117 = arith.constant dense<0.000000e+00> : vector<16x256xf32>
    %391 = tpu.matmul %390, %389, %cst_117 {dimension_numbers = #tpu.dot_dimension_numbers<[1], [0], [0], [1], [0, 0, 1, 1], [], []>} : vector<16x16xf32>, vector<16x256xf32>, vector<16x256xf32> -> vector<16x256xf32>
    %c80_118 = arith.constant 80 : index
    %c0_119 = arith.constant 0 : index
    %392 = vector.load %arg4[%c80_118, %c0_119] : memref<152x256xf32, #tpu.memory_space<vmem>>, vector<16x256xf32>
    %393 = arith.addf %391, %392 : vector<16x256xf32>
    %394 = arith.negf %393 : vector<16x256xf32>
    %395 = math.exp %394 : vector<16x256xf32>
    %cst_120 = arith.constant 1.000000e+00 : f32
    %396 = vector.broadcast %cst_120 : f32 to vector<16x256xf32>
    %397 = arith.addf %396, %395 : vector<16x256xf32>
    %398 = arith.divf %396, %397 : vector<16x256xf32>
    %399 = arith.mulf %393, %398 : vector<16x256xf32>
    %c112_121 = arith.constant 112 : index
    %c0_122 = arith.constant 0 : index
    %400 = vector.load %arg3[%c112_121, %c0_122] : memref<232x64xf32, #tpu.memory_space<vmem>>, vector<16x16xf32>
    %cst_123 = arith.constant dense<0.000000e+00> : vector<16x256xf32>
    %401 = tpu.matmul %400, %399, %cst_123 {dimension_numbers = #tpu.dot_dimension_numbers<[1], [0], [0], [1], [0, 0, 1, 1], [], []>} : vector<16x16xf32>, vector<16x256xf32>, vector<16x256xf32> -> vector<16x256xf32>
    %c96_124 = arith.constant 96 : index
    %c0_125 = arith.constant 0 : index
    %402 = vector.load %arg4[%c96_124, %c0_125] : memref<152x256xf32, #tpu.memory_space<vmem>>, vector<16x256xf32>
    %403 = arith.addf %401, %402 : vector<16x256xf32>
    %404 = vector.extract_strided_slice %403 {offsets = [0, 0], sizes = [8, 256], strides = [1, 1]} : vector<16x256xf32> to vector<8x256xf32>
    %405 = vector.extract_strided_slice %403 {offsets = [8, 0], sizes = [8, 256], strides = [1, 1]} : vector<16x256xf32> to vector<8x256xf32>
    %406 = arith.mulf %366, %405 : vector<8x256xf32>
    %407 = arith.mulf %374, %405 : vector<8x256xf32>
    %408 = arith.mulf %382, %405 : vector<8x256xf32>
    %409 = tpu.concatenate %404, %406, %407, %408 in 0 : vector<8x256xf32>, vector<8x256xf32>, vector<8x256xf32>, vector<8x256xf32> -> vector<32x256xf32>
    %c192_126 = arith.constant 192 : index
    %c0_127 = arith.constant 0 : index
    %410 = vector.load %arg3[%c192_126, %c0_127] : memref<232x64xf32, #tpu.memory_space<vmem>>, vector<32x32xf32>
    %cst_128 = arith.constant dense<0.000000e+00> : vector<256x32xf32>
    %411 = tpu.matmul %409, %410, %cst_128 {dimension_numbers = #tpu.dot_dimension_numbers<[0], [0], [1], [1], [0, 1, 1, 1], [], []>} : vector<32x256xf32>, vector<32x32xf32>, vector<256x32xf32> -> vector<256x32xf32>
    %c224_129 = arith.constant 224 : index
    %c0_130 = arith.constant 0 : index
    %412 = vector.load %arg3[%c224_129, %c0_130] : memref<232x64xf32, #tpu.memory_space<vmem>>, vector<1x32xf32>
    %413 = arith.index_cast %281 : i32 to index
    %c0_131 = arith.constant 0 : index
    %414 = vector.load %arg2[%413, %c0_131] : memref<1024x32xf32, #tpu.memory_space<vmem>>, vector<256x32xf32>
    %415 = vector.broadcast %412 : vector<1x32xf32> to vector<256x32xf32>
    %416 = arith.addf %411, %415 : vector<256x32xf32>
    %417 = arith.addf %416, %414 : vector<256x32xf32>
    %418 = arith.index_cast %281 : i32 to index
    %c0_132 = arith.constant 0 : index
    %419 = vector.load %arg5[%418, %c0_132] : memref<1024x32xf32, #tpu.memory_space<vmem>>, vector<256x32xf32>
    tpu.vector_store %arg5[%418, %c0_132], %417 {strides = array<i32>} : memref<1024x32xf32, #tpu.memory_space<vmem>>, vector<256x32xf32>,
    %c3_i32 = arith.constant 3 : i32
    %c256_i32_133 = arith.constant 256 : i32
    %420 = arith.muli %c3_i32, %c256_i32_133 : i32
    %421 = tpu.assume_multiple %420, 256 : i32
    %422 = arith.index_cast %421 : i32 to index
    %c0_134 = arith.constant 0 : index
    %423 = vector.load %arg1[%422, %c0_134] : memref<1024x32xf32, #tpu.memory_space<vmem>>, vector<256x32xf32>
    %c0_135 = arith.constant 0 : index
    %c0_136 = arith.constant 0 : index
    %424 = vector.load %arg3[%c0_135, %c0_136] : memref<232x64xf32, #tpu.memory_space<vmem>>, vector<32x32xf32>
    %cst_137 = arith.constant dense<0.000000e+00> : vector<32x256xf32>
    %425 = tpu.matmul %424, %423, %cst_137 {dimension_numbers = #tpu.dot_dimension_numbers<[1], [1], [0], [0], [0, 0, 1, 0], [], []>} : vector<32x32xf32>, vector<256x32xf32>, vector<32x256xf32> -> vector<32x256xf32>
    %426 = vector.extract_strided_slice %425 {offsets = [0, 0], sizes = [8, 256], strides = [1, 1]} : vector<32x256xf32> to vector<8x256xf32>
    %427 = vector.extract_strided_slice %425 {offsets = [8, 0], sizes = [8, 256], strides = [1, 1]} : vector<32x256xf32> to vector<8x256xf32>
    %428 = vector.extract_strided_slice %425 {offsets = [16, 0], sizes = [8, 256], strides = [1, 1]} : vector<32x256xf32> to vector<8x256xf32>
    %429 = vector.extract_strided_slice %425 {offsets = [24, 0], sizes = [8, 256], strides = [1, 1]} : vector<32x256xf32> to vector<8x256xf32>
    %430 = arith.mulf %427, %427 : vector<8x256xf32>
    %431 = arith.mulf %428, %428 : vector<8x256xf32>
    %432 = arith.addf %430, %431 : vector<8x256xf32>
    %433 = arith.mulf %429, %429 : vector<8x256xf32>
    %434 = arith.addf %432, %433 : vector<8x256xf32>
    %435 = math.sqrt %434 : vector<8x256xf32>
    %436 = tpu.concatenate %426, %435 in 0 : vector<8x256xf32>, vector<8x256xf32> -> vector<16x256xf32>
    %c32_138 = arith.constant 32 : index
    %c0_139 = arith.constant 0 : index
    %437 = vector.load %arg3[%c32_138, %c0_139] : memref<232x64xf32, #tpu.memory_space<vmem>>, vector<32x16xf32>
    %cst_140 = arith.constant dense<0.000000e+00> : vector<32x256xf32>
    %438 = tpu.matmul %437, %436, %cst_140 {dimension_numbers = #tpu.dot_dimension_numbers<[1], [0], [0], [1], [0, 0, 1, 1], [], []>} : vector<32x16xf32>, vector<16x256xf32>, vector<32x256xf32> -> vector<32x256xf32>
    %c0_141 = arith.constant 0 : index
    %c0_142 = arith.constant 0 : index
    %439 = vector.load %arg4[%c0_141, %c0_142] : memref<152x256xf32, #tpu.memory_space<vmem>>, vector<32x256xf32>
    %440 = arith.addf %438, %439 : vector<32x256xf32>
    %441 = arith.negf %440 : vector<32x256xf32>
    %442 = math.exp %441 : vector<32x256xf32>
    %cst_143 = arith.constant 1.000000e+00 : f32
    %443 = vector.broadcast %cst_143 : f32 to vector<32x256xf32>
    %444 = arith.addf %443, %442 : vector<32x256xf32>
    %445 = arith.divf %443, %444 : vector<32x256xf32>
    %446 = arith.mulf %440, %445 : vector<32x256xf32>
    %c64_144 = arith.constant 64 : index
    %c0_145 = arith.constant 0 : index
    %447 = vector.load %arg3[%c64_144, %c0_145] : memref<232x64xf32, #tpu.memory_space<vmem>>, vector<32x32xf32>
    %cst_146 = arith.constant dense<0.000000e+00> : vector<32x256xf32>
    %448 = tpu.matmul %447, %446, %cst_146 {dimension_numbers = #tpu.dot_dimension_numbers<[1], [0], [0], [1], [0, 0, 1, 1], [], []>} : vector<32x32xf32>, vector<32x256xf32>, vector<32x256xf32> -> vector<32x256xf32>
    %c32_147 = arith.constant 32 : index
    %c0_148 = arith.constant 0 : index
    %449 = vector.load %arg4[%c32_147, %c0_148] : memref<152x256xf32, #tpu.memory_space<vmem>>, vector<32x256xf32>
    %450 = arith.addf %448, %449 : vector<32x256xf32>
    %451 = vector.extract_strided_slice %450 {offsets = [8, 0], sizes = [8, 256], strides = [1, 1]} : vector<32x256xf32> to vector<8x256xf32>
    %452 = vector.extract_strided_slice %450 {offsets = [24, 0], sizes = [8, 256], strides = [1, 1]} : vector<32x256xf32> to vector<8x256xf32>
    %453 = vector.extract_strided_slice %450 {offsets = [0, 0], sizes = [8, 256], strides = [1, 1]} : vector<32x256xf32> to vector<8x256xf32>
    %454 = vector.extract_strided_slice %450 {offsets = [16, 0], sizes = [8, 256], strides = [1, 1]} : vector<32x256xf32> to vector<8x256xf32>
    %455 = arith.mulf %427, %451 : vector<8x256xf32>
    %456 = arith.mulf %428, %451 : vector<8x256xf32>
    %457 = arith.mulf %429, %451 : vector<8x256xf32>
    %458 = arith.mulf %427, %452 : vector<8x256xf32>
    %459 = arith.mulf %428, %452 : vector<8x256xf32>
    %460 = arith.mulf %429, %452 : vector<8x256xf32>
    %461 = tpu.concatenate %453, %454, %455, %456, %457, %458, %459, %460 in 0 : vector<8x256xf32>, vector<8x256xf32>, vector<8x256xf32>, vector<8x256xf32>, vector<8x256xf32>, vector<8x256xf32>, vector<8x256xf32>, vector<8x256xf32> -> vector<64x256xf32>
    %c128_149 = arith.constant 128 : index
    %c0_150 = arith.constant 0 : index
    %462 = vector.load %arg3[%c128_149, %c0_150] : memref<232x64xf32, #tpu.memory_space<vmem>>, vector<64x64xf32>
    %cst_151 = arith.constant dense<0.000000e+00> : vector<64x256xf32>
    %463 = tpu.matmul %462, %461, %cst_151 {dimension_numbers = #tpu.dot_dimension_numbers<[1], [0], [0], [1], [0, 0, 1, 1], [], []>} : vector<64x64xf32>, vector<64x256xf32>, vector<64x256xf32> -> vector<64x256xf32>
    %464 = vector.extract_strided_slice %463 {offsets = [0, 0], sizes = [16, 256], strides = [1, 1]} : vector<64x256xf32> to vector<16x256xf32>
    %c64_152 = arith.constant 64 : index
    %c0_153 = arith.constant 0 : index
    %465 = vector.load %arg4[%c64_152, %c0_153] : memref<152x256xf32, #tpu.memory_space<vmem>>, vector<16x256xf32>
    %466 = arith.addf %464, %465 : vector<16x256xf32>
    %467 = vector.extract_strided_slice %466 {offsets = [0, 0], sizes = [8, 256], strides = [1, 1]} : vector<16x256xf32> to vector<8x256xf32>
    %468 = vector.extract_strided_slice %466 {offsets = [8, 0], sizes = [8, 256], strides = [1, 1]} : vector<16x256xf32> to vector<8x256xf32>
    %469 = vector.extract_strided_slice %463 {offsets = [16, 0], sizes = [8, 256], strides = [1, 1]} : vector<64x256xf32> to vector<8x256xf32>
    %470 = vector.extract_strided_slice %463 {offsets = [24, 0], sizes = [8, 256], strides = [1, 1]} : vector<64x256xf32> to vector<8x256xf32>
    %471 = vector.extract_strided_slice %463 {offsets = [32, 0], sizes = [8, 256], strides = [1, 1]} : vector<64x256xf32> to vector<8x256xf32>
    %472 = vector.extract_strided_slice %463 {offsets = [40, 0], sizes = [8, 256], strides = [1, 1]} : vector<64x256xf32> to vector<8x256xf32>
    %473 = vector.extract_strided_slice %463 {offsets = [48, 0], sizes = [8, 256], strides = [1, 1]} : vector<64x256xf32> to vector<8x256xf32>
    %474 = vector.extract_strided_slice %463 {offsets = [56, 0], sizes = [8, 256], strides = [1, 1]} : vector<64x256xf32> to vector<8x256xf32>
    %c112_154 = arith.constant 112 : index
    %c0_155 = arith.constant 0 : index
    %475 = vector.load %arg4[%c112_154, %c0_155] : memref<152x256xf32, #tpu.memory_space<vmem>>, vector<8x256xf32>
    %c120_156 = arith.constant 120 : index
    %c0_157 = arith.constant 0 : index
    %476 = vector.load %arg4[%c120_156, %c0_157] : memref<152x256xf32, #tpu.memory_space<vmem>>, vector<8x256xf32>
    %c128_158 = arith.constant 128 : index
    %c0_159 = arith.constant 0 : index
    %477 = vector.load %arg4[%c128_158, %c0_159] : memref<152x256xf32, #tpu.memory_space<vmem>>, vector<8x256xf32>
    %c136_160 = arith.constant 136 : index
    %c0_161 = arith.constant 0 : index
    %478 = vector.load %arg4[%c136_160, %c0_161] : memref<152x256xf32, #tpu.memory_space<vmem>>, vector<8x256xf32>
    %c144_162 = arith.constant 144 : index
    %c0_163 = arith.constant 0 : index
    %479 = vector.load %arg4[%c144_162, %c0_163] : memref<152x256xf32, #tpu.memory_space<vmem>>, vector<8x256xf32>
    %480 = arith.mulf %469, %472 : vector<8x256xf32>
    %481 = arith.mulf %470, %473 : vector<8x256xf32>
    %482 = arith.addf %480, %481 : vector<8x256xf32>
    %483 = arith.mulf %471, %474 : vector<8x256xf32>
    %484 = arith.addf %482, %483 : vector<8x256xf32>
    %485 = arith.mulf %467, %468 : vector<8x256xf32>
    %486 = arith.mulf %475, %485 : vector<8x256xf32>
    %487 = arith.mulf %478, %484 : vector<8x256xf32>
    %488 = arith.addf %486, %487 : vector<8x256xf32>
    %489 = arith.addf %488, %426 : vector<8x256xf32>
    %490 = arith.mulf %470, %474 : vector<8x256xf32>
    %491 = arith.mulf %471, %473 : vector<8x256xf32>
    %492 = arith.subf %490, %491 : vector<8x256xf32>
    %493 = arith.mulf %471, %472 : vector<8x256xf32>
    %494 = arith.mulf %469, %474 : vector<8x256xf32>
    %495 = arith.subf %493, %494 : vector<8x256xf32>
    %496 = arith.mulf %469, %473 : vector<8x256xf32>
    %497 = arith.mulf %470, %472 : vector<8x256xf32>
    %498 = arith.subf %496, %497 : vector<8x256xf32>
    %499 = arith.mulf %467, %472 : vector<8x256xf32>
    %500 = arith.mulf %476, %499 : vector<8x256xf32>
    %501 = arith.mulf %469, %468 : vector<8x256xf32>
    %502 = arith.mulf %477, %501 : vector<8x256xf32>
    %503 = arith.addf %500, %502 : vector<8x256xf32>
    %504 = arith.mulf %479, %492 : vector<8x256xf32>
    %505 = arith.addf %503, %504 : vector<8x256xf32>
    %506 = arith.addf %505, %427 : vector<8x256xf32>
    %507 = arith.mulf %467, %473 : vector<8x256xf32>
    %508 = arith.mulf %476, %507 : vector<8x256xf32>
    %509 = arith.mulf %470, %468 : vector<8x256xf32>
    %510 = arith.mulf %477, %509 : vector<8x256xf32>
    %511 = arith.addf %508, %510 : vector<8x256xf32>
    %512 = arith.mulf %479, %495 : vector<8x256xf32>
    %513 = arith.addf %511, %512 : vector<8x256xf32>
    %514 = arith.addf %513, %428 : vector<8x256xf32>
    %515 = arith.mulf %467, %474 : vector<8x256xf32>
    %516 = arith.mulf %476, %515 : vector<8x256xf32>
    %517 = arith.mulf %471, %468 : vector<8x256xf32>
    %518 = arith.mulf %477, %517 : vector<8x256xf32>
    %519 = arith.addf %516, %518 : vector<8x256xf32>
    %520 = arith.mulf %479, %498 : vector<8x256xf32>
    %521 = arith.addf %519, %520 : vector<8x256xf32>
    %522 = arith.addf %521, %429 : vector<8x256xf32>
    %523 = arith.mulf %506, %506 : vector<8x256xf32>
    %524 = arith.mulf %514, %514 : vector<8x256xf32>
    %525 = arith.addf %523, %524 : vector<8x256xf32>
    %526 = arith.mulf %522, %522 : vector<8x256xf32>
    %527 = arith.addf %525, %526 : vector<8x256xf32>
    %528 = math.sqrt %527 : vector<8x256xf32>
    %529 = tpu.concatenate %489, %528 in 0 : vector<8x256xf32>, vector<8x256xf32> -> vector<16x256xf32>
    %c96_164 = arith.constant 96 : index
    %c0_165 = arith.constant 0 : index
    %530 = vector.load %arg3[%c96_164, %c0_165] : memref<232x64xf32, #tpu.memory_space<vmem>>, vector<16x16xf32>
    %cst_166 = arith.constant dense<0.000000e+00> : vector<16x256xf32>
    %531 = tpu.matmul %530, %529, %cst_166 {dimension_numbers = #tpu.dot_dimension_numbers<[1], [0], [0], [1], [0, 0, 1, 1], [], []>} : vector<16x16xf32>, vector<16x256xf32>, vector<16x256xf32> -> vector<16x256xf32>
    %c80_167 = arith.constant 80 : index
    %c0_168 = arith.constant 0 : index
    %532 = vector.load %arg4[%c80_167, %c0_168] : memref<152x256xf32, #tpu.memory_space<vmem>>, vector<16x256xf32>
    %533 = arith.addf %531, %532 : vector<16x256xf32>
    %534 = arith.negf %533 : vector<16x256xf32>
    %535 = math.exp %534 : vector<16x256xf32>
    %cst_169 = arith.constant 1.000000e+00 : f32
    %536 = vector.broadcast %cst_169 : f32 to vector<16x256xf32>
    %537 = arith.addf %536, %535 : vector<16x256xf32>
    %538 = arith.divf %536, %537 : vector<16x256xf32>
    %539 = arith.mulf %533, %538 : vector<16x256xf32>
    %c112_170 = arith.constant 112 : index
    %c0_171 = arith.constant 0 : index
    %540 = vector.load %arg3[%c112_170, %c0_171] : memref<232x64xf32, #tpu.memory_space<vmem>>, vector<16x16xf32>
    %cst_172 = arith.constant dense<0.000000e+00> : vector<16x256xf32>
    %541 = tpu.matmul %540, %539, %cst_172 {dimension_numbers = #tpu.dot_dimension_numbers<[1], [0], [0], [1], [0, 0, 1, 1], [], []>} : vector<16x16xf32>, vector<16x256xf32>, vector<16x256xf32> -> vector<16x256xf32>
    %c96_173 = arith.constant 96 : index
    %c0_174 = arith.constant 0 : index
    %542 = vector.load %arg4[%c96_173, %c0_174] : memref<152x256xf32, #tpu.memory_space<vmem>>, vector<16x256xf32>
    %543 = arith.addf %541, %542 : vector<16x256xf32>
    %544 = vector.extract_strided_slice %543 {offsets = [0, 0], sizes = [8, 256], strides = [1, 1]} : vector<16x256xf32> to vector<8x256xf32>
    %545 = vector.extract_strided_slice %543 {offsets = [8, 0], sizes = [8, 256], strides = [1, 1]} : vector<16x256xf32> to vector<8x256xf32>
    %546 = arith.mulf %506, %545 : vector<8x256xf32>
    %547 = arith.mulf %514, %545 : vector<8x256xf32>
    %548 = arith.mulf %522, %545 : vector<8x256xf32>
    %549 = tpu.concatenate %544, %546, %547, %548 in 0 : vector<8x256xf32>, vector<8x256xf32>, vector<8x256xf32>, vector<8x256xf32> -> vector<32x256xf32>
    %c192_175 = arith.constant 192 : index
    %c0_176 = arith.constant 0 : index
    %550 = vector.load %arg3[%c192_175, %c0_176] : memref<232x64xf32, #tpu.memory_space<vmem>>, vector<32x32xf32>
    %cst_177 = arith.constant dense<0.000000e+00> : vector<256x32xf32>
    %551 = tpu.matmul %549, %550, %cst_177 {dimension_numbers = #tpu.dot_dimension_numbers<[0], [0], [1], [1], [0, 1, 1, 1], [], []>} : vector<32x256xf32>, vector<32x32xf32>, vector<256x32xf32> -> vector<256x32xf32>
    %c224_178 = arith.constant 224 : index
    %c0_179 = arith.constant 0 : index
    %552 = vector.load %arg3[%c224_178, %c0_179] : memref<232x64xf32, #tpu.memory_space<vmem>>, vector<1x32xf32>
    %553 = arith.index_cast %421 : i32 to index
    %c0_180 = arith.constant 0 : index
    %554 = vector.load %arg2[%553, %c0_180] : memref<1024x32xf32, #tpu.memory_space<vmem>>, vector<256x32xf32>
    %555 = vector.broadcast %552 : vector<1x32xf32> to vector<256x32xf32>
    %556 = arith.addf %551, %555 : vector<256x32xf32>
    %557 = arith.addf %556, %554 : vector<256x32xf32>
    %558 = arith.index_cast %421 : i32 to index
    %c0_181 = arith.constant 0 : index
    %559 = vector.load %arg5[%558, %c0_181] : memref<1024x32xf32, #tpu.memory_space<vmem>>, vector<256x32xf32>
    tpu.vector_store %arg5[%558, %c0_181], %557 {strides = array<i32>} : memref<1024x32xf32, #tpu.memory_space<vmem>>, vector<256x32xf32>,
    %c4_i32 = arith.constant 4 : i32
    return
  }
  func.func @transform_0(%arg0: i32) -> (i32, i32) {
    %c0_i32 = arith.constant 0 : i32
    %c0_i32_0 = arith.constant 0 : i32
    return %arg0, %c0_i32 : i32, i32
  }
  func.func @transform_1(%arg0: i32) -> (i32, i32) {
    %c0_i32 = arith.constant 0 : i32
    %c0_i32_0 = arith.constant 0 : i32
    return %arg0, %c0_i32 : i32, i32
  }
  func.func @transform_2(%arg0: i32) -> (i32, i32) {
    %c0_i32 = arith.constant 0 : i32
    %c0_i32_0 = arith.constant 0 : i32
    %c0_i32_1 = arith.constant 0 : i32
    return %c0_i32, %c0_i32_0 : i32, i32
  }
  func.func @transform_3(%arg0: i32) -> (i32, i32) {
    %c0_i32 = arith.constant 0 : i32
    %c0_i32_0 = arith.constant 0 : i32
    %c0_i32_1 = arith.constant 0 : i32
    return %c0_i32, %c0_i32_0 : i32, i32
  }
  func.func @transform_4(%arg0: i32) -> (i32, i32) {
    %c0_i32 = arith.constant 0 : i32
    %c0_i32_0 = arith.constant 0 : i32
    return %arg0, %c0_i32 : i32, i32
  }
}

</mosaic_0001>

<llo_original>
// kernel: selfnet_layer.1
$region0: #{selfnet_layer.1}
  #allocation0 [shape = 'u32[]', space=smem, size = 0x4, offset = 0x4, fixed_abs, tag = 'smem constant byte address 0x4 - core index']
  #allocation1 [shape = 'u32[144,128]{1,0:T(1,128)}', space=vmem, size = 0x12000, scoped, tag = 'internal scratch']
  %s0 = inlined_call_operand.vmem [shape: f32[2500,32], index: 0, kind: input, shape index: {}]
  %s1 = inlined_call_operand.vmem [shape: f32[2500,32], index: 1, kind: input, shape index: {}]
  %s2 = inlined_call_operand.vmem [shape: f32[232,64], index: 2, kind: input, shape index: {}]
  %s3 = inlined_call_operand.vmem [shape: f32[152,256], index: 3, kind: input, shape index: {}]
  %s4 = inlined_call_operand.vmem [shape: f32[2500,32], index: 4, kind: output, shape index: {}]
  %s5 = sld [smem:[#allocation0]]
  $region97: #{selfnet_layer.1} parent=0
    _
  %s7 = ssub.s32 1, %s5
  %s8 = scalar_select 0, %s7, %s5
  $region1: #{selfnet_layer.1} parent=0
    #allocation2 [shape = 'u8[1048576]{0}', space=vmem, size = 0x100000, scoped, tag = 'output window, operand 0']
    loop: start=0, step=1, limit=5
    $region2: #{selfnet_layer.1} parent=1 // loop_pre_header
      _
    $region3: #{selfnet_layer.1} parent=1 // loop_header
      %s10 = sphi 0, %s14
      %p11 = scmp.ge.s32.totalorder %s10, 5
      %s20 = sphi 0, %s22
      %s23 = sphi 0, %s20
      %s24 = sphi 0, %s23
      %s40 = sphi 0, %s24
      %s46 = sphi 0, %s48
      %s49 = sphi 0, %s46
      %s50 = sphi 0, %s49
      %s66 = sphi 0, %s50
      %s70 = sphi 0, %s70
      %s72 = sphi 0, %s70
      %s73 = sphi 0, %s72
      %s87 = sphi 0, %s73
      %s91 = sphi 0, %s91
      %s93 = sphi 0, %s91
      %s94 = sphi 0, %s93
      %s108 = sphi 0, %s94
      %s114 = sphi 0, %s116
      %s117 = sphi 0, %s114
      %s118 = sphi 0, %s117
      %s134 = sphi 0, %s118
    $region4: #{selfnet_layer.1} parent=1 // loop_header_branch
      %13 = sbr.rel (%p11) target = $region8
    $region5: #{selfnet_layer.1} parent=1 // loop_body
      %s15 = ssub.s32 %s10, 1
      %s16 = ssub.s32 %s10, 2
      %s17 = sadd.s32 %s10, 1
      %s18 = ssub.s32 %s10, %s17
      %p19 = scmp.eq.s32.totalorder %s18, 0
      %s21 = sadd.s32 %s20, 1
      %s22 = scalar_select %p19, %s20, %s21
      %p25 = pneg %p19
      %p26 = scmp.eq.s32.totalorder %s10, 2
      %p27 = por %p25, %p26
      %p28 = scmp.ne.s32.totalorder %s20, %s23
      %p29 = scmp.eq.s32.totalorder %s10, 0
      %p30 = por %p28, %p29
      %p31 = scmp.ne.s32.totalorder %s20, %s23
      %p32 = scmp.eq.s32.totalorder %s15, 2
      %p33 = por %p31, %p32
      %p34 = scmp.ne.s32.totalorder %s23, %s24
      %p35 = scmp.eq.s32.totalorder %s15, 0
      %p36 = por %p34, %p35
      %p37 = scmp.ne.s32.totalorder %s23, %s24
      %p38 = scmp.eq.s32.totalorder %s16, 2
      %p39 = por %p37, %p38
      %p41 = scmp.ne.s32.totalorder %s24, %s40
      %p42 = scmp.eq.s32.totalorder %s16, 0
      %p43 = por %p41, %p42
      %s44 = ssub.s32 %s10, %s17
      %p45 = scmp.eq.s32.totalorder %s44, 0
      %s47 = sadd.s32 %s46, 1
      %s48 = scalar_select %p45, %s46, %s47
      %p51 = pneg %p45
      %p52 = scmp.eq.s32.totalorder %s10, 2
      %p53 = por %p51, %p52
      %p54 = scmp.ne.s32.totalorder %s46, %s49
      %p55 = scmp.eq.s32.totalorder %s10, 0
      %p56 = por %p54, %p55
      %p57 = scmp.ne.s32.totalorder %s46, %s49
      %p58 = scmp.eq.s32.totalorder %s15, 2
      %p59 = por %p57, %p58
      %p60 = scmp.ne.s32.totalorder %s49, %s50
      %p61 = scmp.eq.s32.totalorder %s15, 0
      %p62 = por %p60, %p61
      %p63 = scmp.ne.s32.totalorder %s49, %s50
      %p64 = scmp.eq.s32.totalorder %s16, 2
      %p65 = por %p63, %p64
      %p67 = scmp.ne.s32.totalorder %s50, %s66
      %p68 = scmp.eq.s32.totalorder %s16, 0
      %p69 = por %p67, %p68
      %s71 = sadd.s32 %s70, 1
      %p74 = scmp.eq.s32.totalorder %s10, 2
      %p75 = scmp.ne.s32.totalorder %s70, %s72
      %p76 = scmp.eq.s32.totalorder %s10, 0
      %p77 = por %p75, %p76
      %p78 = scmp.ne.s32.totalorder %s70, %s72
      %p79 = scmp.eq.s32.totalorder %s15, 2
      %p80 = por %p78, %p79
      %p81 = scmp.ne.s32.totalorder %s72, %s73
      %p82 = scmp.eq.s32.totalorder %s15, 0
      %p83 = por %p81, %p82
      %p84 = scmp.ne.s32.totalorder %s72, %s73
      %p85 = scmp.eq.s32.totalorder %s16, 2
      %p86 = por %p84, %p85
      %p88 = scmp.ne.s32.totalorder %s73, %s87
      %p89 = scmp.eq.s32.totalorder %s16, 0
      %p90 = por %p88, %p89
      %s92 = sadd.s32 %s91, 1
      %p95 = scmp.eq.s32.totalorder %s10, 2
      %p96 = scmp.ne.s32.totalorder %s91, %s93
      %p97 = scmp.eq.s32.totalorder %s10, 0
      %p98 = por %p96, %p97
      %p99 = scmp.ne.s32.totalorder %s91, %s93
      %p100 = scmp.eq.s32.totalorder %s15, 2
      %p101 = por %p99, %p100
      %p102 = scmp.ne.s32.totalorder %s93, %s94
      %p103 = scmp.eq.s32.totalorder %s15, 0
      %p104 = por %p102, %p103
      %p105 = scmp.ne.s32.totalorder %s93, %s94
      %p106 = scmp.eq.s32.totalorder %s16, 2
      %p107 = por %p105, %p106
      %p109 = scmp.ne.s32.totalorder %s94, %s108
      %p110 = scmp.eq.s32.totalorder %s16, 0
      %p111 = por %p109, %p110
      %s112 = ssub.s32 %s10, %s17
      %p113 = scmp.eq.s32.totalorder %s112, 0
      %s115 = sadd.s32 %s114, 1
      %s116 = scalar_select %p113, %s114, %s115
      %p119 = pneg %p113
      %p120 = scmp.eq.s32.totalorder %s10, 2
      %p121 = por %p119, %p120
      %p122 = scmp.ne.s32.totalorder %s114, %s117
      %p123 = scmp.eq.s32.totalorder %s10, 0
      %p124 = por %p122, %p123
      %p125 = scmp.ne.s32.totalorder %s114, %s117
      %p126 = scmp.eq.s32.totalorder %s15, 2
      %p127 = por %p125, %p126
      %p128 = scmp.ne.s32.totalorder %s117, %s118
      %p129 = scmp.eq.s32.totalorder %s15, 0
      %p130 = por %p128, %p129
      %p131 = scmp.ne.s32.totalorder %s117, %s118
      %p132 = scmp.eq.s32.totalorder %s16, 2
      %p133 = por %p131, %p132
      %p135 = scmp.ne.s32.totalorder %s118, %s134
      %p136 = scmp.eq.s32.totalorder %s16, 0
      %p137 = por %p135, %p136
      %p138 = scmp.le.s32.totalorder 1, %s10
      %p139 = scmp.lt.s32.totalorder %s10, 4
      %p140 = pnand %p138, %p139
      %p141 = pneg %p140
      // Predicated region
      $region9: #{selfnet_layer.1} parent=5 // pred_check
        _
      $region10: #{selfnet_layer.1} parent=5 // pred_check_branch
        %143 = sbr.rel (%p140) target = $region12
      $region11: #{selfnet_layer.1} parent=5 // pred_region
        %s144 = ssub.s32 %s10, 1
        // Predicated region
        $region13: #{selfnet_layer.1} parent=11 // pred_check
          %p145 = pneg %p83
        $region14: #{selfnet_layer.1} parent=11 // pred_check_branch
          %147 = sbr.rel (%p145) target = $region16
        $region15: #{selfnet_layer.1} parent=11 // pred_region
          _
        $region16: #{selfnet_layer.1} parent=11 // pred_fallthru
          _
        // Predicated region
        $region17: #{selfnet_layer.1} parent=11 // pred_check
          %p148 = pneg %p104
        $region18: #{selfnet_layer.1} parent=11 // pred_check_branch
          %150 = sbr.rel (%p148) target = $region20
        $region19: #{selfnet_layer.1} parent=11 // pred_region
          _
        $region20: #{selfnet_layer.1} parent=11 // pred_fallthru
          _
      $region12: #{selfnet_layer.1} parent=5 // pred_fallthru
        _
      %p151 = scmp.lt.s32.totalorder %s10, 3
      // Predicated region
      $region21: #{selfnet_layer.1} parent=5 // pred_check
        %p152 = pneg %p151
      $region22: #{selfnet_layer.1} parent=5 // pred_check_branch
        %154 = sbr.rel (%p152) target = $region24
      $region23: #{selfnet_layer.1} parent=5 // pred_region
        // Predicated region
        $region25: #{selfnet_layer.1} parent=23 // pred_check
          %p155 = pneg %p30
        $region26: #{selfnet_layer.1} parent=23 // pred_check_branch
          %157 = sbr.rel (%p155) target = $region28
        $region27: #{selfnet_layer.1} parent=23 // pred_region
          %s158 = smul.u32 128, %s10
          %s159 = ssub.s32 313, %s158
          %p160 = scmp.lt.s32.totalorder %s159, 128
          %s161 = scalar_select %p160, %s159, 128
          %s162 = smul.u32 128, %s161
          %p163 = scmp.lt.s32.totalorder %s158, 312
          %s164 = scalar_select %p163, %s158, 312
          %s165 = smul.addr %s164, 8
          %s166 = scalar_lea.vmem %s0, %s165
          %s167 = smul.u32 128, %s10
          %s168 = ssub.s32 313, %s167
          %p169 = scmp.lt.s32.totalorder %s168, 128
          %s170 = scalar_select %p169, %s168, 128
          %s171 = smul.u32 128, %s170
        $region28: #{selfnet_layer.1} parent=23 // pred_fallthru
          _
        // Predicated region
        $region29: #{selfnet_layer.1} parent=23 // pred_check
          %p172 = pneg %p56
        $region30: #{selfnet_layer.1} parent=23 // pred_check_branch
          %174 = sbr.rel (%p172) target = $region32
        $region31: #{selfnet_layer.1} parent=23 // pred_region
          %s175 = smul.u32 128, %s10
          %s176 = ssub.s32 313, %s175
          %p177 = scmp.lt.s32.totalorder %s176, 128
          %s178 = scalar_select %p177, %s176, 128
          %s179 = smul.u32 128, %s178
          %p180 = scmp.lt.s32.totalorder %s175, 312
          %s181 = scalar_select %p180, %s175, 312
          %s182 = smul.addr %s181, 8
          %s183 = scalar_lea.vmem %s1, %s182
          %s184 = smul.u32 128, %s10
          %s185 = ssub.s32 313, %s184
          %p186 = scmp.lt.s32.totalorder %s185, 128
          %s187 = scalar_select %p186, %s185, 128
          %s188 = smul.u32 128, %s187
        $region32: #{selfnet_layer.1} parent=23 // pred_fallthru
          _
      $region24: #{selfnet_layer.1} parent=5 // pred_fallthru
        _
      %p189 = scmp.le.s32.totalorder 1, %s10
      %p190 = scmp.lt.s32.totalorder %s10, 4
      %p191 = pnand %p189, %p190
      %p192 = pneg %p191
      // Predicated region
      $region33: #{selfnet_layer.1} parent=5 // pred_check
        _
      $region34: #{selfnet_layer.1} parent=5 // pred_check_branch
        %194 = sbr.rel (%p191) target = $region36
      $region35: #{selfnet_layer.1} parent=5 // pred_region
        %s195 = ssub.s32 %s10, 1
        %s196 = smul.u32 128, %s15
        %s197 = ssub.s32 313, %s196
        %p198 = scmp.lt.s32.totalorder %s197, 128
        %s199 = scalar_select %p198, %s197, 128
        %s200 = smul.u32 128, %s199
        %p201 = scmp.lt.s32.totalorder %s196, 312
        %s202 = scalar_select %p201, %s196, 312
        %s203 = smul.addr %s202, 8
        %s204 = scalar_lea.vmem %s0, %s203
        %p205 = pneg %p36
        %p206 = pneg %p33
        %s207 = smul.u32 128, %s15
        %s208 = ssub.s32 313, %s207
        %p209 = scmp.lt.s32.totalorder %s208, 128
        %s210 = scalar_select %p209, %s208, 128
        %s211 = smul.u32 128, %s210
        %p212 = scmp.lt.s32.totalorder %s207, 312
        %s213 = scalar_select %p212, %s207, 312
        %s214 = smul.addr %s213, 8
        %s215 = scalar_lea.vmem %s1, %s214
        %p216 = pneg %p62
        %p217 = pneg %p59
        %p218 = pneg %p83
        %p219 = pneg %p80
        %p220 = pneg %p104
        %p221 = pneg %p101
        %p222 = pneg %p130
        %p223 = pneg %p127
        %s224 = sand.u32 %s117, 1
        %s225 = sand.u32 %s117, 1
        %s226 = smul.addr %s225, 1024
        %s227 = scalar_lea.vmem [#allocation2], %s226
        %s228 = smul.u32 128, %s15
        %s229 = ssub.s32 313, %s228
        %p230 = scmp.lt.s32.totalorder %s229, 128
        %s231 = scalar_select %p230, %s229, 128
        %s232 = smul.u32 128, %s231
        %p233 = scmp.lt.s32.totalorder %s228, 312
        %s234 = scalar_select %p233, %s228, 312
        %s235 = smul.addr %s234, 8
        %s236 = scalar_lea.vmem %s0, %s235
        %s237 = smul.u32 128, %s15
        %s238 = ssub.s32 313, %s237
        %p239 = scmp.lt.s32.totalorder %s238, 128
        %s240 = scalar_select %p239, %s238, 128
        %s241 = smul.u32 128, %s240
        %s242 = smul.u32 128, %s15
        %s243 = ssub.s32 313, %s242
        %p244 = scmp.lt.s32.totalorder %s243, 128
        %s245 = scalar_select %p244, %s243, 128
        %s246 = smul.u32 128, %s245
        %p247 = scmp.lt.s32.totalorder %s242, 312
        %s248 = scalar_select %p247, %s242, 312
        %s249 = smul.addr %s248, 8
        %s250 = scalar_lea.vmem %s1, %s249
        %s251 = smul.u32 128, %s15
        %s252 = ssub.s32 313, %s251
        %p253 = scmp.lt.s32.totalorder %s252, 128
        %s254 = scalar_select %p253, %s252, 128
        %s255 = smul.u32 128, %s254
        %s256 = smul.u32 128, %s15
        %s257 = ssub.s32 313, %s256
        %p258 = scmp.lt.s32.totalorder %s257, 128
        %s259 = scalar_select %p258, %s257, 128
        %s260 = smul.u32 128, %s259
        %v261 = vld [vmem:[%s236] sm:$0xff]
        %v262 = vld [vmem:[%s236 + $0x8] sm:$0xff]
        %v263 = vld [vmem:[%s236 + $0x10] sm:$0xff]
        %v264 = vld [vmem:[%s236 + $0x18] sm:$0xff]
        %v265 = vld [vmem:[%s236 + $0x20] sm:$0xff]
        %v266 = vld [vmem:[%s236 + $0x28] sm:$0xff]
        %v267 = vld [vmem:[%s236 + $0x30] sm:$0xff]
        %v268 = vld [vmem:[%s236 + $0x38] sm:$0xff]
        %v269 = vld [vmem:[%s236 + $0x40] sm:$0xff]
        %v270 = vld [vmem:[%s236 + $0x48] sm:$0xff]
        %v271 = vld [vmem:[%s236 + $0x50] sm:$0xff]
        %v272 = vld [vmem:[%s236 + $0x58] sm:$0xff]
        %v273 = vld [vmem:[%s236 + $0x60] sm:$0xff]
        %v274 = vld [vmem:[%s236 + $0x68] sm:$0xff]
        %v275 = vld [vmem:[%s236 + $0x70] sm:$0xff]
        %v276 = vld [vmem:[%s236 + $0x78] sm:$0xff]
        %v277 = vld [vmem:[%s236 + $0x80] sm:$0xff]
        %v278 = vld [vmem:[%s236 + $0x88] sm:$0xff]
        %v279 = vld [vmem:[%s236 + $0x90] sm:$0xff]
        %v280 = vld [vmem:[%s236 + $0x98] sm:$0xff]
        %v281 = vld [vmem:[%s236 + $0xa0] sm:$0xff]
        %v282 = vld [vmem:[%s236 + $0xa8] sm:$0xff]
        %v283 = vld [vmem:[%s236 + $0xb0] sm:$0xff]
        %v284 = vld [vmem:[%s236 + $0xb8] sm:$0xff]
        %v285 = vld [vmem:[%s236 + $0xc0] sm:$0xff]
        %v286 = vld [vmem:[%s236 + $0xc8] sm:$0xff]
        %v287 = vld [vmem:[%s236 + $0xd0] sm:$0xff]
        %v288 = vld [vmem:[%s236 + $0xd8] sm:$0xff]
        %v289 = vld [vmem:[%s236 + $0xe0] sm:$0xff]
        %v290 = vld [vmem:[%s236 + $0xe8] sm:$0xff]
        %v291 = vld [vmem:[%s236 + $0xf0] sm:$0xff]
        %v292 = vld [vmem:[%s236 + $0xf8] sm:$0xff]
        %v293 = vld [vmem:[%s2] sm:$0xff]
        %v294 = vld [vmem:[%s2 + $0x8] sm:$0xff]
        %v295 = vld [vmem:[%s2 + $0x10] sm:$0xff]
        %v296 = vld [vmem:[%s2 + $0x18] sm:$0xff]
        %vm297 = vcmask 261120
        %v299 = vsel %vm297, %v293, 0
        %v302 = vsel %vm297, %v294, 0
        %v305 = vsel %vm297, %v295, 0
        %v308 = vsel %vm297, %v296, 0
        %v311 = vsel %vm297, %v261, 0
        %v314 = vsel %vm297, %v262, 0
        %v317 = vsel %vm297, %v263, 0
        %v320 = vsel %vm297, %v264, 0
        %v323 = vsel %vm297, %v265, 0
        %v326 = vsel %vm297, %v266, 0
        %v329 = vsel %vm297, %v267, 0
        %v332 = vsel %vm297, %v268, 0
        %v335 = vsel %vm297, %v269, 0
        %v338 = vsel %vm297, %v270, 0
        %v341 = vsel %vm297, %v271, 0
        %v344 = vsel %vm297, %v272, 0
        %v347 = vsel %vm297, %v273, 0
        %v350 = vsel %vm297, %v274, 0
        %v353 = vsel %vm297, %v275, 0
        %v356 = vsel %vm297, %v276, 0
        %v359 = vsel %vm297, %v277, 0
        %v362 = vsel %vm297, %v278, 0
        %v365 = vsel %vm297, %v279, 0
        %v368 = vsel %vm297, %v280, 0
        %v371 = vsel %vm297, %v281, 0
        %v374 = vsel %vm297, %v282, 0
        %v377 = vsel %vm297, %v283, 0
        %v380 = vsel %vm297, %v284, 0
        %v383 = vsel %vm297, %v285, 0
        %v386 = vsel %vm297, %v286, 0
        %v389 = vsel %vm297, %v287, 0
        %v392 = vsel %vm297, %v288, 0
        %v395 = vsel %vm297, %v289, 0
        %v398 = vsel %vm297, %v290, 0
        %v401 = vsel %vm297, %v291, 0
        %v404 = vsel %vm297, %v292, 0
        %406 = vmatprep.subr.mxu0 0.0
        %407 = vmatpush1.xpose.msra.mxu0 %v311
        %408 = vmatprep.subr.mxu0 0.0
        %409 = vmatpush1.xpose.msra.mxu0 %v314
        %410 = vmatprep.subr.mxu0 0.0
        %411 = vmatpush1.xpose.msra.mxu0 %v317
        %412 = vmatprep.subr.mxu0 0.0
        %413 = vmatpush1.xpose.msra.mxu0 %v320
        %414 = vmatprep.subr.mxu0 0.0
        %415 = vmatpush1.xpose.msra.mxu0 %v323
        %416 = vmatprep.subr.mxu0 0.0
        %417 = vmatpush1.xpose.msra.mxu0 %v326
        %418 = vmatprep.subr.mxu0 0.0
        %419 = vmatpush1.xpose.msra.mxu0 %v329
        %420 = vmatprep.subr.mxu0 0.0
        %421 = vmatpush1.xpose.msra.mxu0 %v332
        %422 = vmatprep.subr.mxu0 0.0
        %423 = vmatpush1.xpose.msra.mxu0 %v335
        %424 = vmatprep.subr.mxu0 0.0
        %425 = vmatpush1.xpose.msra.mxu0 %v338
        %426 = vmatprep.subr.mxu0 0.0
        %427 = vmatpush1.xpose.msra.mxu0 %v341
        %428 = vmatprep.subr.mxu0 0.0
        %429 = vmatpush1.xpose.msra.mxu0 %v344
        %430 = vmatprep.subr.mxu0 0.0
        %431 = vmatpush1.xpose.msra.mxu0 %v347
        %432 = vmatprep.subr.mxu0 0.0
        %433 = vmatpush1.xpose.msra.mxu0 %v350
        %434 = vmatprep.subr.mxu0 0.0
        %435 = vmatpush1.xpose.msra.mxu0 %v353
        %436 = vmatprep.subr.mxu0 0.0
        %437 = vmatpush1.xpose.msra.mxu0 %v356
        %438 = vmatprep.subr.mxu0 0.0
        %439 = vmatpush1.xpose.msra.mxu0 %v359
        %440 = vmatprep.subr.mxu0 0.0
        %441 = vmatpush1.xpose.msra.mxu0 %v362
        %442 = vmatprep.subr.mxu0 0.0
        %443 = vmatpush1.xpose.msra.mxu0 %v365
        %444 = vmatprep.subr.mxu0 0.0
        %445 = vmatpush1.xpose.msra.mxu0 %v368
        %446 = vmatprep.subr.mxu0 0.0
        %447 = vmatpush1.xpose.msra.mxu0 %v371
        %448 = vmatprep.subr.mxu0 0.0
        %449 = vmatpush1.xpose.msra.mxu0 %v374
        %450 = vmatprep.subr.mxu0 0.0
        %451 = vmatpush1.xpose.msra.mxu0 %v377
        %452 = vmatprep.subr.mxu0 0.0
        %453 = vmatpush1.xpose.msra.mxu0 %v380
        %454 = vmatprep.subr.mxu0 0.0
        %455 = vmatpush1.xpose.msra.mxu0 %v383
        %456 = vmatprep.subr.mxu0 0.0
        %457 = vmatpush1.xpose.msra.mxu0 %v386
        %458 = vmatprep.subr.mxu0 0.0
        %459 = vmatpush1.xpose.msra.mxu0 %v389
        %460 = vmatprep.subr.mxu0 0.0
        %461 = vmatpush1.xpose.msra.mxu0 %v392
        %462 = vmatprep.subr.mxu0 0.0
        %463 = vmatpush1.xpose.msra.mxu0 %v395
        %464 = vmatprep.subr.mxu0 0.0
        %465 = vmatpush1.xpose.msra.mxu0 %v398
        %466 = vmatprep.subr.mxu0 0.0
        %467 = vmatpush1.xpose.msra.mxu0 %v401
        %468 = vmatprep.subr.mxu0 0.0
        %469 = vmatpush1.xpose.msra.mxu0 %v404
        %470 = vmatprep.mubr.f32.mxu0 0.0
        %471 = vmatmul.mubr.f32.gmra.mrb[0].mxu0 %v299
        %v472 = vpop.f32.mrb[0].mxu0
        %v473 = vadd.f32 0.0, %v472
        %v474 = vpop.f32.mrb[0].mxu0
        %v475 = vadd.f32 0.0, %v474
        %476 = vmatprep.mubr.f32.mxu0 0.0
        %477 = vmatmul.mubr.f32.gmra.mrb[0].mxu0 %v302
        %v478 = vpop.f32.mrb[0].mxu0
        %v479 = vadd.f32 0.0, %v478
        %v480 = vpop.f32.mrb[0].mxu0
        %v481 = vadd.f32 0.0, %v480
        %482 = vmatprep.mubr.f32.mxu0 0.0
        %483 = vmatmul.mubr.f32.gmra.mrb[0].mxu0 %v305
        %v484 = vpop.f32.mrb[0].mxu0
        %v485 = vadd.f32 0.0, %v484
        %v486 = vpop.f32.mrb[0].mxu0
        %v487 = vadd.f32 0.0, %v486
        %488 = vmatprep.mubr.f32.mxu0 0.0
        %489 = vmatmul.mubr.f32.gmra.mrb[0].mxu0 %v308
        %v490 = vpop.f32.mrb[0].mxu0
        %v491 = vadd.f32 0.0, %v490
        %v492 = vpop.f32.mrb[0].mxu0
        %v493 = vadd.f32 0.0, %v492
        %494 = vdwg.mxu0
        %v495 = vmul.f32 %v479, %v479
        %v496 = vmul.f32 %v481, %v481
        %v497 = vmul.f32 %v485, %v485
        %v498 = vmul.f32 %v487, %v487
        %v499 = vadd.f32 %v495, %v497
        %v500 = vadd.f32 %v496, %v498
        %v501 = vmul.f32 %v491, %v491
        %v502 = vmul.f32 %v493, %v493
        %v503 = vadd.f32 %v499, %v501
        %v504 = vadd.f32 %v500, %v502
        %v505 = vrsqrt.pop %v503
        %v506 = vmul.f32 %v503, %v505
        %vm507 = vcmp.eq.f32.partialorder %v503, inf
        %v508 = vsel %vm507, %v503, %v506
        %vm509 = vcmp.eq.f32.partialorder %v503, 0.0
        %v510 = vand.u32 %v503, 2147483648
        %v511 = vsel %vm509, %v510, %v508
        %v512 = vrsqrt.pop %v504
        %v513 = vmul.f32 %v504, %v512
        %vm514 = vcmp.eq.f32.partialorder %v504, inf
        %v515 = vsel %vm514, %v504, %v513
        %vm516 = vcmp.eq.f32.partialorder %v504, 0.0
        %v517 = vand.u32 %v504, 2147483648
        %v518 = vsel %vm516, %v517, %v515
        %v519 = vld [vmem:[%s2 + $0x20] sm:$0xff]
        %v520 = vld [vmem:[%s2 + $0x28] sm:$0xff]
        %v521 = vld [vmem:[%s2 + $0x30] sm:$0xff]
        %v522 = vld [vmem:[%s2 + $0x38] sm:$0xff]
        %v523 = vld [vmem:[%s3] sm:$0xff]
        %v524 = vld [vmem:[%s3 + $0x8] sm:$0xff]
        %v525 = vld [vmem:[%s3 + $0x10] sm:$0xff]
        %v526 = vld [vmem:[%s3 + $0x18] sm:$0xff]
        %v527 = vld [vmem:[%s3 + $0x20] sm:$0xff]
        %v528 = vld [vmem:[%s3 + $0x28] sm:$0xff]
        %v529 = vld [vmem:[%s3 + $0x30] sm:$0xff]
        %v530 = vld [vmem:[%s3 + $0x38] sm:$0xff]
        %vm531 = vcmask 130048
        %v533 = vsel %vm531, %v519, 0
        %v536 = vsel %vm531, %v520, 0
        %v539 = vsel %vm531, %v521, 0
        %v542 = vsel %vm531, %v522, 0
        %544 = vmatprep.subr.mxu0 %v475
        %545 = vmatpush1.msra.mxu0 %v473
        %546 = vmatprep.subr.mxu0 %v518
        %547 = vmatpush1.msra.mxu0 %v511
        %548 = vmatprep.subr.mxu0 0.0
        %549 = vmatpush1.msra.mxu0 0.0
        %550 = vmatprep.subr.mxu0 0.0
        %551 = vmatpush1.msra.mxu0 0.0
        %552 = vmatprep.subr.mxu0 0.0
        %553 = vmatpush1.msra.mxu0 0.0
        %554 = vmatprep.subr.mxu0 0.0
        %555 = vmatpush1.msra.mxu0 0.0
        %556 = vmatprep.subr.mxu0 0.0
        %557 = vmatpush1.msra.mxu0 0.0
        %558 = vmatprep.subr.mxu0 0.0
        %559 = vmatpush1.msra.mxu0 0.0
        %560 = vmatprep.subr.mxu0 0.0
        %561 = vmatpush1.msra.mxu0 0.0
        %562 = vmatprep.subr.mxu0 0.0
        %563 = vmatpush1.msra.mxu0 0.0
        %564 = vmatprep.subr.mxu0 0.0
        %565 = vmatpush1.msra.mxu0 0.0
        %566 = vmatprep.subr.mxu0 0.0
        %567 = vmatpush1.msra.mxu0 0.0
        %568 = vmatprep.subr.mxu0 0.0
        %569 = vmatpush1.msra.mxu0 0.0
        %570 = vmatprep.subr.mxu0 0.0
        %571 = vmatpush1.msra.mxu0 0.0
        %572 = vmatprep.subr.mxu0 0.0
        %573 = vmatpush1.msra.mxu0 0.0
        %574 = vmatprep.subr.mxu0 0.0
        %575 = vmatpush1.msra.mxu0 0.0
        %576 = vmatprep.subr.mxu0 0.0
        %577 = vmatpush1.msra.mxu0 0.0
        %578 = vmatprep.subr.mxu0 0.0
        %579 = vmatpush1.msra.mxu0 0.0
        %580 = vmatprep.subr.mxu0 0.0
        %581 = vmatpush1.msra.mxu0 0.0
        %582 = vmatprep.subr.mxu0 0.0
        %583 = vmatpush1.msra.mxu0 0.0
        %584 = vmatprep.subr.mxu0 0.0
        %585 = vmatpush1.msra.mxu0 0.0
        %586 = vmatprep.subr.mxu0 0.0
        %587 = vmatpush1.msra.mxu0 0.0
        %588 = vmatprep.subr.mxu0 0.0
        %589 = vmatpush1.msra.mxu0 0.0
        %590 = vmatprep.subr.mxu0 0.0
        %591 = vmatpush1.msra.mxu0 0.0
        %592 = vmatprep.subr.mxu0 0.0
        %593 = vmatpush1.msra.mxu0 0.0
        %594 = vmatprep.subr.mxu0 0.0
        %595 = vmatpush1.msra.mxu0 0.0
        %596 = vmatprep.subr.mxu0 0.0
        %597 = vmatpush1.msra.mxu0 0.0
        %598 = vmatprep.subr.mxu0 0.0
        %599 = vmatpush1.msra.mxu0 0.0
        %600 = vmatprep.subr.mxu0 0.0
        %601 = vmatpush1.msra.mxu0 0.0
        %602 = vmatprep.subr.mxu0 0.0
        %603 = vmatpush1.msra.mxu0 0.0
        %604 = vmatprep.subr.mxu0 0.0
        %605 = vmatpush1.msra.mxu0 0.0
        %606 = vmatprep.subr.mxu0 0.0
        %607 = vmatpush1.msra.mxu0 0.0
        %608 = vmatprep.mubr.f32.mxu0 0.0
        %609 = vmatmul.mubr.f32.gmra.mrb[0].mxu0 %v533
        %v610 = vpop.f32.mrb[0].mxu0
        %v611 = vadd.f32 %v523, %v610
        %v612 = vpop.f32.mrb[0].mxu0
        %v613 = vadd.f32 %v524, %v612
        %614 = vmatprep.mubr.f32.mxu0 0.0
        %615 = vmatmul.mubr.f32.gmra.mrb[0].mxu0 %v536
        %v616 = vpop.f32.mrb[0].mxu0
        %v617 = vadd.f32 %v525, %v616
        %v618 = vpop.f32.mrb[0].mxu0
        %v619 = vadd.f32 %v526, %v618
        %620 = vmatprep.mubr.f32.mxu0 0.0
        %621 = vmatmul.mubr.f32.gmra.mrb[0].mxu0 %v539
        %v622 = vpop.f32.mrb[0].mxu0
        %v623 = vadd.f32 %v527, %v622
        %v624 = vpop.f32.mrb[0].mxu0
        %v625 = vadd.f32 %v528, %v624
        %626 = vmatprep.mubr.f32.mxu0 0.0
        %627 = vmatmul.mubr.f32.gmra.mrb[0].mxu0 %v542
        %v628 = vpop.f32.mrb[0].mxu0
        %v629 = vadd.f32 %v529, %v628
        %v630 = vpop.f32.mrb[0].mxu0
        %v631 = vadd.f32 %v530, %v630
        %632 = vdwg.mxu0
        %v633 = vxor.u32 %v611, 2147483648
        %v634 = vxor.u32 %v613, 2147483648
        %v635 = vxor.u32 %v617, 2147483648
        %v636 = vxor.u32 %v619, 2147483648
        %v637 = vxor.u32 %v623, 2147483648
        %v638 = vxor.u32 %v625, 2147483648
        %v639 = vxor.u32 %v629, 2147483648
        %v640 = vxor.u32 %v631, 2147483648
        %v641 = vmul.f32 %v633, 1.442695
        %v642 = vpow.pop %v641
        %v643 = vmul.f32 %v634, 1.442695
        %v644 = vpow.pop %v643
        %v645 = vmul.f32 %v635, 1.442695
        %v646 = vpow.pop %v645
        %v647 = vmul.f32 %v636, 1.442695
        %v648 = vpow.pop %v647
        %v649 = vmul.f32 %v637, 1.442695
        %v650 = vpow.pop %v649
        %v651 = vmul.f32 %v638, 1.442695
        %v652 = vpow.pop %v651
        %v653 = vmul.f32 %v639, 1.442695
        %v654 = vpow.pop %v653
        %v655 = vmul.f32 %v640, 1.442695
        %v656 = vpow.pop %v655
        %v657 = vadd.f32 %v642, 1.0
        %v658 = vadd.f32 %v644, 1.0
        %v659 = vadd.f32 %v646, 1.0
        %v660 = vadd.f32 %v648, 1.0
        %v661 = vadd.f32 %v650, 1.0
        %v662 = vadd.f32 %v652, 1.0
        %v663 = vadd.f32 %v654, 1.0
        %v664 = vadd.f32 %v656, 1.0
        %v665 = vrcp.pop %v657
        %v666 = vmul.f32 1.0, %v665
        %v667 = vrcp.pop %v658
        %v668 = vmul.f32 1.0, %v667
        %v669 = vrcp.pop %v659
        %v670 = vmul.f32 1.0, %v669
        %v671 = vrcp.pop %v660
        %v672 = vmul.f32 1.0, %v671
        %v673 = vrcp.pop %v661
        %v674 = vmul.f32 1.0, %v673
        %v675 = vrcp.pop %v662
        %v676 = vmul.f32 1.0, %v675
        %v677 = vrcp.pop %v663
        %v678 = vmul.f32 1.0, %v677
        %v679 = vrcp.pop %v664
        %v680 = vmul.f32 1.0, %v679
        %v681 = vmul.f32 %v611, %v666
        %v682 = vmul.f32 %v613, %v668
        %v683 = vmul.f32 %v617, %v670
        %v684 = vmul.f32 %v619, %v672
        %v685 = vmul.f32 %v623, %v674
        %v686 = vmul.f32 %v625, %v676
        %v687 = vmul.f32 %v629, %v678
        %v688 = vmul.f32 %v631, %v680
        %v689 = vld [vmem:[%s2 + $0x40] sm:$0xff]
        %v690 = vld [vmem:[%s2 + $0x48] sm:$0xff]
        %v691 = vld [vmem:[%s2 + $0x50] sm:$0xff]
        %v692 = vld [vmem:[%s2 + $0x58] sm:$0xff]
        %v693 = vld [vmem:[%s3 + $0x40] sm:$0xff]
        %v694 = vld [vmem:[%s3 + $0x48] sm:$0xff]
        %v695 = vld [vmem:[%s3 + $0x50] sm:$0xff]
        %v696 = vld [vmem:[%s3 + $0x58] sm:$0xff]
        %v697 = vld [vmem:[%s3 + $0x60] sm:$0xff]
        %v698 = vld [vmem:[%s3 + $0x68] sm:$0xff]
        %v699 = vld [vmem:[%s3 + $0x70] sm:$0xff]
        %v700 = vld [vmem:[%s3 + $0x78] sm:$0xff]
        %v702 = vsel %vm297, %v689, 0
        %v705 = vsel %vm297, %v690, 0
        %v708 = vsel %vm297, %v691, 0
        %v711 = vsel %vm297, %v692, 0
        %713 = vmatprep.subr.mxu0 %v682
        %714 = vmatpush1.msra.mxu0 %v681
        %715 = vmatprep.subr.mxu0 %v684
        %716 = vmatpush1.msra.mxu0 %v683
        %717 = vmatprep.subr.mxu0 %v686
        %718 = vmatpush1.msra.mxu0 %v685
        %719 = vmatprep.subr.mxu0 %v688
        %720 = vmatpush1.msra.mxu0 %v687
        %721 = vmatprep.subr.mxu0 0.0
        %722 = vmatpush1.msra.mxu0 0.0
        %723 = vmatprep.subr.mxu0 0.0
        %724 = vmatpush1.msra.mxu0 0.0
        %725 = vmatprep.subr.mxu0 0.0
        %726 = vmatpush1.msra.mxu0 0.0
        %727 = vmatprep.subr.mxu0 0.0
        %728 = vmatpush1.msra.mxu0 0.0
        %729 = vmatprep.subr.mxu0 0.0
        %730 = vmatpush1.msra.mxu0 0.0
        %731 = vmatprep.subr.mxu0 0.0
        %732 = vmatpush1.msra.mxu0 0.0
        %733 = vmatprep.subr.mxu0 0.0
        %734 = vmatpush1.msra.mxu0 0.0
        %735 = vmatprep.subr.mxu0 0.0
        %736 = vmatpush1.msra.mxu0 0.0
        %737 = vmatprep.subr.mxu0 0.0
        %738 = vmatpush1.msra.mxu0 0.0
        %739 = vmatprep.subr.mxu0 0.0
        %740 = vmatpush1.msra.mxu0 0.0
        %741 = vmatprep.subr.mxu0 0.0
        %742 = vmatpush1.msra.mxu0 0.0
        %743 = vmatprep.subr.mxu0 0.0
        %744 = vmatpush1.msra.mxu0 0.0
        %745 = vmatprep.subr.mxu0 0.0
        %746 = vmatpush1.msra.mxu0 0.0
        %747 = vmatprep.subr.mxu0 0.0
        %748 = vmatpush1.msra.mxu0 0.0
        %749 = vmatprep.subr.mxu0 0.0
        %750 = vmatpush1.msra.mxu0 0.0
        %751 = vmatprep.subr.mxu0 0.0
        %752 = vmatpush1.msra.mxu0 0.0
        %753 = vmatprep.subr.mxu0 0.0
        %754 = vmatpush1.msra.mxu0 0.0
        %755 = vmatprep.subr.mxu0 0.0
        %756 = vmatpush1.msra.mxu0 0.0
        %757 = vmatprep.subr.mxu0 0.0
        %758 = vmatpush1.msra.mxu0 0.0
        %759 = vmatprep.subr.mxu0 0.0
        %760 = vmatpush1.msra.mxu0 0.0
        %761 = vmatprep.subr.mxu0 0.0
        %762 = vmatpush1.msra.mxu0 0.0
        %763 = vmatprep.subr.mxu0 0.0
        %764 = vmatpush1.msra.mxu0 0.0
        %765 = vmatprep.subr.mxu0 0.0
        %766 = vmatpush1.msra.mxu0 0.0
        %767 = vmatprep.subr.mxu0 0.0
        %768 = vmatpush1.msra.mxu0 0.0
        %769 = vmatprep.subr.mxu0 0.0
        %770 = vmatpush1.msra.mxu0 0.0
        %771 = vmatprep.subr.mxu0 0.0
        %772 = vmatpush1.msra.mxu0 0.0
        %773 = vmatprep.subr.mxu0 0.0
        %774 = vmatpush1.msra.mxu0 0.0
        %775 = vmatprep.subr.mxu0 0.0
        %776 = vmatpush1.msra.mxu0 0.0
        %777 = vmatprep.mubr.f32.mxu0 0.0
        %778 = vmatmul.mubr.f32.gmra.mrb[0].mxu0 %v702
        %v779 = vpop.f32.mrb[0].mxu0
        %v780 = vadd.f32 %v693, %v779
        %v781 = vpop.f32.mrb[0].mxu0
        %v782 = vadd.f32 %v694, %v781
        %783 = vmatprep.mubr.f32.mxu0 0.0
        %784 = vmatmul.mubr.f32.gmra.mrb[0].mxu0 %v705
        %v785 = vpop.f32.mrb[0].mxu0
        %v786 = vadd.f32 %v695, %v785
        %v787 = vpop.f32.mrb[0].mxu0
        %v788 = vadd.f32 %v696, %v787
        %789 = vmatprep.mubr.f32.mxu0 0.0
        %790 = vmatmul.mubr.f32.gmra.mrb[0].mxu0 %v708
        %v791 = vpop.f32.mrb[0].mxu0
        %v792 = vadd.f32 %v697, %v791
        %v793 = vpop.f32.mrb[0].mxu0
        %v794 = vadd.f32 %v698, %v793
        %795 = vmatprep.mubr.f32.mxu0 0.0
        %796 = vmatmul.mubr.f32.gmra.mrb[0].mxu0 %v711
        %v797 = vpop.f32.mrb[0].mxu0
        %v798 = vadd.f32 %v699, %v797
        %v799 = vpop.f32.mrb[0].mxu0
        %v800 = vadd.f32 %v700, %v799
        %801 = vdwg.mxu0
        %v802 = vmul.f32 %v479, %v786
        %v803 = vmul.f32 %v481, %v788
        %v804 = vmul.f32 %v485, %v786
        %v805 = vmul.f32 %v487, %v788
        %v806 = vmul.f32 %v491, %v786
        %v807 = vmul.f32 %v493, %v788
        %v808 = vmul.f32 %v479, %v798
        %v809 = vmul.f32 %v481, %v800
        %v810 = vmul.f32 %v485, %v798
        %v811 = vmul.f32 %v487, %v800
        %v812 = vmul.f32 %v491, %v798
        %v813 = vmul.f32 %v493, %v800
        %v814 = vld [vmem:[%s2 + $0x80] sm:$0xff]
        %v815 = vld [vmem:[%s2 + $0x88] sm:$0xff]
        %v816 = vld [vmem:[%s2 + $0x90] sm:$0xff]
        %v817 = vld [vmem:[%s2 + $0x98] sm:$0xff]
        %v818 = vld [vmem:[%s2 + $0xa0] sm:$0xff]
        %v819 = vld [vmem:[%s2 + $0xa8] sm:$0xff]
        %v820 = vld [vmem:[%s2 + $0xb0] sm:$0xff]
        %v821 = vld [vmem:[%s2 + $0xb8] sm:$0xff]
        %vm822 = vcmask 523264
        %v824 = vsel %vm822, %v814, 0
        %v827 = vsel %vm822, %v815, 0
        %v830 = vsel %vm822, %v816, 0
        %v833 = vsel %vm822, %v817, 0
        %v836 = vsel %vm822, %v818, 0
        %v839 = vsel %vm822, %v819, 0
        %v842 = vsel %vm822, %v820, 0
        %v845 = vsel %vm822, %v821, 0
        %847 = vmatprep.subr.mxu0 %v782
        %848 = vmatpush1.msra.mxu0 %v780
        %849 = vmatprep.subr.mxu0 %v794
        %850 = vmatpush1.msra.mxu0 %v792
        %851 = vmatprep.subr.mxu0 %v803
        %852 = vmatpush1.msra.mxu0 %v802
        %853 = vmatprep.subr.mxu0 %v805
        %854 = vmatpush1.msra.mxu0 %v804
        %855 = vmatprep.subr.mxu0 %v807
        %856 = vmatpush1.msra.mxu0 %v806
        %857 = vmatprep.subr.mxu0 %v809
        %858 = vmatpush1.msra.mxu0 %v808
        %859 = vmatprep.subr.mxu0 %v811
        %860 = vmatpush1.msra.mxu0 %v810
        %861 = vmatprep.subr.mxu0 %v813
        %862 = vmatpush1.msra.mxu0 %v812
        %863 = vmatprep.subr.mxu0 0.0
        %864 = vmatpush1.msra.mxu0 0.0
        %865 = vmatprep.subr.mxu0 0.0
        %866 = vmatpush1.msra.mxu0 0.0
        %867 = vmatprep.subr.mxu0 0.0
        %868 = vmatpush1.msra.mxu0 0.0
        %869 = vmatprep.subr.mxu0 0.0
        %870 = vmatpush1.msra.mxu0 0.0
        %871 = vmatprep.subr.mxu0 0.0
        %872 = vmatpush1.msra.mxu0 0.0
        %873 = vmatprep.subr.mxu0 0.0
        %874 = vmatpush1.msra.mxu0 0.0
        %875 = vmatprep.subr.mxu0 0.0
        %876 = vmatpush1.msra.mxu0 0.0
        %877 = vmatprep.subr.mxu0 0.0
        %878 = vmatpush1.msra.mxu0 0.0
        %879 = vmatprep.subr.mxu0 0.0
        %880 = vmatpush1.msra.mxu0 0.0
        %881 = vmatprep.subr.mxu0 0.0
        %882 = vmatpush1.msra.mxu0 0.0
        %883 = vmatprep.subr.mxu0 0.0
        %884 = vmatpush1.msra.mxu0 0.0
        %885 = vmatprep.subr.mxu0 0.0
        %886 = vmatpush1.msra.mxu0 0.0
        %887 = vmatprep.subr.mxu0 0.0
        %888 = vmatpush1.msra.mxu0 0.0
        %889 = vmatprep.subr.mxu0 0.0
        %890 = vmatpush1.msra.mxu0 0.0
        %891 = vmatprep.subr.mxu0 0.0
        %892 = vmatpush1.msra.mxu0 0.0
        %893 = vmatprep.subr.mxu0 0.0
        %894 = vmatpush1.msra.mxu0 0.0
        %895 = vmatprep.subr.mxu0 0.0
        %896 = vmatpush1.msra.mxu0 0.0
        %897 = vmatprep.subr.mxu0 0.0
        %898 = vmatpush1.msra.mxu0 0.0
        %899 = vmatprep.subr.mxu0 0.0
        %900 = vmatpush1.msra.mxu0 0.0
        %901 = vmatprep.subr.mxu0 0.0
        %902 = vmatpush1.msra.mxu0 0.0
        %903 = vmatprep.subr.mxu0 0.0
        %904 = vmatpush1.msra.mxu0 0.0
        %905 = vmatprep.subr.mxu0 0.0
        %906 = vmatpush1.msra.mxu0 0.0
        %907 = vmatprep.subr.mxu0 0.0
        %908 = vmatpush1.msra.mxu0 0.0
        %909 = vmatprep.subr.mxu0 0.0
        %910 = vmatpush1.msra.mxu0 0.0
        %911 = vmatprep.mubr.f32.mxu0 0.0
        %912 = vmatmul.mubr.f32.gmra.mrb[0].mxu0 %v824
        %v913 = vpop.f32.mrb[0].mxu0
        %v914 = vadd.f32 0.0, %v913
        %v915 = vpop.f32.mrb[0].mxu0
        %v916 = vadd.f32 0.0, %v915
        %917 = vmatprep.mubr.f32.mxu0 0.0
        %918 = vmatmul.mubr.f32.gmra.mrb[0].mxu0 %v827
        %v919 = vpop.f32.mrb[0].mxu0
        %v920 = vadd.f32 0.0, %v919
        %v921 = vpop.f32.mrb[0].mxu0
        %v922 = vadd.f32 0.0, %v921
        %923 = vmatprep.mubr.f32.mxu0 0.0
        %924 = vmatmul.mubr.f32.gmra.mrb[0].mxu0 %v830
        %v925 = vpop.f32.mrb[0].mxu0
        %v926 = vadd.f32 0.0, %v925
        %v927 = vpop.f32.mrb[0].mxu0
        %v928 = vadd.f32 0.0, %v927
        %929 = vmatprep.mubr.f32.mxu0 0.0
        %930 = vmatmul.mubr.f32.gmra.mrb[0].mxu0 %v833
        %v931 = vpop.f32.mrb[0].mxu0
        %v932 = vadd.f32 0.0, %v931
        %v933 = vpop.f32.mrb[0].mxu0
        %v934 = vadd.f32 0.0, %v933
        %935 = vmatprep.mubr.f32.mxu0 0.0
        %936 = vmatmul.mubr.f32.gmra.mrb[0].mxu0 %v836
        %v937 = vpop.f32.mrb[0].mxu0
        %v938 = vadd.f32 0.0, %v937
        %v939 = vpop.f32.mrb[0].mxu0
        %v940 = vadd.f32 0.0, %v939
        %941 = vmatprep.mubr.f32.mxu0 0.0
        %942 = vmatmul.mubr.f32.gmra.mrb[0].mxu0 %v839
        %v943 = vpop.f32.mrb[0].mxu0
        %v944 = vadd.f32 0.0, %v943
        %v945 = vpop.f32.mrb[0].mxu0
        %v946 = vadd.f32 0.0, %v945
        %947 = vmatprep.mubr.f32.mxu0 0.0
        %948 = vmatmul.mubr.f32.gmra.mrb[0].mxu0 %v842
        %v949 = vpop.f32.mrb[0].mxu0
        %v950 = vadd.f32 0.0, %v949
        %v951 = vpop.f32.mrb[0].mxu0
        %v952 = vadd.f32 0.0, %v951
        %953 = vmatprep.mubr.f32.mxu0 0.0
        %954 = vmatmul.mubr.f32.gmra.mrb[0].mxu0 %v845
        %v955 = vpop.f32.mrb[0].mxu0
        %v956 = vadd.f32 0.0, %v955
        %v957 = vpop.f32.mrb[0].mxu0
        %v958 = vadd.f32 0.0, %v957
        %959 = vdwg.mxu0
        %v960 = vld [vmem:[%s3 + $0x80] sm:$0xff]
        %v961 = vld [vmem:[%s3 + $0x88] sm:$0xff]
        %v962 = vld [vmem:[%s3 + $0x90] sm:$0xff]
        %v963 = vld [vmem:[%s3 + $0x98] sm:$0xff]
        %v964 = vadd.f32 %v914, %v960
        %v965 = vadd.f32 %v916, %v961
        %v966 = vadd.f32 %v920, %v962
        %v967 = vadd.f32 %v922, %v963
        %v968 = vld [vmem:[%s3 + $0xe0] sm:$0xff]
        %v969 = vld [vmem:[%s3 + $0xe8] sm:$0xff]
        %v970 = vld [vmem:[%s3 + $0xf0] sm:$0xff]
        %v971 = vld [vmem:[%s3 + $0xf8] sm:$0xff]
        %v972 = vld [vmem:[%s3 + $0x100] sm:$0xff]
        %v973 = vld [vmem:[%s3 + $0x108] sm:$0xff]
        %v974 = vld [vmem:[%s3 + $0x110] sm:$0xff]
        %v975 = vld [vmem:[%s3 + $0x118] sm:$0xff]
        %v976 = vld [vmem:[%s3 + $0x120] sm:$0xff]
        %v977 = vld [vmem:[%s3 + $0x128] sm:$0xff]
        %v978 = vmul.f32 %v926, %v944
        %v979 = vmul.f32 %v928, %v946
        %v980 = vmul.f32 %v932, %v950
        %v981 = vmul.f32 %v934, %v952
        %v982 = vadd.f32 %v978, %v980
        %v983 = vadd.f32 %v979, %v981
        %v984 = vmul.f32 %v938, %v956
        %v985 = vmul.f32 %v940, %v958
        %v986 = vadd.f32 %v982, %v984
        %v987 = vadd.f32 %v983, %v985
        %v988 = vmul.f32 %v964, %v966
        %v989 = vmul.f32 %v965, %v967
        %v990 = vmul.f32 %v968, %v988
        %v991 = vmul.f32 %v969, %v989
        %v992 = vmul.f32 %v974, %v986
        %v993 = vmul.f32 %v975, %v987
        %v994 = vadd.f32 %v990, %v992
        %v995 = vadd.f32 %v991, %v993
        %v996 = vadd.f32 %v994, %v473
        %v997 = vadd.f32 %v995, %v475
        %v998 = vmul.f32 %v932, %v956
        %v999 = vmul.f32 %v934, %v958
        %v1000 = vmul.f32 %v938, %v950
        %v1001 = vmul.f32 %v940, %v952
        %v1002 = vsub.f32 %v998, %v1000
        %v1003 = vsub.f32 %v999, %v1001
        %v1004 = vmul.f32 %v938, %v944
        %v1005 = vmul.f32 %v940, %v946
        %v1006 = vmul.f32 %v926, %v956
        %v1007 = vmul.f32 %v928, %v958
        %v1008 = vsub.f32 %v1004, %v1006
        %v1009 = vsub.f32 %v1005, %v1007
        %v1010 = vmul.f32 %v926, %v950
        %v1011 = vmul.f32 %v928, %v952
        %v1012 = vmul.f32 %v932, %v944
        %v1013 = vmul.f32 %v934, %v946
        %v1014 = vsub.f32 %v1010, %v1012
        %v1015 = vsub.f32 %v1011, %v1013
        %v1016 = vmul.f32 %v964, %v944
        %v1017 = vmul.f32 %v965, %v946
        %v1018 = vmul.f32 %v970, %v1016
        %v1019 = vmul.f32 %v971, %v1017
        %v1020 = vmul.f32 %v926, %v966
        %v1021 = vmul.f32 %v928, %v967
        %v1022 = vmul.f32 %v972, %v1020
        %v1023 = vmul.f32 %v973, %v1021
        %v1024 = vadd.f32 %v1018, %v1022
        %v1025 = vadd.f32 %v1019, %v1023
        %v1026 = vmul.f32 %v976, %v1002
        %v1027 = vmul.f32 %v977, %v1003
        %v1028 = vadd.f32 %v1024, %v1026
        %v1029 = vadd.f32 %v1025, %v1027
        %v1030 = vadd.f32 %v1028, %v479
        %v1031 = vadd.f32 %v1029, %v481
        %v1032 = vmul.f32 %v964, %v950
        %v1033 = vmul.f32 %v965, %v952
        %v1034 = vmul.f32 %v970, %v1032
        %v1035 = vmul.f32 %v971, %v1033
        %v1036 = vmul.f32 %v932, %v966
        %v1037 = vmul.f32 %v934, %v967
        %v1038 = vmul.f32 %v972, %v1036
        %v1039 = vmul.f32 %v973, %v1037
        %v1040 = vadd.f32 %v1034, %v1038
        %v1041 = vadd.f32 %v1035, %v1039
        %v1042 = vmul.f32 %v976, %v1008
        %v1043 = vmul.f32 %v977, %v1009
        %v1044 = vadd.f32 %v1040, %v1042
        %v1045 = vadd.f32 %v1041, %v1043
        %v1046 = vadd.f32 %v1044, %v485
        %v1047 = vadd.f32 %v1045, %v487
        %v1048 = vmul.f32 %v964, %v956
        %v1049 = vmul.f32 %v965, %v958
        %v1050 = vmul.f32 %v970, %v1048
        %v1051 = vmul.f32 %v971, %v1049
        %v1052 = vmul.f32 %v938, %v966
        %v1053 = vmul.f32 %v940, %v967
        %v1054 = vmul.f32 %v972, %v1052
        %v1055 = vmul.f32 %v973, %v1053
        %v1056 = vadd.f32 %v1050, %v1054
        %v1057 = vadd.f32 %v1051, %v1055
        %v1058 = vmul.f32 %v976, %v1014
        %v1059 = vmul.f32 %v977, %v1015
        %v1060 = vadd.f32 %v1056, %v1058
        %v1061 = vadd.f32 %v1057, %v1059
        %v1062 = vadd.f32 %v1060, %v491
        %v1063 = vadd.f32 %v1061, %v493
        %v1064 = vmul.f32 %v1030, %v1030
        %v1065 = vmul.f32 %v1031, %v1031
        %v1066 = vmul.f32 %v1046, %v1046
        %v1067 = vmul.f32 %v1047, %v1047
        %v1068 = vadd.f32 %v1064, %v1066
        %v1069 = vadd.f32 %v1065, %v1067
        %v1070 = vmul.f32 %v1062, %v1062
        %v1071 = vmul.f32 %v1063, %v1063
        %v1072 = vadd.f32 %v1068, %v1070
        %v1073 = vadd.f32 %v1069, %v1071
        %v1074 = vrsqrt.pop %v1072
        %v1075 = vmul.f32 %v1072, %v1074
        %vm1076 = vcmp.eq.f32.partialorder %v1072, inf
        %v1077 = vsel %vm1076, %v1072, %v1075
        %vm1078 = vcmp.eq.f32.partialorder %v1072, 0.0
        %v1079 = vand.u32 %v1072, 2147483648
        %v1080 = vsel %vm1078, %v1079, %v1077
        %v1081 = vrsqrt.pop %v1073
        %v1082 = vmul.f32 %v1073, %v1081
        %vm1083 = vcmp.eq.f32.partialorder %v1073, inf
        %v1084 = vsel %vm1083, %v1073, %v1082
        %vm1085 = vcmp.eq.f32.partialorder %v1073, 0.0
        %v1086 = vand.u32 %v1073, 2147483648
        %v1087 = vsel %vm1085, %v1086, %v1084
        %v1088 = vld [vmem:[%s2 + $0x60] sm:$0xff]
        %v1089 = vld [vmem:[%s2 + $0x68] sm:$0xff]
        %v1090 = vld [vmem:[%s3 + $0xa0] sm:$0xff]
        %v1091 = vld [vmem:[%s3 + $0xa8] sm:$0xff]
        %v1092 = vld [vmem:[%s3 + $0xb0] sm:$0xff]
        %v1093 = vld [vmem:[%s3 + $0xb8] sm:$0xff]
        %v1095 = vsel %vm531, %v1088, 0
        %v1098 = vsel %vm531, %v1089, 0
        %1100 = vmatprep.subr.mxu0 %v997
        %1101 = vmatpush1.msra.mxu0 %v996
        %1102 = vmatprep.subr.mxu0 %v1087
        %1103 = vmatpush1.msra.mxu0 %v1080
        %1104 = vmatprep.subr.mxu0 0.0
        %1105 = vmatpush1.msra.mxu0 0.0
        %1106 = vmatprep.subr.mxu0 0.0
        %1107 = vmatpush1.msra.mxu0 0.0
        %1108 = vmatprep.subr.mxu0 0.0
        %1109 = vmatpush1.msra.mxu0 0.0
        %1110 = vmatprep.subr.mxu0 0.0
        %1111 = vmatpush1.msra.mxu0 0.0
        %1112 = vmatprep.subr.mxu0 0.0
        %1113 = vmatpush1.msra.mxu0 0.0
        %1114 = vmatprep.subr.mxu0 0.0
        %1115 = vmatpush1.msra.mxu0 0.0
        %1116 = vmatprep.subr.mxu0 0.0
        %1117 = vmatpush1.msra.mxu0 0.0
        %1118 = vmatprep.subr.mxu0 0.0
        %1119 = vmatpush1.msra.mxu0 0.0
        %1120 = vmatprep.subr.mxu0 0.0
        %1121 = vmatpush1.msra.mxu0 0.0
        %1122 = vmatprep.subr.mxu0 0.0
        %1123 = vmatpush1.msra.mxu0 0.0
        %1124 = vmatprep.subr.mxu0 0.0
        %1125 = vmatpush1.msra.mxu0 0.0
        %1126 = vmatprep.subr.mxu0 0.0
        %1127 = vmatpush1.msra.mxu0 0.0
        %1128 = vmatprep.subr.mxu0 0.0
        %1129 = vmatpush1.msra.mxu0 0.0
        %1130 = vmatprep.subr.mxu0 0.0
        %1131 = vmatpush1.msra.mxu0 0.0
        %1132 = vmatprep.subr.mxu0 0.0
        %1133 = vmatpush1.msra.mxu0 0.0
        %1134 = vmatprep.subr.mxu0 0.0
        %1135 = vmatpush1.msra.mxu0 0.0
        %1136 = vmatprep.subr.mxu0 0.0
        %1137 = vmatpush1.msra.mxu0 0.0
        %1138 = vmatprep.subr.mxu0 0.0
        %1139 = vmatpush1.msra.mxu0 0.0
        %1140 = vmatprep.subr.mxu0 0.0
        %1141 = vmatpush1.msra.mxu0 0.0
        %1142 = vmatprep.subr.mxu0 0.0
        %1143 = vmatpush1.msra.mxu0 0.0
        %1144 = vmatprep.subr.mxu0 0.0
        %1145 = vmatpush1.msra.mxu0 0.0
        %1146 = vmatprep.subr.mxu0 0.0
        %1147 = vmatpush1.msra.mxu0 0.0
        %1148 = vmatprep.subr.mxu0 0.0
        %1149 = vmatpush1.msra.mxu0 0.0
        %1150 = vmatprep.subr.mxu0 0.0
        %1151 = vmatpush1.msra.mxu0 0.0
        %1152 = vmatprep.subr.mxu0 0.0
        %1153 = vmatpush1.msra.mxu0 0.0
        %1154 = vmatprep.subr.mxu0 0.0
        %1155 = vmatpush1.msra.mxu0 0.0
        %1156 = vmatprep.subr.mxu0 0.0
        %1157 = vmatpush1.msra.mxu0 0.0
        %1158 = vmatprep.subr.mxu0 0.0
        %1159 = vmatpush1.msra.mxu0 0.0
        %1160 = vmatprep.subr.mxu0 0.0
        %1161 = vmatpush1.msra.mxu0 0.0
        %1162 = vmatprep.subr.mxu0 0.0
        %1163 = vmatpush1.msra.mxu0 0.0
        %1164 = vmatprep.mubr.f32.mxu0 0.0
        %1165 = vmatmul.mubr.f32.gmra.mrb[0].mxu0 %v1095
        %v1166 = vpop.f32.mrb[0].mxu0
        %v1167 = vadd.f32 %v1090, %v1166
        %v1168 = vpop.f32.mrb[0].mxu0
        %v1169 = vadd.f32 %v1091, %v1168
        %1170 = vmatprep.mubr.f32.mxu0 0.0
        %1171 = vmatmul.mubr.f32.gmra.mrb[0].mxu0 %v1098
        %v1172 = vpop.f32.mrb[0].mxu0
        %v1173 = vadd.f32 %v1092, %v1172
        %v1174 = vpop.f32.mrb[0].mxu0
        %v1175 = vadd.f32 %v1093, %v1174
        %1176 = vdwg.mxu0
        %v1177 = vxor.u32 %v1167, 2147483648
        %v1178 = vxor.u32 %v1169, 2147483648
        %v1179 = vxor.u32 %v1173, 2147483648
        %v1180 = vxor.u32 %v1175, 2147483648
        %v1181 = vmul.f32 %v1177, 1.442695
        %v1182 = vpow.pop %v1181
        %v1183 = vmul.f32 %v1178, 1.442695
        %v1184 = vpow.pop %v1183
        %v1185 = vmul.f32 %v1179, 1.442695
        %v1186 = vpow.pop %v1185
        %v1187 = vmul.f32 %v1180, 1.442695
        %v1188 = vpow.pop %v1187
        %v1189 = vadd.f32 %v1182, 1.0
        %v1190 = vadd.f32 %v1184, 1.0
        %v1191 = vadd.f32 %v1186, 1.0
        %v1192 = vadd.f32 %v1188, 1.0
        %v1193 = vrcp.pop %v1189
        %v1194 = vmul.f32 1.0, %v1193
        %v1195 = vrcp.pop %v1190
        %v1196 = vmul.f32 1.0, %v1195
        %v1197 = vrcp.pop %v1191
        %v1198 = vmul.f32 1.0, %v1197
        %v1199 = vrcp.pop %v1192
        %v1200 = vmul.f32 1.0, %v1199
        %v1201 = vmul.f32 %v1167, %v1194
        %v1202 = vmul.f32 %v1169, %v1196
        %v1203 = vmul.f32 %v1173, %v1198
        %v1204 = vmul.f32 %v1175, %v1200
        %v1205 = vld [vmem:[%s2 + $0x70] sm:$0xff]
        %v1206 = vld [vmem:[%s2 + $0x78] sm:$0xff]
        %v1207 = vld [vmem:[%s3 + $0xc0] sm:$0xff]
        %v1208 = vld [vmem:[%s3 + $0xc8] sm:$0xff]
        %v1209 = vld [vmem:[%s3 + $0xd0] sm:$0xff]
        %v1210 = vld [vmem:[%s3 + $0xd8] sm:$0xff]
        %v1212 = vsel %vm531, %v1205, 0
        %v1215 = vsel %vm531, %v1206, 0
        %1217 = vmatprep.subr.mxu0 %v1202
        %1218 = vmatpush1.msra.mxu0 %v1201
        %1219 = vmatprep.subr.mxu0 %v1204
        %1220 = vmatpush1.msra.mxu0 %v1203
        %1221 = vmatprep.subr.mxu0 0.0
        %1222 = vmatpush1.msra.mxu0 0.0
        %1223 = vmatprep.subr.mxu0 0.0
        %1224 = vmatpush1.msra.mxu0 0.0
        %1225 = vmatprep.subr.mxu0 0.0
        %1226 = vmatpush1.msra.mxu0 0.0
        %1227 = vmatprep.subr.mxu0 0.0
        %1228 = vmatpush1.msra.mxu0 0.0
        %1229 = vmatprep.subr.mxu0 0.0
        %1230 = vmatpush1.msra.mxu0 0.0
        %1231 = vmatprep.subr.mxu0 0.0
        %1232 = vmatpush1.msra.mxu0 0.0
        %1233 = vmatprep.subr.mxu0 0.0
        %1234 = vmatpush1.msra.mxu0 0.0
        %1235 = vmatprep.subr.mxu0 0.0
        %1236 = vmatpush1.msra.mxu0 0.0
        %1237 = vmatprep.subr.mxu0 0.0
        %1238 = vmatpush1.msra.mxu0 0.0
        %1239 = vmatprep.subr.mxu0 0.0
        %1240 = vmatpush1.msra.mxu0 0.0
        %1241 = vmatprep.subr.mxu0 0.0
        %1242 = vmatpush1.msra.mxu0 0.0
        %1243 = vmatprep.subr.mxu0 0.0
        %1244 = vmatpush1.msra.mxu0 0.0
        %1245 = vmatprep.subr.mxu0 0.0
        %1246 = vmatpush1.msra.mxu0 0.0
        %1247 = vmatprep.subr.mxu0 0.0
        %1248 = vmatpush1.msra.mxu0 0.0
        %1249 = vmatprep.subr.mxu0 0.0
        %1250 = vmatpush1.msra.mxu0 0.0
        %1251 = vmatprep.subr.mxu0 0.0
        %1252 = vmatpush1.msra.mxu0 0.0
        %1253 = vmatprep.subr.mxu0 0.0
        %1254 = vmatpush1.msra.mxu0 0.0
        %1255 = vmatprep.subr.mxu0 0.0
        %1256 = vmatpush1.msra.mxu0 0.0
        %1257 = vmatprep.subr.mxu0 0.0
        %1258 = vmatpush1.msra.mxu0 0.0
        %1259 = vmatprep.subr.mxu0 0.0
        %1260 = vmatpush1.msra.mxu0 0.0
        %1261 = vmatprep.subr.mxu0 0.0
        %1262 = vmatpush1.msra.mxu0 0.0
        %1263 = vmatprep.subr.mxu0 0.0
        %1264 = vmatpush1.msra.mxu0 0.0
        %1265 = vmatprep.subr.mxu0 0.0
        %1266 = vmatpush1.msra.mxu0 0.0
        %1267 = vmatprep.subr.mxu0 0.0
        %1268 = vmatpush1.msra.mxu0 0.0
        %1269 = vmatprep.subr.mxu0 0.0
        %1270 = vmatpush1.msra.mxu0 0.0
        %1271 = vmatprep.subr.mxu0 0.0
        %1272 = vmatpush1.msra.mxu0 0.0
        %1273 = vmatprep.subr.mxu0 0.0
        %1274 = vmatpush1.msra.mxu0 0.0
        %1275 = vmatprep.subr.mxu0 0.0
        %1276 = vmatpush1.msra.mxu0 0.0
        %1277 = vmatprep.subr.mxu0 0.0
        %1278 = vmatpush1.msra.mxu0 0.0
        %1279 = vmatprep.subr.mxu0 0.0
        %1280 = vmatpush1.msra.mxu0 0.0
        %1281 = vmatprep.mubr.f32.mxu0 0.0
        %1282 = vmatmul.mubr.f32.gmra.mrb[0].mxu0 %v1212
        %v1283 = vpop.f32.mrb[0].mxu0
        %v1284 = vadd.f32 %v1207, %v1283
        %v1285 = vpop.f32.mrb[0].mxu0
        %v1286 = vadd.f32 %v1208, %v1285
        %1287 = vmatprep.mubr.f32.mxu0 0.0
        %1288 = vmatmul.mubr.f32.gmra.mrb[0].mxu0 %v1215
        %v1289 = vpop.f32.mrb[0].mxu0
        %v1290 = vadd.f32 %v1209, %v1289
        %v1291 = vpop.f32.mrb[0].mxu0
        %v1292 = vadd.f32 %v1210, %v1291
        %1293 = vdwg.mxu0
        %v1294 = vmul.f32 %v1030, %v1290
        %v1295 = vmul.f32 %v1031, %v1292
        %v1296 = vmul.f32 %v1046, %v1290
        %v1297 = vmul.f32 %v1047, %v1292
        %v1298 = vmul.f32 %v1062, %v1290
        %v1299 = vmul.f32 %v1063, %v1292
        %v1300 = vld [vmem:[%s2 + $0xc0] sm:$0xff]
        %v1301 = vld [vmem:[%s2 + $0xc8] sm:$0xff]
        %v1302 = vld [vmem:[%s2 + $0xd0] sm:$0xff]
        %v1303 = vld [vmem:[%s2 + $0xd8] sm:$0xff]
        %v1304 = vld [vmem:[%s2 + $0xe0] sm:$0x1]
        %v1305 = vld [vmem:[%s250] sm:$0xff]
        %v1306 = vld [vmem:[%s250 + $0x8] sm:$0xff]
        %v1307 = vld [vmem:[%s250 + $0x10] sm:$0xff]
        %v1308 = vld [vmem:[%s250 + $0x18] sm:$0xff]
        %v1309 = vld [vmem:[%s250 + $0x20] sm:$0xff]
        %v1310 = vld [vmem:[%s250 + $0x28] sm:$0xff]
        %v1311 = vld [vmem:[%s250 + $0x30] sm:$0xff]
        %v1312 = vld [vmem:[%s250 + $0x38] sm:$0xff]
        %v1313 = vld [vmem:[%s250 + $0x40] sm:$0xff]
        %v1314 = vld [vmem:[%s250 + $0x48] sm:$0xff]
        %v1315 = vld [vmem:[%s250 + $0x50] sm:$0xff]
        %v1316 = vld [vmem:[%s250 + $0x58] sm:$0xff]
        %v1317 = vld [vmem:[%s250 + $0x60] sm:$0xff]
        %v1318 = vld [vmem:[%s250 + $0x68] sm:$0xff]
        %v1319 = vld [vmem:[%s250 + $0x70] sm:$0xff]
        %v1320 = vld [vmem:[%s250 + $0x78] sm:$0xff]
        %v1321 = vld [vmem:[%s250 + $0x80] sm:$0xff]
        %v1322 = vld [vmem:[%s250 + $0x88] sm:$0xff]
        %v1323 = vld [vmem:[%s250 + $0x90] sm:$0xff]
        %v1324 = vld [vmem:[%s250 + $0x98] sm:$0xff]
        %v1325 = vld [vmem:[%s250 + $0xa0] sm:$0xff]
        %v1326 = vld [vmem:[%s250 + $0xa8] sm:$0xff]
        %v1327 = vld [vmem:[%s250 + $0xb0] sm:$0xff]
        %v1328 = vld [vmem:[%s250 + $0xb8] sm:$0xff]
        %v1329 = vld [vmem:[%s250 + $0xc0] sm:$0xff]
        %v1330 = vld [vmem:[%s250 + $0xc8] sm:$0xff]
        %v1331 = vld [vmem:[%s250 + $0xd0] sm:$0xff]
        %v1332 = vld [vmem:[%s250 + $0xd8] sm:$0xff]
        %v1333 = vld [vmem:[%s250 + $0xe0] sm:$0xff]
        %v1334 = vld [vmem:[%s250 + $0xe8] sm:$0xff]
        %v1335 = vld [vmem:[%s250 + $0xf0] sm:$0xff]
        %v1336 = vld [vmem:[%s250 + $0xf8] sm:$0xff]
        %v1337 = vlaneseq
        %v1338 = vshrl.u32 %v1337, 7
        %v1339 = vsub.s32 0, %v1338
        %v1340 = vrot.slane %v1304, %v1339
        %1341 = vxpose.xlu0.b32.start [1/16] %v1284, 128
        %1342 = vxpose.xlu0.b32.cont [2/16] %v1294, 128
        %1343 = vxpose.xlu0.b32.cont [3/16] %v1296, 128
        %1344 = vxpose.xlu0.b32.cont [4/16] %v1298, 128
        %1345 = vxpose.xlu0.b32.cont [5/16] 0.0, 128
        %1346 = vxpose.xlu0.b32.cont [6/16] 0.0, 128
        %1347 = vxpose.xlu0.b32.cont [7/16] 0.0, 128
        %1348 = vxpose.xlu0.b32.cont [8/16] 0.0, 128
        %1349 = vxpose.xlu0.b32.cont [9/16] 0.0, 128
        %1350 = vxpose.xlu0.b32.cont [10/16] 0.0, 128
        %1351 = vxpose.xlu0.b32.cont [11/16] 0.0, 128
        %1352 = vxpose.xlu0.b32.cont [12/16] 0.0, 128
        %1353 = vxpose.xlu0.b32.cont [13/16] 0.0, 128
        %1354 = vxpose.xlu0.b32.cont [14/16] 0.0, 128
        %1355 = vxpose.xlu0.b32.cont [15/16] 0.0, 128
        %1356 = vxpose.xlu0.b32.end [16/16] 0.0, 128
        %v1357 = vpop.trf.xlu0
        %v1358 = vpop.trf.xlu0
        %v1359 = vpop.trf.xlu0
        %v1360 = vpop.trf.xlu0
        %v1361 = vpop.trf.xlu0
        %v1362 = vpop.trf.xlu0
        %v1363 = vpop.trf.xlu0
        %v1364 = vpop.trf.xlu0
        %v1365 = vpop.trf.xlu0
        %v1366 = vpop.trf.xlu0
        %v1367 = vpop.trf.xlu0
        %v1368 = vpop.trf.xlu0
        %v1369 = vpop.trf.xlu0
        %v1370 = vpop.trf.xlu0
        %v1371 = vpop.trf.xlu0
        %v1372 = vpop.trf.xlu0
        %1373 = vxpose.xlu0.b32.start [1/16] %v1286, 128
        %1374 = vxpose.xlu0.b32.cont [2/16] %v1295, 128
        %1375 = vxpose.xlu0.b32.cont [3/16] %v1297, 128
        %1376 = vxpose.xlu0.b32.cont [4/16] %v1299, 128
        %1377 = vxpose.xlu0.b32.cont [5/16] 0.0, 128
        %1378 = vxpose.xlu0.b32.cont [6/16] 0.0, 128
        %1379 = vxpose.xlu0.b32.cont [7/16] 0.0, 128
        %1380 = vxpose.xlu0.b32.cont [8/16] 0.0, 128
        %1381 = vxpose.xlu0.b32.cont [9/16] 0.0, 128
        %1382 = vxpose.xlu0.b32.cont [10/16] 0.0, 128
        %1383 = vxpose.xlu0.b32.cont [11/16] 0.0, 128
        %1384 = vxpose.xlu0.b32.cont [12/16] 0.0, 128
        %1385 = vxpose.xlu0.b32.cont [13/16] 0.0, 128
        %1386 = vxpose.xlu0.b32.cont [14/16] 0.0, 128
        %1387 = vxpose.xlu0.b32.cont [15/16] 0.0, 128
        %1388 = vxpose.xlu0.b32.end [16/16] 0.0, 128
        %v1389 = vpop.trf.xlu0
        %v1390 = vpop.trf.xlu0
        %v1391 = vpop.trf.xlu0
        %v1392 = vpop.trf.xlu0
        %v1393 = vpop.trf.xlu0
        %v1394 = vpop.trf.xlu0
        %v1395 = vpop.trf.xlu0
        %v1396 = vpop.trf.xlu0
        %v1397 = vpop.trf.xlu0
        %v1398 = vpop.trf.xlu0
        %v1399 = vpop.trf.xlu0
        %v1400 = vpop.trf.xlu0
        %v1401 = vpop.trf.xlu0
        %v1402 = vpop.trf.xlu0
        %v1403 = vpop.trf.xlu0
        %v1404 = vpop.trf.xlu0
        %v1406 = vsel %vm297, %v1357, 0
        %v1409 = vsel %vm297, %v1358, 0
        %v1412 = vsel %vm297, %v1359, 0
        %v1415 = vsel %vm297, %v1360, 0
        %v1418 = vsel %vm297, %v1361, 0
        %v1421 = vsel %vm297, %v1362, 0
        %v1424 = vsel %vm297, %v1363, 0
        %v1427 = vsel %vm297, %v1364, 0
        %v1430 = vsel %vm297, %v1365, 0
        %v1433 = vsel %vm297, %v1366, 0
        %v1436 = vsel %vm297, %v1367, 0
        %v1439 = vsel %vm297, %v1368, 0
        %v1442 = vsel %vm297, %v1369, 0
        %v1445 = vsel %vm297, %v1370, 0
        %v1448 = vsel %vm297, %v1371, 0
        %v1451 = vsel %vm297, %v1372, 0
        %v1454 = vsel %vm297, %v1389, 0
        %v1457 = vsel %vm297, %v1390, 0
        %v1460 = vsel %vm297, %v1391, 0
        %v1463 = vsel %vm297, %v1392, 0
        %v1466 = vsel %vm297, %v1393, 0
        %v1469 = vsel %vm297, %v1394, 0
        %v1472 = vsel %vm297, %v1395, 0
        %v1475 = vsel %vm297, %v1396, 0
        %v1478 = vsel %vm297, %v1397, 0
        %v1481 = vsel %vm297, %v1398, 0
        %v1484 = vsel %vm297, %v1399, 0
        %v1487 = vsel %vm297, %v1400, 0
        %v1490 = vsel %vm297, %v1401, 0
        %v1493 = vsel %vm297, %v1402, 0
        %v1496 = vsel %vm297, %v1403, 0
        %v1499 = vsel %vm297, %v1404, 0
        %1501 = vmatprep.subr.mxu0 0.0
        %1502 = vmatpush1.msra.mxu0 %v1300
        %1503 = vmatprep.subr.mxu0 0.0
        %1504 = vmatpush1.msra.mxu0 %v1301
        %1505 = vmatprep.subr.mxu0 0.0
        %1506 = vmatpush1.msra.mxu0 %v1302
        %1507 = vmatprep.subr.mxu0 0.0
        %1508 = vmatpush1.msra.mxu0 %v1303
        %1509 = vmatprep.subr.mxu0 0.0
        %1510 = vmatpush1.msra.mxu0 0.0
        %1511 = vmatprep.subr.mxu0 0.0
        %1512 = vmatpush1.msra.mxu0 0.0
        %1513 = vmatprep.subr.mxu0 0.0
        %1514 = vmatpush1.msra.mxu0 0.0
        %1515 = vmatprep.subr.mxu0 0.0
        %1516 = vmatpush1.msra.mxu0 0.0
        %1517 = vmatprep.subr.mxu0 0.0
        %1518 = vmatpush1.msra.mxu0 0.0
        %1519 = vmatprep.subr.mxu0 0.0
        %1520 = vmatpush1.msra.mxu0 0.0
        %1521 = vmatprep.subr.mxu0 0.0
        %1522 = vmatpush1.msra.mxu0 0.0
        %1523 = vmatprep.subr.mxu0 0.0
        %1524 = vmatpush1.msra.mxu0 0.0
        %1525 = vmatprep.subr.mxu0 0.0
        %1526 = vmatpush1.msra.mxu0 0.0
        %1527 = vmatprep.subr.mxu0 0.0
        %1528 = vmatpush1.msra.mxu0 0.0
        %1529 = vmatprep.subr.mxu0 0.0
        %1530 = vmatpush1.msra.mxu0 0.0
        %1531 = vmatprep.subr.mxu0 0.0
        %1532 = vmatpush1.msra.mxu0 0.0
        %1533 = vmatprep.subr.mxu0 0.0
        %1534 = vmatpush1.msra.mxu0 0.0
        %1535 = vmatprep.subr.mxu0 0.0
        %1536 = vmatpush1.msra.mxu0 0.0
        %1537 = vmatprep.subr.mxu0 0.0
        %1538 = vmatpush1.msra.mxu0 0.0
        %1539 = vmatprep.subr.mxu0 0.0
        %1540 = vmatpush1.msra.mxu0 0.0
        %1541 = vmatprep.subr.mxu0 0.0
        %1542 = vmatpush1.msra.mxu0 0.0
        %1543 = vmatprep.subr.mxu0 0.0
        %1544 = vmatpush1.msra.mxu0 0.0
        %1545 = vmatprep.subr.mxu0 0.0
        %1546 = vmatpush1.msra.mxu0 0.0
        %1547 = vmatprep.subr.mxu0 0.0
        %1548 = vmatpush1.msra.mxu0 0.0
        %1549 = vmatprep.subr.mxu0 0.0
        %1550 = vmatpush1.msra.mxu0 0.0
        %1551 = vmatprep.subr.mxu0 0.0
        %1552 = vmatpush1.msra.mxu0 0.0
        %1553 = vmatprep.subr.mxu0 0.0
        %1554 = vmatpush1.msra.mxu0 0.0
        %1555 = vmatprep.subr.mxu0 0.0
        %1556 = vmatpush1.msra.mxu0 0.0
        %1557 = vmatprep.subr.mxu0 0.0
        %1558 = vmatpush1.msra.mxu0 0.0
        %1559 = vmatprep.subr.mxu0 0.0
        %1560 = vmatpush1.msra.mxu0 0.0
        %1561 = vmatprep.subr.mxu0 0.0
        %1562 = vmatpush1.msra.mxu0 0.0
        %1563 = vmatprep.subr.mxu0 0.0
        %1564 = vmatpush1.msra.mxu0 0.0
        %1565 = vmatprep.mubr.f32.mxu0 0.0
        %1566 = vmatmul.mubr.f32.gmra.mrb[0].mxu0 %v1406
        %v1567 = vpop.f32.mrb[0].mxu0
        %v1568 = vadd.f32 %v1340, %v1567
        %v1569 = vpop.f32.mrb[0].mxu0
        %1570 = vmatprep.mubr.f32.mxu0 0.0
        %1571 = vmatmul.mubr.f32.gmra.mrb[0].mxu0 %v1409
        %v1572 = vpop.f32.mrb[0].mxu0
        %v1573 = vadd.f32 %v1340, %v1572
        %v1574 = vpop.f32.mrb[0].mxu0
        %1575 = vmatprep.mubr.f32.mxu0 0.0
        %1576 = vmatmul.mubr.f32.gmra.mrb[0].mxu0 %v1412
        %v1577 = vpop.f32.mrb[0].mxu0
        %v1578 = vadd.f32 %v1340, %v1577
        %v1579 = vpop.f32.mrb[0].mxu0
        %1580 = vmatprep.mubr.f32.mxu0 0.0
        %1581 = vmatmul.mubr.f32.gmra.mrb[0].mxu0 %v1415
        %v1582 = vpop.f32.mrb[0].mxu0
        %v1583 = vadd.f32 %v1340, %v1582
        %v1584 = vpop.f32.mrb[0].mxu0
        %1585 = vmatprep.mubr.f32.mxu0 0.0
        %1586 = vmatmul.mubr.f32.gmra.mrb[0].mxu0 %v1418
        %v1587 = vpop.f32.mrb[0].mxu0
        %v1588 = vadd.f32 %v1340, %v1587
        %v1589 = vpop.f32.mrb[0].mxu0
        %1590 = vmatprep.mubr.f32.mxu0 0.0
        %1591 = vmatmul.mubr.f32.gmra.mrb[0].mxu0 %v1421
        %v1592 = vpop.f32.mrb[0].mxu0
        %v1593 = vadd.f32 %v1340, %v1592
        %v1594 = vpop.f32.mrb[0].mxu0
        %1595 = vmatprep.mubr.f32.mxu0 0.0
        %1596 = vmatmul.mubr.f32.gmra.mrb[0].mxu0 %v1424
        %v1597 = vpop.f32.mrb[0].mxu0
        %v1598 = vadd.f32 %v1340, %v1597
        %v1599 = vpop.f32.mrb[0].mxu0
        %1600 = vmatprep.mubr.f32.mxu0 0.0
        %1601 = vmatmul.mubr.f32.gmra.mrb[0].mxu0 %v1427
        %v1602 = vpop.f32.mrb[0].mxu0
        %v1603 = vadd.f32 %v1340, %v1602
        %v1604 = vpop.f32.mrb[0].mxu0
        %1605 = vmatprep.mubr.f32.mxu0 0.0
        %1606 = vmatmul.mubr.f32.gmra.mrb[0].mxu0 %v1430
        %v1607 = vpop.f32.mrb[0].mxu0
        %v1608 = vadd.f32 %v1340, %v1607
        %v1609 = vpop.f32.mrb[0].mxu0
        %1610 = vmatprep.mubr.f32.mxu0 0.0
        %1611 = vmatmul.mubr.f32.gmra.mrb[0].mxu0 %v1433
        %v1612 = vpop.f32.mrb[0].mxu0
        %v1613 = vadd.f32 %v1340, %v1612
        %v1614 = vpop.f32.mrb[0].mxu0
        %1615 = vmatprep.mubr.f32.mxu0 0.0
        %1616 = vmatmul.mubr.f32.gmra.mrb[0].mxu0 %v1436
        %v1617 = vpop.f32.mrb[0].mxu0
        %v1618 = vadd.f32 %v1340, %v1617
        %v1619 = vpop.f32.mrb[0].mxu0
        %1620 = vmatprep.mubr.f32.mxu0 0.0
        %1621 = vmatmul.mubr.f32.gmra.mrb[0].mxu0 %v1439
        %v1622 = vpop.f32.mrb[0].mxu0
        %v1623 = vadd.f32 %v1340, %v1622
        %v1624 = vpop.f32.mrb[0].mxu0
        %1625 = vmatprep.mubr.f32.mxu0 0.0
        %1626 = vmatmul.mubr.f32.gmra.mrb[0].mxu0 %v1442
        %v1627 = vpop.f32.mrb[0].mxu0
        %v1628 = vadd.f32 %v1340, %v1627
        %v1629 = vpop.f32.mrb[0].mxu0
        %1630 = vmatprep.mubr.f32.mxu0 0.0
        %1631 = vmatmul.mubr.f32.gmra.mrb[0].mxu0 %v1445
        %v1632 = vpop.f32.mrb[0].mxu0
        %v1633 = vadd.f32 %v1340, %v1632
        %v1634 = vpop.f32.mrb[0].mxu0
        %1635 = vmatprep.mubr.f32.mxu0 0.0
        %1636 = vmatmul.mubr.f32.gmra.mrb[0].mxu0 %v1448
        %v1637 = vpop.f32.mrb[0].mxu0
        %v1638 = vadd.f32 %v1340, %v1637
        %v1639 = vpop.f32.mrb[0].mxu0
        %1640 = vmatprep.mubr.f32.mxu0 0.0
        %1641 = vmatmul.mubr.f32.gmra.mrb[0].mxu0 %v1451
        %v1642 = vpop.f32.mrb[0].mxu0
        %v1643 = vadd.f32 %v1340, %v1642
        %v1644 = vpop.f32.mrb[0].mxu0
        %1645 = vmatprep.mubr.f32.mxu0 0.0
        %1646 = vmatmul.mubr.f32.gmra.mrb[0].mxu0 %v1454
        %v1647 = vpop.f32.mrb[0].mxu0
        %v1648 = vadd.f32 %v1340, %v1647
        %v1649 = vpop.f32.mrb[0].mxu0
        %1650 = vmatprep.mubr.f32.mxu0 0.0
        %1651 = vmatmul.mubr.f32.gmra.mrb[0].mxu0 %v1457
        %v1652 = vpop.f32.mrb[0].mxu0
        %v1653 = vadd.f32 %v1340, %v1652
        %v1654 = vpop.f32.mrb[0].mxu0
        %1655 = vmatprep.mubr.f32.mxu0 0.0
        %1656 = vmatmul.mubr.f32.gmra.mrb[0].mxu0 %v1460
        %v1657 = vpop.f32.mrb[0].mxu0
        %v1658 = vadd.f32 %v1340, %v1657
        %v1659 = vpop.f32.mrb[0].mxu0
        %1660 = vmatprep.mubr.f32.mxu0 0.0
        %1661 = vmatmul.mubr.f32.gmra.mrb[0].mxu0 %v1463
        %v1662 = vpop.f32.mrb[0].mxu0
        %v1663 = vadd.f32 %v1340, %v1662
        %v1664 = vpop.f32.mrb[0].mxu0
        %1665 = vmatprep.mubr.f32.mxu0 0.0
        %1666 = vmatmul.mubr.f32.gmra.mrb[0].mxu0 %v1466
        %v1667 = vpop.f32.mrb[0].mxu0
        %v1668 = vadd.f32 %v1340, %v1667
        %v1669 = vpop.f32.mrb[0].mxu0
        %1670 = vmatprep.mubr.f32.mxu0 0.0
        %1671 = vmatmul.mubr.f32.gmra.mrb[0].mxu0 %v1469
        %v1672 = vpop.f32.mrb[0].mxu0
        %v1673 = vadd.f32 %v1340, %v1672
        %v1674 = vpop.f32.mrb[0].mxu0
        %1675 = vmatprep.mubr.f32.mxu0 0.0
        %1676 = vmatmul.mubr.f32.gmra.mrb[0].mxu0 %v1472
        %v1677 = vpop.f32.mrb[0].mxu0
        %v1678 = vadd.f32 %v1340, %v1677
        %v1679 = vpop.f32.mrb[0].mxu0
        %1680 = vmatprep.mubr.f32.mxu0 0.0
        %1681 = vmatmul.mubr.f32.gmra.mrb[0].mxu0 %v1475
        %v1682 = vpop.f32.mrb[0].mxu0
        %v1683 = vadd.f32 %v1340, %v1682
        %v1684 = vpop.f32.mrb[0].mxu0
        %1685 = vmatprep.mubr.f32.mxu0 0.0
        %1686 = vmatmul.mubr.f32.gmra.mrb[0].mxu0 %v1478
        %v1687 = vpop.f32.mrb[0].mxu0
        %v1688 = vadd.f32 %v1340, %v1687
        %v1689 = vpop.f32.mrb[0].mxu0
        %1690 = vmatprep.mubr.f32.mxu0 0.0
        %1691 = vmatmul.mubr.f32.gmra.mrb[0].mxu0 %v1481
        %v1692 = vpop.f32.mrb[0].mxu0
        %v1693 = vadd.f32 %v1340, %v1692
        %v1694 = vpop.f32.mrb[0].mxu0
        %1695 = vmatprep.mubr.f32.mxu0 0.0
        %1696 = vmatmul.mubr.f32.gmra.mrb[0].mxu0 %v1484
        %v1697 = vpop.f32.mrb[0].mxu0
        %v1698 = vadd.f32 %v1340, %v1697
        %v1699 = vpop.f32.mrb[0].mxu0
        %1700 = vmatprep.mubr.f32.mxu0 0.0
        %1701 = vmatmul.mubr.f32.gmra.mrb[0].mxu0 %v1487
        %v1702 = vpop.f32.mrb[0].mxu0
        %v1703 = vadd.f32 %v1340, %v1702
        %v1704 = vpop.f32.mrb[0].mxu0
        %1705 = vmatprep.mubr.f32.mxu0 0.0
        %1706 = vmatmul.mubr.f32.gmra.mrb[0].mxu0 %v1490
        %v1707 = vpop.f32.mrb[0].mxu0
        %v1708 = vadd.f32 %v1340, %v1707
        %v1709 = vpop.f32.mrb[0].mxu0
        %1710 = vmatprep.mubr.f32.mxu0 0.0
        %1711 = vmatmul.mubr.f32.gmra.mrb[0].mxu0 %v1493
        %v1712 = vpop.f32.mrb[0].mxu0
        %v1713 = vadd.f32 %v1340, %v1712
        %v1714 = vpop.f32.mrb[0].mxu0
        %1715 = vmatprep.mubr.f32.mxu0 0.0
        %1716 = vmatmul.mubr.f32.gmra.mrb[0].mxu0 %v1496
        %v1717 = vpop.f32.mrb[0].mxu0
        %v1718 = vadd.f32 %v1340, %v1717
        %v1719 = vpop.f32.mrb[0].mxu0
        %1720 = vmatprep.mubr.f32.mxu0 0.0
        %1721 = vmatmul.mubr.f32.gmra.mrb[0].mxu0 %v1499
        %v1722 = vpop.f32.mrb[0].mxu0
        %v1723 = vadd.f32 %v1340, %v1722
        %v1724 = vpop.f32.mrb[0].mxu0
        %1725 = vdwg.mxu0
        %v1726 = vadd.f32 %v1568, %v1305
        %v1727 = vadd.f32 %v1573, %v1306
        %v1728 = vadd.f32 %v1578, %v1307
        %v1729 = vadd.f32 %v1583, %v1308
        %v1730 = vadd.f32 %v1588, %v1309
        %v1731 = vadd.f32 %v1593, %v1310
        %v1732 = vadd.f32 %v1598, %v1311
        %v1733 = vadd.f32 %v1603, %v1312
        %v1734 = vadd.f32 %v1608, %v1313
        %v1735 = vadd.f32 %v1613, %v1314
        %v1736 = vadd.f32 %v1618, %v1315
        %v1737 = vadd.f32 %v1623, %v1316
        %v1738 = vadd.f32 %v1628, %v1317
        %v1739 = vadd.f32 %v1633, %v1318
        %v1740 = vadd.f32 %v1638, %v1319
        %v1741 = vadd.f32 %v1643, %v1320
        %v1742 = vadd.f32 %v1648, %v1321
        %v1743 = vadd.f32 %v1653, %v1322
        %v1744 = vadd.f32 %v1658, %v1323
        %v1745 = vadd.f32 %v1663, %v1324
        %v1746 = vadd.f32 %v1668, %v1325
        %v1747 = vadd.f32 %v1673, %v1326
        %v1748 = vadd.f32 %v1678, %v1327
        %v1749 = vadd.f32 %v1683, %v1328
        %v1750 = vadd.f32 %v1688, %v1329
        %v1751 = vadd.f32 %v1693, %v1330
        %v1752 = vadd.f32 %v1698, %v1331
        %v1753 = vadd.f32 %v1703, %v1332
        %v1754 = vadd.f32 %v1708, %v1333
        %v1755 = vadd.f32 %v1713, %v1334
        %v1756 = vadd.f32 %v1718, %v1335
        %v1757 = vadd.f32 %v1723, %v1336
        %1758 = vst.msk [vmem:[%s227] sm:$0xff] %vm297, %v1726
        %1759 = vst.msk [vmem:[%s227 + $0x8] sm:$0xff] %vm297, %v1727
        %1760 = vst.msk [vmem:[%s227 + $0x10] sm:$0xff] %vm297, %v1728
        %1761 = vst.msk [vmem:[%s227 + $0x18] sm:$0xff] %vm297, %v1729
        %1762 = vst.msk [vmem:[%s227 + $0x20] sm:$0xff] %vm297, %v1730
        %1763 = vst.msk [vmem:[%s227 + $0x28] sm:$0xff] %vm297, %v1731
        %1764 = vst.msk [vmem:[%s227 + $0x30] sm:$0xff] %vm297, %v1732
        %1765 = vst.msk [vmem:[%s227 + $0x38] sm:$0xff] %vm297, %v1733
        %1766 = vst.msk [vmem:[%s227 + $0x40] sm:$0xff] %vm297, %v1734
        %1767 = vst.msk [vmem:[%s227 + $0x48] sm:$0xff] %vm297, %v1735
        %1768 = vst.msk [vmem:[%s227 + $0x50] sm:$0xff] %vm297, %v1736
        %1769 = vst.msk [vmem:[%s227 + $0x58] sm:$0xff] %vm297, %v1737
        %1770 = vst.msk [vmem:[%s227 + $0x60] sm:$0xff] %vm297, %v1738
        %1771 = vst.msk [vmem:[%s227 + $0x68] sm:$0xff] %vm297, %v1739
        %1772 = vst.msk [vmem:[%s227 + $0x70] sm:$0xff] %vm297, %v1740
        %1773 = vst.msk [vmem:[%s227 + $0x78] sm:$0xff] %vm297, %v1741
        %1774 = vst.msk [vmem:[%s227 + $0x80] sm:$0xff] %vm297, %v1742
        %1775 = vst.msk [vmem:[%s227 + $0x88] sm:$0xff] %vm297, %v1743
        %1776 = vst.msk [vmem:[%s227 + $0x90] sm:$0xff] %vm297, %v1744
        %1777 = vst.msk [vmem:[%s227 + $0x98] sm:$0xff] %vm297, %v1745
        %1778 = vst.msk [vmem:[%s227 + $0xa0] sm:$0xff] %vm297, %v1746
        %1779 = vst.msk [vmem:[%s227 + $0xa8] sm:$0xff] %vm297, %v1747
        %1780 = vst.msk [vmem:[%s227 + $0xb0] sm:$0xff] %vm297, %v1748
        %1781 = vst.msk [vmem:[%s227 + $0xb8] sm:$0xff] %vm297, %v1749
        %1782 = vst.msk [vmem:[%s227 + $0xc0] sm:$0xff] %vm297, %v1750
        %1783 = vst.msk [vmem:[%s227 + $0xc8] sm:$0xff] %vm297, %v1751
        %1784 = vst.msk [vmem:[%s227 + $0xd0] sm:$0xff] %vm297, %v1752
        %1785 = vst.msk [vmem:[%s227 + $0xd8] sm:$0xff] %vm297, %v1753
        %1786 = vst.msk [vmem:[%s227 + $0xe0] sm:$0xff] %vm297, %v1754
        %1787 = vst.msk [vmem:[%s227 + $0xe8] sm:$0xff] %vm297, %v1755
        %1788 = vst.msk [vmem:[%s227 + $0xf0] sm:$0xff] %vm297, %v1756
        %1789 = vst.msk [vmem:[%s227 + $0xf8] sm:$0xff] %vm297, %v1757
        %s1790 = scalar_lea.vmem %s236, 256
        %v1791 = vld [vmem:[%s1790] sm:$0xff]
        %v1792 = vld [vmem:[%s1790 + $0x8] sm:$0xff]
        %v1793 = vld [vmem:[%s1790 + $0x10] sm:$0xff]
        %v1794 = vld [vmem:[%s1790 + $0x18] sm:$0xff]
        %v1795 = vld [vmem:[%s1790 + $0x20] sm:$0xff]
        %v1796 = vld [vmem:[%s1790 + $0x28] sm:$0xff]
        %v1797 = vld [vmem:[%s1790 + $0x30] sm:$0xff]
        %v1798 = vld [vmem:[%s1790 + $0x38] sm:$0xff]
        %v1799 = vld [vmem:[%s1790 + $0x40] sm:$0xff]
        %v1800 = vld [vmem:[%s1790 + $0x48] sm:$0xff]
        %v1801 = vld [vmem:[%s1790 + $0x50] sm:$0xff]
        %v1802 = vld [vmem:[%s1790 + $0x58] sm:$0xff]
        %v1803 = vld [vmem:[%s1790 + $0x60] sm:$0xff]
        %v1804 = vld [vmem:[%s1790 + $0x68] sm:$0xff]
        %v1805 = vld [vmem:[%s1790 + $0x70] sm:$0xff]
        %v1806 = vld [vmem:[%s1790 + $0x78] sm:$0xff]
        %v1807 = vld [vmem:[%s1790 + $0x80] sm:$0xff]
        %v1808 = vld [vmem:[%s1790 + $0x88] sm:$0xff]
        %v1809 = vld [vmem:[%s1790 + $0x90] sm:$0xff]
        %v1810 = vld [vmem:[%s1790 + $0x98] sm:$0xff]
        %v1811 = vld [vmem:[%s1790 + $0xa0] sm:$0xff]
        %v1812 = vld [vmem:[%s1790 + $0xa8] sm:$0xff]
        %v1813 = vld [vmem:[%s1790 + $0xb0] sm:$0xff]
        %v1814 = vld [vmem:[%s1790 + $0xb8] sm:$0xff]
        %v1815 = vld [vmem:[%s1790 + $0xc0] sm:$0xff]
        %v1816 = vld [vmem:[%s1790 + $0xc8] sm:$0xff]
        %v1817 = vld [vmem:[%s1790 + $0xd0] sm:$0xff]
        %v1818 = vld [vmem:[%s1790 + $0xd8] sm:$0xff]
        %v1819 = vld [vmem:[%s1790 + $0xe0] sm:$0xff]
        %v1820 = vld [vmem:[%s1790 + $0xe8] sm:$0xff]
        %v1821 = vld [vmem:[%s1790 + $0xf0] sm:$0xff]
        %v1822 = vld [vmem:[%s1790 + $0xf8] sm:$0xff]
        %v1823 = vld [vmem:[%s2] sm:$0xff]
        %v1824 = vld [vmem:[%s2 + $0x8] sm:$0xff]
        %v1825 = vld [vmem:[%s2 + $0x10] sm:$0xff]
        %v1826 = vld [vmem:[%s2 + $0x18] sm:$0xff]
        %v1828 = vsel %vm297, %v1823, 0
        %v1831 = vsel %vm297, %v1824, 0
        %v1834 = vsel %vm297, %v1825, 0
        %v1837 = vsel %vm297, %v1826, 0
        %v1840 = vsel %vm297, %v1791, 0
        %v1843 = vsel %vm297, %v1792, 0
        %v1846 = vsel %vm297, %v1793, 0
        %v1849 = vsel %vm297, %v1794, 0
        %v1852 = vsel %vm297, %v1795, 0
        %v1855 = vsel %vm297, %v1796, 0
        %v1858 = vsel %vm297, %v1797, 0
        %v1861 = vsel %vm297, %v1798, 0
        %v1864 = vsel %vm297, %v1799, 0
        %v1867 = vsel %vm297, %v1800, 0
        %v1870 = vsel %vm297, %v1801, 0
        %v1873 = vsel %vm297, %v1802, 0
        %v1876 = vsel %vm297, %v1803, 0
        %v1879 = vsel %vm297, %v1804, 0
        %v1882 = vsel %vm297, %v1805, 0
        %v1885 = vsel %vm297, %v1806, 0
        %v1888 = vsel %vm297, %v1807, 0
        %v1891 = vsel %vm297, %v1808, 0
        %v1894 = vsel %vm297, %v1809, 0
        %v1897 = vsel %vm297, %v1810, 0
        %v1900 = vsel %vm297, %v1811, 0
        %v1903 = vsel %vm297, %v1812, 0
        %v1906 = vsel %vm297, %v1813, 0
        %v1909 = vsel %vm297, %v1814, 0
        %v1912 = vsel %vm297, %v1815, 0
        %v1915 = vsel %vm297, %v1816, 0
        %v1918 = vsel %vm297, %v1817, 0
        %v1921 = vsel %vm297, %v1818, 0
        %v1924 = vsel %vm297, %v1819, 0
        %v1927 = vsel %vm297, %v1820, 0
        %v1930 = vsel %vm297, %v1821, 0
        %v1933 = vsel %vm297, %v1822, 0
        %1935 = vmatprep.subr.mxu0 0.0
        %1936 = vmatpush1.xpose.msra.mxu0 %v1840
        %1937 = vmatprep.subr.mxu0 0.0
        %1938 = vmatpush1.xpose.msra.mxu0 %v1843
        %1939 = vmatprep.subr.mxu0 0.0
        %1940 = vmatpush1.xpose.msra.mxu0 %v1846
        %1941 = vmatprep.subr.mxu0 0.0
        %1942 = vmatpush1.xpose.msra.mxu0 %v1849
        %1943 = vmatprep.subr.mxu0 0.0
        %1944 = vmatpush1.xpose.msra.mxu0 %v1852
        %1945 = vmatprep.subr.mxu0 0.0
        %1946 = vmatpush1.xpose.msra.mxu0 %v1855
        %1947 = vmatprep.subr.mxu0 0.0
        %1948 = vmatpush1.xpose.msra.mxu0 %v1858
        %1949 = vmatprep.subr.mxu0 0.0
        %1950 = vmatpush1.xpose.msra.mxu0 %v1861
        %1951 = vmatprep.subr.mxu0 0.0
        %1952 = vmatpush1.xpose.msra.mxu0 %v1864
        %1953 = vmatprep.subr.mxu0 0.0
        %1954 = vmatpush1.xpose.msra.mxu0 %v1867
        %1955 = vmatprep.subr.mxu0 0.0
        %1956 = vmatpush1.xpose.msra.mxu0 %v1870
        %1957 = vmatprep.subr.mxu0 0.0
        %1958 = vmatpush1.xpose.msra.mxu0 %v1873
        %1959 = vmatprep.subr.mxu0 0.0
        %1960 = vmatpush1.xpose.msra.mxu0 %v1876
        %1961 = vmatprep.subr.mxu0 0.0
        %1962 = vmatpush1.xpose.msra.mxu0 %v1879
        %1963 = vmatprep.subr.mxu0 0.0
        %1964 = vmatpush1.xpose.msra.mxu0 %v1882
        %1965 = vmatprep.subr.mxu0 0.0
        %1966 = vmatpush1.xpose.msra.mxu0 %v1885
        %1967 = vmatprep.subr.mxu0 0.0
        %1968 = vmatpush1.xpose.msra.mxu0 %v1888
        %1969 = vmatprep.subr.mxu0 0.0
        %1970 = vmatpush1.xpose.msra.mxu0 %v1891
        %1971 = vmatprep.subr.mxu0 0.0
        %1972 = vmatpush1.xpose.msra.mxu0 %v1894
        %1973 = vmatprep.subr.mxu0 0.0
        %1974 = vmatpush1.xpose.msra.mxu0 %v1897
        %1975 = vmatprep.subr.mxu0 0.0
        %1976 = vmatpush1.xpose.msra.mxu0 %v1900
        %1977 = vmatprep.subr.mxu0 0.0
        %1978 = vmatpush1.xpose.msra.mxu0 %v1903
        %1979 = vmatprep.subr.mxu0 0.0
        %1980 = vmatpush1.xpose.msra.mxu0 %v1906
        %1981 = vmatprep.subr.mxu0 0.0
        %1982 = vmatpush1.xpose.msra.mxu0 %v1909
        %1983 = vmatprep.subr.mxu0 0.0
        %1984 = vmatpush1.xpose.msra.mxu0 %v1912
        %1985 = vmatprep.subr.mxu0 0.0
        %1986 = vmatpush1.xpose.msra.mxu0 %v1915
        %1987 = vmatprep.subr.mxu0 0.0
        %1988 = vmatpush1.xpose.msra.mxu0 %v1918
        %1989 = vmatprep.subr.mxu0 0.0
        %1990 = vmatpush1.xpose.msra.mxu0 %v1921
        %1991 = vmatprep.subr.mxu0 0.0
        %1992 = vmatpush1.xpose.msra.mxu0 %v1924
        %1993 = vmatprep.subr.mxu0 0.0
        %1994 = vmatpush1.xpose.msra.mxu0 %v1927
        %1995 = vmatprep.subr.mxu0 0.0
        %1996 = vmatpush1.xpose.msra.mxu0 %v1930
        %1997 = vmatprep.subr.mxu0 0.0
        %1998 = vmatpush1.xpose.msra.mxu0 %v1933
        %1999 = vmatprep.mubr.f32.mxu0 0.0
        %2000 = vmatmul.mubr.f32.gmra.mrb[0].mxu0 %v1828
        %v2001 = vpop.f32.mrb[0].mxu0
        %v2002 = vadd.f32 0.0, %v2001
        %v2003 = vpop.f32.mrb[0].mxu0
        %v2004 = vadd.f32 0.0, %v2003
        %2005 = vmatprep.mubr.f32.mxu0 0.0
        %2006 = vmatmul.mubr.f32.gmra.mrb[0].mxu0 %v1831
        %v2007 = vpop.f32.mrb[0].mxu0
        %v2008 = vadd.f32 0.0, %v2007
        %v2009 = vpop.f32.mrb[0].mxu0
        %v2010 = vadd.f32 0.0, %v2009
        %2011 = vmatprep.mubr.f32.mxu0 0.0
        %2012 = vmatmul.mubr.f32.gmra.mrb[0].mxu0 %v1834
        %v2013 = vpop.f32.mrb[0].mxu0
        %v2014 = vadd.f32 0.0, %v2013
        %v2015 = vpop.f32.mrb[0].mxu0
        %v2016 = vadd.f32 0.0, %v2015
        %2017 = vmatprep.mubr.f32.mxu0 0.0
        %2018 = vmatmul.mubr.f32.gmra.mrb[0].mxu0 %v1837
        %v2019 = vpop.f32.mrb[0].mxu0
        %v2020 = vadd.f32 0.0, %v2019
        %v2021 = vpop.f32.mrb[0].mxu0
        %v2022 = vadd.f32 0.0, %v2021
        %2023 = vdwg.mxu0
        %v2024 = vmul.f32 %v2008, %v2008
        %v2025 = vmul.f32 %v2010, %v2010
        %v2026 = vmul.f32 %v2014, %v2014
        %v2027 = vmul.f32 %v2016, %v2016
        %v2028 = vadd.f32 %v2024, %v2026
        %v2029 = vadd.f32 %v2025, %v2027
        %v2030 = vmul.f32 %v2020, %v2020
        %v2031 = vmul.f32 %v2022, %v2022
        %v2032 = vadd.f32 %v2028, %v2030
        %v2033 = vadd.f32 %v2029, %v2031
        %v2034 = vrsqrt.pop %v2032
        %v2035 = vmul.f32 %v2032, %v2034
        %vm2036 = vcmp.eq.f32.partialorder %v2032, inf
        %v2037 = vsel %vm2036, %v2032, %v2035
        %vm2038 = vcmp.eq.f32.partialorder %v2032, 0.0
        %v2039 = vand.u32 %v2032, 2147483648
        %v2040 = vsel %vm2038, %v2039, %v2037
        %v2041 = vrsqrt.pop %v2033
        %v2042 = vmul.f32 %v2033, %v2041
        %vm2043 = vcmp.eq.f32.partialorder %v2033, inf
        %v2044 = vsel %vm2043, %v2033, %v2042
        %vm2045 = vcmp.eq.f32.partialorder %v2033, 0.0
        %v2046 = vand.u32 %v2033, 2147483648
        %v2047 = vsel %vm2045, %v2046, %v2044
        %v2048 = vld [vmem:[%s2 + $0x20] sm:$0xff]
        %v2049 = vld [vmem:[%s2 + $0x28] sm:$0xff]
        %v2050 = vld [vmem:[%s2 + $0x30] sm:$0xff]
        %v2051 = vld [vmem:[%s2 + $0x38] sm:$0xff]
        %v2052 = vld [vmem:[%s3] sm:$0xff]
        %v2053 = vld [vmem:[%s3 + $0x8] sm:$0xff]
        %v2054 = vld [vmem:[%s3 + $0x10] sm:$0xff]
        %v2055 = vld [vmem:[%s3 + $0x18] sm:$0xff]
        %v2056 = vld [vmem:[%s3 + $0x20] sm:$0xff]
        %v2057 = vld [vmem:[%s3 + $0x28] sm:$0xff]
        %v2058 = vld [vmem:[%s3 + $0x30] sm:$0xff]
        %v2059 = vld [vmem:[%s3 + $0x38] sm:$0xff]
        %v2061 = vsel %vm531, %v2048, 0
        %v2064 = vsel %vm531, %v2049, 0
        %v2067 = vsel %vm531, %v2050, 0
        %v2070 = vsel %vm531, %v2051, 0
        %2072 = vmatprep.subr.mxu0 %v2004
        %2073 = vmatpush1.msra.mxu0 %v2002
        %2074 = vmatprep.subr.mxu0 %v2047
        %2075 = vmatpush1.msra.mxu0 %v2040
        %2076 = vmatprep.subr.mxu0 0.0
        %2077 = vmatpush1.msra.mxu0 0.0
        %2078 = vmatprep.subr.mxu0 0.0
        %2079 = vmatpush1.msra.mxu0 0.0
        %2080 = vmatprep.subr.mxu0 0.0
        %2081 = vmatpush1.msra.mxu0 0.0
        %2082 = vmatprep.subr.mxu0 0.0
        %2083 = vmatpush1.msra.mxu0 0.0
        %2084 = vmatprep.subr.mxu0 0.0
        %2085 = vmatpush1.msra.mxu0 0.0
        %2086 = vmatprep.subr.mxu0 0.0
        %2087 = vmatpush1.msra.mxu0 0.0
        %2088 = vmatprep.subr.mxu0 0.0
        %2089 = vmatpush1.msra.mxu0 0.0
        %2090 = vmatprep.subr.mxu0 0.0
        %2091 = vmatpush1.msra.mxu0 0.0
        %2092 = vmatprep.subr.mxu0 0.0
        %2093 = vmatpush1.msra.mxu0 0.0
        %2094 = vmatprep.subr.mxu0 0.0
        %2095 = vmatpush1.msra.mxu0 0.0
        %2096 = vmatprep.subr.mxu0 0.0
        %2097 = vmatpush1.msra.mxu0 0.0
        %2098 = vmatprep.subr.mxu0 0.0
        %2099 = vmatpush1.msra.mxu0 0.0
        %2100 = vmatprep.subr.mxu0 0.0
        %2101 = vmatpush1.msra.mxu0 0.0
        %2102 = vmatprep.subr.mxu0 0.0
        %2103 = vmatpush1.msra.mxu0 0.0
        %2104 = vmatprep.subr.mxu0 0.0
        %2105 = vmatpush1.msra.mxu0 0.0
        %2106 = vmatprep.subr.mxu0 0.0
        %2107 = vmatpush1.msra.mxu0 0.0
        %2108 = vmatprep.subr.mxu0 0.0
        %2109 = vmatpush1.msra.mxu0 0.0
        %2110 = vmatprep.subr.mxu0 0.0
        %2111 = vmatpush1.msra.mxu0 0.0
        %2112 = vmatprep.subr.mxu0 0.0
        %2113 = vmatpush1.msra.mxu0 0.0
        %2114 = vmatprep.subr.mxu0 0.0
        %2115 = vmatpush1.msra.mxu0 0.0
        %2116 = vmatprep.subr.mxu0 0.0
        %2117 = vmatpush1.msra.mxu0 0.0
        %2118 = vmatprep.subr.mxu0 0.0
        %2119 = vmatpush1.msra.mxu0 0.0
        %2120 = vmatprep.subr.mxu0 0.0
        %2121 = vmatpush1.msra.mxu0 0.0
        %2122 = vmatprep.subr.mxu0 0.0
        %2123 = vmatpush1.msra.mxu0 0.0
        %2124 = vmatprep.subr.mxu0 0.0
        %2125 = vmatpush1.msra.mxu0 0.0
        %2126 = vmatprep.subr.mxu0 0.0
        %2127 = vmatpush1.msra.mxu0 0.0
        %2128 = vmatprep.subr.mxu0 0.0
        %2129 = vmatpush1.msra.mxu0 0.0
        %2130 = vmatprep.subr.mxu0 0.0
        %2131 = vmatpush1.msra.mxu0 0.0
        %2132 = vmatprep.subr.mxu0 0.0
        %2133 = vmatpush1.msra.mxu0 0.0
        %2134 = vmatprep.subr.mxu0 0.0
        %2135 = vmatpush1.msra.mxu0 0.0
        %2136 = vmatprep.mubr.f32.mxu0 0.0
        %2137 = vmatmul.mubr.f32.gmra.mrb[0].mxu0 %v2061
        %v2138 = vpop.f32.mrb[0].mxu0
        %v2139 = vadd.f32 %v2052, %v2138
        %v2140 = vpop.f32.mrb[0].mxu0
        %v2141 = vadd.f32 %v2053, %v2140
        %2142 = vmatprep.mubr.f32.mxu0 0.0
        %2143 = vmatmul.mubr.f32.gmra.mrb[0].mxu0 %v2064
        %v2144 = vpop.f32.mrb[0].mxu0
        %v2145 = vadd.f32 %v2054, %v2144
        %v2146 = vpop.f32.mrb[0].mxu0
        %v2147 = vadd.f32 %v2055, %v2146
        %2148 = vmatprep.mubr.f32.mxu0 0.0
        %2149 = vmatmul.mubr.f32.gmra.mrb[0].mxu0 %v2067
        %v2150 = vpop.f32.mrb[0].mxu0
        %v2151 = vadd.f32 %v2056, %v2150
        %v2152 = vpop.f32.mrb[0].mxu0
        %v2153 = vadd.f32 %v2057, %v2152
        %2154 = vmatprep.mubr.f32.mxu0 0.0
        %2155 = vmatmul.mubr.f32.gmra.mrb[0].mxu0 %v2070
        %v2156 = vpop.f32.mrb[0].mxu0
        %v2157 = vadd.f32 %v2058, %v2156
        %v2158 = vpop.f32.mrb[0].mxu0
        %v2159 = vadd.f32 %v2059, %v2158
        %2160 = vdwg.mxu0
        %v2161 = vxor.u32 %v2139, 2147483648
        %v2162 = vxor.u32 %v2141, 2147483648
        %v2163 = vxor.u32 %v2145, 2147483648
        %v2164 = vxor.u32 %v2147, 2147483648
        %v2165 = vxor.u32 %v2151, 2147483648
        %v2166 = vxor.u32 %v2153, 2147483648
        %v2167 = vxor.u32 %v2157, 2147483648
        %v2168 = vxor.u32 %v2159, 2147483648
        %v2169 = vmul.f32 %v2161, 1.442695
        %v2170 = vpow.pop %v2169
        %v2171 = vmul.f32 %v2162, 1.442695
        %v2172 = vpow.pop %v2171
        %v2173 = vmul.f32 %v2163, 1.442695
        %v2174 = vpow.pop %v2173
        %v2175 = vmul.f32 %v2164, 1.442695
        %v2176 = vpow.pop %v2175
        %v2177 = vmul.f32 %v2165, 1.442695
        %v2178 = vpow.pop %v2177
        %v2179 = vmul.f32 %v2166, 1.442695
        %v2180 = vpow.pop %v2179
        %v2181 = vmul.f32 %v2167, 1.442695
        %v2182 = vpow.pop %v2181
        %v2183 = vmul.f32 %v2168, 1.442695
        %v2184 = vpow.pop %v2183
        %v2185 = vadd.f32 %v2170, 1.0
        %v2186 = vadd.f32 %v2172, 1.0
        %v2187 = vadd.f32 %v2174, 1.0
        %v2188 = vadd.f32 %v2176, 1.0
        %v2189 = vadd.f32 %v2178, 1.0
        %v2190 = vadd.f32 %v2180, 1.0
        %v2191 = vadd.f32 %v2182, 1.0
        %v2192 = vadd.f32 %v2184, 1.0
        %v2193 = vrcp.pop %v2185
        %v2194 = vmul.f32 1.0, %v2193
        %v2195 = vrcp.pop %v2186
        %v2196 = vmul.f32 1.0, %v2195
        %v2197 = vrcp.pop %v2187
        %v2198 = vmul.f32 1.0, %v2197
        %v2199 = vrcp.pop %v2188
        %v2200 = vmul.f32 1.0, %v2199
        %v2201 = vrcp.pop %v2189
        %v2202 = vmul.f32 1.0, %v2201
        %v2203 = vrcp.pop %v2190
        %v2204 = vmul.f32 1.0, %v2203
        %v2205 = vrcp.pop %v2191
        %v2206 = vmul.f32 1.0, %v2205
        %v2207 = vrcp.pop %v2192
        %v2208 = vmul.f32 1.0, %v2207
        %v2209 = vmul.f32 %v2139, %v2194
        %v2210 = vmul.f32 %v2141, %v2196
        %v2211 = vmul.f32 %v2145, %v2198
        %v2212 = vmul.f32 %v2147, %v2200
        %v2213 = vmul.f32 %v2151, %v2202
        %v2214 = vmul.f32 %v2153, %v2204
        %v2215 = vmul.f32 %v2157, %v2206
        %v2216 = vmul.f32 %v2159, %v2208
        %v2217 = vld [vmem:[%s2 + $0x40] sm:$0xff]
        %v2218 = vld [vmem:[%s2 + $0x48] sm:$0xff]
        %v2219 = vld [vmem:[%s2 + $0x50] sm:$0xff]
        %v2220 = vld [vmem:[%s2 + $0x58] sm:$0xff]
        %v2221 = vld [vmem:[%s3 + $0x40] sm:$0xff]
        %v2222 = vld [vmem:[%s3 + $0x48] sm:$0xff]
        %v2223 = vld [vmem:[%s3 + $0x50] sm:$0xff]
        %v2224 = vld [vmem:[%s3 + $0x58] sm:$0xff]
        %v2225 = vld [vmem:[%s3 + $0x60] sm:$0xff]
        %v2226 = vld [vmem:[%s3 + $0x68] sm:$0xff]
        %v2227 = vld [vmem:[%s3 + $0x70] sm:$0xff]
        %v2228 = vld [vmem:[%s3 + $0x78] sm:$0xff]
        %v2230 = vsel %vm297, %v2217, 0
        %v2233 = vsel %vm297, %v2218, 0
        %v2236 = vsel %vm297, %v2219, 0
        %v2239 = vsel %vm297, %v2220, 0
        %2241 = vmatprep.subr.mxu0 %v2210
        %2242 = vmatpush1.msra.mxu0 %v2209
        %2243 = vmatprep.subr.mxu0 %v2212
        %2244 = vmatpush1.msra.mxu0 %v2211
        %2245 = vmatprep.subr.mxu0 %v2214
        %2246 = vmatpush1.msra.mxu0 %v2213
        %2247 = vmatprep.subr.mxu0 %v2216
        %2248 = vmatpush1.msra.mxu0 %v2215
        %2249 = vmatprep.subr.mxu0 0.0
        %2250 = vmatpush1.msra.mxu0 0.0
        %2251 = vmatprep.subr.mxu0 0.0
        %2252 = vmatpush1.msra.mxu0 0.0
        %2253 = vmatprep.subr.mxu0 0.0
        %2254 = vmatpush1.msra.mxu0 0.0
        %2255 = vmatprep.subr.mxu0 0.0
        %2256 = vmatpush1.msra.mxu0 0.0
        %2257 = vmatprep.subr.mxu0 0.0
        %2258 = vmatpush1.msra.mxu0 0.0
        %2259 = vmatprep.subr.mxu0 0.0
        %2260 = vmatpush1.msra.mxu0 0.0
        %2261 = vmatprep.subr.mxu0 0.0
        %2262 = vmatpush1.msra.mxu0 0.0
        %2263 = vmatprep.subr.mxu0 0.0
        %2264 = vmatpush1.msra.mxu0 0.0
        %2265 = vmatprep.subr.mxu0 0.0
        %2266 = vmatpush1.msra.mxu0 0.0
        %2267 = vmatprep.subr.mxu0 0.0
        %2268 = vmatpush1.msra.mxu0 0.0
        %2269 = vmatprep.subr.mxu0 0.0
        %2270 = vmatpush1.msra.mxu0 0.0
        %2271 = vmatprep.subr.mxu0 0.0
        %2272 = vmatpush1.msra.mxu0 0.0
        %2273 = vmatprep.subr.mxu0 0.0
        %2274 = vmatpush1.msra.mxu0 0.0
        %2275 = vmatprep.subr.mxu0 0.0
        %2276 = vmatpush1.msra.mxu0 0.0
        %2277 = vmatprep.subr.mxu0 0.0
        %2278 = vmatpush1.msra.mxu0 0.0
        %2279 = vmatprep.subr.mxu0 0.0
        %2280 = vmatpush1.msra.mxu0 0.0
        %2281 = vmatprep.subr.mxu0 0.0
        %2282 = vmatpush1.msra.mxu0 0.0
        %2283 = vmatprep.subr.mxu0 0.0
        %2284 = vmatpush1.msra.mxu0 0.0
        %2285 = vmatprep.subr.mxu0 0.0
        %2286 = vmatpush1.msra.mxu0 0.0
        %2287 = vmatprep.subr.mxu0 0.0
        %2288 = vmatpush1.msra.mxu0 0.0
        %2289 = vmatprep.subr.mxu0 0.0
        %2290 = vmatpush1.msra.mxu0 0.0
        %2291 = vmatprep.subr.mxu0 0.0
        %2292 = vmatpush1.msra.mxu0 0.0
        %2293 = vmatprep.subr.mxu0 0.0
        %2294 = vmatpush1.msra.mxu0 0.0
        %2295 = vmatprep.subr.mxu0 0.0
        %2296 = vmatpush1.msra.mxu0 0.0
        %2297 = vmatprep.subr.mxu0 0.0
        %2298 = vmatpush1.msra.mxu0 0.0
        %2299 = vmatprep.subr.mxu0 0.0
        %2300 = vmatpush1.msra.mxu0 0.0
        %2301 = vmatprep.subr.mxu0 0.0
        %2302 = vmatpush1.msra.mxu0 0.0
        %2303 = vmatprep.subr.mxu0 0.0
        %2304 = vmatpush1.msra.mxu0 0.0
        %2305 = vmatprep.mubr.f32.mxu0 0.0
        %2306 = vmatmul.mubr.f32.gmra.mrb[0].mxu0 %v2230
        %v2307 = vpop.f32.mrb[0].mxu0
        %v2308 = vadd.f32 %v2221, %v2307
        %v2309 = vpop.f32.mrb[0].mxu0
        %v2310 = vadd.f32 %v2222, %v2309
        %2311 = vmatprep.mubr.f32.mxu0 0.0
        %2312 = vmatmul.mubr.f32.gmra.mrb[0].mxu0 %v2233
        %v2313 = vpop.f32.mrb[0].mxu0
        %v2314 = vadd.f32 %v2223, %v2313
        %v2315 = vpop.f32.mrb[0].mxu0
        %v2316 = vadd.f32 %v2224, %v2315
        %2317 = vmatprep.mubr.f32.mxu0 0.0
        %2318 = vmatmul.mubr.f32.gmra.mrb[0].mxu0 %v2236
        %v2319 = vpop.f32.mrb[0].mxu0
        %v2320 = vadd.f32 %v2225, %v2319
        %v2321 = vpop.f32.mrb[0].mxu0
        %v2322 = vadd.f32 %v2226, %v2321
        %2323 = vmatprep.mubr.f32.mxu0 0.0
        %2324 = vmatmul.mubr.f32.gmra.mrb[0].mxu0 %v2239
        %v2325 = vpop.f32.mrb[0].mxu0
        %v2326 = vadd.f32 %v2227, %v2325
        %v2327 = vpop.f32.mrb[0].mxu0
        %v2328 = vadd.f32 %v2228, %v2327
        %2329 = vdwg.mxu0
        %v2330 = vmul.f32 %v2008, %v2314
        %v2331 = vmul.f32 %v2010, %v2316
        %v2332 = vmul.f32 %v2014, %v2314
        %v2333 = vmul.f32 %v2016, %v2316
        %v2334 = vmul.f32 %v2020, %v2314
        %v2335 = vmul.f32 %v2022, %v2316
        %v2336 = vmul.f32 %v2008, %v2326
        %v2337 = vmul.f32 %v2010, %v2328
        %v2338 = vmul.f32 %v2014, %v2326
        %v2339 = vmul.f32 %v2016, %v2328
        %v2340 = vmul.f32 %v2020, %v2326
        %v2341 = vmul.f32 %v2022, %v2328
        %v2342 = vld [vmem:[%s2 + $0x80] sm:$0xff]
        %v2343 = vld [vmem:[%s2 + $0x88] sm:$0xff]
        %v2344 = vld [vmem:[%s2 + $0x90] sm:$0xff]
        %v2345 = vld [vmem:[%s2 + $0x98] sm:$0xff]
        %v2346 = vld [vmem:[%s2 + $0xa0] sm:$0xff]
        %v2347 = vld [vmem:[%s2 + $0xa8] sm:$0xff]
        %v2348 = vld [vmem:[%s2 + $0xb0] sm:$0xff]
        %v2349 = vld [vmem:[%s2 + $0xb8] sm:$0xff]
        %v2351 = vsel %vm822, %v2342, 0
        %v2354 = vsel %vm822, %v2343, 0
        %v2357 = vsel %vm822, %v2344, 0
        %v2360 = vsel %vm822, %v2345, 0
        %v2363 = vsel %vm822, %v2346, 0
        %v2366 = vsel %vm822, %v2347, 0
        %v2369 = vsel %vm822, %v2348, 0
        %v2372 = vsel %vm822, %v2349, 0
        %2374 = vmatprep.subr.mxu0 %v2310
        %2375 = vmatpush1.msra.mxu0 %v2308
        %2376 = vmatprep.subr.mxu0 %v2322
        %2377 = vmatpush1.msra.mxu0 %v2320
        %2378 = vmatprep.subr.mxu0 %v2331
        %2379 = vmatpush1.msra.mxu0 %v2330
        %2380 = vmatprep.subr.mxu0 %v2333
        %2381 = vmatpush1.msra.mxu0 %v2332
        %2382 = vmatprep.subr.mxu0 %v2335
        %2383 = vmatpush1.msra.mxu0 %v2334
        %2384 = vmatprep.subr.mxu0 %v2337
        %2385 = vmatpush1.msra.mxu0 %v2336
        %2386 = vmatprep.subr.mxu0 %v2339
        %2387 = vmatpush1.msra.mxu0 %v2338
        %2388 = vmatprep.subr.mxu0 %v2341
        %2389 = vmatpush1.msra.mxu0 %v2340
        %2390 = vmatprep.subr.mxu0 0.0
        %2391 = vmatpush1.msra.mxu0 0.0
        %2392 = vmatprep.subr.mxu0 0.0
        %2393 = vmatpush1.msra.mxu0 0.0
        %2394 = vmatprep.subr.mxu0 0.0
        %2395 = vmatpush1.msra.mxu0 0.0
        %2396 = vmatprep.subr.mxu0 0.0
        %2397 = vmatpush1.msra.mxu0 0.0
        %2398 = vmatprep.subr.mxu0 0.0
        %2399 = vmatpush1.msra.mxu0 0.0
        %2400 = vmatprep.subr.mxu0 0.0
        %2401 = vmatpush1.msra.mxu0 0.0
        %2402 = vmatprep.subr.mxu0 0.0
        %2403 = vmatpush1.msra.mxu0 0.0
        %2404 = vmatprep.subr.mxu0 0.0
        %2405 = vmatpush1.msra.mxu0 0.0
        %2406 = vmatprep.subr.mxu0 0.0
        %2407 = vmatpush1.msra.mxu0 0.0
        %2408 = vmatprep.subr.mxu0 0.0
        %2409 = vmatpush1.msra.mxu0 0.0
        %2410 = vmatprep.subr.mxu0 0.0
        %2411 = vmatpush1.msra.mxu0 0.0
        %2412 = vmatprep.subr.mxu0 0.0
        %2413 = vmatpush1.msra.mxu0 0.0
        %2414 = vmatprep.subr.mxu0 0.0
        %2415 = vmatpush1.msra.mxu0 0.0
        %2416 = vmatprep.subr.mxu0 0.0
        %2417 = vmatpush1.msra.mxu0 0.0
        %2418 = vmatprep.subr.mxu0 0.0
        %2419 = vmatpush1.msra.mxu0 0.0
        %2420 = vmatprep.subr.mxu0 0.0
        %2421 = vmatpush1.msra.mxu0 0.0
        %2422 = vmatprep.subr.mxu0 0.0
        %2423 = vmatpush1.msra.mxu0 0.0
        %2424 = vmatprep.subr.mxu0 0.0
        %2425 = vmatpush1.msra.mxu0 0.0
        %2426 = vmatprep.subr.mxu0 0.0
        %2427 = vmatpush1.msra.mxu0 0.0
        %2428 = vmatprep.subr.mxu0 0.0
        %2429 = vmatpush1.msra.mxu0 0.0
        %2430 = vmatprep.subr.mxu0 0.0
        %2431 = vmatpush1.msra.mxu0 0.0
        %2432 = vmatprep.subr.mxu0 0.0
        %2433 = vmatpush1.msra.mxu0 0.0
        %2434 = vmatprep.subr.mxu0 0.0
        %2435 = vmatpush1.msra.mxu0 0.0
        %2436 = vmatprep.subr.mxu0 0.0
        %2437 = vmatpush1.msra.mxu0 0.0
        %2438 = vmatprep.mubr.f32.mxu0 0.0
        %2439 = vmatmul.mubr.f32.gmra.mrb[0].mxu0 %v2351
        %v2440 = vpop.f32.mrb[0].mxu0
        %v2441 = vadd.f32 0.0, %v2440
        %v2442 = vpop.f32.mrb[0].mxu0
        %v2443 = vadd.f32 0.0, %v2442
        %2444 = vmatprep.mubr.f32.mxu0 0.0
        %2445 = vmatmul.mubr.f32.gmra.mrb[0].mxu0 %v2354
        %v2446 = vpop.f32.mrb[0].mxu0
        %v2447 = vadd.f32 0.0, %v2446
        %v2448 = vpop.f32.mrb[0].mxu0
        %v2449 = vadd.f32 0.0, %v2448
        %2450 = vmatprep.mubr.f32.mxu0 0.0
        %2451 = vmatmul.mubr.f32.gmra.mrb[0].mxu0 %v2357
        %v2452 = vpop.f32.mrb[0].mxu0
        %v2453 = vadd.f32 0.0, %v2452
        %v2454 = vpop.f32.mrb[0].mxu0
        %v2455 = vadd.f32 0.0, %v2454
        %2456 = vmatprep.mubr.f32.mxu0 0.0
        %2457 = vmatmul.mubr.f32.gmra.mrb[0].mxu0 %v2360
        %v2458 = vpop.f32.mrb[0].mxu0
        %v2459 = vadd.f32 0.0, %v2458
        %v2460 = vpop.f32.mrb[0].mxu0
        %v2461 = vadd.f32 0.0, %v2460
        %2462 = vmatprep.mubr.f32.mxu0 0.0
        %2463 = vmatmul.mubr.f32.gmra.mrb[0].mxu0 %v2363
        %v2464 = vpop.f32.mrb[0].mxu0
        %v2465 = vadd.f32 0.0, %v2464
        %v2466 = vpop.f32.mrb[0].mxu0
        %v2467 = vadd.f32 0.0, %v2466
        %2468 = vmatprep.mubr.f32.mxu0 0.0
        %2469 = vmatmul.mubr.f32.gmra.mrb[0].mxu0 %v2366
        %v2470 = vpop.f32.mrb[0].mxu0
        %v2471 = vadd.f32 0.0, %v2470
        %v2472 = vpop.f32.mrb[0].mxu0
        %v2473 = vadd.f32 0.0, %v2472
        %2474 = vmatprep.mubr.f32.mxu0 0.0
        %2475 = vmatmul.mubr.f32.gmra.mrb[0].mxu0 %v2369
        %v2476 = vpop.f32.mrb[0].mxu0
        %v2477 = vadd.f32 0.0, %v2476
        %v2478 = vpop.f32.mrb[0].mxu0
        %v2479 = vadd.f32 0.0, %v2478
        %2480 = vmatprep.mubr.f32.mxu0 0.0
        %2481 = vmatmul.mubr.f32.gmra.mrb[0].mxu0 %v2372
        %v2482 = vpop.f32.mrb[0].mxu0
        %v2483 = vadd.f32 0.0, %v2482
        %v2484 = vpop.f32.mrb[0].mxu0
        %v2485 = vadd.f32 0.0, %v2484
        %2486 = vdwg.mxu0
        %v2487 = vld [vmem:[%s3 + $0x80] sm:$0xff]
        %v2488 = vld [vmem:[%s3 + $0x88] sm:$0xff]
        %v2489 = vld [vmem:[%s3 + $0x90] sm:$0xff]
        %v2490 = vld [vmem:[%s3 + $0x98] sm:$0xff]
        %v2491 = vadd.f32 %v2441, %v2487
        %v2492 = vadd.f32 %v2443, %v2488
        %v2493 = vadd.f32 %v2447, %v2489
        %v2494 = vadd.f32 %v2449, %v2490
        %v2495 = vld [vmem:[%s3 + $0xe0] sm:$0xff]
        %v2496 = vld [vmem:[%s3 + $0xe8] sm:$0xff]
        %v2497 = vld [vmem:[%s3 + $0xf0] sm:$0xff]
        %v2498 = vld [vmem:[%s3 + $0xf8] sm:$0xff]
        %v2499 = vld [vmem:[%s3 + $0x100] sm:$0xff]
        %v2500 = vld [vmem:[%s3 + $0x108] sm:$0xff]
        %v2501 = vld [vmem:[%s3 + $0x110] sm:$0xff]
        %v2502 = vld [vmem:[%s3 + $0x118] sm:$0xff]
        %v2503 = vld [vmem:[%s3 + $0x120] sm:$0xff]
        %v2504 = vld [vmem:[%s3 + $0x128] sm:$0xff]
        %v2505 = vmul.f32 %v2453, %v2471
        %v2506 = vmul.f32 %v2455, %v2473
        %v2507 = vmul.f32 %v2459, %v2477
        %v2508 = vmul.f32 %v2461, %v2479
        %v2509 = vadd.f32 %v2505, %v2507
        %v2510 = vadd.f32 %v2506, %v2508
        %v2511 = vmul.f32 %v2465, %v2483
        %v2512 = vmul.f32 %v2467, %v2485
        %v2513 = vadd.f32 %v2509, %v2511
        %v2514 = vadd.f32 %v2510, %v2512
        %v2515 = vmul.f32 %v2491, %v2493
        %v2516 = vmul.f32 %v2492, %v2494
        %v2517 = vmul.f32 %v2495, %v2515
        %v2518 = vmul.f32 %v2496, %v2516
        %v2519 = vmul.f32 %v2501, %v2513
        %v2520 = vmul.f32 %v2502, %v2514
        %v2521 = vadd.f32 %v2517, %v2519
        %v2522 = vadd.f32 %v2518, %v2520
        %v2523 = vadd.f32 %v2521, %v2002
        %v2524 = vadd.f32 %v2522, %v2004
        %v2525 = vmul.f32 %v2459, %v2483
        %v2526 = vmul.f32 %v2461, %v2485
        %v2527 = vmul.f32 %v2465, %v2477
        %v2528 = vmul.f32 %v2467, %v2479
        %v2529 = vsub.f32 %v2525, %v2527
        %v2530 = vsub.f32 %v2526, %v2528
        %v2531 = vmul.f32 %v2465, %v2471
        %v2532 = vmul.f32 %v2467, %v2473
        %v2533 = vmul.f32 %v2453, %v2483
        %v2534 = vmul.f32 %v2455, %v2485
        %v2535 = vsub.f32 %v2531, %v2533
        %v2536 = vsub.f32 %v2532, %v2534
        %v2537 = vmul.f32 %v2453, %v2477
        %v2538 = vmul.f32 %v2455, %v2479
        %v2539 = vmul.f32 %v2459, %v2471
        %v2540 = vmul.f32 %v2461, %v2473
        %v2541 = vsub.f32 %v2537, %v2539
        %v2542 = vsub.f32 %v2538, %v2540
        %v2543 = vmul.f32 %v2491, %v2471
        %v2544 = vmul.f32 %v2492, %v2473
        %v2545 = vmul.f32 %v2497, %v2543
        %v2546 = vmul.f32 %v2498, %v2544
        %v2547 = vmul.f32 %v2453, %v2493
        %v2548 = vmul.f32 %v2455, %v2494
        %v2549 = vmul.f32 %v2499, %v2547
        %v2550 = vmul.f32 %v2500, %v2548
        %v2551 = vadd.f32 %v2545, %v2549
        %v2552 = vadd.f32 %v2546, %v2550
        %v2553 = vmul.f32 %v2503, %v2529
        %v2554 = vmul.f32 %v2504, %v2530
        %v2555 = vadd.f32 %v2551, %v2553
        %v2556 = vadd.f32 %v2552, %v2554
        %v2557 = vadd.f32 %v2555, %v2008
        %v2558 = vadd.f32 %v2556, %v2010
        %v2559 = vmul.f32 %v2491, %v2477
        %v2560 = vmul.f32 %v2492, %v2479
        %v2561 = vmul.f32 %v2497, %v2559
        %v2562 = vmul.f32 %v2498, %v2560
        %v2563 = vmul.f32 %v2459, %v2493
        %v2564 = vmul.f32 %v2461, %v2494
        %v2565 = vmul.f32 %v2499, %v2563
        %v2566 = vmul.f32 %v2500, %v2564
        %v2567 = vadd.f32 %v2561, %v2565
        %v2568 = vadd.f32 %v2562, %v2566
        %v2569 = vmul.f32 %v2503, %v2535
        %v2570 = vmul.f32 %v2504, %v2536
        %v2571 = vadd.f32 %v2567, %v2569
        %v2572 = vadd.f32 %v2568, %v2570
        %v2573 = vadd.f32 %v2571, %v2014
        %v2574 = vadd.f32 %v2572, %v2016
        %v2575 = vmul.f32 %v2491, %v2483
        %v2576 = vmul.f32 %v2492, %v2485
        %v2577 = vmul.f32 %v2497, %v2575
        %v2578 = vmul.f32 %v2498, %v2576
        %v2579 = vmul.f32 %v2465, %v2493
        %v2580 = vmul.f32 %v2467, %v2494
        %v2581 = vmul.f32 %v2499, %v2579
        %v2582 = vmul.f32 %v2500, %v2580
        %v2583 = vadd.f32 %v2577, %v2581
        %v2584 = vadd.f32 %v2578, %v2582
        %v2585 = vmul.f32 %v2503, %v2541
        %v2586 = vmul.f32 %v2504, %v2542
        %v2587 = vadd.f32 %v2583, %v2585
        %v2588 = vadd.f32 %v2584, %v2586
        %v2589 = vadd.f32 %v2587, %v2020
        %v2590 = vadd.f32 %v2588, %v2022
        %v2591 = vmul.f32 %v2557, %v2557
        %v2592 = vmul.f32 %v2558, %v2558
        %v2593 = vmul.f32 %v2573, %v2573
        %v2594 = vmul.f32 %v2574, %v2574
        %v2595 = vadd.f32 %v2591, %v2593
        %v2596 = vadd.f32 %v2592, %v2594
        %v2597 = vmul.f32 %v2589, %v2589
        %v2598 = vmul.f32 %v2590, %v2590
        %v2599 = vadd.f32 %v2595, %v2597
        %v2600 = vadd.f32 %v2596, %v2598
        %v2601 = vrsqrt.pop %v2599
        %v2602 = vmul.f32 %v2599, %v2601
        %vm2603 = vcmp.eq.f32.partialorder %v2599, inf
        %v2604 = vsel %vm2603, %v2599, %v2602
        %vm2605 = vcmp.eq.f32.partialorder %v2599, 0.0
        %v2606 = vand.u32 %v2599, 2147483648
        %v2607 = vsel %vm2605, %v2606, %v2604
        %v2608 = vrsqrt.pop %v2600
        %v2609 = vmul.f32 %v2600, %v2608
        %vm2610 = vcmp.eq.f32.partialorder %v2600, inf
        %v2611 = vsel %vm2610, %v2600, %v2609
        %vm2612 = vcmp.eq.f32.partialorder %v2600, 0.0
        %v2613 = vand.u32 %v2600, 2147483648
        %v2614 = vsel %vm2612, %v2613, %v2611
        %v2615 = vld [vmem:[%s2 + $0x60] sm:$0xff]
        %v2616 = vld [vmem:[%s2 + $0x68] sm:$0xff]
        %v2617 = vld [vmem:[%s3 + $0xa0] sm:$0xff]
        %v2618 = vld [vmem:[%s3 + $0xa8] sm:$0xff]
        %v2619 = vld [vmem:[%s3 + $0xb0] sm:$0xff]
        %v2620 = vld [vmem:[%s3 + $0xb8] sm:$0xff]
        %v2622 = vsel %vm531, %v2615, 0
        %v2625 = vsel %vm531, %v2616, 0
        %2627 = vmatprep.subr.mxu0 %v2524
        %2628 = vmatpush1.msra.mxu0 %v2523
        %2629 = vmatprep.subr.mxu0 %v2614
        %2630 = vmatpush1.msra.mxu0 %v2607
        %2631 = vmatprep.subr.mxu0 0.0
        %2632 = vmatpush1.msra.mxu0 0.0
        %2633 = vmatprep.subr.mxu0 0.0
        %2634 = vmatpush1.msra.mxu0 0.0
        %2635 = vmatprep.subr.mxu0 0.0
        %2636 = vmatpush1.msra.mxu0 0.0
        %2637 = vmatprep.subr.mxu0 0.0
        %2638 = vmatpush1.msra.mxu0 0.0
        %2639 = vmatprep.subr.mxu0 0.0
        %2640 = vmatpush1.msra.mxu0 0.0
        %2641 = vmatprep.subr.mxu0 0.0
        %2642 = vmatpush1.msra.mxu0 0.0
        %2643 = vmatprep.subr.mxu0 0.0
        %2644 = vmatpush1.msra.mxu0 0.0
        %2645 = vmatprep.subr.mxu0 0.0
        %2646 = vmatpush1.msra.mxu0 0.0
        %2647 = vmatprep.subr.mxu0 0.0
        %2648 = vmatpush1.msra.mxu0 0.0
        %2649 = vmatprep.subr.mxu0 0.0
        %2650 = vmatpush1.msra.mxu0 0.0
        %2651 = vmatprep.subr.mxu0 0.0
        %2652 = vmatpush1.msra.mxu0 0.0
        %2653 = vmatprep.subr.mxu0 0.0
        %2654 = vmatpush1.msra.mxu0 0.0
        %2655 = vmatprep.subr.mxu0 0.0
        %2656 = vmatpush1.msra.mxu0 0.0
        %2657 = vmatprep.subr.mxu0 0.0
        %2658 = vmatpush1.msra.mxu0 0.0
        %2659 = vmatprep.subr.mxu0 0.0
        %2660 = vmatpush1.msra.mxu0 0.0
        %2661 = vmatprep.subr.mxu0 0.0
        %2662 = vmatpush1.msra.mxu0 0.0
        %2663 = vmatprep.subr.mxu0 0.0
        %2664 = vmatpush1.msra.mxu0 0.0
        %2665 = vmatprep.subr.mxu0 0.0
        %2666 = vmatpush1.msra.mxu0 0.0
        %2667 = vmatprep.subr.mxu0 0.0
        %2668 = vmatpush1.msra.mxu0 0.0
        %2669 = vmatprep.subr.mxu0 0.0
        %2670 = vmatpush1.msra.mxu0 0.0
        %2671 = vmatprep.subr.mxu0 0.0
        %2672 = vmatpush1.msra.mxu0 0.0
        %2673 = vmatprep.subr.mxu0 0.0
        %2674 = vmatpush1.msra.mxu0 0.0
        %2675 = vmatprep.subr.mxu0 0.0
        %2676 = vmatpush1.msra.mxu0 0.0
        %2677 = vmatprep.subr.mxu0 0.0
        %2678 = vmatpush1.msra.mxu0 0.0
        %2679 = vmatprep.subr.mxu0 0.0
        %2680 = vmatpush1.msra.mxu0 0.0
        %2681 = vmatprep.subr.mxu0 0.0
        %2682 = vmatpush1.msra.mxu0 0.0
        %2683 = vmatprep.subr.mxu0 0.0
        %2684 = vmatpush1.msra.mxu0 0.0
        %2685 = vmatprep.subr.mxu0 0.0
        %2686 = vmatpush1.msra.mxu0 0.0
        %2687 = vmatprep.subr.mxu0 0.0
        %2688 = vmatpush1.msra.mxu0 0.0
        %2689 = vmatprep.subr.mxu0 0.0
        %2690 = vmatpush1.msra.mxu0 0.0
        %2691 = vmatprep.mubr.f32.mxu0 0.0
        %2692 = vmatmul.mubr.f32.gmra.mrb[0].mxu0 %v2622
        %v2693 = vpop.f32.mrb[0].mxu0
        %v2694 = vadd.f32 %v2617, %v2693
        %v2695 = vpop.f32.mrb[0].mxu0
        %v2696 = vadd.f32 %v2618, %v2695
        %2697 = vmatprep.mubr.f32.mxu0 0.0
        %2698 = vmatmul.mubr.f32.gmra.mrb[0].mxu0 %v2625
        %v2699 = vpop.f32.mrb[0].mxu0
        %v2700 = vadd.f32 %v2619, %v2699
        %v2701 = vpop.f32.mrb[0].mxu0
        %v2702 = vadd.f32 %v2620, %v2701
        %2703 = vdwg.mxu0
        %v2704 = vxor.u32 %v2694, 2147483648
        %v2705 = vxor.u32 %v2696, 2147483648
        %v2706 = vxor.u32 %v2700, 2147483648
        %v2707 = vxor.u32 %v2702, 2147483648
        %v2708 = vmul.f32 %v2704, 1.442695
        %v2709 = vpow.pop %v2708
        %v2710 = vmul.f32 %v2705, 1.442695
        %v2711 = vpow.pop %v2710
        %v2712 = vmul.f32 %v2706, 1.442695
        %v2713 = vpow.pop %v2712
        %v2714 = vmul.f32 %v2707, 1.442695
        %v2715 = vpow.pop %v2714
        %v2716 = vadd.f32 %v2709, 1.0
        %v2717 = vadd.f32 %v2711, 1.0
        %v2718 = vadd.f32 %v2713, 1.0
        %v2719 = vadd.f32 %v2715, 1.0
        %v2720 = vrcp.pop %v2716
        %v2721 = vmul.f32 1.0, %v2720
        %v2722 = vrcp.pop %v2717
        %v2723 = vmul.f32 1.0, %v2722
        %v2724 = vrcp.pop %v2718
        %v2725 = vmul.f32 1.0, %v2724
        %v2726 = vrcp.pop %v2719
        %v2727 = vmul.f32 1.0, %v2726
        %v2728 = vmul.f32 %v2694, %v2721
        %v2729 = vmul.f32 %v2696, %v2723
        %v2730 = vmul.f32 %v2700, %v2725
        %v2731 = vmul.f32 %v2702, %v2727
        %v2732 = vld [vmem:[%s2 + $0x70] sm:$0xff]
        %v2733 = vld [vmem:[%s2 + $0x78] sm:$0xff]
        %v2734 = vld [vmem:[%s3 + $0xc0] sm:$0xff]
        %v2735 = vld [vmem:[%s3 + $0xc8] sm:$0xff]
        %v2736 = vld [vmem:[%s3 + $0xd0] sm:$0xff]
        %v2737 = vld [vmem:[%s3 + $0xd8] sm:$0xff]
        %v2739 = vsel %vm531, %v2732, 0
        %v2742 = vsel %vm531, %v2733, 0
        %2744 = vmatprep.subr.mxu0 %v2729
        %2745 = vmatpush1.msra.mxu0 %v2728
        %2746 = vmatprep.subr.mxu0 %v2731
        %2747 = vmatpush1.msra.mxu0 %v2730
        %2748 = vmatprep.subr.mxu0 0.0
        %2749 = vmatpush1.msra.mxu0 0.0
        %2750 = vmatprep.subr.mxu0 0.0
        %2751 = vmatpush1.msra.mxu0 0.0
        %2752 = vmatprep.subr.mxu0 0.0
        %2753 = vmatpush1.msra.mxu0 0.0
        %2754 = vmatprep.subr.mxu0 0.0
        %2755 = vmatpush1.msra.mxu0 0.0
        %2756 = vmatprep.subr.mxu0 0.0
        %2757 = vmatpush1.msra.mxu0 0.0
        %2758 = vmatprep.subr.mxu0 0.0
        %2759 = vmatpush1.msra.mxu0 0.0
        %2760 = vmatprep.subr.mxu0 0.0
        %2761 = vmatpush1.msra.mxu0 0.0
        %2762 = vmatprep.subr.mxu0 0.0
        %2763 = vmatpush1.msra.mxu0 0.0
        %2764 = vmatprep.subr.mxu0 0.0
        %2765 = vmatpush1.msra.mxu0 0.0
        %2766 = vmatprep.subr.mxu0 0.0
        %2767 = vmatpush1.msra.mxu0 0.0
        %2768 = vmatprep.subr.mxu0 0.0
        %2769 = vmatpush1.msra.mxu0 0.0
        %2770 = vmatprep.subr.mxu0 0.0
        %2771 = vmatpush1.msra.mxu0 0.0
        %2772 = vmatprep.subr.mxu0 0.0
        %2773 = vmatpush1.msra.mxu0 0.0
        %2774 = vmatprep.subr.mxu0 0.0
        %2775 = vmatpush1.msra.mxu0 0.0
        %2776 = vmatprep.subr.mxu0 0.0
        %2777 = vmatpush1.msra.mxu0 0.0
        %2778 = vmatprep.subr.mxu0 0.0
        %2779 = vmatpush1.msra.mxu0 0.0
        %2780 = vmatprep.subr.mxu0 0.0
        %2781 = vmatpush1.msra.mxu0 0.0
        %2782 = vmatprep.subr.mxu0 0.0
        %2783 = vmatpush1.msra.mxu0 0.0
        %2784 = vmatprep.subr.mxu0 0.0
        %2785 = vmatpush1.msra.mxu0 0.0
        %2786 = vmatprep.subr.mxu0 0.0
        %2787 = vmatpush1.msra.mxu0 0.0
        %2788 = vmatprep.subr.mxu0 0.0
        %2789 = vmatpush1.msra.mxu0 0.0
        %2790 = vmatprep.subr.mxu0 0.0
        %2791 = vmatpush1.msra.mxu0 0.0
        %2792 = vmatprep.subr.mxu0 0.0
        %2793 = vmatpush1.msra.mxu0 0.0
        %2794 = vmatprep.subr.mxu0 0.0
        %2795 = vmatpush1.msra.mxu0 0.0
        %2796 = vmatprep.subr.mxu0 0.0
        %2797 = vmatpush1.msra.mxu0 0.0
        %2798 = vmatprep.subr.mxu0 0.0
        %2799 = vmatpush1.msra.mxu0 0.0
        %2800 = vmatprep.subr.mxu0 0.0
        %2801 = vmatpush1.msra.mxu0 0.0
        %2802 = vmatprep.subr.mxu0 0.0
        %2803 = vmatpush1.msra.mxu0 0.0
        %2804 = vmatprep.subr.mxu0 0.0
        %2805 = vmatpush1.msra.mxu0 0.0
        %2806 = vmatprep.subr.mxu0 0.0
        %2807 = vmatpush1.msra.mxu0 0.0
        %2808 = vmatprep.mubr.f32.mxu0 0.0
        %2809 = vmatmul.mubr.f32.gmra.mrb[0].mxu0 %v2739
        %v2810 = vpop.f32.mrb[0].mxu0
        %v2811 = vadd.f32 %v2734, %v2810
        %v2812 = vpop.f32.mrb[0].mxu0
        %v2813 = vadd.f32 %v2735, %v2812
        %2814 = vmatprep.mubr.f32.mxu0 0.0
        %2815 = vmatmul.mubr.f32.gmra.mrb[0].mxu0 %v2742
        %v2816 = vpop.f32.mrb[0].mxu0
        %v2817 = vadd.f32 %v2736, %v2816
        %v2818 = vpop.f32.mrb[0].mxu0
        %v2819 = vadd.f32 %v2737, %v2818
        %2820 = vdwg.mxu0
        %v2821 = vmul.f32 %v2557, %v2817
        %v2822 = vmul.f32 %v2558, %v2819
        %v2823 = vmul.f32 %v2573, %v2817
        %v2824 = vmul.f32 %v2574, %v2819
        %v2825 = vmul.f32 %v2589, %v2817
        %v2826 = vmul.f32 %v2590, %v2819
        %v2827 = vld [vmem:[%s2 + $0xc0] sm:$0xff]
        %v2828 = vld [vmem:[%s2 + $0xc8] sm:$0xff]
        %v2829 = vld [vmem:[%s2 + $0xd0] sm:$0xff]
        %v2830 = vld [vmem:[%s2 + $0xd8] sm:$0xff]
        %v2831 = vld [vmem:[%s2 + $0xe0] sm:$0x1]
        %s2832 = scalar_lea.vmem %s250, 256
        %v2833 = vld [vmem:[%s2832] sm:$0xff]
        %v2834 = vld [vmem:[%s2832 + $0x8] sm:$0xff]
        %v2835 = vld [vmem:[%s2832 + $0x10] sm:$0xff]
        %v2836 = vld [vmem:[%s2832 + $0x18] sm:$0xff]
        %v2837 = vld [vmem:[%s2832 + $0x20] sm:$0xff]
        %v2838 = vld [vmem:[%s2832 + $0x28] sm:$0xff]
        %v2839 = vld [vmem:[%s2832 + $0x30] sm:$0xff]
        %v2840 = vld [vmem:[%s2832 + $0x38] sm:$0xff]
        %v2841 = vld [vmem:[%s2832 + $0x40] sm:$0xff]
        %v2842 = vld [vmem:[%s2832 + $0x48] sm:$0xff]
        %v2843 = vld [vmem:[%s2832 + $0x50] sm:$0xff]
        %v2844 = vld [vmem:[%s2832 + $0x58] sm:$0xff]
        %v2845 = vld [vmem:[%s2832 + $0x60] sm:$0xff]
        %v2846 = vld [vmem:[%s2832 + $0x68] sm:$0xff]
        %v2847 = vld [vmem:[%s2832 + $0x70] sm:$0xff]
        %v2848 = vld [vmem:[%s2832 + $0x78] sm:$0xff]
        %v2849 = vld [vmem:[%s2832 + $0x80] sm:$0xff]
        %v2850 = vld [vmem:[%s2832 + $0x88] sm:$0xff]
        %v2851 = vld [vmem:[%s2832 + $0x90] sm:$0xff]
        %v2852 = vld [vmem:[%s2832 + $0x98] sm:$0xff]
        %v2853 = vld [vmem:[%s2832 + $0xa0] sm:$0xff]
        %v2854 = vld [vmem:[%s2832 + $0xa8] sm:$0xff]
        %v2855 = vld [vmem:[%s2832 + $0xb0] sm:$0xff]
        %v2856 = vld [vmem:[%s2832 + $0xb8] sm:$0xff]
        %v2857 = vld [vmem:[%s2832 + $0xc0] sm:$0xff]
        %v2858 = vld [vmem:[%s2832 + $0xc8] sm:$0xff]
        %v2859 = vld [vmem:[%s2832 + $0xd0] sm:$0xff]
        %v2860 = vld [vmem:[%s2832 + $0xd8] sm:$0xff]
        %v2861 = vld [vmem:[%s2832 + $0xe0] sm:$0xff]
        %v2862 = vld [vmem:[%s2832 + $0xe8] sm:$0xff]
        %v2863 = vld [vmem:[%s2832 + $0xf0] sm:$0xff]
        %v2864 = vld [vmem:[%s2832 + $0xf8] sm:$0xff]
        %v2865 = vlaneseq
        %v2866 = vshrl.u32 %v2865, 7
        %v2867 = vsub.s32 0, %v2866
        %v2868 = vrot.slane %v2831, %v2867
        %2869 = vxpose.xlu0.b32.start [1/16] %v2811, 128
        %2870 = vxpose.xlu0.b32.cont [2/16] %v2821, 128
        %2871 = vxpose.xlu0.b32.cont [3/16] %v2823, 128
        %2872 = vxpose.xlu0.b32.cont [4/16] %v2825, 128
        %2873 = vxpose.xlu0.b32.cont [5/16] 0.0, 128
        %2874 = vxpose.xlu0.b32.cont [6/16] 0.0, 128
        %2875 = vxpose.xlu0.b32.cont [7/16] 0.0, 128
        %2876 = vxpose.xlu0.b32.cont [8/16] 0.0, 128
        %2877 = vxpose.xlu0.b32.cont [9/16] 0.0, 128
        %2878 = vxpose.xlu0.b32.cont [10/16] 0.0, 128
        %2879 = vxpose.xlu0.b32.cont [11/16] 0.0, 128
        %2880 = vxpose.xlu0.b32.cont [12/16] 0.0, 128
        %2881 = vxpose.xlu0.b32.cont [13/16] 0.0, 128
        %2882 = vxpose.xlu0.b32.cont [14/16] 0.0, 128
        %2883 = vxpose.xlu0.b32.cont [15/16] 0.0, 128
        %2884 = vxpose.xlu0.b32.end [16/16] 0.0, 128
        %v2885 = vpop.trf.xlu0
        %v2886 = vpop.trf.xlu0
        %v2887 = vpop.trf.xlu0
        %v2888 = vpop.trf.xlu0
        %v2889 = vpop.trf.xlu0
        %v2890 = vpop.trf.xlu0
        %v2891 = vpop.trf.xlu0
        %v2892 = vpop.trf.xlu0
        %v2893 = vpop.trf.xlu0
        %v2894 = vpop.trf.xlu0
        %v2895 = vpop.trf.xlu0
        %v2896 = vpop.trf.xlu0
        %v2897 = vpop.trf.xlu0
        %v2898 = vpop.trf.xlu0
        %v2899 = vpop.trf.xlu0
        %v2900 = vpop.trf.xlu0
        %2901 = vxpose.xlu0.b32.start [1/16] %v2813, 128
        %2902 = vxpose.xlu0.b32.cont [2/16] %v2822, 128
        %2903 = vxpose.xlu0.b32.cont [3/16] %v2824, 128
        %2904 = vxpose.xlu0.b32.cont [4/16] %v2826, 128
        %2905 = vxpose.xlu0.b32.cont [5/16] 0.0, 128
        %2906 = vxpose.xlu0.b32.cont [6/16] 0.0, 128
        %2907 = vxpose.xlu0.b32.cont [7/16] 0.0, 128
        %2908 = vxpose.xlu0.b32.cont [8/16] 0.0, 128
        %2909 = vxpose.xlu0.b32.cont [9/16] 0.0, 128
        %2910 = vxpose.xlu0.b32.cont [10/16] 0.0, 128
        %2911 = vxpose.xlu0.b32.cont [11/16] 0.0, 128
        %2912 = vxpose.xlu0.b32.cont [12/16] 0.0, 128
        %2913 = vxpose.xlu0.b32.cont [13/16] 0.0, 128
        %2914 = vxpose.xlu0.b32.cont [14/16] 0.0, 128
        %2915 = vxpose.xlu0.b32.cont [15/16] 0.0, 128
        %2916 = vxpose.xlu0.b32.end [16/16] 0.0, 128
        %v2917 = vpop.trf.xlu0
        %v2918 = vpop.trf.xlu0
        %v2919 = vpop.trf.xlu0
        %v2920 = vpop.trf.xlu0
        %v2921 = vpop.trf.xlu0
        %v2922 = vpop.trf.xlu0
        %v2923 = vpop.trf.xlu0
        %v2924 = vpop.trf.xlu0
        %v2925 = vpop.trf.xlu0
        %v2926 = vpop.trf.xlu0
        %v2927 = vpop.trf.xlu0
        %v2928 = vpop.trf.xlu0
        %v2929 = vpop.trf.xlu0
        %v2930 = vpop.trf.xlu0
        %v2931 = vpop.trf.xlu0
        %v2932 = vpop.trf.xlu0
        %v2934 = vsel %vm297, %v2885, 0
        %v2937 = vsel %vm297, %v2886, 0
        %v2940 = vsel %vm297, %v2887, 0
        %v2943 = vsel %vm297, %v2888, 0
        %v2946 = vsel %vm297, %v2889, 0
        %v2949 = vsel %vm297, %v2890, 0
        %v2952 = vsel %vm297, %v2891, 0
        %v2955 = vsel %vm297, %v2892, 0
        %v2958 = vsel %vm297, %v2893, 0
        %v2961 = vsel %vm297, %v2894, 0
        %v2964 = vsel %vm297, %v2895, 0
        %v2967 = vsel %vm297, %v2896, 0
        %v2970 = vsel %vm297, %v2897, 0
        %v2973 = vsel %vm297, %v2898, 0
        %v2976 = vsel %vm297, %v2899, 0
        %v2979 = vsel %vm297, %v2900, 0
        %v2982 = vsel %vm297, %v2917, 0
        %v2985 = vsel %vm297, %v2918, 0
        %v2988 = vsel %vm297, %v2919, 0
        %v2991 = vsel %vm297, %v2920, 0
        %v2994 = vsel %vm297, %v2921, 0
        %v2997 = vsel %vm297, %v2922, 0
        %v3000 = vsel %vm297, %v2923, 0
        %v3003 = vsel %vm297, %v2924, 0
        %v3006 = vsel %vm297, %v2925, 0
        %v3009 = vsel %vm297, %v2926, 0
        %v3012 = vsel %vm297, %v2927, 0
        %v3015 = vsel %vm297, %v2928, 0
        %v3018 = vsel %vm297, %v2929, 0
        %v3021 = vsel %vm297, %v2930, 0
        %v3024 = vsel %vm297, %v2931, 0
        %v3027 = vsel %vm297, %v2932, 0
        %3029 = vmatprep.subr.mxu0 0.0
        %3030 = vmatpush1.msra.mxu0 %v2827
        %3031 = vmatprep.subr.mxu0 0.0
        %3032 = vmatpush1.msra.mxu0 %v2828
        %3033 = vmatprep.subr.mxu0 0.0
        %3034 = vmatpush1.msra.mxu0 %v2829
        %3035 = vmatprep.subr.mxu0 0.0
        %3036 = vmatpush1.msra.mxu0 %v2830
        %3037 = vmatprep.subr.mxu0 0.0
        %3038 = vmatpush1.msra.mxu0 0.0
        %3039 = vmatprep.subr.mxu0 0.0
        %3040 = vmatpush1.msra.mxu0 0.0
        %3041 = vmatprep.subr.mxu0 0.0
        %3042 = vmatpush1.msra.mxu0 0.0
        %3043 = vmatprep.subr.mxu0 0.0
        %3044 = vmatpush1.msra.mxu0 0.0
        %3045 = vmatprep.subr.mxu0 0.0
        %3046 = vmatpush1.msra.mxu0 0.0
        %3047 = vmatprep.subr.mxu0 0.0
        %3048 = vmatpush1.msra.mxu0 0.0
        %3049 = vmatprep.subr.mxu0 0.0
        %3050 = vmatpush1.msra.mxu0 0.0
        %3051 = vmatprep.subr.mxu0 0.0
        %3052 = vmatpush1.msra.mxu0 0.0
        %3053 = vmatprep.subr.mxu0 0.0
        %3054 = vmatpush1.msra.mxu0 0.0
        %3055 = vmatprep.subr.mxu0 0.0
        %3056 = vmatpush1.msra.mxu0 0.0
        %3057 = vmatprep.subr.mxu0 0.0
        %3058 = vmatpush1.msra.mxu0 0.0
        %3059 = vmatprep.subr.mxu0 0.0
        %3060 = vmatpush1.msra.mxu0 0.0
        %3061 = vmatprep.subr.mxu0 0.0
        %3062 = vmatpush1.msra.mxu0 0.0
        %3063 = vmatprep.subr.mxu0 0.0
        %3064 = vmatpush1.msra.mxu0 0.0
        %3065 = vmatprep.subr.mxu0 0.0
        %3066 = vmatpush1.msra.mxu0 0.0
        %3067 = vmatprep.subr.mxu0 0.0
        %3068 = vmatpush1.msra.mxu0 0.0
        %3069 = vmatprep.subr.mxu0 0.0
        %3070 = vmatpush1.msra.mxu0 0.0
        %3071 = vmatprep.subr.mxu0 0.0
        %3072 = vmatpush1.msra.mxu0 0.0
        %3073 = vmatprep.subr.mxu0 0.0
        %3074 = vmatpush1.msra.mxu0 0.0
        %3075 = vmatprep.subr.mxu0 0.0
        %3076 = vmatpush1.msra.mxu0 0.0
        %3077 = vmatprep.subr.mxu0 0.0
        %3078 = vmatpush1.msra.mxu0 0.0
        %3079 = vmatprep.subr.mxu0 0.0
        %3080 = vmatpush1.msra.mxu0 0.0
        %3081 = vmatprep.subr.mxu0 0.0
        %3082 = vmatpush1.msra.mxu0 0.0
        %3083 = vmatprep.subr.mxu0 0.0
        %3084 = vmatpush1.msra.mxu0 0.0
        %3085 = vmatprep.subr.mxu0 0.0
        %3086 = vmatpush1.msra.mxu0 0.0
        %3087 = vmatprep.subr.mxu0 0.0
        %3088 = vmatpush1.msra.mxu0 0.0
        %3089 = vmatprep.subr.mxu0 0.0
        %3090 = vmatpush1.msra.mxu0 0.0
        %3091 = vmatprep.subr.mxu0 0.0
        %3092 = vmatpush1.msra.mxu0 0.0
        %3093 = vmatprep.mubr.f32.mxu0 0.0
        %3094 = vmatmul.mubr.f32.gmra.mrb[0].mxu0 %v2934
        %v3095 = vpop.f32.mrb[0].mxu0
        %v3096 = vadd.f32 %v2868, %v3095
        %v3097 = vpop.f32.mrb[0].mxu0
        %3098 = vmatprep.mubr.f32.mxu0 0.0
        %3099 = vmatmul.mubr.f32.gmra.mrb[0].mxu0 %v2937
        %v3100 = vpop.f32.mrb[0].mxu0
        %v3101 = vadd.f32 %v2868, %v3100
        %v3102 = vpop.f32.mrb[0].mxu0
        %3103 = vmatprep.mubr.f32.mxu0 0.0
        %3104 = vmatmul.mubr.f32.gmra.mrb[0].mxu0 %v2940
        %v3105 = vpop.f32.mrb[0].mxu0
        %v3106 = vadd.f32 %v2868, %v3105
        %v3107 = vpop.f32.mrb[0].mxu0
        %3108 = vmatprep.mubr.f32.mxu0 0.0
        %3109 = vmatmul.mubr.f32.gmra.mrb[0].mxu0 %v2943
        %v3110 = vpop.f32.mrb[0].mxu0
        %v3111 = vadd.f32 %v2868, %v3110
        %v3112 = vpop.f32.mrb[0].mxu0
        %3113 = vmatprep.mubr.f32.mxu0 0.0
        %3114 = vmatmul.mubr.f32.gmra.mrb[0].mxu0 %v2946
        %v3115 = vpop.f32.mrb[0].mxu0
        %v3116 = vadd.f32 %v2868, %v3115
        %v3117 = vpop.f32.mrb[0].mxu0
        %3118 = vmatprep.mubr.f32.mxu0 0.0
        %3119 = vmatmul.mubr.f32.gmra.mrb[0].mxu0 %v2949
        %v3120 = vpop.f32.mrb[0].mxu0
        %v3121 = vadd.f32 %v2868, %v3120
        %v3122 = vpop.f32.mrb[0].mxu0
        %3123 = vmatprep.mubr.f32.mxu0 0.0
        %3124 = vmatmul.mubr.f32.gmra.mrb[0].mxu0 %v2952
        %v3125 = vpop.f32.mrb[0].mxu0
        %v3126 = vadd.f32 %v2868, %v3125
        %v3127 = vpop.f32.mrb[0].mxu0
        %3128 = vmatprep.mubr.f32.mxu0 0.0
        %3129 = vmatmul.mubr.f32.gmra.mrb[0].mxu0 %v2955
        %v3130 = vpop.f32.mrb[0].mxu0
        %v3131 = vadd.f32 %v2868, %v3130
        %v3132 = vpop.f32.mrb[0].mxu0
        %3133 = vmatprep.mubr.f32.mxu0 0.0
        %3134 = vmatmul.mubr.f32.gmra.mrb[0].mxu0 %v2958
        %v3135 = vpop.f32.mrb[0].mxu0
        %v3136 = vadd.f32 %v2868, %v3135
        %v3137 = vpop.f32.mrb[0].mxu0
        %3138 = vmatprep.mubr.f32.mxu0 0.0
        %3139 = vmatmul.mubr.f32.gmra.mrb[0].mxu0 %v2961
        %v3140 = vpop.f32.mrb[0].mxu0
        %v3141 = vadd.f32 %v2868, %v3140
        %v3142 = vpop.f32.mrb[0].mxu0
        %3143 = vmatprep.mubr.f32.mxu0 0.0
        %3144 = vmatmul.mubr.f32.gmra.mrb[0].mxu0 %v2964
        %v3145 = vpop.f32.mrb[0].mxu0
        %v3146 = vadd.f32 %v2868, %v3145
        %v3147 = vpop.f32.mrb[0].mxu0
        %3148 = vmatprep.mubr.f32.mxu0 0.0
        %3149 = vmatmul.mubr.f32.gmra.mrb[0].mxu0 %v2967
        %v3150 = vpop.f32.mrb[0].mxu0
        %v3151 = vadd.f32 %v2868, %v3150
        %v3152 = vpop.f32.mrb[0].mxu0
        %3153 = vmatprep.mubr.f32.mxu0 0.0
        %3154 = vmatmul.mubr.f32.gmra.mrb[0].mxu0 %v2970
        %v3155 = vpop.f32.mrb[0].mxu0
        %v3156 = vadd.f32 %v2868, %v3155
        %v3157 = vpop.f32.mrb[0].mxu0
        %3158 = vmatprep.mubr.f32.mxu0 0.0
        %3159 = vmatmul.mubr.f32.gmra.mrb[0].mxu0 %v2973
        %v3160 = vpop.f32.mrb[0].mxu0
        %v3161 = vadd.f32 %v2868, %v3160
        %v3162 = vpop.f32.mrb[0].mxu0
        %3163 = vmatprep.mubr.f32.mxu0 0.0
        %3164 = vmatmul.mubr.f32.gmra.mrb[0].mxu0 %v2976
        %v3165 = vpop.f32.mrb[0].mxu0
        %v3166 = vadd.f32 %v2868, %v3165
        %v3167 = vpop.f32.mrb[0].mxu0
        %3168 = vmatprep.mubr.f32.mxu0 0.0
        %3169 = vmatmul.mubr.f32.gmra.mrb[0].mxu0 %v2979
        %v3170 = vpop.f32.mrb[0].mxu0
        %v3171 = vadd.f32 %v2868, %v3170
        %v3172 = vpop.f32.mrb[0].mxu0
        %3173 = vmatprep.mubr.f32.mxu0 0.0
        %3174 = vmatmul.mubr.f32.gmra.mrb[0].mxu0 %v2982
        %v3175 = vpop.f32.mrb[0].mxu0
        %v3176 = vadd.f32 %v2868, %v3175
        %v3177 = vpop.f32.mrb[0].mxu0
        %3178 = vmatprep.mubr.f32.mxu0 0.0
        %3179 = vmatmul.mubr.f32.gmra.mrb[0].mxu0 %v2985
        %v3180 = vpop.f32.mrb[0].mxu0
        %v3181 = vadd.f32 %v2868, %v3180
        %v3182 = vpop.f32.mrb[0].mxu0
        %3183 = vmatprep.mubr.f32.mxu0 0.0
        %3184 = vmatmul.mubr.f32.gmra.mrb[0].mxu0 %v2988
        %v3185 = vpop.f32.mrb[0].mxu0
        %v3186 = vadd.f32 %v2868, %v3185
        %v3187 = vpop.f32.mrb[0].mxu0
        %3188 = vmatprep.mubr.f32.mxu0 0.0
        %3189 = vmatmul.mubr.f32.gmra.mrb[0].mxu0 %v2991
        %v3190 = vpop.f32.mrb[0].mxu0
        %v3191 = vadd.f32 %v2868, %v3190
        %v3192 = vpop.f32.mrb[0].mxu0
        %3193 = vmatprep.mubr.f32.mxu0 0.0
        %3194 = vmatmul.mubr.f32.gmra.mrb[0].mxu0 %v2994
        %v3195 = vpop.f32.mrb[0].mxu0
        %v3196 = vadd.f32 %v2868, %v3195
        %v3197 = vpop.f32.mrb[0].mxu0
        %3198 = vmatprep.mubr.f32.mxu0 0.0
        %3199 = vmatmul.mubr.f32.gmra.mrb[0].mxu0 %v2997
        %v3200 = vpop.f32.mrb[0].mxu0
        %v3201 = vadd.f32 %v2868, %v3200
        %v3202 = vpop.f32.mrb[0].mxu0
        %3203 = vmatprep.mubr.f32.mxu0 0.0
        %3204 = vmatmul.mubr.f32.gmra.mrb[0].mxu0 %v3000
        %v3205 = vpop.f32.mrb[0].mxu0
        %v3206 = vadd.f32 %v2868, %v3205
        %v3207 = vpop.f32.mrb[0].mxu0
        %3208 = vmatprep.mubr.f32.mxu0 0.0
        %3209 = vmatmul.mubr.f32.gmra.mrb[0].mxu0 %v3003
        %v3210 = vpop.f32.mrb[0].mxu0
        %v3211 = vadd.f32 %v2868, %v3210
        %v3212 = vpop.f32.mrb[0].mxu0
        %3213 = vmatprep.mubr.f32.mxu0 0.0
        %3214 = vmatmul.mubr.f32.gmra.mrb[0].mxu0 %v3006
        %v3215 = vpop.f32.mrb[0].mxu0
        %v3216 = vadd.f32 %v2868, %v3215
        %v3217 = vpop.f32.mrb[0].mxu0
        %3218 = vmatprep.mubr.f32.mxu0 0.0
        %3219 = vmatmul.mubr.f32.gmra.mrb[0].mxu0 %v3009
        %v3220 = vpop.f32.mrb[0].mxu0
        %v3221 = vadd.f32 %v2868, %v3220
        %v3222 = vpop.f32.mrb[0].mxu0
        %3223 = vmatprep.mubr.f32.mxu0 0.0
        %3224 = vmatmul.mubr.f32.gmra.mrb[0].mxu0 %v3012
        %v3225 = vpop.f32.mrb[0].mxu0
        %v3226 = vadd.f32 %v2868, %v3225
        %v3227 = vpop.f32.mrb[0].mxu0
        %3228 = vmatprep.mubr.f32.mxu0 0.0
        %3229 = vmatmul.mubr.f32.gmra.mrb[0].mxu0 %v3015
        %v3230 = vpop.f32.mrb[0].mxu0
        %v3231 = vadd.f32 %v2868, %v3230
        %v3232 = vpop.f32.mrb[0].mxu0
        %3233 = vmatprep.mubr.f32.mxu0 0.0
        %3234 = vmatmul.mubr.f32.gmra.mrb[0].mxu0 %v3018
        %v3235 = vpop.f32.mrb[0].mxu0
        %v3236 = vadd.f32 %v2868, %v3235
        %v3237 = vpop.f32.mrb[0].mxu0
        %3238 = vmatprep.mubr.f32.mxu0 0.0
        %3239 = vmatmul.mubr.f32.gmra.mrb[0].mxu0 %v3021
        %v3240 = vpop.f32.mrb[0].mxu0
        %v3241 = vadd.f32 %v2868, %v3240
        %v3242 = vpop.f32.mrb[0].mxu0
        %3243 = vmatprep.mubr.f32.mxu0 0.0
        %3244 = vmatmul.mubr.f32.gmra.mrb[0].mxu0 %v3024
        %v3245 = vpop.f32.mrb[0].mxu0
        %v3246 = vadd.f32 %v2868, %v3245
        %v3247 = vpop.f32.mrb[0].mxu0
        %3248 = vmatprep.mubr.f32.mxu0 0.0
        %3249 = vmatmul.mubr.f32.gmra.mrb[0].mxu0 %v3027
        %v3250 = vpop.f32.mrb[0].mxu0
        %v3251 = vadd.f32 %v2868, %v3250
        %v3252 = vpop.f32.mrb[0].mxu0
        %3253 = vdwg.mxu0
        %v3254 = vadd.f32 %v3096, %v2833
        %v3255 = vadd.f32 %v3101, %v2834
        %v3256 = vadd.f32 %v3106, %v2835
        %v3257 = vadd.f32 %v3111, %v2836
        %v3258 = vadd.f32 %v3116, %v2837
        %v3259 = vadd.f32 %v3121, %v2838
        %v3260 = vadd.f32 %v3126, %v2839
        %v3261 = vadd.f32 %v3131, %v2840
        %v3262 = vadd.f32 %v3136, %v2841
        %v3263 = vadd.f32 %v3141, %v2842
        %v3264 = vadd.f32 %v3146, %v2843
        %v3265 = vadd.f32 %v3151, %v2844
        %v3266 = vadd.f32 %v3156, %v2845
        %v3267 = vadd.f32 %v3161, %v2846
        %v3268 = vadd.f32 %v3166, %v2847
        %v3269 = vadd.f32 %v3171, %v2848
        %v3270 = vadd.f32 %v3176, %v2849
        %v3271 = vadd.f32 %v3181, %v2850
        %v3272 = vadd.f32 %v3186, %v2851
        %v3273 = vadd.f32 %v3191, %v2852
        %v3274 = vadd.f32 %v3196, %v2853
        %v3275 = vadd.f32 %v3201, %v2854
        %v3276 = vadd.f32 %v3206, %v2855
        %v3277 = vadd.f32 %v3211, %v2856
        %v3278 = vadd.f32 %v3216, %v2857
        %v3279 = vadd.f32 %v3221, %v2858
        %v3280 = vadd.f32 %v3226, %v2859
        %v3281 = vadd.f32 %v3231, %v2860
        %v3282 = vadd.f32 %v3236, %v2861
        %v3283 = vadd.f32 %v3241, %v2862
        %v3284 = vadd.f32 %v3246, %v2863
        %v3285 = vadd.f32 %v3251, %v2864
        %s3286 = scalar_lea.vmem %s227, 256 [#allocation2]
        %3287 = vst.msk [vmem:[%s3286] sm:$0xff] %vm297, %v3254
        %3288 = vst.msk [vmem:[%s3286 + $0x8] sm:$0xff] %vm297, %v3255
        %3289 = vst.msk [vmem:[%s3286 + $0x10] sm:$0xff] %vm297, %v3256
        %3290 = vst.msk [vmem:[%s3286 + $0x18] sm:$0xff] %vm297, %v3257
        %3291 = vst.msk [vmem:[%s3286 + $0x20] sm:$0xff] %vm297, %v3258
        %3292 = vst.msk [vmem:[%s3286 + $0x28] sm:$0xff] %vm297, %v3259
        %3293 = vst.msk [vmem:[%s3286 + $0x30] sm:$0xff] %vm297, %v3260
        %3294 = vst.msk [vmem:[%s3286 + $0x38] sm:$0xff] %vm297, %v3261
        %3295 = vst.msk [vmem:[%s3286 + $0x40] sm:$0xff] %vm297, %v3262
        %3296 = vst.msk [vmem:[%s3286 + $0x48] sm:$0xff] %vm297, %v3263
        %3297 = vst.msk [vmem:[%s3286 + $0x50] sm:$0xff] %vm297, %v3264
        %3298 = vst.msk [vmem:[%s3286 + $0x58] sm:$0xff] %vm297, %v3265
        %3299 = vst.msk [vmem:[%s3286 + $0x60] sm:$0xff] %vm297, %v3266
        %3300 = vst.msk [vmem:[%s3286 + $0x68] sm:$0xff] %vm297, %v3267
        %3301 = vst.msk [vmem:[%s3286 + $0x70] sm:$0xff] %vm297, %v3268
        %3302 = vst.msk [vmem:[%s3286 + $0x78] sm:$0xff] %vm297, %v3269
        %3303 = vst.msk [vmem:[%s3286 + $0x80] sm:$0xff] %vm297, %v3270
        %3304 = vst.msk [vmem:[%s3286 + $0x88] sm:$0xff] %vm297, %v3271
        %3305 = vst.msk [vmem:[%s3286 + $0x90] sm:$0xff] %vm297, %v3272
        %3306 = vst.msk [vmem:[%s3286 + $0x98] sm:$0xff] %vm297, %v3273
        %3307 = vst.msk [vmem:[%s3286 + $0xa0] sm:$0xff] %vm297, %v3274
        %3308 = vst.msk [vmem:[%s3286 + $0xa8] sm:$0xff] %vm297, %v3275
        %3309 = vst.msk [vmem:[%s3286 + $0xb0] sm:$0xff] %vm297, %v3276
        %3310 = vst.msk [vmem:[%s3286 + $0xb8] sm:$0xff] %vm297, %v3277
        %3311 = vst.msk [vmem:[%s3286 + $0xc0] sm:$0xff] %vm297, %v3278
        %3312 = vst.msk [vmem:[%s3286 + $0xc8] sm:$0xff] %vm297, %v3279
        %3313 = vst.msk [vmem:[%s3286 + $0xd0] sm:$0xff] %vm297, %v3280
        %3314 = vst.msk [vmem:[%s3286 + $0xd8] sm:$0xff] %vm297, %v3281
        %3315 = vst.msk [vmem:[%s3286 + $0xe0] sm:$0xff] %vm297, %v3282
        %3316 = vst.msk [vmem:[%s3286 + $0xe8] sm:$0xff] %vm297, %v3283
        %3317 = vst.msk [vmem:[%s3286 + $0xf0] sm:$0xff] %vm297, %v3284
        %3318 = vst.msk [vmem:[%s3286 + $0xf8] sm:$0xff] %vm297, %v3285
        %s3319 = scalar_lea.vmem %s236, 512
        %v3320 = vld [vmem:[%s3319] sm:$0xff]
        %v3321 = vld [vmem:[%s3319 + $0x8] sm:$0xff]
        %v3322 = vld [vmem:[%s3319 + $0x10] sm:$0xff]
        %v3323 = vld [vmem:[%s3319 + $0x18] sm:$0xff]
        %v3324 = vld [vmem:[%s3319 + $0x20] sm:$0xff]
        %v3325 = vld [vmem:[%s3319 + $0x28] sm:$0xff]
        %v3326 = vld [vmem:[%s3319 + $0x30] sm:$0xff]
        %v3327 = vld [vmem:[%s3319 + $0x38] sm:$0xff]
        %v3328 = vld [vmem:[%s3319 + $0x40] sm:$0xff]
        %v3329 = vld [vmem:[%s3319 + $0x48] sm:$0xff]
        %v3330 = vld [vmem:[%s3319 + $0x50] sm:$0xff]
        %v3331 = vld [vmem:[%s3319 + $0x58] sm:$0xff]
        %v3332 = vld [vmem:[%s3319 + $0x60] sm:$0xff]
        %v3333 = vld [vmem:[%s3319 + $0x68] sm:$0xff]
        %v3334 = vld [vmem:[%s3319 + $0x70] sm:$0xff]
        %v3335 = vld [vmem:[%s3319 + $0x78] sm:$0xff]
        %v3336 = vld [vmem:[%s3319 + $0x80] sm:$0xff]
        %v3337 = vld [vmem:[%s3319 + $0x88] sm:$0xff]
        %v3338 = vld [vmem:[%s3319 + $0x90] sm:$0xff]
        %v3339 = vld [vmem:[%s3319 + $0x98] sm:$0xff]
        %v3340 = vld [vmem:[%s3319 + $0xa0] sm:$0xff]
        %v3341 = vld [vmem:[%s3319 + $0xa8] sm:$0xff]
        %v3342 = vld [vmem:[%s3319 + $0xb0] sm:$0xff]
        %v3343 = vld [vmem:[%s3319 + $0xb8] sm:$0xff]
        %v3344 = vld [vmem:[%s3319 + $0xc0] sm:$0xff]
        %v3345 = vld [vmem:[%s3319 + $0xc8] sm:$0xff]
        %v3346 = vld [vmem:[%s3319 + $0xd0] sm:$0xff]
        %v3347 = vld [vmem:[%s3319 + $0xd8] sm:$0xff]
        %v3348 = vld [vmem:[%s3319 + $0xe0] sm:$0xff]
        %v3349 = vld [vmem:[%s3319 + $0xe8] sm:$0xff]
        %v3350 = vld [vmem:[%s3319 + $0xf0] sm:$0xff]
        %v3351 = vld [vmem:[%s3319 + $0xf8] sm:$0xff]
        %v3352 = vld [vmem:[%s2] sm:$0xff]
        %v3353 = vld [vmem:[%s2 + $0x8] sm:$0xff]
        %v3354 = vld [vmem:[%s2 + $0x10] sm:$0xff]
        %v3355 = vld [vmem:[%s2 + $0x18] sm:$0xff]
        %v3357 = vsel %vm297, %v3352, 0
        %v3360 = vsel %vm297, %v3353, 0
        %v3363 = vsel %vm297, %v3354, 0
        %v3366 = vsel %vm297, %v3355, 0
        %v3369 = vsel %vm297, %v3320, 0
        %v3372 = vsel %vm297, %v3321, 0
        %v3375 = vsel %vm297, %v3322, 0
        %v3378 = vsel %vm297, %v3323, 0
        %v3381 = vsel %vm297, %v3324, 0
        %v3384 = vsel %vm297, %v3325, 0
        %v3387 = vsel %vm297, %v3326, 0
        %v3390 = vsel %vm297, %v3327, 0
        %v3393 = vsel %vm297, %v3328, 0
        %v3396 = vsel %vm297, %v3329, 0
        %v3399 = vsel %vm297, %v3330, 0
        %v3402 = vsel %vm297, %v3331, 0
        %v3405 = vsel %vm297, %v3332, 0
        %v3408 = vsel %vm297, %v3333, 0
        %v3411 = vsel %vm297, %v3334, 0
        %v3414 = vsel %vm297, %v3335, 0
        %v3417 = vsel %vm297, %v3336, 0
        %v3420 = vsel %vm297, %v3337, 0
        %v3423 = vsel %vm297, %v3338, 0
        %v3426 = vsel %vm297, %v3339, 0
        %v3429 = vsel %vm297, %v3340, 0
        %v3432 = vsel %vm297, %v3341, 0
        %v3435 = vsel %vm297, %v3342, 0
        %v3438 = vsel %vm297, %v3343, 0
        %v3441 = vsel %vm297, %v3344, 0
        %v3444 = vsel %vm297, %v3345, 0
        %v3447 = vsel %vm297, %v3346, 0
        %v3450 = vsel %vm297, %v3347, 0
        %v3453 = vsel %vm297, %v3348, 0
        %v3456 = vsel %vm297, %v3349, 0
        %v3459 = vsel %vm297, %v3350, 0
        %v3462 = vsel %vm297, %v3351, 0
        %3464 = vmatprep.subr.mxu0 0.0
        %3465 = vmatpush1.xpose.msra.mxu0 %v3369
        %3466 = vmatprep.subr.mxu0 0.0
        %3467 = vmatpush1.xpose.msra.mxu0 %v3372
        %3468 = vmatprep.subr.mxu0 0.0
        %3469 = vmatpush1.xpose.msra.mxu0 %v3375
        %3470 = vmatprep.subr.mxu0 0.0
        %3471 = vmatpush1.xpose.msra.mxu0 %v3378
        %3472 = vmatprep.subr.mxu0 0.0
        %3473 = vmatpush1.xpose.msra.mxu0 %v3381
        %3474 = vmatprep.subr.mxu0 0.0
        %3475 = vmatpush1.xpose.msra.mxu0 %v3384
        %3476 = vmatprep.subr.mxu0 0.0
        %3477 = vmatpush1.xpose.msra.mxu0 %v3387
        %3478 = vmatprep.subr.mxu0 0.0
        %3479 = vmatpush1.xpose.msra.mxu0 %v3390
        %3480 = vmatprep.subr.mxu0 0.0
        %3481 = vmatpush1.xpose.msra.mxu0 %v3393
        %3482 = vmatprep.subr.mxu0 0.0
        %3483 = vmatpush1.xpose.msra.mxu0 %v3396
        %3484 = vmatprep.subr.mxu0 0.0
        %3485 = vmatpush1.xpose.msra.mxu0 %v3399
        %3486 = vmatprep.subr.mxu0 0.0
        %3487 = vmatpush1.xpose.msra.mxu0 %v3402
        %3488 = vmatprep.subr.mxu0 0.0
        %3489 = vmatpush1.xpose.msra.mxu0 %v3405
        %3490 = vmatprep.subr.mxu0 0.0
        %3491 = vmatpush1.xpose.msra.mxu0 %v3408
        %3492 = vmatprep.subr.mxu0 0.0
        %3493 = vmatpush1.xpose.msra.mxu0 %v3411
        %3494 = vmatprep.subr.mxu0 0.0
        %3495 = vmatpush1.xpose.msra.mxu0 %v3414
        %3496 = vmatprep.subr.mxu0 0.0
        %3497 = vmatpush1.xpose.msra.mxu0 %v3417
        %3498 = vmatprep.subr.mxu0 0.0
        %3499 = vmatpush1.xpose.msra.mxu0 %v3420
        %3500 = vmatprep.subr.mxu0 0.0
        %3501 = vmatpush1.xpose.msra.mxu0 %v3423
        %3502 = vmatprep.subr.mxu0 0.0
        %3503 = vmatpush1.xpose.msra.mxu0 %v3426
        %3504 = vmatprep.subr.mxu0 0.0
        %3505 = vmatpush1.xpose.msra.mxu0 %v3429
        %3506 = vmatprep.subr.mxu0 0.0
        %3507 = vmatpush1.xpose.msra.mxu0 %v3432
        %3508 = vmatprep.subr.mxu0 0.0
        %3509 = vmatpush1.xpose.msra.mxu0 %v3435
        %3510 = vmatprep.subr.mxu0 0.0
        %3511 = vmatpush1.xpose.msra.mxu0 %v3438
        %3512 = vmatprep.subr.mxu0 0.0
        %3513 = vmatpush1.xpose.msra.mxu0 %v3441
        %3514 = vmatprep.subr.mxu0 0.0
        %3515 = vmatpush1.xpose.msra.mxu0 %v3444
        %3516 = vmatprep.subr.mxu0 0.0
        %3517 = vmatpush1.xpose.msra.mxu0 %v3447
        %3518 = vmatprep.subr.mxu0 0.0
        %3519 = vmatpush1.xpose.msra.mxu0 %v3450
        %3520 = vmatprep.subr.mxu0 0.0
        %3521 = vmatpush1.xpose.msra.mxu0 %v3453
        %3522 = vmatprep.subr.mxu0 0.0
        %3523 = vmatpush1.xpose.msra.mxu0 %v3456
        %3524 = vmatprep.subr.mxu0 0.0
        %3525 = vmatpush1.xpose.msra.mxu0 %v3459
        %3526 = vmatprep.subr.mxu0 0.0
        %3527 = vmatpush1.xpose.msra.mxu0 %v3462
        %3528 = vmatprep.mubr.f32.mxu0 0.0
        %3529 = vmatmul.mubr.f32.gmra.mrb[0].mxu0 %v3357
        %v3530 = vpop.f32.mrb[0].mxu0
        %v3531 = vadd.f32 0.0, %v3530
        %v3532 = vpop.f32.mrb[0].mxu0
        %v3533 = vadd.f32 0.0, %v3532
        %3534 = vmatprep.mubr.f32.mxu0 0.0
        %3535 = vmatmul.mubr.f32.gmra.mrb[0].mxu0 %v3360
        %v3536 = vpop.f32.mrb[0].mxu0
        %v3537 = vadd.f32 0.0, %v3536
        %v3538 = vpop.f32.mrb[0].mxu0
        %v3539 = vadd.f32 0.0, %v3538
        %3540 = vmatprep.mubr.f32.mxu0 0.0
        %3541 = vmatmul.mubr.f32.gmra.mrb[0].mxu0 %v3363
        %v3542 = vpop.f32.mrb[0].mxu0
        %v3543 = vadd.f32 0.0, %v3542
        %v3544 = vpop.f32.mrb[0].mxu0
        %v3545 = vadd.f32 0.0, %v3544
        %3546 = vmatprep.mubr.f32.mxu0 0.0
        %3547 = vmatmul.mubr.f32.gmra.mrb[0].mxu0 %v3366
        %v3548 = vpop.f32.mrb[0].mxu0
        %v3549 = vadd.f32 0.0, %v3548
        %v3550 = vpop.f32.mrb[0].mxu0
        %v3551 = vadd.f32 0.0, %v3550
        %3552 = vdwg.mxu0
        %v3553 = vmul.f32 %v3537, %v3537
        %v3554 = vmul.f32 %v3539, %v3539
        %v3555 = vmul.f32 %v3543, %v3543
        %v3556 = vmul.f32 %v3545, %v3545
        %v3557 = vadd.f32 %v3553, %v3555
        %v3558 = vadd.f32 %v3554, %v3556
        %v3559 = vmul.f32 %v3549, %v3549
        %v3560 = vmul.f32 %v3551, %v3551
        %v3561 = vadd.f32 %v3557, %v3559
        %v3562 = vadd.f32 %v3558, %v3560
        %v3563 = vrsqrt.pop %v3561
        %v3564 = vmul.f32 %v3561, %v3563
        %vm3565 = vcmp.eq.f32.partialorder %v3561, inf
        %v3566 = vsel %vm3565, %v3561, %v3564
        %vm3567 = vcmp.eq.f32.partialorder %v3561, 0.0
        %v3568 = vand.u32 %v3561, 2147483648
        %v3569 = vsel %vm3567, %v3568, %v3566
        %v3570 = vrsqrt.pop %v3562
        %v3571 = vmul.f32 %v3562, %v3570
        %vm3572 = vcmp.eq.f32.partialorder %v3562, inf
        %v3573 = vsel %vm3572, %v3562, %v3571
        %vm3574 = vcmp.eq.f32.partialorder %v3562, 0.0
        %v3575 = vand.u32 %v3562, 2147483648
        %v3576 = vsel %vm3574, %v3575, %v3573
        %v3577 = vld [vmem:[%s2 + $0x20] sm:$0xff]
        %v3578 = vld [vmem:[%s2 + $0x28] sm:$0xff]
        %v3579 = vld [vmem:[%s2 + $0x30] sm:$0xff]
        %v3580 = vld [vmem:[%s2 + $0x38] sm:$0xff]
        %v3581 = vld [vmem:[%s3] sm:$0xff]
        %v3582 = vld [vmem:[%s3 + $0x8] sm:$0xff]
        %v3583 = vld [vmem:[%s3 + $0x10] sm:$0xff]
        %v3584 = vld [vmem:[%s3 + $0x18] sm:$0xff]
        %v3585 = vld [vmem:[%s3 + $0x20] sm:$0xff]
        %v3586 = vld [vmem:[%s3 + $0x28] sm:$0xff]
        %v3587 = vld [vmem:[%s3 + $0x30] sm:$0xff]
        %v3588 = vld [vmem:[%s3 + $0x38] sm:$0xff]
        %v3590 = vsel %vm531, %v3577, 0
        %v3593 = vsel %vm531, %v3578, 0
        %v3596 = vsel %vm531, %v3579, 0
        %v3599 = vsel %vm531, %v3580, 0
        %3601 = vmatprep.subr.mxu0 %v3533
        %3602 = vmatpush1.msra.mxu0 %v3531
        %3603 = vmatprep.subr.mxu0 %v3576
        %3604 = vmatpush1.msra.mxu0 %v3569
        %3605 = vmatprep.subr.mxu0 0.0
        %3606 = vmatpush1.msra.mxu0 0.0
        %3607 = vmatprep.subr.mxu0 0.0
        %3608 = vmatpush1.msra.mxu0 0.0
        %3609 = vmatprep.subr.mxu0 0.0
        %3610 = vmatpush1.msra.mxu0 0.0
        %3611 = vmatprep.subr.mxu0 0.0
        %3612 = vmatpush1.msra.mxu0 0.0
        %3613 = vmatprep.subr.mxu0 0.0
        %3614 = vmatpush1.msra.mxu0 0.0
        %3615 = vmatprep.subr.mxu0 0.0
        %3616 = vmatpush1.msra.mxu0 0.0
        %3617 = vmatprep.subr.mxu0 0.0
        %3618 = vmatpush1.msra.mxu0 0.0
        %3619 = vmatprep.subr.mxu0 0.0
        %3620 = vmatpush1.msra.mxu0 0.0
        %3621 = vmatprep.subr.mxu0 0.0
        %3622 = vmatpush1.msra.mxu0 0.0
        %3623 = vmatprep.subr.mxu0 0.0
        %3624 = vmatpush1.msra.mxu0 0.0
        %3625 = vmatprep.subr.mxu0 0.0
        %3626 = vmatpush1.msra.mxu0 0.0
        %3627 = vmatprep.subr.mxu0 0.0
        %3628 = vmatpush1.msra.mxu0 0.0
        %3629 = vmatprep.subr.mxu0 0.0
        %3630 = vmatpush1.msra.mxu0 0.0
        %3631 = vmatprep.subr.mxu0 0.0
        %3632 = vmatpush1.msra.mxu0 0.0
        %3633 = vmatprep.subr.mxu0 0.0
        %3634 = vmatpush1.msra.mxu0 0.0
        %3635 = vmatprep.subr.mxu0 0.0
        %3636 = vmatpush1.msra.mxu0 0.0
        %3637 = vmatprep.subr.mxu0 0.0
        %3638 = vmatpush1.msra.mxu0 0.0
        %3639 = vmatprep.subr.mxu0 0.0
        %3640 = vmatpush1.msra.mxu0 0.0
        %3641 = vmatprep.subr.mxu0 0.0
        %3642 = vmatpush1.msra.mxu0 0.0
        %3643 = vmatprep.subr.mxu0 0.0
        %3644 = vmatpush1.msra.mxu0 0.0
        %3645 = vmatprep.subr.mxu0 0.0
        %3646 = vmatpush1.msra.mxu0 0.0
        %3647 = vmatprep.subr.mxu0 0.0
        %3648 = vmatpush1.msra.mxu0 0.0
        %3649 = vmatprep.subr.mxu0 0.0
        %3650 = vmatpush1.msra.mxu0 0.0
        %3651 = vmatprep.subr.mxu0 0.0
        %3652 = vmatpush1.msra.mxu0 0.0
        %3653 = vmatprep.subr.mxu0 0.0
        %3654 = vmatpush1.msra.mxu0 0.0
        %3655 = vmatprep.subr.mxu0 0.0
        %3656 = vmatpush1.msra.mxu0 0.0
        %3657 = vmatprep.subr.mxu0 0.0
        %3658 = vmatpush1.msra.mxu0 0.0
        %3659 = vmatprep.subr.mxu0 0.0
        %3660 = vmatpush1.msra.mxu0 0.0
        %3661 = vmatprep.subr.mxu0 0.0
        %3662 = vmatpush1.msra.mxu0 0.0
        %3663 = vmatprep.subr.mxu0 0.0
        %3664 = vmatpush1.msra.mxu0 0.0
        %3665 = vmatprep.mubr.f32.mxu0 0.0
        %3666 = vmatmul.mubr.f32.gmra.mrb[0].mxu0 %v3590
        %v3667 = vpop.f32.mrb[0].mxu0
        %v3668 = vadd.f32 %v3581, %v3667
        %v3669 = vpop.f32.mrb[0].mxu0
        %v3670 = vadd.f32 %v3582, %v3669
        %3671 = vmatprep.mubr.f32.mxu0 0.0
        %3672 = vmatmul.mubr.f32.gmra.mrb[0].mxu0 %v3593
        %v3673 = vpop.f32.mrb[0].mxu0
        %v3674 = vadd.f32 %v3583, %v3673
        %v3675 = vpop.f32.mrb[0].mxu0
        %v3676 = vadd.f32 %v3584, %v3675
        %3677 = vmatprep.mubr.f32.mxu0 0.0
        %3678 = vmatmul.mubr.f32.gmra.mrb[0].mxu0 %v3596
        %v3679 = vpop.f32.mrb[0].mxu0
        %v3680 = vadd.f32 %v3585, %v3679
        %v3681 = vpop.f32.mrb[0].mxu0
        %v3682 = vadd.f32 %v3586, %v3681
        %3683 = vmatprep.mubr.f32.mxu0 0.0
        %3684 = vmatmul.mubr.f32.gmra.mrb[0].mxu0 %v3599
        %v3685 = vpop.f32.mrb[0].mxu0
        %v3686 = vadd.f32 %v3587, %v3685
        %v3687 = vpop.f32.mrb[0].mxu0
        %v3688 = vadd.f32 %v3588, %v3687
        %3689 = vdwg.mxu0
        %v3690 = vxor.u32 %v3668, 2147483648
        %v3691 = vxor.u32 %v3670, 2147483648
        %v3692 = vxor.u32 %v3674, 2147483648
        %v3693 = vxor.u32 %v3676, 2147483648
        %v3694 = vxor.u32 %v3680, 2147483648
        %v3695 = vxor.u32 %v3682, 2147483648
        %v3696 = vxor.u32 %v3686, 2147483648
        %v3697 = vxor.u32 %v3688, 2147483648
        %v3698 = vmul.f32 %v3690, 1.442695
        %v3699 = vpow.pop %v3698
        %v3700 = vmul.f32 %v3691, 1.442695
        %v3701 = vpow.pop %v3700
        %v3702 = vmul.f32 %v3692, 1.442695
        %v3703 = vpow.pop %v3702
        %v3704 = vmul.f32 %v3693, 1.442695
        %v3705 = vpow.pop %v3704
        %v3706 = vmul.f32 %v3694, 1.442695
        %v3707 = vpow.pop %v3706
        %v3708 = vmul.f32 %v3695, 1.442695
        %v3709 = vpow.pop %v3708
        %v3710 = vmul.f32 %v3696, 1.442695
        %v3711 = vpow.pop %v3710
        %v3712 = vmul.f32 %v3697, 1.442695
        %v3713 = vpow.pop %v3712
        %v3714 = vadd.f32 %v3699, 1.0
        %v3715 = vadd.f32 %v3701, 1.0
        %v3716 = vadd.f32 %v3703, 1.0
        %v3717 = vadd.f32 %v3705, 1.0
        %v3718 = vadd.f32 %v3707, 1.0
        %v3719 = vadd.f32 %v3709, 1.0
        %v3720 = vadd.f32 %v3711, 1.0
        %v3721 = vadd.f32 %v3713, 1.0
        %v3722 = vrcp.pop %v3714
        %v3723 = vmul.f32 1.0, %v3722
        %v3724 = vrcp.pop %v3715
        %v3725 = vmul.f32 1.0, %v3724
        %v3726 = vrcp.pop %v3716
        %v3727 = vmul.f32 1.0, %v3726
        %v3728 = vrcp.pop %v3717
        %v3729 = vmul.f32 1.0, %v3728
        %v3730 = vrcp.pop %v3718
        %v3731 = vmul.f32 1.0, %v3730
        %v3732 = vrcp.pop %v3719
        %v3733 = vmul.f32 1.0, %v3732
        %v3734 = vrcp.pop %v3720
        %v3735 = vmul.f32 1.0, %v3734
        %v3736 = vrcp.pop %v3721
        %v3737 = vmul.f32 1.0, %v3736
        %v3738 = vmul.f32 %v3668, %v3723
        %v3739 = vmul.f32 %v3670, %v3725
        %v3740 = vmul.f32 %v3674, %v3727
        %v3741 = vmul.f32 %v3676, %v3729
        %v3742 = vmul.f32 %v3680, %v3731
        %v3743 = vmul.f32 %v3682, %v3733
        %v3744 = vmul.f32 %v3686, %v3735
        %v3745 = vmul.f32 %v3688, %v3737
        %v3746 = vld [vmem:[%s2 + $0x40] sm:$0xff]
        %v3747 = vld [vmem:[%s2 + $0x48] sm:$0xff]
        %v3748 = vld [vmem:[%s2 + $0x50] sm:$0xff]
        %v3749 = vld [vmem:[%s2 + $0x58] sm:$0xff]
        %v3750 = vld [vmem:[%s3 + $0x40] sm:$0xff]
        %v3751 = vld [vmem:[%s3 + $0x48] sm:$0xff]
        %v3752 = vld [vmem:[%s3 + $0x50] sm:$0xff]
        %v3753 = vld [vmem:[%s3 + $0x58] sm:$0xff]
        %v3754 = vld [vmem:[%s3 + $0x60] sm:$0xff]
        %v3755 = vld [vmem:[%s3 + $0x68] sm:$0xff]
        %v3756 = vld [vmem:[%s3 + $0x70] sm:$0xff]
        %v3757 = vld [vmem:[%s3 + $0x78] sm:$0xff]
        %v3759 = vsel %vm297, %v3746, 0
        %v3762 = vsel %vm297, %v3747, 0
        %v3765 = vsel %vm297, %v3748, 0
        %v3768 = vsel %vm297, %v3749, 0
        %3770 = vmatprep.subr.mxu0 %v3739
        %3771 = vmatpush1.msra.mxu0 %v3738
        %3772 = vmatprep.subr.mxu0 %v3741
        %3773 = vmatpush1.msra.mxu0 %v3740
        %3774 = vmatprep.subr.mxu0 %v3743
        %3775 = vmatpush1.msra.mxu0 %v3742
        %3776 = vmatprep.subr.mxu0 %v3745
        %3777 = vmatpush1.msra.mxu0 %v3744
        %3778 = vmatprep.subr.mxu0 0.0
        %3779 = vmatpush1.msra.mxu0 0.0
        %3780 = vmatprep.subr.mxu0 0.0
        %3781 = vmatpush1.msra.mxu0 0.0
        %3782 = vmatprep.subr.mxu0 0.0
        %3783 = vmatpush1.msra.mxu0 0.0
        %3784 = vmatprep.subr.mxu0 0.0
        %3785 = vmatpush1.msra.mxu0 0.0
        %3786 = vmatprep.subr.mxu0 0.0
        %3787 = vmatpush1.msra.mxu0 0.0
        %3788 = vmatprep.subr.mxu0 0.0
        %3789 = vmatpush1.msra.mxu0 0.0
        %3790 = vmatprep.subr.mxu0 0.0
        %3791 = vmatpush1.msra.mxu0 0.0
        %3792 = vmatprep.subr.mxu0 0.0
        %3793 = vmatpush1.msra.mxu0 0.0
        %3794 = vmatprep.subr.mxu0 0.0
        %3795 = vmatpush1.msra.mxu0 0.0
        %3796 = vmatprep.subr.mxu0 0.0
        %3797 = vmatpush1.msra.mxu0 0.0
        %3798 = vmatprep.subr.mxu0 0.0
        %3799 = vmatpush1.msra.mxu0 0.0
        %3800 = vmatprep.subr.mxu0 0.0
        %3801 = vmatpush1.msra.mxu0 0.0
        %3802 = vmatprep.subr.mxu0 0.0
        %3803 = vmatpush1.msra.mxu0 0.0
        %3804 = vmatprep.subr.mxu0 0.0
        %3805 = vmatpush1.msra.mxu0 0.0
        %3806 = vmatprep.subr.mxu0 0.0
        %3807 = vmatpush1.msra.mxu0 0.0
        %3808 = vmatprep.subr.mxu0 0.0
        %3809 = vmatpush1.msra.mxu0 0.0
        %3810 = vmatprep.subr.mxu0 0.0
        %3811 = vmatpush1.msra.mxu0 0.0
        %3812 = vmatprep.subr.mxu0 0.0
        %3813 = vmatpush1.msra.mxu0 0.0
        %3814 = vmatprep.subr.mxu0 0.0
        %3815 = vmatpush1.msra.mxu0 0.0
        %3816 = vmatprep.subr.mxu0 0.0
        %3817 = vmatpush1.msra.mxu0 0.0
        %3818 = vmatprep.subr.mxu0 0.0
        %3819 = vmatpush1.msra.mxu0 0.0
        %3820 = vmatprep.subr.mxu0 0.0
        %3821 = vmatpush1.msra.mxu0 0.0
        %3822 = vmatprep.subr.mxu0 0.0
        %3823 = vmatpush1.msra.mxu0 0.0
        %3824 = vmatprep.subr.mxu0 0.0
        %3825 = vmatpush1.msra.mxu0 0.0
        %3826 = vmatprep.subr.mxu0 0.0
        %3827 = vmatpush1.msra.mxu0 0.0
        %3828 = vmatprep.subr.mxu0 0.0
        %3829 = vmatpush1.msra.mxu0 0.0
        %3830 = vmatprep.subr.mxu0 0.0
        %3831 = vmatpush1.msra.mxu0 0.0
        %3832 = vmatprep.subr.mxu0 0.0
        %3833 = vmatpush1.msra.mxu0 0.0
        %3834 = vmatprep.mubr.f32.mxu0 0.0
        %3835 = vmatmul.mubr.f32.gmra.mrb[0].mxu0 %v3759
        %v3836 = vpop.f32.mrb[0].mxu0
        %v3837 = vadd.f32 %v3750, %v3836
        %v3838 = vpop.f32.mrb[0].mxu0
        %v3839 = vadd.f32 %v3751, %v3838
        %3840 = vmatprep.mubr.f32.mxu0 0.0
        %3841 = vmatmul.mubr.f32.gmra.mrb[0].mxu0 %v3762
        %v3842 = vpop.f32.mrb[0].mxu0
        %v3843 = vadd.f32 %v3752, %v3842
        %v3844 = vpop.f32.mrb[0].mxu0
        %v3845 = vadd.f32 %v3753, %v3844
        %3846 = vmatprep.mubr.f32.mxu0 0.0
        %3847 = vmatmul.mubr.f32.gmra.mrb[0].mxu0 %v3765
        %v3848 = vpop.f32.mrb[0].mxu0
        %v3849 = vadd.f32 %v3754, %v3848
        %v3850 = vpop.f32.mrb[0].mxu0
        %v3851 = vadd.f32 %v3755, %v3850
        %3852 = vmatprep.mubr.f32.mxu0 0.0
        %3853 = vmatmul.mubr.f32.gmra.mrb[0].mxu0 %v3768
        %v3854 = vpop.f32.mrb[0].mxu0
        %v3855 = vadd.f32 %v3756, %v3854
        %v3856 = vpop.f32.mrb[0].mxu0
        %v3857 = vadd.f32 %v3757, %v3856
        %3858 = vdwg.mxu0
        %v3859 = vmul.f32 %v3537, %v3843
        %v3860 = vmul.f32 %v3539, %v3845
        %v3861 = vmul.f32 %v3543, %v3843
        %v3862 = vmul.f32 %v3545, %v3845
        %v3863 = vmul.f32 %v3549, %v3843
        %v3864 = vmul.f32 %v3551, %v3845
        %v3865 = vmul.f32 %v3537, %v3855
        %v3866 = vmul.f32 %v3539, %v3857
        %v3867 = vmul.f32 %v3543, %v3855
        %v3868 = vmul.f32 %v3545, %v3857
        %v3869 = vmul.f32 %v3549, %v3855
        %v3870 = vmul.f32 %v3551, %v3857
        %v3871 = vld [vmem:[%s2 + $0x80] sm:$0xff]
        %v3872 = vld [vmem:[%s2 + $0x88] sm:$0xff]
        %v3873 = vld [vmem:[%s2 + $0x90] sm:$0xff]
        %v3874 = vld [vmem:[%s2 + $0x98] sm:$0xff]
        %v3875 = vld [vmem:[%s2 + $0xa0] sm:$0xff]
        %v3876 = vld [vmem:[%s2 + $0xa8] sm:$0xff]
        %v3877 = vld [vmem:[%s2 + $0xb0] sm:$0xff]
        %v3878 = vld [vmem:[%s2 + $0xb8] sm:$0xff]
        %v3880 = vsel %vm822, %v3871, 0
        %v3883 = vsel %vm822, %v3872, 0
        %v3886 = vsel %vm822, %v3873, 0
        %v3889 = vsel %vm822, %v3874, 0
        %v3892 = vsel %vm822, %v3875, 0
        %v3895 = vsel %vm822, %v3876, 0
        %v3898 = vsel %vm822, %v3877, 0
        %v3901 = vsel %vm822, %v3878, 0
        %3903 = vmatprep.subr.mxu0 %v3839
        %3904 = vmatpush1.msra.mxu0 %v3837
        %3905 = vmatprep.subr.mxu0 %v3851
        %3906 = vmatpush1.msra.mxu0 %v3849
        %3907 = vmatprep.subr.mxu0 %v3860
        %3908 = vmatpush1.msra.mxu0 %v3859
        %3909 = vmatprep.subr.mxu0 %v3862
        %3910 = vmatpush1.msra.mxu0 %v3861
        %3911 = vmatprep.subr.mxu0 %v3864
        %3912 = vmatpush1.msra.mxu0 %v3863
        %3913 = vmatprep.subr.mxu0 %v3866
        %3914 = vmatpush1.msra.mxu0 %v3865
        %3915 = vmatprep.subr.mxu0 %v3868
        %3916 = vmatpush1.msra.mxu0 %v3867
        %3917 = vmatprep.subr.mxu0 %v3870
        %3918 = vmatpush1.msra.mxu0 %v3869
        %3919 = vmatprep.subr.mxu0 0.0
        %3920 = vmatpush1.msra.mxu0 0.0
        %3921 = vmatprep.subr.mxu0 0.0
        %3922 = vmatpush1.msra.mxu0 0.0
        %3923 = vmatprep.subr.mxu0 0.0
        %3924 = vmatpush1.msra.mxu0 0.0
        %3925 = vmatprep.subr.mxu0 0.0
        %3926 = vmatpush1.msra.mxu0 0.0
        %3927 = vmatprep.subr.mxu0 0.0
        %3928 = vmatpush1.msra.mxu0 0.0
        %3929 = vmatprep.subr.mxu0 0.0
        %3930 = vmatpush1.msra.mxu0 0.0
        %3931 = vmatprep.subr.mxu0 0.0
        %3932 = vmatpush1.msra.mxu0 0.0
        %3933 = vmatprep.subr.mxu0 0.0
        %3934 = vmatpush1.msra.mxu0 0.0
        %3935 = vmatprep.subr.mxu0 0.0
        %3936 = vmatpush1.msra.mxu0 0.0
        %3937 = vmatprep.subr.mxu0 0.0
        %3938 = vmatpush1.msra.mxu0 0.0
        %3939 = vmatprep.subr.mxu0 0.0
        %3940 = vmatpush1.msra.mxu0 0.0
        %3941 = vmatprep.subr.mxu0 0.0
        %3942 = vmatpush1.msra.mxu0 0.0
        %3943 = vmatprep.subr.mxu0 0.0
        %3944 = vmatpush1.msra.mxu0 0.0
        %3945 = vmatprep.subr.mxu0 0.0
        %3946 = vmatpush1.msra.mxu0 0.0
        %3947 = vmatprep.subr.mxu0 0.0
        %3948 = vmatpush1.msra.mxu0 0.0
        %3949 = vmatprep.subr.mxu0 0.0
        %3950 = vmatpush1.msra.mxu0 0.0
        %3951 = vmatprep.subr.mxu0 0.0
        %3952 = vmatpush1.msra.mxu0 0.0
        %3953 = vmatprep.subr.mxu0 0.0
        %3954 = vmatpush1.msra.mxu0 0.0
        %3955 = vmatprep.subr.mxu0 0.0
        %3956 = vmatpush1.msra.mxu0 0.0
        %3957 = vmatprep.subr.mxu0 0.0
        %3958 = vmatpush1.msra.mxu0 0.0
        %3959 = vmatprep.subr.mxu0 0.0
        %3960 = vmatpush1.msra.mxu0 0.0
        %3961 = vmatprep.subr.mxu0 0.0
        %3962 = vmatpush1.msra.mxu0 0.0
        %3963 = vmatprep.subr.mxu0 0.0
        %3964 = vmatpush1.msra.mxu0 0.0
        %3965 = vmatprep.subr.mxu0 0.0
        %3966 = vmatpush1.msra.mxu0 0.0
        %3967 = vmatprep.mubr.f32.mxu0 0.0
        %3968 = vmatmul.mubr.f32.gmra.mrb[0].mxu0 %v3880
        %v3969 = vpop.f32.mrb[0].mxu0
        %v3970 = vadd.f32 0.0, %v3969
        %v3971 = vpop.f32.mrb[0].mxu0
        %v3972 = vadd.f32 0.0, %v3971
        %3973 = vmatprep.mubr.f32.mxu0 0.0
        %3974 = vmatmul.mubr.f32.gmra.mrb[0].mxu0 %v3883
        %v3975 = vpop.f32.mrb[0].mxu0
        %v3976 = vadd.f32 0.0, %v3975
        %v3977 = vpop.f32.mrb[0].mxu0
        %v3978 = vadd.f32 0.0, %v3977
        %3979 = vmatprep.mubr.f32.mxu0 0.0
        %3980 = vmatmul.mubr.f32.gmra.mrb[0].mxu0 %v3886
        %v3981 = vpop.f32.mrb[0].mxu0
        %v3982 = vadd.f32 0.0, %v3981
        %v3983 = vpop.f32.mrb[0].mxu0
        %v3984 = vadd.f32 0.0, %v3983
        %3985 = vmatprep.mubr.f32.mxu0 0.0
        %3986 = vmatmul.mubr.f32.gmra.mrb[0].mxu0 %v3889
        %v3987 = vpop.f32.mrb[0].mxu0
        %v3988 = vadd.f32 0.0, %v3987
        %v3989 = vpop.f32.mrb[0].mxu0
        %v3990 = vadd.f32 0.0, %v3989
        %3991 = vmatprep.mubr.f32.mxu0 0.0
        %3992 = vmatmul.mubr.f32.gmra.mrb[0].mxu0 %v3892
        %v3993 = vpop.f32.mrb[0].mxu0
        %v3994 = vadd.f32 0.0, %v3993
        %v3995 = vpop.f32.mrb[0].mxu0
        %v3996 = vadd.f32 0.0, %v3995
        %3997 = vmatprep.mubr.f32.mxu0 0.0
        %3998 = vmatmul.mubr.f32.gmra.mrb[0].mxu0 %v3895
        %v3999 = vpop.f32.mrb[0].mxu0
        %v4000 = vadd.f32 0.0, %v3999
        %v4001 = vpop.f32.mrb[0].mxu0
        %v4002 = vadd.f32 0.0, %v4001
        %4003 = vmatprep.mubr.f32.mxu0 0.0
        %4004 = vmatmul.mubr.f32.gmra.mrb[0].mxu0 %v3898
        %v4005 = vpop.f32.mrb[0].mxu0
        %v4006 = vadd.f32 0.0, %v4005
        %v4007 = vpop.f32.mrb[0].mxu0
        %v4008 = vadd.f32 0.0, %v4007
        %4009 = vmatprep.mubr.f32.mxu0 0.0
        %4010 = vmatmul.mubr.f32.gmra.mrb[0].mxu0 %v3901
        %v4011 = vpop.f32.mrb[0].mxu0
        %v4012 = vadd.f32 0.0, %v4011
        %v4013 = vpop.f32.mrb[0].mxu0
        %v4014 = vadd.f32 0.0, %v4013
        %4015 = vdwg.mxu0
        %v4016 = vld [vmem:[%s3 + $0x80] sm:$0xff]
        %v4017 = vld [vmem:[%s3 + $0x88] sm:$0xff]
        %v4018 = vld [vmem:[%s3 + $0x90] sm:$0xff]
        %v4019 = vld [vmem:[%s3 + $0x98] sm:$0xff]
        %v4020 = vadd.f32 %v3970, %v4016
        %v4021 = vadd.f32 %v3972, %v4017
        %v4022 = vadd.f32 %v3976, %v4018
        %v4023 = vadd.f32 %v3978, %v4019
        %v4024 = vld [vmem:[%s3 + $0xe0] sm:$0xff]
        %v4025 = vld [vmem:[%s3 + $0xe8] sm:$0xff]
        %v4026 = vld [vmem:[%s3 + $0xf0] sm:$0xff]
        %v4027 = vld [vmem:[%s3 + $0xf8] sm:$0xff]
        %v4028 = vld [vmem:[%s3 + $0x100] sm:$0xff]
        %v4029 = vld [vmem:[%s3 + $0x108] sm:$0xff]
        %v4030 = vld [vmem:[%s3 + $0x110] sm:$0xff]
        %v4031 = vld [vmem:[%s3 + $0x118] sm:$0xff]
        %v4032 = vld [vmem:[%s3 + $0x120] sm:$0xff]
        %v4033 = vld [vmem:[%s3 + $0x128] sm:$0xff]
        %v4034 = vmul.f32 %v3982, %v4000
        %v4035 = vmul.f32 %v3984, %v4002
        %v4036 = vmul.f32 %v3988, %v4006
        %v4037 = vmul.f32 %v3990, %v4008
        %v4038 = vadd.f32 %v4034, %v4036
        %v4039 = vadd.f32 %v4035, %v4037
        %v4040 = vmul.f32 %v3994, %v4012
        %v4041 = vmul.f32 %v3996, %v4014
        %v4042 = vadd.f32 %v4038, %v4040
        %v4043 = vadd.f32 %v4039, %v4041
        %v4044 = vmul.f32 %v4020, %v4022
        %v4045 = vmul.f32 %v4021, %v4023
        %v4046 = vmul.f32 %v4024, %v4044
        %v4047 = vmul.f32 %v4025, %v4045
        %v4048 = vmul.f32 %v4030, %v4042
        %v4049 = vmul.f32 %v4031, %v4043
        %v4050 = vadd.f32 %v4046, %v4048
        %v4051 = vadd.f32 %v4047, %v4049
        %v4052 = vadd.f32 %v4050, %v3531
        %v4053 = vadd.f32 %v4051, %v3533
        %v4054 = vmul.f32 %v3988, %v4012
        %v4055 = vmul.f32 %v3990, %v4014
        %v4056 = vmul.f32 %v3994, %v4006
        %v4057 = vmul.f32 %v3996, %v4008
        %v4058 = vsub.f32 %v4054, %v4056
        %v4059 = vsub.f32 %v4055, %v4057
        %v4060 = vmul.f32 %v3994, %v4000
        %v4061 = vmul.f32 %v3996, %v4002
        %v4062 = vmul.f32 %v3982, %v4012
        %v4063 = vmul.f32 %v3984, %v4014
        %v4064 = vsub.f32 %v4060, %v4062
        %v4065 = vsub.f32 %v4061, %v4063
        %v4066 = vmul.f32 %v3982, %v4006
        %v4067 = vmul.f32 %v3984, %v4008
        %v4068 = vmul.f32 %v3988, %v4000
        %v4069 = vmul.f32 %v3990, %v4002
        %v4070 = vsub.f32 %v4066, %v4068
        %v4071 = vsub.f32 %v4067, %v4069
        %v4072 = vmul.f32 %v4020, %v4000
        %v4073 = vmul.f32 %v4021, %v4002
        %v4074 = vmul.f32 %v4026, %v4072
        %v4075 = vmul.f32 %v4027, %v4073
        %v4076 = vmul.f32 %v3982, %v4022
        %v4077 = vmul.f32 %v3984, %v4023
        %v4078 = vmul.f32 %v4028, %v4076
        %v4079 = vmul.f32 %v4029, %v4077
        %v4080 = vadd.f32 %v4074, %v4078
        %v4081 = vadd.f32 %v4075, %v4079
        %v4082 = vmul.f32 %v4032, %v4058
        %v4083 = vmul.f32 %v4033, %v4059
        %v4084 = vadd.f32 %v4080, %v4082
        %v4085 = vadd.f32 %v4081, %v4083
        %v4086 = vadd.f32 %v4084, %v3537
        %v4087 = vadd.f32 %v4085, %v3539
        %v4088 = vmul.f32 %v4020, %v4006
        %v4089 = vmul.f32 %v4021, %v4008
        %v4090 = vmul.f32 %v4026, %v4088
        %v4091 = vmul.f32 %v4027, %v4089
        %v4092 = vmul.f32 %v3988, %v4022
        %v4093 = vmul.f32 %v3990, %v4023
        %v4094 = vmul.f32 %v4028, %v4092
        %v4095 = vmul.f32 %v4029, %v4093
        %v4096 = vadd.f32 %v4090, %v4094
        %v4097 = vadd.f32 %v4091, %v4095
        %v4098 = vmul.f32 %v4032, %v4064
        %v4099 = vmul.f32 %v4033, %v4065
        %v4100 = vadd.f32 %v4096, %v4098
        %v4101 = vadd.f32 %v4097, %v4099
        %v4102 = vadd.f32 %v4100, %v3543
        %v4103 = vadd.f32 %v4101, %v3545
        %v4104 = vmul.f32 %v4020, %v4012
        %v4105 = vmul.f32 %v4021, %v4014
        %v4106 = vmul.f32 %v4026, %v4104
        %v4107 = vmul.f32 %v4027, %v4105
        %v4108 = vmul.f32 %v3994, %v4022
        %v4109 = vmul.f32 %v3996, %v4023
        %v4110 = vmul.f32 %v4028, %v4108
        %v4111 = vmul.f32 %v4029, %v4109
        %v4112 = vadd.f32 %v4106, %v4110
        %v4113 = vadd.f32 %v4107, %v4111
        %v4114 = vmul.f32 %v4032, %v4070
        %v4115 = vmul.f32 %v4033, %v4071
        %v4116 = vadd.f32 %v4112, %v4114
        %v4117 = vadd.f32 %v4113, %v4115
        %v4118 = vadd.f32 %v4116, %v3549
        %v4119 = vadd.f32 %v4117, %v3551
        %v4120 = vmul.f32 %v4086, %v4086
        %v4121 = vmul.f32 %v4087, %v4087
        %v4122 = vmul.f32 %v4102, %v4102
        %v4123 = vmul.f32 %v4103, %v4103
        %v4124 = vadd.f32 %v4120, %v4122
        %v4125 = vadd.f32 %v4121, %v4123
        %v4126 = vmul.f32 %v4118, %v4118
        %v4127 = vmul.f32 %v4119, %v4119
        %v4128 = vadd.f32 %v4124, %v4126
        %v4129 = vadd.f32 %v4125, %v4127
        %v4130 = vrsqrt.pop %v4128
        %v4131 = vmul.f32 %v4128, %v4130
        %vm4132 = vcmp.eq.f32.partialorder %v4128, inf
        %v4133 = vsel %vm4132, %v4128, %v4131
        %vm4134 = vcmp.eq.f32.partialorder %v4128, 0.0
        %v4135 = vand.u32 %v4128, 2147483648
        %v4136 = vsel %vm4134, %v4135, %v4133
        %v4137 = vrsqrt.pop %v4129
        %v4138 = vmul.f32 %v4129, %v4137
        %vm4139 = vcmp.eq.f32.partialorder %v4129, inf
        %v4140 = vsel %vm4139, %v4129, %v4138
        %vm4141 = vcmp.eq.f32.partialorder %v4129, 0.0
        %v4142 = vand.u32 %v4129, 2147483648
        %v4143 = vsel %vm4141, %v4142, %v4140
        %v4144 = vld [vmem:[%s2 + $0x60] sm:$0xff]
        %v4145 = vld [vmem:[%s2 + $0x68] sm:$0xff]
        %v4146 = vld [vmem:[%s3 + $0xa0] sm:$0xff]
        %v4147 = vld [vmem:[%s3 + $0xa8] sm:$0xff]
        %v4148 = vld [vmem:[%s3 + $0xb0] sm:$0xff]
        %v4149 = vld [vmem:[%s3 + $0xb8] sm:$0xff]
        %v4151 = vsel %vm531, %v4144, 0
        %v4154 = vsel %vm531, %v4145, 0
        %4156 = vmatprep.subr.mxu0 %v4053
        %4157 = vmatpush1.msra.mxu0 %v4052
        %4158 = vmatprep.subr.mxu0 %v4143
        %4159 = vmatpush1.msra.mxu0 %v4136
        %4160 = vmatprep.subr.mxu0 0.0
        %4161 = vmatpush1.msra.mxu0 0.0
        %4162 = vmatprep.subr.mxu0 0.0
        %4163 = vmatpush1.msra.mxu0 0.0
        %4164 = vmatprep.subr.mxu0 0.0
        %4165 = vmatpush1.msra.mxu0 0.0
        %4166 = vmatprep.subr.mxu0 0.0
        %4167 = vmatpush1.msra.mxu0 0.0
        %4168 = vmatprep.subr.mxu0 0.0
        %4169 = vmatpush1.msra.mxu0 0.0
        %4170 = vmatprep.subr.mxu0 0.0
        %4171 = vmatpush1.msra.mxu0 0.0
        %4172 = vmatprep.subr.mxu0 0.0
        %4173 = vmatpush1.msra.mxu0 0.0
        %4174 = vmatprep.subr.mxu0 0.0
        %4175 = vmatpush1.msra.mxu0 0.0
        %4176 = vmatprep.subr.mxu0 0.0
        %4177 = vmatpush1.msra.mxu0 0.0
        %4178 = vmatprep.subr.mxu0 0.0
        %4179 = vmatpush1.msra.mxu0 0.0
        %4180 = vmatprep.subr.mxu0 0.0
        %4181 = vmatpush1.msra.mxu0 0.0
        %4182 = vmatprep.subr.mxu0 0.0
        %4183 = vmatpush1.msra.mxu0 0.0
        %4184 = vmatprep.subr.mxu0 0.0
        %4185 = vmatpush1.msra.mxu0 0.0
        %4186 = vmatprep.subr.mxu0 0.0
        %4187 = vmatpush1.msra.mxu0 0.0
        %4188 = vmatprep.subr.mxu0 0.0
        %4189 = vmatpush1.msra.mxu0 0.0
        %4190 = vmatprep.subr.mxu0 0.0
        %4191 = vmatpush1.msra.mxu0 0.0
        %4192 = vmatprep.subr.mxu0 0.0
        %4193 = vmatpush1.msra.mxu0 0.0
        %4194 = vmatprep.subr.mxu0 0.0
        %4195 = vmatpush1.msra.mxu0 0.0
        %4196 = vmatprep.subr.mxu0 0.0
        %4197 = vmatpush1.msra.mxu0 0.0
        %4198 = vmatprep.subr.mxu0 0.0
        %4199 = vmatpush1.msra.mxu0 0.0
        %4200 = vmatprep.subr.mxu0 0.0
        %4201 = vmatpush1.msra.mxu0 0.0
        %4202 = vmatprep.subr.mxu0 0.0
        %4203 = vmatpush1.msra.mxu0 0.0
        %4204 = vmatprep.subr.mxu0 0.0
        %4205 = vmatpush1.msra.mxu0 0.0
        %4206 = vmatprep.subr.mxu0 0.0
        %4207 = vmatpush1.msra.mxu0 0.0
        %4208 = vmatprep.subr.mxu0 0.0
        %4209 = vmatpush1.msra.mxu0 0.0
        %4210 = vmatprep.subr.mxu0 0.0
        %4211 = vmatpush1.msra.mxu0 0.0
        %4212 = vmatprep.subr.mxu0 0.0
        %4213 = vmatpush1.msra.mxu0 0.0
        %4214 = vmatprep.subr.mxu0 0.0
        %4215 = vmatpush1.msra.mxu0 0.0
        %4216 = vmatprep.subr.mxu0 0.0
        %4217 = vmatpush1.msra.mxu0 0.0
        %4218 = vmatprep.subr.mxu0 0.0
        %4219 = vmatpush1.msra.mxu0 0.0
        %4220 = vmatprep.mubr.f32.mxu0 0.0
        %4221 = vmatmul.mubr.f32.gmra.mrb[0].mxu0 %v4151
        %v4222 = vpop.f32.mrb[0].mxu0
        %v4223 = vadd.f32 %v4146, %v4222
        %v4224 = vpop.f32.mrb[0].mxu0
        %v4225 = vadd.f32 %v4147, %v4224
        %4226 = vmatprep.mubr.f32.mxu0 0.0
        %4227 = vmatmul.mubr.f32.gmra.mrb[0].mxu0 %v4154
        %v4228 = vpop.f32.mrb[0].mxu0
        %v4229 = vadd.f32 %v4148, %v4228
        %v4230 = vpop.f32.mrb[0].mxu0
        %v4231 = vadd.f32 %v4149, %v4230
        %4232 = vdwg.mxu0
        %v4233 = vxor.u32 %v4223, 2147483648
        %v4234 = vxor.u32 %v4225, 2147483648
        %v4235 = vxor.u32 %v4229, 2147483648
        %v4236 = vxor.u32 %v4231, 2147483648
        %v4237 = vmul.f32 %v4233, 1.442695
        %v4238 = vpow.pop %v4237
        %v4239 = vmul.f32 %v4234, 1.442695
        %v4240 = vpow.pop %v4239
        %v4241 = vmul.f32 %v4235, 1.442695
        %v4242 = vpow.pop %v4241
        %v4243 = vmul.f32 %v4236, 1.442695
        %v4244 = vpow.pop %v4243
        %v4245 = vadd.f32 %v4238, 1.0
        %v4246 = vadd.f32 %v4240, 1.0
        %v4247 = vadd.f32 %v4242, 1.0
        %v4248 = vadd.f32 %v4244, 1.0
        %v4249 = vrcp.pop %v4245
        %v4250 = vmul.f32 1.0, %v4249
        %v4251 = vrcp.pop %v4246
        %v4252 = vmul.f32 1.0, %v4251
        %v4253 = vrcp.pop %v4247
        %v4254 = vmul.f32 1.0, %v4253
        %v4255 = vrcp.pop %v4248
        %v4256 = vmul.f32 1.0, %v4255
        %v4257 = vmul.f32 %v4223, %v4250
        %v4258 = vmul.f32 %v4225, %v4252
        %v4259 = vmul.f32 %v4229, %v4254
        %v4260 = vmul.f32 %v4231, %v4256
        %v4261 = vld [vmem:[%s2 + $0x70] sm:$0xff]
        %v4262 = vld [vmem:[%s2 + $0x78] sm:$0xff]
        %v4263 = vld [vmem:[%s3 + $0xc0] sm:$0xff]
        %v4264 = vld [vmem:[%s3 + $0xc8] sm:$0xff]
        %v4265 = vld [vmem:[%s3 + $0xd0] sm:$0xff]
        %v4266 = vld [vmem:[%s3 + $0xd8] sm:$0xff]
        %v4268 = vsel %vm531, %v4261, 0
        %v4271 = vsel %vm531, %v4262, 0
        %4273 = vmatprep.subr.mxu0 %v4258
        %4274 = vmatpush1.msra.mxu0 %v4257
        %4275 = vmatprep.subr.mxu0 %v4260
        %4276 = vmatpush1.msra.mxu0 %v4259
        %4277 = vmatprep.subr.mxu0 0.0
        %4278 = vmatpush1.msra.mxu0 0.0
        %4279 = vmatprep.subr.mxu0 0.0
        %4280 = vmatpush1.msra.mxu0 0.0
        %4281 = vmatprep.subr.mxu0 0.0
        %4282 = vmatpush1.msra.mxu0 0.0
        %4283 = vmatprep.subr.mxu0 0.0
        %4284 = vmatpush1.msra.mxu0 0.0
        %4285 = vmatprep.subr.mxu0 0.0
        %4286 = vmatpush1.msra.mxu0 0.0
        %4287 = vmatprep.subr.mxu0 0.0
        %4288 = vmatpush1.msra.mxu0 0.0
        %4289 = vmatprep.subr.mxu0 0.0
        %4290 = vmatpush1.msra.mxu0 0.0
        %4291 = vmatprep.subr.mxu0 0.0
        %4292 = vmatpush1.msra.mxu0 0.0
        %4293 = vmatprep.subr.mxu0 0.0
        %4294 = vmatpush1.msra.mxu0 0.0
        %4295 = vmatprep.subr.mxu0 0.0
        %4296 = vmatpush1.msra.mxu0 0.0
        %4297 = vmatprep.subr.mxu0 0.0
        %4298 = vmatpush1.msra.mxu0 0.0
        %4299 = vmatprep.subr.mxu0 0.0
        %4300 = vmatpush1.msra.mxu0 0.0
        %4301 = vmatprep.subr.mxu0 0.0
        %4302 = vmatpush1.msra.mxu0 0.0
        %4303 = vmatprep.subr.mxu0 0.0
        %4304 = vmatpush1.msra.mxu0 0.0
        %4305 = vmatprep.subr.mxu0 0.0
        %4306 = vmatpush1.msra.mxu0 0.0
        %4307 = vmatprep.subr.mxu0 0.0
        %4308 = vmatpush1.msra.mxu0 0.0
        %4309 = vmatprep.subr.mxu0 0.0
        %4310 = vmatpush1.msra.mxu0 0.0
        %4311 = vmatprep.subr.mxu0 0.0
        %4312 = vmatpush1.msra.mxu0 0.0
        %4313 = vmatprep.subr.mxu0 0.0
        %4314 = vmatpush1.msra.mxu0 0.0
        %4315 = vmatprep.subr.mxu0 0.0
        %4316 = vmatpush1.msra.mxu0 0.0
        %4317 = vmatprep.subr.mxu0 0.0
        %4318 = vmatpush1.msra.mxu0 0.0
        %4319 = vmatprep.subr.mxu0 0.0
        %4320 = vmatpush1.msra.mxu0 0.0
        %4321 = vmatprep.subr.mxu0 0.0
        %4322 = vmatpush1.msra.mxu0 0.0
        %4323 = vmatprep.subr.mxu0 0.0
        %4324 = vmatpush1.msra.mxu0 0.0
        %4325 = vmatprep.subr.mxu0 0.0
        %4326 = vmatpush1.msra.mxu0 0.0
        %4327 = vmatprep.subr.mxu0 0.0
        %4328 = vmatpush1.msra.mxu0 0.0
        %4329 = vmatprep.subr.mxu0 0.0
        %4330 = vmatpush1.msra.mxu0 0.0
        %4331 = vmatprep.subr.mxu0 0.0
        %4332 = vmatpush1.msra.mxu0 0.0
        %4333 = vmatprep.subr.mxu0 0.0
        %4334 = vmatpush1.msra.mxu0 0.0
        %4335 = vmatprep.subr.mxu0 0.0
        %4336 = vmatpush1.msra.mxu0 0.0
        %4337 = vmatprep.mubr.f32.mxu0 0.0
        %4338 = vmatmul.mubr.f32.gmra.mrb[0].mxu0 %v4268
        %v4339 = vpop.f32.mrb[0].mxu0
        %v4340 = vadd.f32 %v4263, %v4339
        %v4341 = vpop.f32.mrb[0].mxu0
        %v4342 = vadd.f32 %v4264, %v4341
        %4343 = vmatprep.mubr.f32.mxu0 0.0
        %4344 = vmatmul.mubr.f32.gmra.mrb[0].mxu0 %v4271
        %v4345 = vpop.f32.mrb[0].mxu0
        %v4346 = vadd.f32 %v4265, %v4345
        %v4347 = vpop.f32.mrb[0].mxu0
        %v4348 = vadd.f32 %v4266, %v4347
        %4349 = vdwg.mxu0
        %v4350 = vmul.f32 %v4086, %v4346
        %v4351 = vmul.f32 %v4087, %v4348
        %v4352 = vmul.f32 %v4102, %v4346
        %v4353 = vmul.f32 %v4103, %v4348
        %v4354 = vmul.f32 %v4118, %v4346
        %v4355 = vmul.f32 %v4119, %v4348
        %v4356 = vld [vmem:[%s2 + $0xc0] sm:$0xff]
        %v4357 = vld [vmem:[%s2 + $0xc8] sm:$0xff]
        %v4358 = vld [vmem:[%s2 + $0xd0] sm:$0xff]
        %v4359 = vld [vmem:[%s2 + $0xd8] sm:$0xff]
        %v4360 = vld [vmem:[%s2 + $0xe0] sm:$0x1]
        %s4361 = scalar_lea.vmem %s250, 512
        %v4362 = vld [vmem:[%s4361] sm:$0xff]
        %v4363 = vld [vmem:[%s4361 + $0x8] sm:$0xff]
        %v4364 = vld [vmem:[%s4361 + $0x10] sm:$0xff]
        %v4365 = vld [vmem:[%s4361 + $0x18] sm:$0xff]
        %v4366 = vld [vmem:[%s4361 + $0x20] sm:$0xff]
        %v4367 = vld [vmem:[%s4361 + $0x28] sm:$0xff]
        %v4368 = vld [vmem:[%s4361 + $0x30] sm:$0xff]
        %v4369 = vld [vmem:[%s4361 + $0x38] sm:$0xff]
        %v4370 = vld [vmem:[%s4361 + $0x40] sm:$0xff]
        %v4371 = vld [vmem:[%s4361 + $0x48] sm:$0xff]
        %v4372 = vld [vmem:[%s4361 + $0x50] sm:$0xff]
        %v4373 = vld [vmem:[%s4361 + $0x58] sm:$0xff]
        %v4374 = vld [vmem:[%s4361 + $0x60] sm:$0xff]
        %v4375 = vld [vmem:[%s4361 + $0x68] sm:$0xff]
        %v4376 = vld [vmem:[%s4361 + $0x70] sm:$0xff]
        %v4377 = vld [vmem:[%s4361 + $0x78] sm:$0xff]
        %v4378 = vld [vmem:[%s4361 + $0x80] sm:$0xff]
        %v4379 = vld [vmem:[%s4361 + $0x88] sm:$0xff]
        %v4380 = vld [vmem:[%s4361 + $0x90] sm:$0xff]
        %v4381 = vld [vmem:[%s4361 + $0x98] sm:$0xff]
        %v4382 = vld [vmem:[%s4361 + $0xa0] sm:$0xff]
        %v4383 = vld [vmem:[%s4361 + $0xa8] sm:$0xff]
        %v4384 = vld [vmem:[%s4361 + $0xb0] sm:$0xff]
        %v4385 = vld [vmem:[%s4361 + $0xb8] sm:$0xff]
        %v4386 = vld [vmem:[%s4361 + $0xc0] sm:$0xff]
        %v4387 = vld [vmem:[%s4361 + $0xc8] sm:$0xff]
        %v4388 = vld [vmem:[%s4361 + $0xd0] sm:$0xff]
        %v4389 = vld [vmem:[%s4361 + $0xd8] sm:$0xff]
        %v4390 = vld [vmem:[%s4361 + $0xe0] sm:$0xff]
        %v4391 = vld [vmem:[%s4361 + $0xe8] sm:$0xff]
        %v4392 = vld [vmem:[%s4361 + $0xf0] sm:$0xff]
        %v4393 = vld [vmem:[%s4361 + $0xf8] sm:$0xff]
        %v4394 = vlaneseq
        %v4395 = vshrl.u32 %v4394, 7
        %v4396 = vsub.s32 0, %v4395
        %v4397 = vrot.slane %v4360, %v4396
        %4398 = vxpose.xlu0.b32.start [1/16] %v4340, 128
        %4399 = vxpose.xlu0.b32.cont [2/16] %v4350, 128
        %4400 = vxpose.xlu0.b32.cont [3/16] %v4352, 128
        %4401 = vxpose.xlu0.b32.cont [4/16] %v4354, 128
        %4402 = vxpose.xlu0.b32.cont [5/16] 0.0, 128
        %4403 = vxpose.xlu0.b32.cont [6/16] 0.0, 128
        %4404 = vxpose.xlu0.b32.cont [7/16] 0.0, 128
        %4405 = vxpose.xlu0.b32.cont [8/16] 0.0, 128
        %4406 = vxpose.xlu0.b32.cont [9/16] 0.0, 128
        %4407 = vxpose.xlu0.b32.cont [10/16] 0.0, 128
        %4408 = vxpose.xlu0.b32.cont [11/16] 0.0, 128
        %4409 = vxpose.xlu0.b32.cont [12/16] 0.0, 128
        %4410 = vxpose.xlu0.b32.cont [13/16] 0.0, 128
        %4411 = vxpose.xlu0.b32.cont [14/16] 0.0, 128
        %4412 = vxpose.xlu0.b32.cont [15/16] 0.0, 128
        %4413 = vxpose.xlu0.b32.end [16/16] 0.0, 128
        %v4414 = vpop.trf.xlu0
        %v4415 = vpop.trf.xlu0
        %v4416 = vpop.trf.xlu0
        %v4417 = vpop.trf.xlu0
        %v4418 = vpop.trf.xlu0
        %v4419 = vpop.trf.xlu0
        %v4420 = vpop.trf.xlu0
        %v4421 = vpop.trf.xlu0
        %v4422 = vpop.trf.xlu0
        %v4423 = vpop.trf.xlu0
        %v4424 = vpop.trf.xlu0
        %v4425 = vpop.trf.xlu0
        %v4426 = vpop.trf.xlu0
        %v4427 = vpop.trf.xlu0
        %v4428 = vpop.trf.xlu0
        %v4429 = vpop.trf.xlu0
        %4430 = vxpose.xlu0.b32.start [1/16] %v4342, 128
        %4431 = vxpose.xlu0.b32.cont [2/16] %v4351, 128
        %4432 = vxpose.xlu0.b32.cont [3/16] %v4353, 128
        %4433 = vxpose.xlu0.b32.cont [4/16] %v4355, 128
        %4434 = vxpose.xlu0.b32.cont [5/16] 0.0, 128
        %4435 = vxpose.xlu0.b32.cont [6/16] 0.0, 128
        %4436 = vxpose.xlu0.b32.cont [7/16] 0.0, 128
        %4437 = vxpose.xlu0.b32.cont [8/16] 0.0, 128
        %4438 = vxpose.xlu0.b32.cont [9/16] 0.0, 128
        %4439 = vxpose.xlu0.b32.cont [10/16] 0.0, 128
        %4440 = vxpose.xlu0.b32.cont [11/16] 0.0, 128
        %4441 = vxpose.xlu0.b32.cont [12/16] 0.0, 128
        %4442 = vxpose.xlu0.b32.cont [13/16] 0.0, 128
        %4443 = vxpose.xlu0.b32.cont [14/16] 0.0, 128
        %4444 = vxpose.xlu0.b32.cont [15/16] 0.0, 128
        %4445 = vxpose.xlu0.b32.end [16/16] 0.0, 128
        %v4446 = vpop.trf.xlu0
        %v4447 = vpop.trf.xlu0
        %v4448 = vpop.trf.xlu0
        %v4449 = vpop.trf.xlu0
        %v4450 = vpop.trf.xlu0
        %v4451 = vpop.trf.xlu0
        %v4452 = vpop.trf.xlu0
        %v4453 = vpop.trf.xlu0
        %v4454 = vpop.trf.xlu0
        %v4455 = vpop.trf.xlu0
        %v4456 = vpop.trf.xlu0
        %v4457 = vpop.trf.xlu0
        %v4458 = vpop.trf.xlu0
        %v4459 = vpop.trf.xlu0
        %v4460 = vpop.trf.xlu0
        %v4461 = vpop.trf.xlu0
        %v4463 = vsel %vm297, %v4414, 0
        %v4466 = vsel %vm297, %v4415, 0
        %v4469 = vsel %vm297, %v4416, 0
        %v4472 = vsel %vm297, %v4417, 0
        %v4475 = vsel %vm297, %v4418, 0
        %v4478 = vsel %vm297, %v4419, 0
        %v4481 = vsel %vm297, %v4420, 0
        %v4484 = vsel %vm297, %v4421, 0
        %v4487 = vsel %vm297, %v4422, 0
        %v4490 = vsel %vm297, %v4423, 0
        %v4493 = vsel %vm297, %v4424, 0
        %v4496 = vsel %vm297, %v4425, 0
        %v4499 = vsel %vm297, %v4426, 0
        %v4502 = vsel %vm297, %v4427, 0
        %v4505 = vsel %vm297, %v4428, 0
        %v4508 = vsel %vm297, %v4429, 0
        %v4511 = vsel %vm297, %v4446, 0
        %v4514 = vsel %vm297, %v4447, 0
        %v4517 = vsel %vm297, %v4448, 0
        %v4520 = vsel %vm297, %v4449, 0
        %v4523 = vsel %vm297, %v4450, 0
        %v4526 = vsel %vm297, %v4451, 0
        %v4529 = vsel %vm297, %v4452, 0
        %v4532 = vsel %vm297, %v4453, 0
        %v4535 = vsel %vm297, %v4454, 0
        %v4538 = vsel %vm297, %v4455, 0
        %v4541 = vsel %vm297, %v4456, 0
        %v4544 = vsel %vm297, %v4457, 0
        %v4547 = vsel %vm297, %v4458, 0
        %v4550 = vsel %vm297, %v4459, 0
        %v4553 = vsel %vm297, %v4460, 0
        %v4556 = vsel %vm297, %v4461, 0
        %4558 = vmatprep.subr.mxu0 0.0
        %4559 = vmatpush1.msra.mxu0 %v4356
        %4560 = vmatprep.subr.mxu0 0.0
        %4561 = vmatpush1.msra.mxu0 %v4357
        %4562 = vmatprep.subr.mxu0 0.0
        %4563 = vmatpush1.msra.mxu0 %v4358
        %4564 = vmatprep.subr.mxu0 0.0
        %4565 = vmatpush1.msra.mxu0 %v4359
        %4566 = vmatprep.subr.mxu0 0.0
        %4567 = vmatpush1.msra.mxu0 0.0
        %4568 = vmatprep.subr.mxu0 0.0
        %4569 = vmatpush1.msra.mxu0 0.0
        %4570 = vmatprep.subr.mxu0 0.0
        %4571 = vmatpush1.msra.mxu0 0.0
        %4572 = vmatprep.subr.mxu0 0.0
        %4573 = vmatpush1.msra.mxu0 0.0
        %4574 = vmatprep.subr.mxu0 0.0
        %4575 = vmatpush1.msra.mxu0 0.0
        %4576 = vmatprep.subr.mxu0 0.0
        %4577 = vmatpush1.msra.mxu0 0.0
        %4578 = vmatprep.subr.mxu0 0.0
        %4579 = vmatpush1.msra.mxu0 0.0
        %4580 = vmatprep.subr.mxu0 0.0
        %4581 = vmatpush1.msra.mxu0 0.0
        %4582 = vmatprep.subr.mxu0 0.0
        %4583 = vmatpush1.msra.mxu0 0.0
        %4584 = vmatprep.subr.mxu0 0.0
        %4585 = vmatpush1.msra.mxu0 0.0
        %4586 = vmatprep.subr.mxu0 0.0
        %4587 = vmatpush1.msra.mxu0 0.0
        %4588 = vmatprep.subr.mxu0 0.0
        %4589 = vmatpush1.msra.mxu0 0.0
        %4590 = vmatprep.subr.mxu0 0.0
        %4591 = vmatpush1.msra.mxu0 0.0
        %4592 = vmatprep.subr.mxu0 0.0
        %4593 = vmatpush1.msra.mxu0 0.0
        %4594 = vmatprep.subr.mxu0 0.0
        %4595 = vmatpush1.msra.mxu0 0.0
        %4596 = vmatprep.subr.mxu0 0.0
        %4597 = vmatpush1.msra.mxu0 0.0
        %4598 = vmatprep.subr.mxu0 0.0
        %4599 = vmatpush1.msra.mxu0 0.0
        %4600 = vmatprep.subr.mxu0 0.0
        %4601 = vmatpush1.msra.mxu0 0.0
        %4602 = vmatprep.subr.mxu0 0.0
        %4603 = vmatpush1.msra.mxu0 0.0
        %4604 = vmatprep.subr.mxu0 0.0
        %4605 = vmatpush1.msra.mxu0 0.0
        %4606 = vmatprep.subr.mxu0 0.0
        %4607 = vmatpush1.msra.mxu0 0.0
        %4608 = vmatprep.subr.mxu0 0.0
        %4609 = vmatpush1.msra.mxu0 0.0
        %4610 = vmatprep.subr.mxu0 0.0
        %4611 = vmatpush1.msra.mxu0 0.0
        %4612 = vmatprep.subr.mxu0 0.0
        %4613 = vmatpush1.msra.mxu0 0.0
        %4614 = vmatprep.subr.mxu0 0.0
        %4615 = vmatpush1.msra.mxu0 0.0
        %4616 = vmatprep.subr.mxu0 0.0
        %4617 = vmatpush1.msra.mxu0 0.0
        %4618 = vmatprep.subr.mxu0 0.0
        %4619 = vmatpush1.msra.mxu0 0.0
        %4620 = vmatprep.subr.mxu0 0.0
        %4621 = vmatpush1.msra.mxu0 0.0
        %4622 = vmatprep.mubr.f32.mxu0 0.0
        %4623 = vmatmul.mubr.f32.gmra.mrb[0].mxu0 %v4463
        %v4624 = vpop.f32.mrb[0].mxu0
        %v4625 = vadd.f32 %v4397, %v4624
        %v4626 = vpop.f32.mrb[0].mxu0
        %4627 = vmatprep.mubr.f32.mxu0 0.0
        %4628 = vmatmul.mubr.f32.gmra.mrb[0].mxu0 %v4466
        %v4629 = vpop.f32.mrb[0].mxu0
        %v4630 = vadd.f32 %v4397, %v4629
        %v4631 = vpop.f32.mrb[0].mxu0
        %4632 = vmatprep.mubr.f32.mxu0 0.0
        %4633 = vmatmul.mubr.f32.gmra.mrb[0].mxu0 %v4469
        %v4634 = vpop.f32.mrb[0].mxu0
        %v4635 = vadd.f32 %v4397, %v4634
        %v4636 = vpop.f32.mrb[0].mxu0
        %4637 = vmatprep.mubr.f32.mxu0 0.0
        %4638 = vmatmul.mubr.f32.gmra.mrb[0].mxu0 %v4472
        %v4639 = vpop.f32.mrb[0].mxu0
        %v4640 = vadd.f32 %v4397, %v4639
        %v4641 = vpop.f32.mrb[0].mxu0
        %4642 = vmatprep.mubr.f32.mxu0 0.0
        %4643 = vmatmul.mubr.f32.gmra.mrb[0].mxu0 %v4475
        %v4644 = vpop.f32.mrb[0].mxu0
        %v4645 = vadd.f32 %v4397, %v4644
        %v4646 = vpop.f32.mrb[0].mxu0
        %4647 = vmatprep.mubr.f32.mxu0 0.0
        %4648 = vmatmul.mubr.f32.gmra.mrb[0].mxu0 %v4478
        %v4649 = vpop.f32.mrb[0].mxu0
        %v4650 = vadd.f32 %v4397, %v4649
        %v4651 = vpop.f32.mrb[0].mxu0
        %4652 = vmatprep.mubr.f32.mxu0 0.0
        %4653 = vmatmul.mubr.f32.gmra.mrb[0].mxu0 %v4481
        %v4654 = vpop.f32.mrb[0].mxu0
        %v4655 = vadd.f32 %v4397, %v4654
        %v4656 = vpop.f32.mrb[0].mxu0
        %4657 = vmatprep.mubr.f32.mxu0 0.0
        %4658 = vmatmul.mubr.f32.gmra.mrb[0].mxu0 %v4484
        %v4659 = vpop.f32.mrb[0].mxu0
        %v4660 = vadd.f32 %v4397, %v4659
        %v4661 = vpop.f32.mrb[0].mxu0
        %4662 = vmatprep.mubr.f32.mxu0 0.0
        %4663 = vmatmul.mubr.f32.gmra.mrb[0].mxu0 %v4487
        %v4664 = vpop.f32.mrb[0].mxu0
        %v4665 = vadd.f32 %v4397, %v4664
        %v4666 = vpop.f32.mrb[0].mxu0
        %4667 = vmatprep.mubr.f32.mxu0 0.0
        %4668 = vmatmul.mubr.f32.gmra.mrb[0].mxu0 %v4490
        %v4669 = vpop.f32.mrb[0].mxu0
        %v4670 = vadd.f32 %v4397, %v4669
        %v4671 = vpop.f32.mrb[0].mxu0
        %4672 = vmatprep.mubr.f32.mxu0 0.0
        %4673 = vmatmul.mubr.f32.gmra.mrb[0].mxu0 %v4493
        %v4674 = vpop.f32.mrb[0].mxu0
        %v4675 = vadd.f32 %v4397, %v4674
        %v4676 = vpop.f32.mrb[0].mxu0
        %4677 = vmatprep.mubr.f32.mxu0 0.0
        %4678 = vmatmul.mubr.f32.gmra.mrb[0].mxu0 %v4496
        %v4679 = vpop.f32.mrb[0].mxu0
        %v4680 = vadd.f32 %v4397, %v4679
        %v4681 = vpop.f32.mrb[0].mxu0
        %4682 = vmatprep.mubr.f32.mxu0 0.0
        %4683 = vmatmul.mubr.f32.gmra.mrb[0].mxu0 %v4499
        %v4684 = vpop.f32.mrb[0].mxu0
        %v4685 = vadd.f32 %v4397, %v4684
        %v4686 = vpop.f32.mrb[0].mxu0
        %4687 = vmatprep.mubr.f32.mxu0 0.0
        %4688 = vmatmul.mubr.f32.gmra.mrb[0].mxu0 %v4502
        %v4689 = vpop.f32.mrb[0].mxu0
        %v4690 = vadd.f32 %v4397, %v4689
        %v4691 = vpop.f32.mrb[0].mxu0
        %4692 = vmatprep.mubr.f32.mxu0 0.0
        %4693 = vmatmul.mubr.f32.gmra.mrb[0].mxu0 %v4505
        %v4694 = vpop.f32.mrb[0].mxu0
        %v4695 = vadd.f32 %v4397, %v4694
        %v4696 = vpop.f32.mrb[0].mxu0
        %4697 = vmatprep.mubr.f32.mxu0 0.0
        %4698 = vmatmul.mubr.f32.gmra.mrb[0].mxu0 %v4508
        %v4699 = vpop.f32.mrb[0].mxu0
        %v4700 = vadd.f32 %v4397, %v4699
        %v4701 = vpop.f32.mrb[0].mxu0
        %4702 = vmatprep.mubr.f32.mxu0 0.0
        %4703 = vmatmul.mubr.f32.gmra.mrb[0].mxu0 %v4511
        %v4704 = vpop.f32.mrb[0].mxu0
        %v4705 = vadd.f32 %v4397, %v4704
        %v4706 = vpop.f32.mrb[0].mxu0
        %4707 = vmatprep.mubr.f32.mxu0 0.0
        %4708 = vmatmul.mubr.f32.gmra.mrb[0].mxu0 %v4514
        %v4709 = vpop.f32.mrb[0].mxu0
        %v4710 = vadd.f32 %v4397, %v4709
        %v4711 = vpop.f32.mrb[0].mxu0
        %4712 = vmatprep.mubr.f32.mxu0 0.0
        %4713 = vmatmul.mubr.f32.gmra.mrb[0].mxu0 %v4517
        %v4714 = vpop.f32.mrb[0].mxu0
        %v4715 = vadd.f32 %v4397, %v4714
        %v4716 = vpop.f32.mrb[0].mxu0
        %4717 = vmatprep.mubr.f32.mxu0 0.0
        %4718 = vmatmul.mubr.f32.gmra.mrb[0].mxu0 %v4520
        %v4719 = vpop.f32.mrb[0].mxu0
        %v4720 = vadd.f32 %v4397, %v4719
        %v4721 = vpop.f32.mrb[0].mxu0
        %4722 = vmatprep.mubr.f32.mxu0 0.0
        %4723 = vmatmul.mubr.f32.gmra.mrb[0].mxu0 %v4523
        %v4724 = vpop.f32.mrb[0].mxu0
        %v4725 = vadd.f32 %v4397, %v4724
        %v4726 = vpop.f32.mrb[0].mxu0
        %4727 = vmatprep.mubr.f32.mxu0 0.0
        %4728 = vmatmul.mubr.f32.gmra.mrb[0].mxu0 %v4526
        %v4729 = vpop.f32.mrb[0].mxu0
        %v4730 = vadd.f32 %v4397, %v4729
        %v4731 = vpop.f32.mrb[0].mxu0
        %4732 = vmatprep.mubr.f32.mxu0 0.0
        %4733 = vmatmul.mubr.f32.gmra.mrb[0].mxu0 %v4529
        %v4734 = vpop.f32.mrb[0].mxu0
        %v4735 = vadd.f32 %v4397, %v4734
        %v4736 = vpop.f32.mrb[0].mxu0
        %4737 = vmatprep.mubr.f32.mxu0 0.0
        %4738 = vmatmul.mubr.f32.gmra.mrb[0].mxu0 %v4532
        %v4739 = vpop.f32.mrb[0].mxu0
        %v4740 = vadd.f32 %v4397, %v4739
        %v4741 = vpop.f32.mrb[0].mxu0
        %4742 = vmatprep.mubr.f32.mxu0 0.0
        %4743 = vmatmul.mubr.f32.gmra.mrb[0].mxu0 %v4535
        %v4744 = vpop.f32.mrb[0].mxu0
        %v4745 = vadd.f32 %v4397, %v4744
        %v4746 = vpop.f32.mrb[0].mxu0
        %4747 = vmatprep.mubr.f32.mxu0 0.0
        %4748 = vmatmul.mubr.f32.gmra.mrb[0].mxu0 %v4538
        %v4749 = vpop.f32.mrb[0].mxu0
        %v4750 = vadd.f32 %v4397, %v4749
        %v4751 = vpop.f32.mrb[0].mxu0
        %4752 = vmatprep.mubr.f32.mxu0 0.0
        %4753 = vmatmul.mubr.f32.gmra.mrb[0].mxu0 %v4541
        %v4754 = vpop.f32.mrb[0].mxu0
        %v4755 = vadd.f32 %v4397, %v4754
        %v4756 = vpop.f32.mrb[0].mxu0
        %4757 = vmatprep.mubr.f32.mxu0 0.0
        %4758 = vmatmul.mubr.f32.gmra.mrb[0].mxu0 %v4544
        %v4759 = vpop.f32.mrb[0].mxu0
        %v4760 = vadd.f32 %v4397, %v4759
        %v4761 = vpop.f32.mrb[0].mxu0
        %4762 = vmatprep.mubr.f32.mxu0 0.0
        %4763 = vmatmul.mubr.f32.gmra.mrb[0].mxu0 %v4547
        %v4764 = vpop.f32.mrb[0].mxu0
        %v4765 = vadd.f32 %v4397, %v4764
        %v4766 = vpop.f32.mrb[0].mxu0
        %4767 = vmatprep.mubr.f32.mxu0 0.0
        %4768 = vmatmul.mubr.f32.gmra.mrb[0].mxu0 %v4550
        %v4769 = vpop.f32.mrb[0].mxu0
        %v4770 = vadd.f32 %v4397, %v4769
        %v4771 = vpop.f32.mrb[0].mxu0
        %4772 = vmatprep.mubr.f32.mxu0 0.0
        %4773 = vmatmul.mubr.f32.gmra.mrb[0].mxu0 %v4553
        %v4774 = vpop.f32.mrb[0].mxu0
        %v4775 = vadd.f32 %v4397, %v4774
        %v4776 = vpop.f32.mrb[0].mxu0
        %4777 = vmatprep.mubr.f32.mxu0 0.0
        %4778 = vmatmul.mubr.f32.gmra.mrb[0].mxu0 %v4556
        %v4779 = vpop.f32.mrb[0].mxu0
        %v4780 = vadd.f32 %v4397, %v4779
        %v4781 = vpop.f32.mrb[0].mxu0
        %4782 = vdwg.mxu0
        %v4783 = vadd.f32 %v4625, %v4362
        %v4784 = vadd.f32 %v4630, %v4363
        %v4785 = vadd.f32 %v4635, %v4364
        %v4786 = vadd.f32 %v4640, %v4365
        %v4787 = vadd.f32 %v4645, %v4366
        %v4788 = vadd.f32 %v4650, %v4367
        %v4789 = vadd.f32 %v4655, %v4368
        %v4790 = vadd.f32 %v4660, %v4369
        %v4791 = vadd.f32 %v4665, %v4370
        %v4792 = vadd.f32 %v4670, %v4371
        %v4793 = vadd.f32 %v4675, %v4372
        %v4794 = vadd.f32 %v4680, %v4373
        %v4795 = vadd.f32 %v4685, %v4374
        %v4796 = vadd.f32 %v4690, %v4375
        %v4797 = vadd.f32 %v4695, %v4376
        %v4798 = vadd.f32 %v4700, %v4377
        %v4799 = vadd.f32 %v4705, %v4378
        %v4800 = vadd.f32 %v4710, %v4379
        %v4801 = vadd.f32 %v4715, %v4380
        %v4802 = vadd.f32 %v4720, %v4381
        %v4803 = vadd.f32 %v4725, %v4382
        %v4804 = vadd.f32 %v4730, %v4383
        %v4805 = vadd.f32 %v4735, %v4384
        %v4806 = vadd.f32 %v4740, %v4385
        %v4807 = vadd.f32 %v4745, %v4386
        %v4808 = vadd.f32 %v4750, %v4387
        %v4809 = vadd.f32 %v4755, %v4388
        %v4810 = vadd.f32 %v4760, %v4389
        %v4811 = vadd.f32 %v4765, %v4390
        %v4812 = vadd.f32 %v4770, %v4391
        %v4813 = vadd.f32 %v4775, %v4392
        %v4814 = vadd.f32 %v4780, %v4393
        %s4815 = scalar_lea.vmem %s227, 512 [#allocation2]
        %4816 = vst.msk [vmem:[%s4815] sm:$0xff] %vm297, %v4783
        %4817 = vst.msk [vmem:[%s4815 + $0x8] sm:$0xff] %vm297, %v4784
        %4818 = vst.msk [vmem:[%s4815 + $0x10] sm:$0xff] %vm297, %v4785
        %4819 = vst.msk [vmem:[%s4815 + $0x18] sm:$0xff] %vm297, %v4786
        %4820 = vst.msk [vmem:[%s4815 + $0x20] sm:$0xff] %vm297, %v4787
        %4821 = vst.msk [vmem:[%s4815 + $0x28] sm:$0xff] %vm297, %v4788
        %4822 = vst.msk [vmem:[%s4815 + $0x30] sm:$0xff] %vm297, %v4789
        %4823 = vst.msk [vmem:[%s4815 + $0x38] sm:$0xff] %vm297, %v4790
        %4824 = vst.msk [vmem:[%s4815 + $0x40] sm:$0xff] %vm297, %v4791
        %4825 = vst.msk [vmem:[%s4815 + $0x48] sm:$0xff] %vm297, %v4792
        %4826 = vst.msk [vmem:[%s4815 + $0x50] sm:$0xff] %vm297, %v4793
        %4827 = vst.msk [vmem:[%s4815 + $0x58] sm:$0xff] %vm297, %v4794
        %4828 = vst.msk [vmem:[%s4815 + $0x60] sm:$0xff] %vm297, %v4795
        %4829 = vst.msk [vmem:[%s4815 + $0x68] sm:$0xff] %vm297, %v4796
        %4830 = vst.msk [vmem:[%s4815 + $0x70] sm:$0xff] %vm297, %v4797
        %4831 = vst.msk [vmem:[%s4815 + $0x78] sm:$0xff] %vm297, %v4798
        %4832 = vst.msk [vmem:[%s4815 + $0x80] sm:$0xff] %vm297, %v4799
        %4833 = vst.msk [vmem:[%s4815 + $0x88] sm:$0xff] %vm297, %v4800
        %4834 = vst.msk [vmem:[%s4815 + $0x90] sm:$0xff] %vm297, %v4801
        %4835 = vst.msk [vmem:[%s4815 + $0x98] sm:$0xff] %vm297, %v4802
        %4836 = vst.msk [vmem:[%s4815 + $0xa0] sm:$0xff] %vm297, %v4803
        %4837 = vst.msk [vmem:[%s4815 + $0xa8] sm:$0xff] %vm297, %v4804
        %4838 = vst.msk [vmem:[%s4815 + $0xb0] sm:$0xff] %vm297, %v4805
        %4839 = vst.msk [vmem:[%s4815 + $0xb8] sm:$0xff] %vm297, %v4806
        %4840 = vst.msk [vmem:[%s4815 + $0xc0] sm:$0xff] %vm297, %v4807
        %4841 = vst.msk [vmem:[%s4815 + $0xc8] sm:$0xff] %vm297, %v4808
        %4842 = vst.msk [vmem:[%s4815 + $0xd0] sm:$0xff] %vm297, %v4809
        %4843 = vst.msk [vmem:[%s4815 + $0xd8] sm:$0xff] %vm297, %v4810
        %4844 = vst.msk [vmem:[%s4815 + $0xe0] sm:$0xff] %vm297, %v4811
        %4845 = vst.msk [vmem:[%s4815 + $0xe8] sm:$0xff] %vm297, %v4812
        %4846 = vst.msk [vmem:[%s4815 + $0xf0] sm:$0xff] %vm297, %v4813
        %4847 = vst.msk [vmem:[%s4815 + $0xf8] sm:$0xff] %vm297, %v4814
        %s4848 = scalar_lea.vmem %s236, 768
        %v4849 = vld [vmem:[%s4848] sm:$0xff]
        %v4850 = vld [vmem:[%s4848 + $0x8] sm:$0xff]
        %v4851 = vld [vmem:[%s4848 + $0x10] sm:$0xff]
        %v4852 = vld [vmem:[%s4848 + $0x18] sm:$0xff]
        %v4853 = vld [vmem:[%s4848 + $0x20] sm:$0xff]
        %v4854 = vld [vmem:[%s4848 + $0x28] sm:$0xff]
        %v4855 = vld [vmem:[%s4848 + $0x30] sm:$0xff]
        %v4856 = vld [vmem:[%s4848 + $0x38] sm:$0xff]
        %v4857 = vld [vmem:[%s4848 + $0x40] sm:$0xff]
        %v4858 = vld [vmem:[%s4848 + $0x48] sm:$0xff]
        %v4859 = vld [vmem:[%s4848 + $0x50] sm:$0xff]
        %v4860 = vld [vmem:[%s4848 + $0x58] sm:$0xff]
        %v4861 = vld [vmem:[%s4848 + $0x60] sm:$0xff]
        %v4862 = vld [vmem:[%s4848 + $0x68] sm:$0xff]
        %v4863 = vld [vmem:[%s4848 + $0x70] sm:$0xff]
        %v4864 = vld [vmem:[%s4848 + $0x78] sm:$0xff]
        %v4865 = vld [vmem:[%s4848 + $0x80] sm:$0xff]
        %v4866 = vld [vmem:[%s4848 + $0x88] sm:$0xff]
        %v4867 = vld [vmem:[%s4848 + $0x90] sm:$0xff]
        %v4868 = vld [vmem:[%s4848 + $0x98] sm:$0xff]
        %v4869 = vld [vmem:[%s4848 + $0xa0] sm:$0xff]
        %v4870 = vld [vmem:[%s4848 + $0xa8] sm:$0xff]
        %v4871 = vld [vmem:[%s4848 + $0xb0] sm:$0xff]
        %v4872 = vld [vmem:[%s4848 + $0xb8] sm:$0xff]
        %v4873 = vld [vmem:[%s4848 + $0xc0] sm:$0xff]
        %v4874 = vld [vmem:[%s4848 + $0xc8] sm:$0xff]
        %v4875 = vld [vmem:[%s4848 + $0xd0] sm:$0xff]
        %v4876 = vld [vmem:[%s4848 + $0xd8] sm:$0xff]
        %v4877 = vld [vmem:[%s4848 + $0xe0] sm:$0xff]
        %v4878 = vld [vmem:[%s4848 + $0xe8] sm:$0xff]
        %v4879 = vld [vmem:[%s4848 + $0xf0] sm:$0xff]
        %v4880 = vld [vmem:[%s4848 + $0xf8] sm:$0xff]
        %v4881 = vld [vmem:[%s2] sm:$0xff]
        %v4882 = vld [vmem:[%s2 + $0x8] sm:$0xff]
        %v4883 = vld [vmem:[%s2 + $0x10] sm:$0xff]
        %v4884 = vld [vmem:[%s2 + $0x18] sm:$0xff]
        %v4886 = vsel %vm297, %v4881, 0
        %v4889 = vsel %vm297, %v4882, 0
        %v4892 = vsel %vm297, %v4883, 0
        %v4895 = vsel %vm297, %v4884, 0
        %v4898 = vsel %vm297, %v4849, 0
        %v4901 = vsel %vm297, %v4850, 0
        %v4904 = vsel %vm297, %v4851, 0
        %v4907 = vsel %vm297, %v4852, 0
        %v4910 = vsel %vm297, %v4853, 0
        %v4913 = vsel %vm297, %v4854, 0
        %v4916 = vsel %vm297, %v4855, 0
        %v4919 = vsel %vm297, %v4856, 0
        %v4922 = vsel %vm297, %v4857, 0
        %v4925 = vsel %vm297, %v4858, 0
        %v4928 = vsel %vm297, %v4859, 0
        %v4931 = vsel %vm297, %v4860, 0
        %v4934 = vsel %vm297, %v4861, 0
        %v4937 = vsel %vm297, %v4862, 0
        %v4940 = vsel %vm297, %v4863, 0
        %v4943 = vsel %vm297, %v4864, 0
        %v4946 = vsel %vm297, %v4865, 0
        %v4949 = vsel %vm297, %v4866, 0
        %v4952 = vsel %vm297, %v4867, 0
        %v4955 = vsel %vm297, %v4868, 0
        %v4958 = vsel %vm297, %v4869, 0
        %v4961 = vsel %vm297, %v4870, 0
        %v4964 = vsel %vm297, %v4871, 0
        %v4967 = vsel %vm297, %v4872, 0
        %v4970 = vsel %vm297, %v4873, 0
        %v4973 = vsel %vm297, %v4874, 0
        %v4976 = vsel %vm297, %v4875, 0
        %v4979 = vsel %vm297, %v4876, 0
        %v4982 = vsel %vm297, %v4877, 0
        %v4985 = vsel %vm297, %v4878, 0
        %v4988 = vsel %vm297, %v4879, 0
        %v4991 = vsel %vm297, %v4880, 0
        %4993 = vmatprep.subr.mxu0 0.0
        %4994 = vmatpush1.xpose.msra.mxu0 %v4898
        %4995 = vmatprep.subr.mxu0 0.0
        %4996 = vmatpush1.xpose.msra.mxu0 %v4901
        %4997 = vmatprep.subr.mxu0 0.0
        %4998 = vmatpush1.xpose.msra.mxu0 %v4904
        %4999 = vmatprep.subr.mxu0 0.0
        %5000 = vmatpush1.xpose.msra.mxu0 %v4907
        %5001 = vmatprep.subr.mxu0 0.0
        %5002 = vmatpush1.xpose.msra.mxu0 %v4910
        %5003 = vmatprep.subr.mxu0 0.0
        %5004 = vmatpush1.xpose.msra.mxu0 %v4913
        %5005 = vmatprep.subr.mxu0 0.0
        %5006 = vmatpush1.xpose.msra.mxu0 %v4916
        %5007 = vmatprep.subr.mxu0 0.0
        %5008 = vmatpush1.xpose.msra.mxu0 %v4919
        %5009 = vmatprep.subr.mxu0 0.0
        %5010 = vmatpush1.xpose.msra.mxu0 %v4922
        %5011 = vmatprep.subr.mxu0 0.0
        %5012 = vmatpush1.xpose.msra.mxu0 %v4925
        %5013 = vmatprep.subr.mxu0 0.0
        %5014 = vmatpush1.xpose.msra.mxu0 %v4928
        %5015 = vmatprep.subr.mxu0 0.0
        %5016 = vmatpush1.xpose.msra.mxu0 %v4931
        %5017 = vmatprep.subr.mxu0 0.0
        %5018 = vmatpush1.xpose.msra.mxu0 %v4934
        %5019 = vmatprep.subr.mxu0 0.0
        %5020 = vmatpush1.xpose.msra.mxu0 %v4937
        %5021 = vmatprep.subr.mxu0 0.0
        %5022 = vmatpush1.xpose.msra.mxu0 %v4940
        %5023 = vmatprep.subr.mxu0 0.0
        %5024 = vmatpush1.xpose.msra.mxu0 %v4943
        %5025 = vmatprep.subr.mxu0 0.0
        %5026 = vmatpush1.xpose.msra.mxu0 %v4946
        %5027 = vmatprep.subr.mxu0 0.0
        %5028 = vmatpush1.xpose.msra.mxu0 %v4949
        %5029 = vmatprep.subr.mxu0 0.0
        %5030 = vmatpush1.xpose.msra.mxu0 %v4952
        %5031 = vmatprep.subr.mxu0 0.0
        %5032 = vmatpush1.xpose.msra.mxu0 %v4955
        %5033 = vmatprep.subr.mxu0 0.0
        %5034 = vmatpush1.xpose.msra.mxu0 %v4958
        %5035 = vmatprep.subr.mxu0 0.0
        %5036 = vmatpush1.xpose.msra.mxu0 %v4961
        %5037 = vmatprep.subr.mxu0 0.0
        %5038 = vmatpush1.xpose.msra.mxu0 %v4964
        %5039 = vmatprep.subr.mxu0 0.0
        %5040 = vmatpush1.xpose.msra.mxu0 %v4967
        %5041 = vmatprep.subr.mxu0 0.0
        %5042 = vmatpush1.xpose.msra.mxu0 %v4970
        %5043 = vmatprep.subr.mxu0 0.0
        %5044 = vmatpush1.xpose.msra.mxu0 %v4973
        %5045 = vmatprep.subr.mxu0 0.0
        %5046 = vmatpush1.xpose.msra.mxu0 %v4976
        %5047 = vmatprep.subr.mxu0 0.0
        %5048 = vmatpush1.xpose.msra.mxu0 %v4979
        %5049 = vmatprep.subr.mxu0 0.0
        %5050 = vmatpush1.xpose.msra.mxu0 %v4982
        %5051 = vmatprep.subr.mxu0 0.0
        %5052 = vmatpush1.xpose.msra.mxu0 %v4985
        %5053 = vmatprep.subr.mxu0 0.0
        %5054 = vmatpush1.xpose.msra.mxu0 %v4988
        %5055 = vmatprep.subr.mxu0 0.0
        %5056 = vmatpush1.xpose.msra.mxu0 %v4991
        %5057 = vmatprep.mubr.f32.mxu0 0.0
        %5058 = vmatmul.mubr.f32.gmra.mrb[0].mxu0 %v4886
        %v5059 = vpop.f32.mrb[0].mxu0
        %v5060 = vadd.f32 0.0, %v5059
        %v5061 = vpop.f32.mrb[0].mxu0
        %v5062 = vadd.f32 0.0, %v5061
        %5063 = vmatprep.mubr.f32.mxu0 0.0
        %5064 = vmatmul.mubr.f32.gmra.mrb[0].mxu0 %v4889
        %v5065 = vpop.f32.mrb[0].mxu0
        %v5066 = vadd.f32 0.0, %v5065
        %v5067 = vpop.f32.mrb[0].mxu0
        %v5068 = vadd.f32 0.0, %v5067
        %5069 = vmatprep.mubr.f32.mxu0 0.0
        %5070 = vmatmul.mubr.f32.gmra.mrb[0].mxu0 %v4892
        %v5071 = vpop.f32.mrb[0].mxu0
        %v5072 = vadd.f32 0.0, %v5071
        %v5073 = vpop.f32.mrb[0].mxu0
        %v5074 = vadd.f32 0.0, %v5073
        %5075 = vmatprep.mubr.f32.mxu0 0.0
        %5076 = vmatmul.mubr.f32.gmra.mrb[0].mxu0 %v4895
        %v5077 = vpop.f32.mrb[0].mxu0
        %v5078 = vadd.f32 0.0, %v5077
        %v5079 = vpop.f32.mrb[0].mxu0
        %v5080 = vadd.f32 0.0, %v5079
        %5081 = vdwg.mxu0
        %v5082 = vmul.f32 %v5066, %v5066
        %v5083 = vmul.f32 %v5068, %v5068
        %v5084 = vmul.f32 %v5072, %v5072
        %v5085 = vmul.f32 %v5074, %v5074
        %v5086 = vadd.f32 %v5082, %v5084
        %v5087 = vadd.f32 %v5083, %v5085
        %v5088 = vmul.f32 %v5078, %v5078
        %v5089 = vmul.f32 %v5080, %v5080
        %v5090 = vadd.f32 %v5086, %v5088
        %v5091 = vadd.f32 %v5087, %v5089
        %v5092 = vrsqrt.pop %v5090
        %v5093 = vmul.f32 %v5090, %v5092
        %vm5094 = vcmp.eq.f32.partialorder %v5090, inf
        %v5095 = vsel %vm5094, %v5090, %v5093
        %vm5096 = vcmp.eq.f32.partialorder %v5090, 0.0
        %v5097 = vand.u32 %v5090, 2147483648
        %v5098 = vsel %vm5096, %v5097, %v5095
        %v5099 = vrsqrt.pop %v5091
        %v5100 = vmul.f32 %v5091, %v5099
        %vm5101 = vcmp.eq.f32.partialorder %v5091, inf
        %v5102 = vsel %vm5101, %v5091, %v5100
        %vm5103 = vcmp.eq.f32.partialorder %v5091, 0.0
        %v5104 = vand.u32 %v5091, 2147483648
        %v5105 = vsel %vm5103, %v5104, %v5102
        %v5106 = vld [vmem:[%s2 + $0x20] sm:$0xff]
        %v5107 = vld [vmem:[%s2 + $0x28] sm:$0xff]
        %v5108 = vld [vmem:[%s2 + $0x30] sm:$0xff]
        %v5109 = vld [vmem:[%s2 + $0x38] sm:$0xff]
        %v5110 = vld [vmem:[%s3] sm:$0xff]
        %v5111 = vld [vmem:[%s3 + $0x8] sm:$0xff]
        %v5112 = vld [vmem:[%s3 + $0x10] sm:$0xff]
        %v5113 = vld [vmem:[%s3 + $0x18] sm:$0xff]
        %v5114 = vld [vmem:[%s3 + $0x20] sm:$0xff]
        %v5115 = vld [vmem:[%s3 + $0x28] sm:$0xff]
        %v5116 = vld [vmem:[%s3 + $0x30] sm:$0xff]
        %v5117 = vld [vmem:[%s3 + $0x38] sm:$0xff]
        %v5119 = vsel %vm531, %v5106, 0
        %v5122 = vsel %vm531, %v5107, 0
        %v5125 = vsel %vm531, %v5108, 0
        %v5128 = vsel %vm531, %v5109, 0
        %5130 = vmatprep.subr.mxu0 %v5062
        %5131 = vmatpush1.msra.mxu0 %v5060
        %5132 = vmatprep.subr.mxu0 %v5105
        %5133 = vmatpush1.msra.mxu0 %v5098
        %5134 = vmatprep.subr.mxu0 0.0
        %5135 = vmatpush1.msra.mxu0 0.0
        %5136 = vmatprep.subr.mxu0 0.0
        %5137 = vmatpush1.msra.mxu0 0.0
        %5138 = vmatprep.subr.mxu0 0.0
        %5139 = vmatpush1.msra.mxu0 0.0
        %5140 = vmatprep.subr.mxu0 0.0
        %5141 = vmatpush1.msra.mxu0 0.0
        %5142 = vmatprep.subr.mxu0 0.0
        %5143 = vmatpush1.msra.mxu0 0.0
        %5144 = vmatprep.subr.mxu0 0.0
        %5145 = vmatpush1.msra.mxu0 0.0
        %5146 = vmatprep.subr.mxu0 0.0
        %5147 = vmatpush1.msra.mxu0 0.0
        %5148 = vmatprep.subr.mxu0 0.0
        %5149 = vmatpush1.msra.mxu0 0.0
        %5150 = vmatprep.subr.mxu0 0.0
        %5151 = vmatpush1.msra.mxu0 0.0
        %5152 = vmatprep.subr.mxu0 0.0
        %5153 = vmatpush1.msra.mxu0 0.0
        %5154 = vmatprep.subr.mxu0 0.0
        %5155 = vmatpush1.msra.mxu0 0.0
        %5156 = vmatprep.subr.mxu0 0.0
        %5157 = vmatpush1.msra.mxu0 0.0
        %5158 = vmatprep.subr.mxu0 0.0
        %5159 = vmatpush1.msra.mxu0 0.0
        %5160 = vmatprep.subr.mxu0 0.0
        %5161 = vmatpush1.msra.mxu0 0.0
        %5162 = vmatprep.subr.mxu0 0.0
        %5163 = vmatpush1.msra.mxu0 0.0
        %5164 = vmatprep.subr.mxu0 0.0
        %5165 = vmatpush1.msra.mxu0 0.0
        %5166 = vmatprep.subr.mxu0 0.0
        %5167 = vmatpush1.msra.mxu0 0.0
        %5168 = vmatprep.subr.mxu0 0.0
        %5169 = vmatpush1.msra.mxu0 0.0
        %5170 = vmatprep.subr.mxu0 0.0
        %5171 = vmatpush1.msra.mxu0 0.0
        %5172 = vmatprep.subr.mxu0 0.0
        %5173 = vmatpush1.msra.mxu0 0.0
        %5174 = vmatprep.subr.mxu0 0.0
        %5175 = vmatpush1.msra.mxu0 0.0
        %5176 = vmatprep.subr.mxu0 0.0
        %5177 = vmatpush1.msra.mxu0 0.0
        %5178 = vmatprep.subr.mxu0 0.0
        %5179 = vmatpush1.msra.mxu0 0.0
        %5180 = vmatprep.subr.mxu0 0.0
        %5181 = vmatpush1.msra.mxu0 0.0
        %5182 = vmatprep.subr.mxu0 0.0
        %5183 = vmatpush1.msra.mxu0 0.0
        %5184 = vmatprep.subr.mxu0 0.0
        %5185 = vmatpush1.msra.mxu0 0.0
        %5186 = vmatprep.subr.mxu0 0.0
        %5187 = vmatpush1.msra.mxu0 0.0
        %5188 = vmatprep.subr.mxu0 0.0
        %5189 = vmatpush1.msra.mxu0 0.0
        %5190 = vmatprep.subr.mxu0 0.0
        %5191 = vmatpush1.msra.mxu0 0.0
        %5192 = vmatprep.subr.mxu0 0.0
        %5193 = vmatpush1.msra.mxu0 0.0
        %5194 = vmatprep.mubr.f32.mxu0 0.0
        %5195 = vmatmul.mubr.f32.gmra.mrb[0].mxu0 %v5119
        %v5196 = vpop.f32.mrb[0].mxu0
        %v5197 = vadd.f32 %v5110, %v5196
        %v5198 = vpop.f32.mrb[0].mxu0
        %v5199 = vadd.f32 %v5111, %v5198
        %5200 = vmatprep.mubr.f32.mxu0 0.0
        %5201 = vmatmul.mubr.f32.gmra.mrb[0].mxu0 %v5122
        %v5202 = vpop.f32.mrb[0].mxu0
        %v5203 = vadd.f32 %v5112, %v5202
        %v5204 = vpop.f32.mrb[0].mxu0
        %v5205 = vadd.f32 %v5113, %v5204
        %5206 = vmatprep.mubr.f32.mxu0 0.0
        %5207 = vmatmul.mubr.f32.gmra.mrb[0].mxu0 %v5125
        %v5208 = vpop.f32.mrb[0].mxu0
        %v5209 = vadd.f32 %v5114, %v5208
        %v5210 = vpop.f32.mrb[0].mxu0
        %v5211 = vadd.f32 %v5115, %v5210
        %5212 = vmatprep.mubr.f32.mxu0 0.0
        %5213 = vmatmul.mubr.f32.gmra.mrb[0].mxu0 %v5128
        %v5214 = vpop.f32.mrb[0].mxu0
        %v5215 = vadd.f32 %v5116, %v5214
        %v5216 = vpop.f32.mrb[0].mxu0
        %v5217 = vadd.f32 %v5117, %v5216
        %5218 = vdwg.mxu0
        %v5219 = vxor.u32 %v5197, 2147483648
        %v5220 = vxor.u32 %v5199, 2147483648
        %v5221 = vxor.u32 %v5203, 2147483648
        %v5222 = vxor.u32 %v5205, 2147483648
        %v5223 = vxor.u32 %v5209, 2147483648
        %v5224 = vxor.u32 %v5211, 2147483648
        %v5225 = vxor.u32 %v5215, 2147483648
        %v5226 = vxor.u32 %v5217, 2147483648
        %v5227 = vmul.f32 %v5219, 1.442695
        %v5228 = vpow.pop %v5227
        %v5229 = vmul.f32 %v5220, 1.442695
        %v5230 = vpow.pop %v5229
        %v5231 = vmul.f32 %v5221, 1.442695
        %v5232 = vpow.pop %v5231
        %v5233 = vmul.f32 %v5222, 1.442695
        %v5234 = vpow.pop %v5233
        %v5235 = vmul.f32 %v5223, 1.442695
        %v5236 = vpow.pop %v5235
        %v5237 = vmul.f32 %v5224, 1.442695
        %v5238 = vpow.pop %v5237
        %v5239 = vmul.f32 %v5225, 1.442695
        %v5240 = vpow.pop %v5239
        %v5241 = vmul.f32 %v5226, 1.442695
        %v5242 = vpow.pop %v5241
        %v5243 = vadd.f32 %v5228, 1.0
        %v5244 = vadd.f32 %v5230, 1.0
        %v5245 = vadd.f32 %v5232, 1.0
        %v5246 = vadd.f32 %v5234, 1.0
        %v5247 = vadd.f32 %v5236, 1.0
        %v5248 = vadd.f32 %v5238, 1.0
        %v5249 = vadd.f32 %v5240, 1.0
        %v5250 = vadd.f32 %v5242, 1.0
        %v5251 = vrcp.pop %v5243
        %v5252 = vmul.f32 1.0, %v5251
        %v5253 = vrcp.pop %v5244
        %v5254 = vmul.f32 1.0, %v5253
        %v5255 = vrcp.pop %v5245
        %v5256 = vmul.f32 1.0, %v5255
        %v5257 = vrcp.pop %v5246
        %v5258 = vmul.f32 1.0, %v5257
        %v5259 = vrcp.pop %v5247
        %v5260 = vmul.f32 1.0, %v5259
        %v5261 = vrcp.pop %v5248
        %v5262 = vmul.f32 1.0, %v5261
        %v5263 = vrcp.pop %v5249
        %v5264 = vmul.f32 1.0, %v5263
        %v5265 = vrcp.pop %v5250
        %v5266 = vmul.f32 1.0, %v5265
        %v5267 = vmul.f32 %v5197, %v5252
        %v5268 = vmul.f32 %v5199, %v5254
        %v5269 = vmul.f32 %v5203, %v5256
        %v5270 = vmul.f32 %v5205, %v5258
        %v5271 = vmul.f32 %v5209, %v5260
        %v5272 = vmul.f32 %v5211, %v5262
        %v5273 = vmul.f32 %v5215, %v5264
        %v5274 = vmul.f32 %v5217, %v5266
        %v5275 = vld [vmem:[%s2 + $0x40] sm:$0xff]
        %v5276 = vld [vmem:[%s2 + $0x48] sm:$0xff]
        %v5277 = vld [vmem:[%s2 + $0x50] sm:$0xff]
        %v5278 = vld [vmem:[%s2 + $0x58] sm:$0xff]
        %v5279 = vld [vmem:[%s3 + $0x40] sm:$0xff]
        %v5280 = vld [vmem:[%s3 + $0x48] sm:$0xff]
        %v5281 = vld [vmem:[%s3 + $0x50] sm:$0xff]
        %v5282 = vld [vmem:[%s3 + $0x58] sm:$0xff]
        %v5283 = vld [vmem:[%s3 + $0x60] sm:$0xff]
        %v5284 = vld [vmem:[%s3 + $0x68] sm:$0xff]
        %v5285 = vld [vmem:[%s3 + $0x70] sm:$0xff]
        %v5286 = vld [vmem:[%s3 + $0x78] sm:$0xff]
        %v5288 = vsel %vm297, %v5275, 0
        %v5291 = vsel %vm297, %v5276, 0
        %v5294 = vsel %vm297, %v5277, 0
        %v5297 = vsel %vm297, %v5278, 0
        %5299 = vmatprep.subr.mxu0 %v5268
        %5300 = vmatpush1.msra.mxu0 %v5267
        %5301 = vmatprep.subr.mxu0 %v5270
        %5302 = vmatpush1.msra.mxu0 %v5269
        %5303 = vmatprep.subr.mxu0 %v5272
        %5304 = vmatpush1.msra.mxu0 %v5271
        %5305 = vmatprep.subr.mxu0 %v5274
        %5306 = vmatpush1.msra.mxu0 %v5273
        %5307 = vmatprep.subr.mxu0 0.0
        %5308 = vmatpush1.msra.mxu0 0.0
        %5309 = vmatprep.subr.mxu0 0.0
        %5310 = vmatpush1.msra.mxu0 0.0
        %5311 = vmatprep.subr.mxu0 0.0
        %5312 = vmatpush1.msra.mxu0 0.0
        %5313 = vmatprep.subr.mxu0 0.0
        %5314 = vmatpush1.msra.mxu0 0.0
        %5315 = vmatprep.subr.mxu0 0.0
        %5316 = vmatpush1.msra.mxu0 0.0
        %5317 = vmatprep.subr.mxu0 0.0
        %5318 = vmatpush1.msra.mxu0 0.0
        %5319 = vmatprep.subr.mxu0 0.0
        %5320 = vmatpush1.msra.mxu0 0.0
        %5321 = vmatprep.subr.mxu0 0.0
        %5322 = vmatpush1.msra.mxu0 0.0
        %5323 = vmatprep.subr.mxu0 0.0
        %5324 = vmatpush1.msra.mxu0 0.0
        %5325 = vmatprep.subr.mxu0 0.0
        %5326 = vmatpush1.msra.mxu0 0.0
        %5327 = vmatprep.subr.mxu0 0.0
        %5328 = vmatpush1.msra.mxu0 0.0
        %5329 = vmatprep.subr.mxu0 0.0
        %5330 = vmatpush1.msra.mxu0 0.0
        %5331 = vmatprep.subr.mxu0 0.0
        %5332 = vmatpush1.msra.mxu0 0.0
        %5333 = vmatprep.subr.mxu0 0.0
        %5334 = vmatpush1.msra.mxu0 0.0
        %5335 = vmatprep.subr.mxu0 0.0
        %5336 = vmatpush1.msra.mxu0 0.0
        %5337 = vmatprep.subr.mxu0 0.0
        %5338 = vmatpush1.msra.mxu0 0.0
        %5339 = vmatprep.subr.mxu0 0.0
        %5340 = vmatpush1.msra.mxu0 0.0
        %5341 = vmatprep.subr.mxu0 0.0
        %5342 = vmatpush1.msra.mxu0 0.0
        %5343 = vmatprep.subr.mxu0 0.0
        %5344 = vmatpush1.msra.mxu0 0.0
        %5345 = vmatprep.subr.mxu0 0.0
        %5346 = vmatpush1.msra.mxu0 0.0
        %5347 = vmatprep.subr.mxu0 0.0
        %5348 = vmatpush1.msra.mxu0 0.0
        %5349 = vmatprep.subr.mxu0 0.0
        %5350 = vmatpush1.msra.mxu0 0.0
        %5351 = vmatprep.subr.mxu0 0.0
        %5352 = vmatpush1.msra.mxu0 0.0
        %5353 = vmatprep.subr.mxu0 0.0
        %5354 = vmatpush1.msra.mxu0 0.0
        %5355 = vmatprep.subr.mxu0 0.0
        %5356 = vmatpush1.msra.mxu0 0.0
        %5357 = vmatprep.subr.mxu0 0.0
        %5358 = vmatpush1.msra.mxu0 0.0
        %5359 = vmatprep.subr.mxu0 0.0
        %5360 = vmatpush1.msra.mxu0 0.0
        %5361 = vmatprep.subr.mxu0 0.0
        %5362 = vmatpush1.msra.mxu0 0.0
        %5363 = vmatprep.mubr.f32.mxu0 0.0
        %5364 = vmatmul.mubr.f32.gmra.mrb[0].mxu0 %v5288
        %v5365 = vpop.f32.mrb[0].mxu0
        %v5366 = vadd.f32 %v5279, %v5365
        %v5367 = vpop.f32.mrb[0].mxu0
        %v5368 = vadd.f32 %v5280, %v5367
        %5369 = vmatprep.mubr.f32.mxu0 0.0
        %5370 = vmatmul.mubr.f32.gmra.mrb[0].mxu0 %v5291
        %v5371 = vpop.f32.mrb[0].mxu0
        %v5372 = vadd.f32 %v5281, %v5371
        %v5373 = vpop.f32.mrb[0].mxu0
        %v5374 = vadd.f32 %v5282, %v5373
        %5375 = vmatprep.mubr.f32.mxu0 0.0
        %5376 = vmatmul.mubr.f32.gmra.mrb[0].mxu0 %v5294
        %v5377 = vpop.f32.mrb[0].mxu0
        %v5378 = vadd.f32 %v5283, %v5377
        %v5379 = vpop.f32.mrb[0].mxu0
        %v5380 = vadd.f32 %v5284, %v5379
        %5381 = vmatprep.mubr.f32.mxu0 0.0
        %5382 = vmatmul.mubr.f32.gmra.mrb[0].mxu0 %v5297
        %v5383 = vpop.f32.mrb[0].mxu0
        %v5384 = vadd.f32 %v5285, %v5383
        %v5385 = vpop.f32.mrb[0].mxu0
        %v5386 = vadd.f32 %v5286, %v5385
        %5387 = vdwg.mxu0
        %v5388 = vmul.f32 %v5066, %v5372
        %v5389 = vmul.f32 %v5068, %v5374
        %v5390 = vmul.f32 %v5072, %v5372
        %v5391 = vmul.f32 %v5074, %v5374
        %v5392 = vmul.f32 %v5078, %v5372
        %v5393 = vmul.f32 %v5080, %v5374
        %v5394 = vmul.f32 %v5066, %v5384
        %v5395 = vmul.f32 %v5068, %v5386
        %v5396 = vmul.f32 %v5072, %v5384
        %v5397 = vmul.f32 %v5074, %v5386
        %v5398 = vmul.f32 %v5078, %v5384
        %v5399 = vmul.f32 %v5080, %v5386
        %v5400 = vld [vmem:[%s2 + $0x80] sm:$0xff]
        %v5401 = vld [vmem:[%s2 + $0x88] sm:$0xff]
        %v5402 = vld [vmem:[%s2 + $0x90] sm:$0xff]
        %v5403 = vld [vmem:[%s2 + $0x98] sm:$0xff]
        %v5404 = vld [vmem:[%s2 + $0xa0] sm:$0xff]
        %v5405 = vld [vmem:[%s2 + $0xa8] sm:$0xff]
        %v5406 = vld [vmem:[%s2 + $0xb0] sm:$0xff]
        %v5407 = vld [vmem:[%s2 + $0xb8] sm:$0xff]
        %v5409 = vsel %vm822, %v5400, 0
        %v5412 = vsel %vm822, %v5401, 0
        %v5415 = vsel %vm822, %v5402, 0
        %v5418 = vsel %vm822, %v5403, 0
        %v5421 = vsel %vm822, %v5404, 0
        %v5424 = vsel %vm822, %v5405, 0
        %v5427 = vsel %vm822, %v5406, 0
        %v5430 = vsel %vm822, %v5407, 0
        %5432 = vmatprep.subr.mxu0 %v5368
        %5433 = vmatpush1.msra.mxu0 %v5366
        %5434 = vmatprep.subr.mxu0 %v5380
        %5435 = vmatpush1.msra.mxu0 %v5378
        %5436 = vmatprep.subr.mxu0 %v5389
        %5437 = vmatpush1.msra.mxu0 %v5388
        %5438 = vmatprep.subr.mxu0 %v5391
        %5439 = vmatpush1.msra.mxu0 %v5390
        %5440 = vmatprep.subr.mxu0 %v5393
        %5441 = vmatpush1.msra.mxu0 %v5392
        %5442 = vmatprep.subr.mxu0 %v5395
        %5443 = vmatpush1.msra.mxu0 %v5394
        %5444 = vmatprep.subr.mxu0 %v5397
        %5445 = vmatpush1.msra.mxu0 %v5396
        %5446 = vmatprep.subr.mxu0 %v5399
        %5447 = vmatpush1.msra.mxu0 %v5398
        %5448 = vmatprep.subr.mxu0 0.0
        %5449 = vmatpush1.msra.mxu0 0.0
        %5450 = vmatprep.subr.mxu0 0.0
        %5451 = vmatpush1.msra.mxu0 0.0
        %5452 = vmatprep.subr.mxu0 0.0
        %5453 = vmatpush1.msra.mxu0 0.0
        %5454 = vmatprep.subr.mxu0 0.0
        %5455 = vmatpush1.msra.mxu0 0.0
        %5456 = vmatprep.subr.mxu0 0.0
        %5457 = vmatpush1.msra.mxu0 0.0
        %5458 = vmatprep.subr.mxu0 0.0
        %5459 = vmatpush1.msra.mxu0 0.0
        %5460 = vmatprep.subr.mxu0 0.0
        %5461 = vmatpush1.msra.mxu0 0.0
        %5462 = vmatprep.subr.mxu0 0.0
        %5463 = vmatpush1.msra.mxu0 0.0
        %5464 = vmatprep.subr.mxu0 0.0
        %5465 = vmatpush1.msra.mxu0 0.0
        %5466 = vmatprep.subr.mxu0 0.0
        %5467 = vmatpush1.msra.mxu0 0.0
        %5468 = vmatprep.subr.mxu0 0.0
        %5469 = vmatpush1.msra.mxu0 0.0
        %5470 = vmatprep.subr.mxu0 0.0
        %5471 = vmatpush1.msra.mxu0 0.0
        %5472 = vmatprep.subr.mxu0 0.0
        %5473 = vmatpush1.msra.mxu0 0.0
        %5474 = vmatprep.subr.mxu0 0.0
        %5475 = vmatpush1.msra.mxu0 0.0
        %5476 = vmatprep.subr.mxu0 0.0
        %5477 = vmatpush1.msra.mxu0 0.0
        %5478 = vmatprep.subr.mxu0 0.0
        %5479 = vmatpush1.msra.mxu0 0.0
        %5480 = vmatprep.subr.mxu0 0.0
        %5481 = vmatpush1.msra.mxu0 0.0
        %5482 = vmatprep.subr.mxu0 0.0
        %5483 = vmatpush1.msra.mxu0 0.0
        %5484 = vmatprep.subr.mxu0 0.0
        %5485 = vmatpush1.msra.mxu0 0.0
        %5486 = vmatprep.subr.mxu0 0.0
        %5487 = vmatpush1.msra.mxu0 0.0
        %5488 = vmatprep.subr.mxu0 0.0
        %5489 = vmatpush1.msra.mxu0 0.0
        %5490 = vmatprep.subr.mxu0 0.0
        %5491 = vmatpush1.msra.mxu0 0.0
        %5492 = vmatprep.subr.mxu0 0.0
        %5493 = vmatpush1.msra.mxu0 0.0
        %5494 = vmatprep.subr.mxu0 0.0
        %5495 = vmatpush1.msra.mxu0 0.0
        %5496 = vmatprep.mubr.f32.mxu0 0.0
        %5497 = vmatmul.mubr.f32.gmra.mrb[0].mxu0 %v5409
        %v5498 = vpop.f32.mrb[0].mxu0
        %v5499 = vadd.f32 0.0, %v5498
        %v5500 = vpop.f32.mrb[0].mxu0
        %v5501 = vadd.f32 0.0, %v5500
        %5502 = vmatprep.mubr.f32.mxu0 0.0
        %5503 = vmatmul.mubr.f32.gmra.mrb[0].mxu0 %v5412
        %v5504 = vpop.f32.mrb[0].mxu0
        %v5505 = vadd.f32 0.0, %v5504
        %v5506 = vpop.f32.mrb[0].mxu0
        %v5507 = vadd.f32 0.0, %v5506
        %5508 = vmatprep.mubr.f32.mxu0 0.0
        %5509 = vmatmul.mubr.f32.gmra.mrb[0].mxu0 %v5415
        %v5510 = vpop.f32.mrb[0].mxu0
        %v5511 = vadd.f32 0.0, %v5510
        %v5512 = vpop.f32.mrb[0].mxu0
        %v5513 = vadd.f32 0.0, %v5512
        %5514 = vmatprep.mubr.f32.mxu0 0.0
        %5515 = vmatmul.mubr.f32.gmra.mrb[0].mxu0 %v5418
        %v5516 = vpop.f32.mrb[0].mxu0
        %v5517 = vadd.f32 0.0, %v5516
        %v5518 = vpop.f32.mrb[0].mxu0
        %v5519 = vadd.f32 0.0, %v5518
        %5520 = vmatprep.mubr.f32.mxu0 0.0
        %5521 = vmatmul.mubr.f32.gmra.mrb[0].mxu0 %v5421
        %v5522 = vpop.f32.mrb[0].mxu0
        %v5523 = vadd.f32 0.0, %v5522
        %v5524 = vpop.f32.mrb[0].mxu0
        %v5525 = vadd.f32 0.0, %v5524
        %5526 = vmatprep.mubr.f32.mxu0 0.0
        %5527 = vmatmul.mubr.f32.gmra.mrb[0].mxu0 %v5424
        %v5528 = vpop.f32.mrb[0].mxu0
        %v5529 = vadd.f32 0.0, %v5528
        %v5530 = vpop.f32.mrb[0].mxu0
        %v5531 = vadd.f32 0.0, %v5530
        %5532 = vmatprep.mubr.f32.mxu0 0.0
        %5533 = vmatmul.mubr.f32.gmra.mrb[0].mxu0 %v5427
        %v5534 = vpop.f32.mrb[0].mxu0
        %v5535 = vadd.f32 0.0, %v5534
        %v5536 = vpop.f32.mrb[0].mxu0
        %v5537 = vadd.f32 0.0, %v5536
        %5538 = vmatprep.mubr.f32.mxu0 0.0
        %5539 = vmatmul.mubr.f32.gmra.mrb[0].mxu0 %v5430
        %v5540 = vpop.f32.mrb[0].mxu0
        %v5541 = vadd.f32 0.0, %v5540
        %v5542 = vpop.f32.mrb[0].mxu0
        %v5543 = vadd.f32 0.0, %v5542
        %5544 = vdwg.mxu0
        %v5545 = vld [vmem:[%s3 + $0x80] sm:$0xff]
        %v5546 = vld [vmem:[%s3 + $0x88] sm:$0xff]
        %v5547 = vld [vmem:[%s3 + $0x90] sm:$0xff]
        %v5548 = vld [vmem:[%s3 + $0x98] sm:$0xff]
        %v5549 = vadd.f32 %v5499, %v5545
        %v5550 = vadd.f32 %v5501, %v5546
        %v5551 = vadd.f32 %v5505, %v5547
        %v5552 = vadd.f32 %v5507, %v5548
        %v5553 = vld [vmem:[%s3 + $0xe0] sm:$0xff]
        %v5554 = vld [vmem:[%s3 + $0xe8] sm:$0xff]
        %v5555 = vld [vmem:[%s3 + $0xf0] sm:$0xff]
        %v5556 = vld [vmem:[%s3 + $0xf8] sm:$0xff]
        %v5557 = vld [vmem:[%s3 + $0x100] sm:$0xff]
        %v5558 = vld [vmem:[%s3 + $0x108] sm:$0xff]
        %v5559 = vld [vmem:[%s3 + $0x110] sm:$0xff]
        %v5560 = vld [vmem:[%s3 + $0x118] sm:$0xff]
        %v5561 = vld [vmem:[%s3 + $0x120] sm:$0xff]
        %v5562 = vld [vmem:[%s3 + $0x128] sm:$0xff]
        %v5563 = vmul.f32 %v5511, %v5529
        %v5564 = vmul.f32 %v5513, %v5531
        %v5565 = vmul.f32 %v5517, %v5535
        %v5566 = vmul.f32 %v5519, %v5537
        %v5567 = vadd.f32 %v5563, %v5565
        %v5568 = vadd.f32 %v5564, %v5566
        %v5569 = vmul.f32 %v5523, %v5541
        %v5570 = vmul.f32 %v5525, %v5543
        %v5571 = vadd.f32 %v5567, %v5569
        %v5572 = vadd.f32 %v5568, %v5570
        %v5573 = vmul.f32 %v5549, %v5551
        %v5574 = vmul.f32 %v5550, %v5552
        %v5575 = vmul.f32 %v5553, %v5573
        %v5576 = vmul.f32 %v5554, %v5574
        %v5577 = vmul.f32 %v5559, %v5571
        %v5578 = vmul.f32 %v5560, %v5572
        %v5579 = vadd.f32 %v5575, %v5577
        %v5580 = vadd.f32 %v5576, %v5578
        %v5581 = vadd.f32 %v5579, %v5060
        %v5582 = vadd.f32 %v5580, %v5062
        %v5583 = vmul.f32 %v5517, %v5541
        %v5584 = vmul.f32 %v5519, %v5543
        %v5585 = vmul.f32 %v5523, %v5535
        %v5586 = vmul.f32 %v5525, %v5537
        %v5587 = vsub.f32 %v5583, %v5585
        %v5588 = vsub.f32 %v5584, %v5586
        %v5589 = vmul.f32 %v5523, %v5529
        %v5590 = vmul.f32 %v5525, %v5531
        %v5591 = vmul.f32 %v5511, %v5541
        %v5592 = vmul.f32 %v5513, %v5543
        %v5593 = vsub.f32 %v5589, %v5591
        %v5594 = vsub.f32 %v5590, %v5592
        %v5595 = vmul.f32 %v5511, %v5535
        %v5596 = vmul.f32 %v5513, %v5537
        %v5597 = vmul.f32 %v5517, %v5529
        %v5598 = vmul.f32 %v5519, %v5531
        %v5599 = vsub.f32 %v5595, %v5597
        %v5600 = vsub.f32 %v5596, %v5598
        %v5601 = vmul.f32 %v5549, %v5529
        %v5602 = vmul.f32 %v5550, %v5531
        %v5603 = vmul.f32 %v5555, %v5601
        %v5604 = vmul.f32 %v5556, %v5602
        %v5605 = vmul.f32 %v5511, %v5551
        %v5606 = vmul.f32 %v5513, %v5552
        %v5607 = vmul.f32 %v5557, %v5605
        %v5608 = vmul.f32 %v5558, %v5606
        %v5609 = vadd.f32 %v5603, %v5607
        %v5610 = vadd.f32 %v5604, %v5608
        %v5611 = vmul.f32 %v5561, %v5587
        %v5612 = vmul.f32 %v5562, %v5588
        %v5613 = vadd.f32 %v5609, %v5611
        %v5614 = vadd.f32 %v5610, %v5612
        %v5615 = vadd.f32 %v5613, %v5066
        %v5616 = vadd.f32 %v5614, %v5068
        %v5617 = vmul.f32 %v5549, %v5535
        %v5618 = vmul.f32 %v5550, %v5537
        %v5619 = vmul.f32 %v5555, %v5617
        %v5620 = vmul.f32 %v5556, %v5618
        %v5621 = vmul.f32 %v5517, %v5551
        %v5622 = vmul.f32 %v5519, %v5552
        %v5623 = vmul.f32 %v5557, %v5621
        %v5624 = vmul.f32 %v5558, %v5622
        %v5625 = vadd.f32 %v5619, %v5623
        %v5626 = vadd.f32 %v5620, %v5624
        %v5627 = vmul.f32 %v5561, %v5593
        %v5628 = vmul.f32 %v5562, %v5594
        %v5629 = vadd.f32 %v5625, %v5627
        %v5630 = vadd.f32 %v5626, %v5628
        %v5631 = vadd.f32 %v5629, %v5072
        %v5632 = vadd.f32 %v5630, %v5074
        %v5633 = vmul.f32 %v5549, %v5541
        %v5634 = vmul.f32 %v5550, %v5543
        %v5635 = vmul.f32 %v5555, %v5633
        %v5636 = vmul.f32 %v5556, %v5634
        %v5637 = vmul.f32 %v5523, %v5551
        %v5638 = vmul.f32 %v5525, %v5552
        %v5639 = vmul.f32 %v5557, %v5637
        %v5640 = vmul.f32 %v5558, %v5638
        %v5641 = vadd.f32 %v5635, %v5639
        %v5642 = vadd.f32 %v5636, %v5640
        %v5643 = vmul.f32 %v5561, %v5599
        %v5644 = vmul.f32 %v5562, %v5600
        %v5645 = vadd.f32 %v5641, %v5643
        %v5646 = vadd.f32 %v5642, %v5644
        %v5647 = vadd.f32 %v5645, %v5078
        %v5648 = vadd.f32 %v5646, %v5080
        %v5649 = vmul.f32 %v5615, %v5615
        %v5650 = vmul.f32 %v5616, %v5616
        %v5651 = vmul.f32 %v5631, %v5631
        %v5652 = vmul.f32 %v5632, %v5632
        %v5653 = vadd.f32 %v5649, %v5651
        %v5654 = vadd.f32 %v5650, %v5652
        %v5655 = vmul.f32 %v5647, %v5647
        %v5656 = vmul.f32 %v5648, %v5648
        %v5657 = vadd.f32 %v5653, %v5655
        %v5658 = vadd.f32 %v5654, %v5656
        %v5659 = vrsqrt.pop %v5657
        %v5660 = vmul.f32 %v5657, %v5659
        %vm5661 = vcmp.eq.f32.partialorder %v5657, inf
        %v5662 = vsel %vm5661, %v5657, %v5660
        %vm5663 = vcmp.eq.f32.partialorder %v5657, 0.0
        %v5664 = vand.u32 %v5657, 2147483648
        %v5665 = vsel %vm5663, %v5664, %v5662
        %v5666 = vrsqrt.pop %v5658
        %v5667 = vmul.f32 %v5658, %v5666
        %vm5668 = vcmp.eq.f32.partialorder %v5658, inf
        %v5669 = vsel %vm5668, %v5658, %v5667
        %vm5670 = vcmp.eq.f32.partialorder %v5658, 0.0
        %v5671 = vand.u32 %v5658, 2147483648
        %v5672 = vsel %vm5670, %v5671, %v5669
        %v5673 = vld [vmem:[%s2 + $0x60] sm:$0xff]
        %v5674 = vld [vmem:[%s2 + $0x68] sm:$0xff]
        %v5675 = vld [vmem:[%s3 + $0xa0] sm:$0xff]
        %v5676 = vld [vmem:[%s3 + $0xa8] sm:$0xff]
        %v5677 = vld [vmem:[%s3 + $0xb0] sm:$0xff]
        %v5678 = vld [vmem:[%s3 + $0xb8] sm:$0xff]
        %v5680 = vsel %vm531, %v5673, 0
        %v5683 = vsel %vm531, %v5674, 0
        %5685 = vmatprep.subr.mxu0 %v5582
        %5686 = vmatpush1.msra.mxu0 %v5581
        %5687 = vmatprep.subr.mxu0 %v5672
        %5688 = vmatpush1.msra.mxu0 %v5665
        %5689 = vmatprep.subr.mxu0 0.0
        %5690 = vmatpush1.msra.mxu0 0.0
        %5691 = vmatprep.subr.mxu0 0.0
        %5692 = vmatpush1.msra.mxu0 0.0
        %5693 = vmatprep.subr.mxu0 0.0
        %5694 = vmatpush1.msra.mxu0 0.0
        %5695 = vmatprep.subr.mxu0 0.0
        %5696 = vmatpush1.msra.mxu0 0.0
        %5697 = vmatprep.subr.mxu0 0.0
        %5698 = vmatpush1.msra.mxu0 0.0
        %5699 = vmatprep.subr.mxu0 0.0
        %5700 = vmatpush1.msra.mxu0 0.0
        %5701 = vmatprep.subr.mxu0 0.0
        %5702 = vmatpush1.msra.mxu0 0.0
        %5703 = vmatprep.subr.mxu0 0.0
        %5704 = vmatpush1.msra.mxu0 0.0
        %5705 = vmatprep.subr.mxu0 0.0
        %5706 = vmatpush1.msra.mxu0 0.0
        %5707 = vmatprep.subr.mxu0 0.0
        %5708 = vmatpush1.msra.mxu0 0.0
        %5709 = vmatprep.subr.mxu0 0.0
        %5710 = vmatpush1.msra.mxu0 0.0
        %5711 = vmatprep.subr.mxu0 0.0
        %5712 = vmatpush1.msra.mxu0 0.0
        %5713 = vmatprep.subr.mxu0 0.0
        %5714 = vmatpush1.msra.mxu0 0.0
        %5715 = vmatprep.subr.mxu0 0.0
        %5716 = vmatpush1.msra.mxu0 0.0
        %5717 = vmatprep.subr.mxu0 0.0
        %5718 = vmatpush1.msra.mxu0 0.0
        %5719 = vmatprep.subr.mxu0 0.0
        %5720 = vmatpush1.msra.mxu0 0.0
        %5721 = vmatprep.subr.mxu0 0.0
        %5722 = vmatpush1.msra.mxu0 0.0
        %5723 = vmatprep.subr.mxu0 0.0
        %5724 = vmatpush1.msra.mxu0 0.0
        %5725 = vmatprep.subr.mxu0 0.0
        %5726 = vmatpush1.msra.mxu0 0.0
        %5727 = vmatprep.subr.mxu0 0.0
        %5728 = vmatpush1.msra.mxu0 0.0
        %5729 = vmatprep.subr.mxu0 0.0
        %5730 = vmatpush1.msra.mxu0 0.0
        %5731 = vmatprep.subr.mxu0 0.0
        %5732 = vmatpush1.msra.mxu0 0.0
        %5733 = vmatprep.subr.mxu0 0.0
        %5734 = vmatpush1.msra.mxu0 0.0
        %5735 = vmatprep.subr.mxu0 0.0
        %5736 = vmatpush1.msra.mxu0 0.0
        %5737 = vmatprep.subr.mxu0 0.0
        %5738 = vmatpush1.msra.mxu0 0.0
        %5739 = vmatprep.subr.mxu0 0.0
        %5740 = vmatpush1.msra.mxu0 0.0
        %5741 = vmatprep.subr.mxu0 0.0
        %5742 = vmatpush1.msra.mxu0 0.0
        %5743 = vmatprep.subr.mxu0 0.0
        %5744 = vmatpush1.msra.mxu0 0.0
        %5745 = vmatprep.subr.mxu0 0.0
        %5746 = vmatpush1.msra.mxu0 0.0
        %5747 = vmatprep.subr.mxu0 0.0
        %5748 = vmatpush1.msra.mxu0 0.0
        %5749 = vmatprep.mubr.f32.mxu0 0.0
        %5750 = vmatmul.mubr.f32.gmra.mrb[0].mxu0 %v5680
        %v5751 = vpop.f32.mrb[0].mxu0
        %v5752 = vadd.f32 %v5675, %v5751
        %v5753 = vpop.f32.mrb[0].mxu0
        %v5754 = vadd.f32 %v5676, %v5753
        %5755 = vmatprep.mubr.f32.mxu0 0.0
        %5756 = vmatmul.mubr.f32.gmra.mrb[0].mxu0 %v5683
        %v5757 = vpop.f32.mrb[0].mxu0
        %v5758 = vadd.f32 %v5677, %v5757
        %v5759 = vpop.f32.mrb[0].mxu0
        %v5760 = vadd.f32 %v5678, %v5759
        %5761 = vdwg.mxu0
        %v5762 = vxor.u32 %v5752, 2147483648
        %v5763 = vxor.u32 %v5754, 2147483648
        %v5764 = vxor.u32 %v5758, 2147483648
        %v5765 = vxor.u32 %v5760, 2147483648
        %v5766 = vmul.f32 %v5762, 1.442695
        %v5767 = vpow.pop %v5766
        %v5768 = vmul.f32 %v5763, 1.442695
        %v5769 = vpow.pop %v5768
        %v5770 = vmul.f32 %v5764, 1.442695
        %v5771 = vpow.pop %v5770
        %v5772 = vmul.f32 %v5765, 1.442695
        %v5773 = vpow.pop %v5772
        %v5774 = vadd.f32 %v5767, 1.0
        %v5775 = vadd.f32 %v5769, 1.0
        %v5776 = vadd.f32 %v5771, 1.0
        %v5777 = vadd.f32 %v5773, 1.0
        %v5778 = vrcp.pop %v5774
        %v5779 = vmul.f32 1.0, %v5778
        %v5780 = vrcp.pop %v5775
        %v5781 = vmul.f32 1.0, %v5780
        %v5782 = vrcp.pop %v5776
        %v5783 = vmul.f32 1.0, %v5782
        %v5784 = vrcp.pop %v5777
        %v5785 = vmul.f32 1.0, %v5784
        %v5786 = vmul.f32 %v5752, %v5779
        %v5787 = vmul.f32 %v5754, %v5781
        %v5788 = vmul.f32 %v5758, %v5783
        %v5789 = vmul.f32 %v5760, %v5785
        %v5790 = vld [vmem:[%s2 + $0x70] sm:$0xff]
        %v5791 = vld [vmem:[%s2 + $0x78] sm:$0xff]
        %v5792 = vld [vmem:[%s3 + $0xc0] sm:$0xff]
        %v5793 = vld [vmem:[%s3 + $0xc8] sm:$0xff]
        %v5794 = vld [vmem:[%s3 + $0xd0] sm:$0xff]
        %v5795 = vld [vmem:[%s3 + $0xd8] sm:$0xff]
        %v5797 = vsel %vm531, %v5790, 0
        %v5800 = vsel %vm531, %v5791, 0
        %5802 = vmatprep.subr.mxu0 %v5787
        %5803 = vmatpush1.msra.mxu0 %v5786
        %5804 = vmatprep.subr.mxu0 %v5789
        %5805 = vmatpush1.msra.mxu0 %v5788
        %5806 = vmatprep.subr.mxu0 0.0
        %5807 = vmatpush1.msra.mxu0 0.0
        %5808 = vmatprep.subr.mxu0 0.0
        %5809 = vmatpush1.msra.mxu0 0.0
        %5810 = vmatprep.subr.mxu0 0.0
        %5811 = vmatpush1.msra.mxu0 0.0
        %5812 = vmatprep.subr.mxu0 0.0
        %5813 = vmatpush1.msra.mxu0 0.0
        %5814 = vmatprep.subr.mxu0 0.0
        %5815 = vmatpush1.msra.mxu0 0.0
        %5816 = vmatprep.subr.mxu0 0.0
        %5817 = vmatpush1.msra.mxu0 0.0
        %5818 = vmatprep.subr.mxu0 0.0
        %5819 = vmatpush1.msra.mxu0 0.0
        %5820 = vmatprep.subr.mxu0 0.0
        %5821 = vmatpush1.msra.mxu0 0.0
        %5822 = vmatprep.subr.mxu0 0.0
        %5823 = vmatpush1.msra.mxu0 0.0
        %5824 = vmatprep.subr.mxu0 0.0
        %5825 = vmatpush1.msra.mxu0 0.0
        %5826 = vmatprep.subr.mxu0 0.0
        %5827 = vmatpush1.msra.mxu0 0.0
        %5828 = vmatprep.subr.mxu0 0.0
        %5829 = vmatpush1.msra.mxu0 0.0
        %5830 = vmatprep.subr.mxu0 0.0
        %5831 = vmatpush1.msra.mxu0 0.0
        %5832 = vmatprep.subr.mxu0 0.0
        %5833 = vmatpush1.msra.mxu0 0.0
        %5834 = vmatprep.subr.mxu0 0.0
        %5835 = vmatpush1.msra.mxu0 0.0
        %5836 = vmatprep.subr.mxu0 0.0
        %5837 = vmatpush1.msra.mxu0 0.0
        %5838 = vmatprep.subr.mxu0 0.0
        %5839 = vmatpush1.msra.mxu0 0.0
        %5840 = vmatprep.subr.mxu0 0.0
        %5841 = vmatpush1.msra.mxu0 0.0
        %5842 = vmatprep.subr.mxu0 0.0
        %5843 = vmatpush1.msra.mxu0 0.0
        %5844 = vmatprep.subr.mxu0 0.0
        %5845 = vmatpush1.msra.mxu0 0.0
        %5846 = vmatprep.subr.mxu0 0.0
        %5847 = vmatpush1.msra.mxu0 0.0
        %5848 = vmatprep.subr.mxu0 0.0
        %5849 = vmatpush1.msra.mxu0 0.0
        %5850 = vmatprep.subr.mxu0 0.0
        %5851 = vmatpush1.msra.mxu0 0.0
        %5852 = vmatprep.subr.mxu0 0.0
        %5853 = vmatpush1.msra.mxu0 0.0
        %5854 = vmatprep.subr.mxu0 0.0
        %5855 = vmatpush1.msra.mxu0 0.0
        %5856 = vmatprep.subr.mxu0 0.0
        %5857 = vmatpush1.msra.mxu0 0.0
        %5858 = vmatprep.subr.mxu0 0.0
        %5859 = vmatpush1.msra.mxu0 0.0
        %5860 = vmatprep.subr.mxu0 0.0
        %5861 = vmatpush1.msra.mxu0 0.0
        %5862 = vmatprep.subr.mxu0 0.0
        %5863 = vmatpush1.msra.mxu0 0.0
        %5864 = vmatprep.subr.mxu0 0.0
        %5865 = vmatpush1.msra.mxu0 0.0
        %5866 = vmatprep.mubr.f32.mxu0 0.0
        %5867 = vmatmul.mubr.f32.gmra.mrb[0].mxu0 %v5797
        %v5868 = vpop.f32.mrb[0].mxu0
        %v5869 = vadd.f32 %v5792, %v5868
        %v5870 = vpop.f32.mrb[0].mxu0
        %v5871 = vadd.f32 %v5793, %v5870
        %5872 = vmatprep.mubr.f32.mxu0 0.0
        %5873 = vmatmul.mubr.f32.gmra.mrb[0].mxu0 %v5800
        %v5874 = vpop.f32.mrb[0].mxu0
        %v5875 = vadd.f32 %v5794, %v5874
        %v5876 = vpop.f32.mrb[0].mxu0
        %v5877 = vadd.f32 %v5795, %v5876
        %5878 = vdwg.mxu0
        %v5879 = vmul.f32 %v5615, %v5875
        %v5880 = vmul.f32 %v5616, %v5877
        %v5881 = vmul.f32 %v5631, %v5875
        %v5882 = vmul.f32 %v5632, %v5877
        %v5883 = vmul.f32 %v5647, %v5875
        %v5884 = vmul.f32 %v5648, %v5877
        %v5885 = vld [vmem:[%s2 + $0xc0] sm:$0xff]
        %v5886 = vld [vmem:[%s2 + $0xc8] sm:$0xff]
        %v5887 = vld [vmem:[%s2 + $0xd0] sm:$0xff]
        %v5888 = vld [vmem:[%s2 + $0xd8] sm:$0xff]
        %v5889 = vld [vmem:[%s2 + $0xe0] sm:$0x1]
        %s5890 = scalar_lea.vmem %s250, 768
        %v5891 = vld [vmem:[%s5890] sm:$0xff]
        %v5892 = vld [vmem:[%s5890 + $0x8] sm:$0xff]
        %v5893 = vld [vmem:[%s5890 + $0x10] sm:$0xff]
        %v5894 = vld [vmem:[%s5890 + $0x18] sm:$0xff]
        %v5895 = vld [vmem:[%s5890 + $0x20] sm:$0xff]
        %v5896 = vld [vmem:[%s5890 + $0x28] sm:$0xff]
        %v5897 = vld [vmem:[%s5890 + $0x30] sm:$0xff]
        %v5898 = vld [vmem:[%s5890 + $0x38] sm:$0xff]
        %v5899 = vld [vmem:[%s5890 + $0x40] sm:$0xff]
        %v5900 = vld [vmem:[%s5890 + $0x48] sm:$0xff]
        %v5901 = vld [vmem:[%s5890 + $0x50] sm:$0xff]
        %v5902 = vld [vmem:[%s5890 + $0x58] sm:$0xff]
        %v5903 = vld [vmem:[%s5890 + $0x60] sm:$0xff]
        %v5904 = vld [vmem:[%s5890 + $0x68] sm:$0xff]
        %v5905 = vld [vmem:[%s5890 + $0x70] sm:$0xff]
        %v5906 = vld [vmem:[%s5890 + $0x78] sm:$0xff]
        %v5907 = vld [vmem:[%s5890 + $0x80] sm:$0xff]
        %v5908 = vld [vmem:[%s5890 + $0x88] sm:$0xff]
        %v5909 = vld [vmem:[%s5890 + $0x90] sm:$0xff]
        %v5910 = vld [vmem:[%s5890 + $0x98] sm:$0xff]
        %v5911 = vld [vmem:[%s5890 + $0xa0] sm:$0xff]
        %v5912 = vld [vmem:[%s5890 + $0xa8] sm:$0xff]
        %v5913 = vld [vmem:[%s5890 + $0xb0] sm:$0xff]
        %v5914 = vld [vmem:[%s5890 + $0xb8] sm:$0xff]
        %v5915 = vld [vmem:[%s5890 + $0xc0] sm:$0xff]
        %v5916 = vld [vmem:[%s5890 + $0xc8] sm:$0xff]
        %v5917 = vld [vmem:[%s5890 + $0xd0] sm:$0xff]
        %v5918 = vld [vmem:[%s5890 + $0xd8] sm:$0xff]
        %v5919 = vld [vmem:[%s5890 + $0xe0] sm:$0xff]
        %v5920 = vld [vmem:[%s5890 + $0xe8] sm:$0xff]
        %v5921 = vld [vmem:[%s5890 + $0xf0] sm:$0xff]
        %v5922 = vld [vmem:[%s5890 + $0xf8] sm:$0xff]
        %v5923 = vlaneseq
        %v5924 = vshrl.u32 %v5923, 7
        %v5925 = vsub.s32 0, %v5924
        %v5926 = vrot.slane %v5889, %v5925
        %5927 = vxpose.xlu0.b32.start [1/16] %v5869, 128
        %5928 = vxpose.xlu0.b32.cont [2/16] %v5879, 128
        %5929 = vxpose.xlu0.b32.cont [3/16] %v5881, 128
        %5930 = vxpose.xlu0.b32.cont [4/16] %v5883, 128
        %5931 = vxpose.xlu0.b32.cont [5/16] 0.0, 128
        %5932 = vxpose.xlu0.b32.cont [6/16] 0.0, 128
        %5933 = vxpose.xlu0.b32.cont [7/16] 0.0, 128
        %5934 = vxpose.xlu0.b32.cont [8/16] 0.0, 128
        %5935 = vxpose.xlu0.b32.cont [9/16] 0.0, 128
        %5936 = vxpose.xlu0.b32.cont [10/16] 0.0, 128
        %5937 = vxpose.xlu0.b32.cont [11/16] 0.0, 128
        %5938 = vxpose.xlu0.b32.cont [12/16] 0.0, 128
        %5939 = vxpose.xlu0.b32.cont [13/16] 0.0, 128
        %5940 = vxpose.xlu0.b32.cont [14/16] 0.0, 128
        %5941 = vxpose.xlu0.b32.cont [15/16] 0.0, 128
        %5942 = vxpose.xlu0.b32.end [16/16] 0.0, 128
        %v5943 = vpop.trf.xlu0
        %v5944 = vpop.trf.xlu0
        %v5945 = vpop.trf.xlu0
        %v5946 = vpop.trf.xlu0
        %v5947 = vpop.trf.xlu0
        %v5948 = vpop.trf.xlu0
        %v5949 = vpop.trf.xlu0
        %v5950 = vpop.trf.xlu0
        %v5951 = vpop.trf.xlu0
        %v5952 = vpop.trf.xlu0
        %v5953 = vpop.trf.xlu0
        %v5954 = vpop.trf.xlu0
        %v5955 = vpop.trf.xlu0
        %v5956 = vpop.trf.xlu0
        %v5957 = vpop.trf.xlu0
        %v5958 = vpop.trf.xlu0
        %5959 = vxpose.xlu0.b32.start [1/16] %v5871, 128
        %5960 = vxpose.xlu0.b32.cont [2/16] %v5880, 128
        %5961 = vxpose.xlu0.b32.cont [3/16] %v5882, 128
        %5962 = vxpose.xlu0.b32.cont [4/16] %v5884, 128
        %5963 = vxpose.xlu0.b32.cont [5/16] 0.0, 128
        %5964 = vxpose.xlu0.b32.cont [6/16] 0.0, 128
        %5965 = vxpose.xlu0.b32.cont [7/16] 0.0, 128
        %5966 = vxpose.xlu0.b32.cont [8/16] 0.0, 128
        %5967 = vxpose.xlu0.b32.cont [9/16] 0.0, 128
        %5968 = vxpose.xlu0.b32.cont [10/16] 0.0, 128
        %5969 = vxpose.xlu0.b32.cont [11/16] 0.0, 128
        %5970 = vxpose.xlu0.b32.cont [12/16] 0.0, 128
        %5971 = vxpose.xlu0.b32.cont [13/16] 0.0, 128
        %5972 = vxpose.xlu0.b32.cont [14/16] 0.0, 128
        %5973 = vxpose.xlu0.b32.cont [15/16] 0.0, 128
        %5974 = vxpose.xlu0.b32.end [16/16] 0.0, 128
        %v5975 = vpop.trf.xlu0
        %v5976 = vpop.trf.xlu0
        %v5977 = vpop.trf.xlu0
        %v5978 = vpop.trf.xlu0
        %v5979 = vpop.trf.xlu0
        %v5980 = vpop.trf.xlu0
        %v5981 = vpop.trf.xlu0
        %v5982 = vpop.trf.xlu0
        %v5983 = vpop.trf.xlu0
        %v5984 = vpop.trf.xlu0
        %v5985 = vpop.trf.xlu0
        %v5986 = vpop.trf.xlu0
        %v5987 = vpop.trf.xlu0
        %v5988 = vpop.trf.xlu0
        %v5989 = vpop.trf.xlu0
        %v5990 = vpop.trf.xlu0
        %v5992 = vsel %vm297, %v5943, 0
        %v5995 = vsel %vm297, %v5944, 0
        %v5998 = vsel %vm297, %v5945, 0
        %v6001 = vsel %vm297, %v5946, 0
        %v6004 = vsel %vm297, %v5947, 0
        %v6007 = vsel %vm297, %v5948, 0
        %v6010 = vsel %vm297, %v5949, 0
        %v6013 = vsel %vm297, %v5950, 0
        %v6016 = vsel %vm297, %v5951, 0
        %v6019 = vsel %vm297, %v5952, 0
        %v6022 = vsel %vm297, %v5953, 0
        %v6025 = vsel %vm297, %v5954, 0
        %v6028 = vsel %vm297, %v5955, 0
        %v6031 = vsel %vm297, %v5956, 0
        %v6034 = vsel %vm297, %v5957, 0
        %v6037 = vsel %vm297, %v5958, 0
        %v6040 = vsel %vm297, %v5975, 0
        %v6043 = vsel %vm297, %v5976, 0
        %v6046 = vsel %vm297, %v5977, 0
        %v6049 = vsel %vm297, %v5978, 0
        %v6052 = vsel %vm297, %v5979, 0
        %v6055 = vsel %vm297, %v5980, 0
        %v6058 = vsel %vm297, %v5981, 0
        %v6061 = vsel %vm297, %v5982, 0
        %v6064 = vsel %vm297, %v5983, 0
        %v6067 = vsel %vm297, %v5984, 0
        %v6070 = vsel %vm297, %v5985, 0
        %v6073 = vsel %vm297, %v5986, 0
        %v6076 = vsel %vm297, %v5987, 0
        %v6079 = vsel %vm297, %v5988, 0
        %v6082 = vsel %vm297, %v5989, 0
        %v6085 = vsel %vm297, %v5990, 0
        %6087 = vmatprep.subr.mxu0 0.0
        %6088 = vmatpush1.msra.mxu0 %v5885
        %6089 = vmatprep.subr.mxu0 0.0
        %6090 = vmatpush1.msra.mxu0 %v5886
        %6091 = vmatprep.subr.mxu0 0.0
        %6092 = vmatpush1.msra.mxu0 %v5887
        %6093 = vmatprep.subr.mxu0 0.0
        %6094 = vmatpush1.msra.mxu0 %v5888
        %6095 = vmatprep.subr.mxu0 0.0
        %6096 = vmatpush1.msra.mxu0 0.0
        %6097 = vmatprep.subr.mxu0 0.0
        %6098 = vmatpush1.msra.mxu0 0.0
        %6099 = vmatprep.subr.mxu0 0.0
        %6100 = vmatpush1.msra.mxu0 0.0
        %6101 = vmatprep.subr.mxu0 0.0
        %6102 = vmatpush1.msra.mxu0 0.0
        %6103 = vmatprep.subr.mxu0 0.0
        %6104 = vmatpush1.msra.mxu0 0.0
        %6105 = vmatprep.subr.mxu0 0.0
        %6106 = vmatpush1.msra.mxu0 0.0
        %6107 = vmatprep.subr.mxu0 0.0
        %6108 = vmatpush1.msra.mxu0 0.0
        %6109 = vmatprep.subr.mxu0 0.0
        %6110 = vmatpush1.msra.mxu0 0.0
        %6111 = vmatprep.subr.mxu0 0.0
        %6112 = vmatpush1.msra.mxu0 0.0
        %6113 = vmatprep.subr.mxu0 0.0
        %6114 = vmatpush1.msra.mxu0 0.0
        %6115 = vmatprep.subr.mxu0 0.0
        %6116 = vmatpush1.msra.mxu0 0.0
        %6117 = vmatprep.subr.mxu0 0.0
        %6118 = vmatpush1.msra.mxu0 0.0
        %6119 = vmatprep.subr.mxu0 0.0
        %6120 = vmatpush1.msra.mxu0 0.0
        %6121 = vmatprep.subr.mxu0 0.0
        %6122 = vmatpush1.msra.mxu0 0.0
        %6123 = vmatprep.subr.mxu0 0.0
        %6124 = vmatpush1.msra.mxu0 0.0
        %6125 = vmatprep.subr.mxu0 0.0
        %6126 = vmatpush1.msra.mxu0 0.0
        %6127 = vmatprep.subr.mxu0 0.0
        %6128 = vmatpush1.msra.mxu0 0.0
        %6129 = vmatprep.subr.mxu0 0.0
        %6130 = vmatpush1.msra.mxu0 0.0
        %6131 = vmatprep.subr.mxu0 0.0
        %6132 = vmatpush1.msra.mxu0 0.0
        %6133 = vmatprep.subr.mxu0 0.0
        %6134 = vmatpush1.msra.mxu0 0.0
        %6135 = vmatprep.subr.mxu0 0.0
        %6136 = vmatpush1.msra.mxu0 0.0
        %6137 = vmatprep.subr.mxu0 0.0
        %6138 = vmatpush1.msra.mxu0 0.0
        %6139 = vmatprep.subr.mxu0 0.0
        %6140 = vmatpush1.msra.mxu0 0.0
        %6141 = vmatprep.subr.mxu0 0.0
        %6142 = vmatpush1.msra.mxu0 0.0
        %6143 = vmatprep.subr.mxu0 0.0
        %6144 = vmatpush1.msra.mxu0 0.0
        %6145 = vmatprep.subr.mxu0 0.0
        %6146 = vmatpush1.msra.mxu0 0.0
        %6147 = vmatprep.subr.mxu0 0.0
        %6148 = vmatpush1.msra.mxu0 0.0
        %6149 = vmatprep.subr.mxu0 0.0
        %6150 = vmatpush1.msra.mxu0 0.0
        %6151 = vmatprep.mubr.f32.mxu0 0.0
        %6152 = vmatmul.mubr.f32.gmra.mrb[0].mxu0 %v5992
        %v6153 = vpop.f32.mrb[0].mxu0
        %v6154 = vadd.f32 %v5926, %v6153
        %v6155 = vpop.f32.mrb[0].mxu0
        %6156 = vmatprep.mubr.f32.mxu0 0.0
        %6157 = vmatmul.mubr.f32.gmra.mrb[0].mxu0 %v5995
        %v6158 = vpop.f32.mrb[0].mxu0
        %v6159 = vadd.f32 %v5926, %v6158
        %v6160 = vpop.f32.mrb[0].mxu0
        %6161 = vmatprep.mubr.f32.mxu0 0.0
        %6162 = vmatmul.mubr.f32.gmra.mrb[0].mxu0 %v5998
        %v6163 = vpop.f32.mrb[0].mxu0
        %v6164 = vadd.f32 %v5926, %v6163
        %v6165 = vpop.f32.mrb[0].mxu0
        %6166 = vmatprep.mubr.f32.mxu0 0.0
        %6167 = vmatmul.mubr.f32.gmra.mrb[0].mxu0 %v6001
        %v6168 = vpop.f32.mrb[0].mxu0
        %v6169 = vadd.f32 %v5926, %v6168
        %v6170 = vpop.f32.mrb[0].mxu0
        %6171 = vmatprep.mubr.f32.mxu0 0.0
        %6172 = vmatmul.mubr.f32.gmra.mrb[0].mxu0 %v6004
        %v6173 = vpop.f32.mrb[0].mxu0
        %v6174 = vadd.f32 %v5926, %v6173
        %v6175 = vpop.f32.mrb[0].mxu0
        %6176 = vmatprep.mubr.f32.mxu0 0.0
        %6177 = vmatmul.mubr.f32.gmra.mrb[0].mxu0 %v6007
        %v6178 = vpop.f32.mrb[0].mxu0
        %v6179 = vadd.f32 %v5926, %v6178
        %v6180 = vpop.f32.mrb[0].mxu0
        %6181 = vmatprep.mubr.f32.mxu0 0.0
        %6182 = vmatmul.mubr.f32.gmra.mrb[0].mxu0 %v6010
        %v6183 = vpop.f32.mrb[0].mxu0
        %v6184 = vadd.f32 %v5926, %v6183
        %v6185 = vpop.f32.mrb[0].mxu0
        %6186 = vmatprep.mubr.f32.mxu0 0.0
        %6187 = vmatmul.mubr.f32.gmra.mrb[0].mxu0 %v6013
        %v6188 = vpop.f32.mrb[0].mxu0
        %v6189 = vadd.f32 %v5926, %v6188
        %v6190 = vpop.f32.mrb[0].mxu0
        %6191 = vmatprep.mubr.f32.mxu0 0.0
        %6192 = vmatmul.mubr.f32.gmra.mrb[0].mxu0 %v6016
        %v6193 = vpop.f32.mrb[0].mxu0
        %v6194 = vadd.f32 %v5926, %v6193
        %v6195 = vpop.f32.mrb[0].mxu0
        %6196 = vmatprep.mubr.f32.mxu0 0.0
        %6197 = vmatmul.mubr.f32.gmra.mrb[0].mxu0 %v6019
        %v6198 = vpop.f32.mrb[0].mxu0
        %v6199 = vadd.f32 %v5926, %v6198
        %v6200 = vpop.f32.mrb[0].mxu0
        %6201 = vmatprep.mubr.f32.mxu0 0.0
        %6202 = vmatmul.mubr.f32.gmra.mrb[0].mxu0 %v6022
        %v6203 = vpop.f32.mrb[0].mxu0
        %v6204 = vadd.f32 %v5926, %v6203
        %v6205 = vpop.f32.mrb[0].mxu0
        %6206 = vmatprep.mubr.f32.mxu0 0.0
        %6207 = vmatmul.mubr.f32.gmra.mrb[0].mxu0 %v6025
        %v6208 = vpop.f32.mrb[0].mxu0
        %v6209 = vadd.f32 %v5926, %v6208
        %v6210 = vpop.f32.mrb[0].mxu0
        %6211 = vmatprep.mubr.f32.mxu0 0.0
        %6212 = vmatmul.mubr.f32.gmra.mrb[0].mxu0 %v6028
        %v6213 = vpop.f32.mrb[0].mxu0
        %v6214 = vadd.f32 %v5926, %v6213
        %v6215 = vpop.f32.mrb[0].mxu0
        %6216 = vmatprep.mubr.f32.mxu0 0.0
        %6217 = vmatmul.mubr.f32.gmra.mrb[0].mxu0 %v6031
        %v6218 = vpop.f32.mrb[0].mxu0
        %v6219 = vadd.f32 %v5926, %v6218
        %v6220 = vpop.f32.mrb[0].mxu0
        %6221 = vmatprep.mubr.f32.mxu0 0.0
        %6222 = vmatmul.mubr.f32.gmra.mrb[0].mxu0 %v6034
        %v6223 = vpop.f32.mrb[0].mxu0
        %v6224 = vadd.f32 %v5926, %v6223
        %v6225 = vpop.f32.mrb[0].mxu0
        %6226 = vmatprep.mubr.f32.mxu0 0.0
        %6227 = vmatmul.mubr.f32.gmra.mrb[0].mxu0 %v6037
        %v6228 = vpop.f32.mrb[0].mxu0
        %v6229 = vadd.f32 %v5926, %v6228
        %v6230 = vpop.f32.mrb[0].mxu0
        %6231 = vmatprep.mubr.f32.mxu0 0.0
        %6232 = vmatmul.mubr.f32.gmra.mrb[0].mxu0 %v6040
        %v6233 = vpop.f32.mrb[0].mxu0
        %v6234 = vadd.f32 %v5926, %v6233
        %v6235 = vpop.f32.mrb[0].mxu0
        %6236 = vmatprep.mubr.f32.mxu0 0.0
        %6237 = vmatmul.mubr.f32.gmra.mrb[0].mxu0 %v6043
        %v6238 = vpop.f32.mrb[0].mxu0
        %v6239 = vadd.f32 %v5926, %v6238
        %v6240 = vpop.f32.mrb[0].mxu0
        %6241 = vmatprep.mubr.f32.mxu0 0.0
        %6242 = vmatmul.mubr.f32.gmra.mrb[0].mxu0 %v6046
        %v6243 = vpop.f32.mrb[0].mxu0
        %v6244 = vadd.f32 %v5926, %v6243
        %v6245 = vpop.f32.mrb[0].mxu0
        %6246 = vmatprep.mubr.f32.mxu0 0.0
        %6247 = vmatmul.mubr.f32.gmra.mrb[0].mxu0 %v6049
        %v6248 = vpop.f32.mrb[0].mxu0
        %v6249 = vadd.f32 %v5926, %v6248
        %v6250 = vpop.f32.mrb[0].mxu0
        %6251 = vmatprep.mubr.f32.mxu0 0.0
        %6252 = vmatmul.mubr.f32.gmra.mrb[0].mxu0 %v6052
        %v6253 = vpop.f32.mrb[0].mxu0
        %v6254 = vadd.f32 %v5926, %v6253
        %v6255 = vpop.f32.mrb[0].mxu0
        %6256 = vmatprep.mubr.f32.mxu0 0.0
        %6257 = vmatmul.mubr.f32.gmra.mrb[0].mxu0 %v6055
        %v6258 = vpop.f32.mrb[0].mxu0
        %v6259 = vadd.f32 %v5926, %v6258
        %v6260 = vpop.f32.mrb[0].mxu0
        %6261 = vmatprep.mubr.f32.mxu0 0.0
        %6262 = vmatmul.mubr.f32.gmra.mrb[0].mxu0 %v6058
        %v6263 = vpop.f32.mrb[0].mxu0
        %v6264 = vadd.f32 %v5926, %v6263
        %v6265 = vpop.f32.mrb[0].mxu0
        %6266 = vmatprep.mubr.f32.mxu0 0.0
        %6267 = vmatmul.mubr.f32.gmra.mrb[0].mxu0 %v6061
        %v6268 = vpop.f32.mrb[0].mxu0
        %v6269 = vadd.f32 %v5926, %v6268
        %v6270 = vpop.f32.mrb[0].mxu0
        %6271 = vmatprep.mubr.f32.mxu0 0.0
        %6272 = vmatmul.mubr.f32.gmra.mrb[0].mxu0 %v6064
        %v6273 = vpop.f32.mrb[0].mxu0
        %v6274 = vadd.f32 %v5926, %v6273
        %v6275 = vpop.f32.mrb[0].mxu0
        %6276 = vmatprep.mubr.f32.mxu0 0.0
        %6277 = vmatmul.mubr.f32.gmra.mrb[0].mxu0 %v6067
        %v6278 = vpop.f32.mrb[0].mxu0
        %v6279 = vadd.f32 %v5926, %v6278
        %v6280 = vpop.f32.mrb[0].mxu0
        %6281 = vmatprep.mubr.f32.mxu0 0.0
        %6282 = vmatmul.mubr.f32.gmra.mrb[0].mxu0 %v6070
        %v6283 = vpop.f32.mrb[0].mxu0
        %v6284 = vadd.f32 %v5926, %v6283
        %v6285 = vpop.f32.mrb[0].mxu0
        %6286 = vmatprep.mubr.f32.mxu0 0.0
        %6287 = vmatmul.mubr.f32.gmra.mrb[0].mxu0 %v6073
        %v6288 = vpop.f32.mrb[0].mxu0
        %v6289 = vadd.f32 %v5926, %v6288
        %v6290 = vpop.f32.mrb[0].mxu0
        %6291 = vmatprep.mubr.f32.mxu0 0.0
        %6292 = vmatmul.mubr.f32.gmra.mrb[0].mxu0 %v6076
        %v6293 = vpop.f32.mrb[0].mxu0
        %v6294 = vadd.f32 %v5926, %v6293
        %v6295 = vpop.f32.mrb[0].mxu0
        %6296 = vmatprep.mubr.f32.mxu0 0.0
        %6297 = vmatmul.mubr.f32.gmra.mrb[0].mxu0 %v6079
        %v6298 = vpop.f32.mrb[0].mxu0
        %v6299 = vadd.f32 %v5926, %v6298
        %v6300 = vpop.f32.mrb[0].mxu0
        %6301 = vmatprep.mubr.f32.mxu0 0.0
        %6302 = vmatmul.mubr.f32.gmra.mrb[0].mxu0 %v6082
        %v6303 = vpop.f32.mrb[0].mxu0
        %v6304 = vadd.f32 %v5926, %v6303
        %v6305 = vpop.f32.mrb[0].mxu0
        %6306 = vmatprep.mubr.f32.mxu0 0.0
        %6307 = vmatmul.mubr.f32.gmra.mrb[0].mxu0 %v6085
        %v6308 = vpop.f32.mrb[0].mxu0
        %v6309 = vadd.f32 %v5926, %v6308
        %v6310 = vpop.f32.mrb[0].mxu0
        %6311 = vdwg.mxu0
        %v6312 = vadd.f32 %v6154, %v5891
        %v6313 = vadd.f32 %v6159, %v5892
        %v6314 = vadd.f32 %v6164, %v5893
        %v6315 = vadd.f32 %v6169, %v5894
        %v6316 = vadd.f32 %v6174, %v5895
        %v6317 = vadd.f32 %v6179, %v5896
        %v6318 = vadd.f32 %v6184, %v5897
        %v6319 = vadd.f32 %v6189, %v5898
        %v6320 = vadd.f32 %v6194, %v5899
        %v6321 = vadd.f32 %v6199, %v5900
        %v6322 = vadd.f32 %v6204, %v5901
        %v6323 = vadd.f32 %v6209, %v5902
        %v6324 = vadd.f32 %v6214, %v5903
        %v6325 = vadd.f32 %v6219, %v5904
        %v6326 = vadd.f32 %v6224, %v5905
        %v6327 = vadd.f32 %v6229, %v5906
        %v6328 = vadd.f32 %v6234, %v5907
        %v6329 = vadd.f32 %v6239, %v5908
        %v6330 = vadd.f32 %v6244, %v5909
        %v6331 = vadd.f32 %v6249, %v5910
        %v6332 = vadd.f32 %v6254, %v5911
        %v6333 = vadd.f32 %v6259, %v5912
        %v6334 = vadd.f32 %v6264, %v5913
        %v6335 = vadd.f32 %v6269, %v5914
        %v6336 = vadd.f32 %v6274, %v5915
        %v6337 = vadd.f32 %v6279, %v5916
        %v6338 = vadd.f32 %v6284, %v5917
        %v6339 = vadd.f32 %v6289, %v5918
        %v6340 = vadd.f32 %v6294, %v5919
        %v6341 = vadd.f32 %v6299, %v5920
        %v6342 = vadd.f32 %v6304, %v5921
        %v6343 = vadd.f32 %v6309, %v5922
        %s6344 = scalar_lea.vmem %s227, 768 [#allocation2]
        %6345 = vst.msk [vmem:[%s6344] sm:$0xff] %vm297, %v6312
        %6346 = vst.msk [vmem:[%s6344 + $0x8] sm:$0xff] %vm297, %v6313
        %6347 = vst.msk [vmem:[%s6344 + $0x10] sm:$0xff] %vm297, %v6314
        %6348 = vst.msk [vmem:[%s6344 + $0x18] sm:$0xff] %vm297, %v6315
        %6349 = vst.msk [vmem:[%s6344 + $0x20] sm:$0xff] %vm297, %v6316
        %6350 = vst.msk [vmem:[%s6344 + $0x28] sm:$0xff] %vm297, %v6317
        %6351 = vst.msk [vmem:[%s6344 + $0x30] sm:$0xff] %vm297, %v6318
        %6352 = vst.msk [vmem:[%s6344 + $0x38] sm:$0xff] %vm297, %v6319
        %6353 = vst.msk [vmem:[%s6344 + $0x40] sm:$0xff] %vm297, %v6320
        %6354 = vst.msk [vmem:[%s6344 + $0x48] sm:$0xff] %vm297, %v6321
        %6355 = vst.msk [vmem:[%s6344 + $0x50] sm:$0xff] %vm297, %v6322
        %6356 = vst.msk [vmem:[%s6344 + $0x58] sm:$0xff] %vm297, %v6323
        %6357 = vst.msk [vmem:[%s6344 + $0x60] sm:$0xff] %vm297, %v6324
        %6358 = vst.msk [vmem:[%s6344 + $0x68] sm:$0xff] %vm297, %v6325
        %6359 = vst.msk [vmem:[%s6344 + $0x70] sm:$0xff] %vm297, %v6326
        %6360 = vst.msk [vmem:[%s6344 + $0x78] sm:$0xff] %vm297, %v6327
        %6361 = vst.msk [vmem:[%s6344 + $0x80] sm:$0xff] %vm297, %v6328
        %6362 = vst.msk [vmem:[%s6344 + $0x88] sm:$0xff] %vm297, %v6329
        %6363 = vst.msk [vmem:[%s6344 + $0x90] sm:$0xff] %vm297, %v6330
        %6364 = vst.msk [vmem:[%s6344 + $0x98] sm:$0xff] %vm297, %v6331
        %6365 = vst.msk [vmem:[%s6344 + $0xa0] sm:$0xff] %vm297, %v6332
        %6366 = vst.msk [vmem:[%s6344 + $0xa8] sm:$0xff] %vm297, %v6333
        %6367 = vst.msk [vmem:[%s6344 + $0xb0] sm:$0xff] %vm297, %v6334
        %6368 = vst.msk [vmem:[%s6344 + $0xb8] sm:$0xff] %vm297, %v6335
        %6369 = vst.msk [vmem:[%s6344 + $0xc0] sm:$0xff] %vm297, %v6336
        %6370 = vst.msk [vmem:[%s6344 + $0xc8] sm:$0xff] %vm297, %v6337
        %6371 = vst.msk [vmem:[%s6344 + $0xd0] sm:$0xff] %vm297, %v6338
        %6372 = vst.msk [vmem:[%s6344 + $0xd8] sm:$0xff] %vm297, %v6339
        %6373 = vst.msk [vmem:[%s6344 + $0xe0] sm:$0xff] %vm297, %v6340
        %6374 = vst.msk [vmem:[%s6344 + $0xe8] sm:$0xff] %vm297, %v6341
        %6375 = vst.msk [vmem:[%s6344 + $0xf0] sm:$0xff] %vm297, %v6342
        %6376 = vst.msk [vmem:[%s6344 + $0xf8] sm:$0xff] %vm297, %v6343
        %s6377 = sand.u32 %s117, 1
        %s6378 = sand.u32 %s117, 1
        %s6379 = smul.addr %s6378, 1024
        %s6380 = scalar_lea.vmem [#allocation2], %s6379
        // Predicated region
        $region37: #{selfnet_layer.1} parent=35 // pred_check
          %p6381 = pneg %p127
        $region38: #{selfnet_layer.1} parent=35 // pred_check_branch
          %6383 = sbr.rel (%p6381) target = $region40
        $region39: #{selfnet_layer.1} parent=35 // pred_region
          %s6384 = smul.u32 128, %s15
          %s6385 = ssub.s32 313, %s6384
          %p6386 = scmp.lt.s32.totalorder %s6385, 128
          %s6387 = scalar_select %p6386, %s6385, 128
          %s6388 = smul.u32 128, %s6387
          %p6389 = scmp.ne.s32.totalorder 0, %s6388
          %s6390 = smul.addr %s6384, 8
          %s6391 = scalar_lea.vmem %s4, %s6390
          // Predicated region
          $region41: #{selfnet_layer.1} parent=39 // pred_check
            %p6392 = pneg %p6389
          $region42: #{selfnet_layer.1} parent=39 // pred_check_branch
            %6394 = sbr.rel (%p6392) target = $region44
          $region43: #{selfnet_layer.1} parent=39 // pred_region
            // Predicated region
            $region45: #{selfnet_layer.1} parent=43 // pred_check
              _
            $region46: #{selfnet_layer.1} parent=43 // pred_check_branch
              %6396 = sbr.rel (0) target = $region48
            $region47: #{selfnet_layer.1} parent=43 // pred_region
              // Predicated region
              $region67: #{selfnet_layer.1} parent=47 // pred_check
                _
              $region68: #{selfnet_layer.1} parent=47 // pred_check_branch
                %6571 = sbr.rel (0) target = $region70
              $region69: #{selfnet_layer.1} parent=47 // pred_region
                %s6572 = sshrl.u32 %s6387, 6
                // While loop
                $region71: #{selfnet_layer.1} parent=69 // loop_pre_header
                  _
                $region72: #{selfnet_layer.1} parent=69 // loop_header
                  %s6574 = sphi 0, %s6576
                  %p6575 = scmp.ge.s32.totalorder %s6574, %s6572
                  %s6579 = sphi 0, %s6712
                  %s6580 = sphi %s6380, %s6715
                  %s6581 = sphi %s6391, %s6716
                $region73: #{selfnet_layer.1} parent=69 // loop_header_branch
                  %6578 = sbr.rel (%p6575) target = $region77
                $region74: #{selfnet_layer.1} parent=69 // loop_body
                  %v6582 = vld [vmem:[%s6580] sm:$0xff]
                  %6583 = vst [vmem:[%s6581] sm:$0xff] %v6582
                  %v6584 = vld [vmem:[%s6580 + $0x8] sm:$0xff]
                  %6585 = vst [vmem:[%s6581 + $0x8] sm:$0xff] %v6584
                  %v6586 = vld [vmem:[%s6580 + $0x10] sm:$0xff]
                  %6587 = vst [vmem:[%s6581 + $0x10] sm:$0xff] %v6586
                  %v6588 = vld [vmem:[%s6580 + $0x18] sm:$0xff]
                  %6589 = vst [vmem:[%s6581 + $0x18] sm:$0xff] %v6588
                  %v6590 = vld [vmem:[%s6580 + $0x20] sm:$0xff]
                  %6591 = vst [vmem:[%s6581 + $0x20] sm:$0xff] %v6590
                  %v6592 = vld [vmem:[%s6580 + $0x28] sm:$0xff]
                  %6593 = vst [vmem:[%s6581 + $0x28] sm:$0xff] %v6592
                  %v6594 = vld [vmem:[%s6580 + $0x30] sm:$0xff]
                  %6595 = vst [vmem:[%s6581 + $0x30] sm:$0xff] %v6594
                  %v6596 = vld [vmem:[%s6580 + $0x38] sm:$0xff]
                  %6597 = vst [vmem:[%s6581 + $0x38] sm:$0xff] %v6596
                  %v6598 = vld [vmem:[%s6580 + $0x40] sm:$0xff]
                  %6599 = vst [vmem:[%s6581 + $0x40] sm:$0xff] %v6598
                  %v6600 = vld [vmem:[%s6580 + $0x48] sm:$0xff]
                  %6601 = vst [vmem:[%s6581 + $0x48] sm:$0xff] %v6600
                  %v6602 = vld [vmem:[%s6580 + $0x50] sm:$0xff]
                  %6603 = vst [vmem:[%s6581 + $0x50] sm:$0xff] %v6602
                  %v6604 = vld [vmem:[%s6580 + $0x58] sm:$0xff]
                  %6605 = vst [vmem:[%s6581 + $0x58] sm:$0xff] %v6604
                  %v6606 = vld [vmem:[%s6580 + $0x60] sm:$0xff]
                  %6607 = vst [vmem:[%s6581 + $0x60] sm:$0xff] %v6606
                  %v6608 = vld [vmem:[%s6580 + $0x68] sm:$0xff]
                  %6609 = vst [vmem:[%s6581 + $0x68] sm:$0xff] %v6608
                  %v6610 = vld [vmem:[%s6580 + $0x70] sm:$0xff]
                  %6611 = vst [vmem:[%s6581 + $0x70] sm:$0xff] %v6610
                  %v6612 = vld [vmem:[%s6580 + $0x78] sm:$0xff]
                  %6613 = vst [vmem:[%s6581 + $0x78] sm:$0xff] %v6612
                  %v6614 = vld [vmem:[%s6580 + $0x80] sm:$0xff]
                  %6615 = vst [vmem:[%s6581 + $0x80] sm:$0xff] %v6614
                  %v6616 = vld [vmem:[%s6580 + $0x88] sm:$0xff]
                  %6617 = vst [vmem:[%s6581 + $0x88] sm:$0xff] %v6616
                  %v6618 = vld [vmem:[%s6580 + $0x90] sm:$0xff]
                  %6619 = vst [vmem:[%s6581 + $0x90] sm:$0xff] %v6618
                  %v6620 = vld [vmem:[%s6580 + $0x98] sm:$0xff]
                  %6621 = vst [vmem:[%s6581 + $0x98] sm:$0xff] %v6620
                  %v6622 = vld [vmem:[%s6580 + $0xa0] sm:$0xff]
                  %6623 = vst [vmem:[%s6581 + $0xa0] sm:$0xff] %v6622
                  %v6624 = vld [vmem:[%s6580 + $0xa8] sm:$0xff]
                  %6625 = vst [vmem:[%s6581 + $0xa8] sm:$0xff] %v6624
                  %v6626 = vld [vmem:[%s6580 + $0xb0] sm:$0xff]
                  %6627 = vst [vmem:[%s6581 + $0xb0] sm:$0xff] %v6626
                  %v6628 = vld [vmem:[%s6580 + $0xb8] sm:$0xff]
                  %6629 = vst [vmem:[%s6581 + $0xb8] sm:$0xff] %v6628
                  %v6630 = vld [vmem:[%s6580 + $0xc0] sm:$0xff]
                  %6631 = vst [vmem:[%s6581 + $0xc0] sm:$0xff] %v6630
                  %v6632 = vld [vmem:[%s6580 + $0xc8] sm:$0xff]
                  %6633 = vst [vmem:[%s6581 + $0xc8] sm:$0xff] %v6632
                  %v6634 = vld [vmem:[%s6580 + $0xd0] sm:$0xff]
                  %6635 = vst [vmem:[%s6581 + $0xd0] sm:$0xff] %v6634
                  %v6636 = vld [vmem:[%s6580 + $0xd8] sm:$0xff]
                  %6637 = vst [vmem:[%s6581 + $0xd8] sm:$0xff] %v6636
                  %v6638 = vld [vmem:[%s6580 + $0xe0] sm:$0xff]
                  %6639 = vst [vmem:[%s6581 + $0xe0] sm:$0xff] %v6638
                  %v6640 = vld [vmem:[%s6580 + $0xe8] sm:$0xff]
                  %6641 = vst [vmem:[%s6581 + $0xe8] sm:$0xff] %v6640
                  %v6642 = vld [vmem:[%s6580 + $0xf0] sm:$0xff]
                  %6643 = vst [vmem:[%s6581 + $0xf0] sm:$0xff] %v6642
                  %v6644 = vld [vmem:[%s6580 + $0xf8] sm:$0xff]
                  %6645 = vst [vmem:[%s6581 + $0xf8] sm:$0xff] %v6644
                  %v6646 = vld [vmem:[%s6580 + $0x100] sm:$0xff]
                  %6647 = vst [vmem:[%s6581 + $0x100] sm:$0xff] %v6646
                  %v6648 = vld [vmem:[%s6580 + $0x108] sm:$0xff]
                  %6649 = vst [vmem:[%s6581 + $0x108] sm:$0xff] %v6648
                  %v6650 = vld [vmem:[%s6580 + $0x110] sm:$0xff]
                  %6651 = vst [vmem:[%s6581 + $0x110] sm:$0xff] %v6650
                  %v6652 = vld [vmem:[%s6580 + $0x118] sm:$0xff]
                  %6653 = vst [vmem:[%s6581 + $0x118] sm:$0xff] %v6652
                  %v6654 = vld [vmem:[%s6580 + $0x120] sm:$0xff]
                  %6655 = vst [vmem:[%s6581 + $0x120] sm:$0xff] %v6654
                  %v6656 = vld [vmem:[%s6580 + $0x128] sm:$0xff]
                  %6657 = vst [vmem:[%s6581 + $0x128] sm:$0xff] %v6656
                  %v6658 = vld [vmem:[%s6580 + $0x130] sm:$0xff]
                  %6659 = vst [vmem:[%s6581 + $0x130] sm:$0xff] %v6658
                  %v6660 = vld [vmem:[%s6580 + $0x138] sm:$0xff]
                  %6661 = vst [vmem:[%s6581 + $0x138] sm:$0xff] %v6660
                  %v6662 = vld [vmem:[%s6580 + $0x140] sm:$0xff]
                  %6663 = vst [vmem:[%s6581 + $0x140] sm:$0xff] %v6662
                  %v6664 = vld [vmem:[%s6580 + $0x148] sm:$0xff]
                  %6665 = vst [vmem:[%s6581 + $0x148] sm:$0xff] %v6664
                  %v6666 = vld [vmem:[%s6580 + $0x150] sm:$0xff]
                  %6667 = vst [vmem:[%s6581 + $0x150] sm:$0xff] %v6666
                  %v6668 = vld [vmem:[%s6580 + $0x158] sm:$0xff]
                  %6669 = vst [vmem:[%s6581 + $0x158] sm:$0xff] %v6668
                  %v6670 = vld [vmem:[%s6580 + $0x160] sm:$0xff]
                  %6671 = vst [vmem:[%s6581 + $0x160] sm:$0xff] %v6670
                  %v6672 = vld [vmem:[%s6580 + $0x168] sm:$0xff]
                  %6673 = vst [vmem:[%s6581 + $0x168] sm:$0xff] %v6672
                  %v6674 = vld [vmem:[%s6580 + $0x170] sm:$0xff]
                  %6675 = vst [vmem:[%s6581 + $0x170] sm:$0xff] %v6674
                  %v6676 = vld [vmem:[%s6580 + $0x178] sm:$0xff]
                  %6677 = vst [vmem:[%s6581 + $0x178] sm:$0xff] %v6676
                  %v6678 = vld [vmem:[%s6580 + $0x180] sm:$0xff]
                  %6679 = vst [vmem:[%s6581 + $0x180] sm:$0xff] %v6678
                  %v6680 = vld [vmem:[%s6580 + $0x188] sm:$0xff]
                  %6681 = vst [vmem:[%s6581 + $0x188] sm:$0xff] %v6680
                  %v6682 = vld [vmem:[%s6580 + $0x190] sm:$0xff]
                  %6683 = vst [vmem:[%s6581 + $0x190] sm:$0xff] %v6682
                  %v6684 = vld [vmem:[%s6580 + $0x198] sm:$0xff]
                  %6685 = vst [vmem:[%s6581 + $0x198] sm:$0xff] %v6684
                  %v6686 = vld [vmem:[%s6580 + $0x1a0] sm:$0xff]
                  %6687 = vst [vmem:[%s6581 + $0x1a0] sm:$0xff] %v6686
                  %v6688 = vld [vmem:[%s6580 + $0x1a8] sm:$0xff]
                  %6689 = vst [vmem:[%s6581 + $0x1a8] sm:$0xff] %v6688
                  %v6690 = vld [vmem:[%s6580 + $0x1b0] sm:$0xff]
                  %6691 = vst [vmem:[%s6581 + $0x1b0] sm:$0xff] %v6690
                  %v6692 = vld [vmem:[%s6580 + $0x1b8] sm:$0xff]
                  %6693 = vst [vmem:[%s6581 + $0x1b8] sm:$0xff] %v6692
                  %v6694 = vld [vmem:[%s6580 + $0x1c0] sm:$0xff]
                  %6695 = vst [vmem:[%s6581 + $0x1c0] sm:$0xff] %v6694
                  %v6696 = vld [vmem:[%s6580 + $0x1c8] sm:$0xff]
                  %6697 = vst [vmem:[%s6581 + $0x1c8] sm:$0xff] %v6696
                  %v6698 = vld [vmem:[%s6580 + $0x1d0] sm:$0xff]
                  %6699 = vst [vmem:[%s6581 + $0x1d0] sm:$0xff] %v6698
                  %v6700 = vld [vmem:[%s6580 + $0x1d8] sm:$0xff]
                  %6701 = vst [vmem:[%s6581 + $0x1d8] sm:$0xff] %v6700
                  %v6702 = vld [vmem:[%s6580 + $0x1e0] sm:$0xff]
                  %6703 = vst [vmem:[%s6581 + $0x1e0] sm:$0xff] %v6702
                  %v6704 = vld [vmem:[%s6580 + $0x1e8] sm:$0xff]
                  %6705 = vst [vmem:[%s6581 + $0x1e8] sm:$0xff] %v6704
                  %v6706 = vld [vmem:[%s6580 + $0x1f0] sm:$0xff]
                  %6707 = vst [vmem:[%s6581 + $0x1f0] sm:$0xff] %v6706
                  %v6708 = vld [vmem:[%s6580 + $0x1f8] sm:$0xff]
                  %6709 = vst [vmem:[%s6581 + $0x1f8] sm:$0xff] %v6708
                  %s6710 = sadd.s32 1, %s6579
                  %p6711 = scmp.ge.s32.totalorder %s6710, %s6572
                  %s6712 = scalar_select %p6711, 0, %s6710
                  %s6713 = smul.u32 %s6712, 512
                  %s6714 = smul.u32 %s6712, 512
                  %s6715 = scalar_lea.vmem %s6380, %s6713 [#allocation2]
                  %s6716 = scalar_lea.vmem %s6391, %s6714
                $region75: #{selfnet_layer.1} parent=69 // loop_footer
                  %s6576 = sadd.s32 %s6574, 1
                $region76: #{selfnet_layer.1} parent=69 // loop_footer_branch
                  %6573 = sbr.rel target = $region72
                $region77: #{selfnet_layer.1} parent=69 // loop_exit
                  _
                %s6717 = sshrl.u32 %s6387, 6
                %s6718 = sand.u32 %s6387, 63
                %s6719 = smul.u32 %s6717, 64
                %s6720 = smul.u32 8, %s6719
                %s6721 = scalar_lea.vmem %s6380, %s6720 [#allocation2]
                %s6722 = smul.u32 8, %s6719
                %s6723 = scalar_lea.vmem %s6391, %s6722
                // While loop
                $region78: #{selfnet_layer.1} parent=69 // loop_pre_header
                  _
                $region79: #{selfnet_layer.1} parent=69 // loop_header
                  %s6725 = sphi 0, %s6727
                  %p6726 = scmp.ge.s32.totalorder %s6725, %s6718
                  %s6730 = sphi 0, %s6737
                  %s6731 = sphi %s6721, %s6740
                  %s6732 = sphi %s6723, %s6741
                $region80: #{selfnet_layer.1} parent=69 // loop_header_branch
                  %6729 = sbr.rel (%p6726) target = $region84
                $region81: #{selfnet_layer.1} parent=69 // loop_body
                  %v6733 = vld [vmem:[%s6731] sm:$0xff]
                  %6734 = vst [vmem:[%s6732] sm:$0xff] %v6733
                  %s6735 = sadd.s32 1, %s6730
                  %p6736 = scmp.ge.s32.totalorder %s6735, %s6718
                  %s6737 = scalar_select %p6736, 0, %s6735
                  %s6738 = smul.u32 %s6737, 8
                  %s6739 = smul.u32 %s6737, 8
                  %s6740 = scalar_lea.vmem %s6721, %s6738 [#allocation2]
                  %s6741 = scalar_lea.vmem %s6723, %s6739
                $region82: #{selfnet_layer.1} parent=69 // loop_footer
                  %s6727 = sadd.s32 %s6725, 1
                $region83: #{selfnet_layer.1} parent=69 // loop_footer_branch
                  %6724 = sbr.rel target = $region79
                $region84: #{selfnet_layer.1} parent=69 // loop_exit
                  _
              $region70: #{selfnet_layer.1} parent=47 // pred_fallthru
                _
              // Predicated region
              $region85: #{selfnet_layer.1} parent=47 // pred_check
                _
              $region86: #{selfnet_layer.1} parent=47 // pred_check_branch
                %6743 = sbr.rel target = $region88
              $region87: #{selfnet_layer.1} parent=47 // pred_region
                _
              $region88: #{selfnet_layer.1} parent=47 // pred_fallthru
                _
            $region48: #{selfnet_layer.1} parent=43 // pred_fallthru
              _
            // Predicated region
            $region49: #{selfnet_layer.1} parent=43 // pred_check
              _
            $region50: #{selfnet_layer.1} parent=43 // pred_check_branch
              %6398 = sbr.rel target = $region52
            $region51: #{selfnet_layer.1} parent=43 // pred_region
              %s6400 = sshrl.u32 %s6387, 6
              // While loop
              $region53: #{selfnet_layer.1} parent=51 // loop_pre_header
                _
              $region54: #{selfnet_layer.1} parent=51 // loop_header
                %s6402 = sphi 0, %s6404
                %p6403 = scmp.ge.s32.totalorder %s6402, %s6400
                %s6407 = sphi 0, %s6540
                %s6408 = sphi %s6380, %s6543
                %s6409 = sphi %s6391, %s6544
              $region55: #{selfnet_layer.1} parent=51 // loop_header_branch
                %6406 = sbr.rel (%p6403) target = $region59
              $region56: #{selfnet_layer.1} parent=51 // loop_body
                %v6410 = vld [vmem:[%s6408] sm:$0xff]
                %6411 = vst [vmem:[%s6409] sm:$0xff] %v6410
                %v6412 = vld [vmem:[%s6408 + $0x8] sm:$0xff]
                %6413 = vst [vmem:[%s6409 + $0x8] sm:$0xff] %v6412
                %v6414 = vld [vmem:[%s6408 + $0x10] sm:$0xff]
                %6415 = vst [vmem:[%s6409 + $0x10] sm:$0xff] %v6414
                %v6416 = vld [vmem:[%s6408 + $0x18] sm:$0xff]
                %6417 = vst [vmem:[%s6409 + $0x18] sm:$0xff] %v6416
                %v6418 = vld [vmem:[%s6408 + $0x20] sm:$0xff]
                %6419 = vst [vmem:[%s6409 + $0x20] sm:$0xff] %v6418
                %v6420 = vld [vmem:[%s6408 + $0x28] sm:$0xff]
                %6421 = vst [vmem:[%s6409 + $0x28] sm:$0xff] %v6420
                %v6422 = vld [vmem:[%s6408 + $0x30] sm:$0xff]
                %6423 = vst [vmem:[%s6409 + $0x30] sm:$0xff] %v6422
                %v6424 = vld [vmem:[%s6408 + $0x38] sm:$0xff]
                %6425 = vst [vmem:[%s6409 + $0x38] sm:$0xff] %v6424
                %v6426 = vld [vmem:[%s6408 + $0x40] sm:$0xff]
                %6427 = vst [vmem:[%s6409 + $0x40] sm:$0xff] %v6426
                %v6428 = vld [vmem:[%s6408 + $0x48] sm:$0xff]
                %6429 = vst [vmem:[%s6409 + $0x48] sm:$0xff] %v6428
                %v6430 = vld [vmem:[%s6408 + $0x50] sm:$0xff]
                %6431 = vst [vmem:[%s6409 + $0x50] sm:$0xff] %v6430
                %v6432 = vld [vmem:[%s6408 + $0x58] sm:$0xff]
                %6433 = vst [vmem:[%s6409 + $0x58] sm:$0xff] %v6432
                %v6434 = vld [vmem:[%s6408 + $0x60] sm:$0xff]
                %6435 = vst [vmem:[%s6409 + $0x60] sm:$0xff] %v6434
                %v6436 = vld [vmem:[%s6408 + $0x68] sm:$0xff]
                %6437 = vst [vmem:[%s6409 + $0x68] sm:$0xff] %v6436
                %v6438 = vld [vmem:[%s6408 + $0x70] sm:$0xff]
                %6439 = vst [vmem:[%s6409 + $0x70] sm:$0xff] %v6438
                %v6440 = vld [vmem:[%s6408 + $0x78] sm:$0xff]
                %6441 = vst [vmem:[%s6409 + $0x78] sm:$0xff] %v6440
                %v6442 = vld [vmem:[%s6408 + $0x80] sm:$0xff]
                %6443 = vst [vmem:[%s6409 + $0x80] sm:$0xff] %v6442
                %v6444 = vld [vmem:[%s6408 + $0x88] sm:$0xff]
                %6445 = vst [vmem:[%s6409 + $0x88] sm:$0xff] %v6444
                %v6446 = vld [vmem:[%s6408 + $0x90] sm:$0xff]
                %6447 = vst [vmem:[%s6409 + $0x90] sm:$0xff] %v6446
                %v6448 = vld [vmem:[%s6408 + $0x98] sm:$0xff]
                %6449 = vst [vmem:[%s6409 + $0x98] sm:$0xff] %v6448
                %v6450 = vld [vmem:[%s6408 + $0xa0] sm:$0xff]
                %6451 = vst [vmem:[%s6409 + $0xa0] sm:$0xff] %v6450
                %v6452 = vld [vmem:[%s6408 + $0xa8] sm:$0xff]
                %6453 = vst [vmem:[%s6409 + $0xa8] sm:$0xff] %v6452
                %v6454 = vld [vmem:[%s6408 + $0xb0] sm:$0xff]
                %6455 = vst [vmem:[%s6409 + $0xb0] sm:$0xff] %v6454
                %v6456 = vld [vmem:[%s6408 + $0xb8] sm:$0xff]
                %6457 = vst [vmem:[%s6409 + $0xb8] sm:$0xff] %v6456
                %v6458 = vld [vmem:[%s6408 + $0xc0] sm:$0xff]
                %6459 = vst [vmem:[%s6409 + $0xc0] sm:$0xff] %v6458
                %v6460 = vld [vmem:[%s6408 + $0xc8] sm:$0xff]
                %6461 = vst [vmem:[%s6409 + $0xc8] sm:$0xff] %v6460
                %v6462 = vld [vmem:[%s6408 + $0xd0] sm:$0xff]
                %6463 = vst [vmem:[%s6409 + $0xd0] sm:$0xff] %v6462
                %v6464 = vld [vmem:[%s6408 + $0xd8] sm:$0xff]
                %6465 = vst [vmem:[%s6409 + $0xd8] sm:$0xff] %v6464
                %v6466 = vld [vmem:[%s6408 + $0xe0] sm:$0xff]
                %6467 = vst [vmem:[%s6409 + $0xe0] sm:$0xff] %v6466
                %v6468 = vld [vmem:[%s6408 + $0xe8] sm:$0xff]
                %6469 = vst [vmem:[%s6409 + $0xe8] sm:$0xff] %v6468
                %v6470 = vld [vmem:[%s6408 + $0xf0] sm:$0xff]
                %6471 = vst [vmem:[%s6409 + $0xf0] sm:$0xff] %v6470
                %v6472 = vld [vmem:[%s6408 + $0xf8] sm:$0xff]
                %6473 = vst [vmem:[%s6409 + $0xf8] sm:$0xff] %v6472
                %v6474 = vld [vmem:[%s6408 + $0x100] sm:$0xff]
                %6475 = vst [vmem:[%s6409 + $0x100] sm:$0xff] %v6474
                %v6476 = vld [vmem:[%s6408 + $0x108] sm:$0xff]
                %6477 = vst [vmem:[%s6409 + $0x108] sm:$0xff] %v6476
                %v6478 = vld [vmem:[%s6408 + $0x110] sm:$0xff]
                %6479 = vst [vmem:[%s6409 + $0x110] sm:$0xff] %v6478
                %v6480 = vld [vmem:[%s6408 + $0x118] sm:$0xff]
                %6481 = vst [vmem:[%s6409 + $0x118] sm:$0xff] %v6480
                %v6482 = vld [vmem:[%s6408 + $0x120] sm:$0xff]
                %6483 = vst [vmem:[%s6409 + $0x120] sm:$0xff] %v6482
                %v6484 = vld [vmem:[%s6408 + $0x128] sm:$0xff]
                %6485 = vst [vmem:[%s6409 + $0x128] sm:$0xff] %v6484
                %v6486 = vld [vmem:[%s6408 + $0x130] sm:$0xff]
                %6487 = vst [vmem:[%s6409 + $0x130] sm:$0xff] %v6486
                %v6488 = vld [vmem:[%s6408 + $0x138] sm:$0xff]
                %6489 = vst [vmem:[%s6409 + $0x138] sm:$0xff] %v6488
                %v6490 = vld [vmem:[%s6408 + $0x140] sm:$0xff]
                %6491 = vst [vmem:[%s6409 + $0x140] sm:$0xff] %v6490
                %v6492 = vld [vmem:[%s6408 + $0x148] sm:$0xff]
                %6493 = vst [vmem:[%s6409 + $0x148] sm:$0xff] %v6492
                %v6494 = vld [vmem:[%s6408 + $0x150] sm:$0xff]
                %6495 = vst [vmem:[%s6409 + $0x150] sm:$0xff] %v6494
                %v6496 = vld [vmem:[%s6408 + $0x158] sm:$0xff]
                %6497 = vst [vmem:[%s6409 + $0x158] sm:$0xff] %v6496
                %v6498 = vld [vmem:[%s6408 + $0x160] sm:$0xff]
                %6499 = vst [vmem:[%s6409 + $0x160] sm:$0xff] %v6498
                %v6500 = vld [vmem:[%s6408 + $0x168] sm:$0xff]
                %6501 = vst [vmem:[%s6409 + $0x168] sm:$0xff] %v6500
                %v6502 = vld [vmem:[%s6408 + $0x170] sm:$0xff]
                %6503 = vst [vmem:[%s6409 + $0x170] sm:$0xff] %v6502
                %v6504 = vld [vmem:[%s6408 + $0x178] sm:$0xff]
                %6505 = vst [vmem:[%s6409 + $0x178] sm:$0xff] %v6504
                %v6506 = vld [vmem:[%s6408 + $0x180] sm:$0xff]
                %6507 = vst [vmem:[%s6409 + $0x180] sm:$0xff] %v6506
                %v6508 = vld [vmem:[%s6408 + $0x188] sm:$0xff]
                %6509 = vst [vmem:[%s6409 + $0x188] sm:$0xff] %v6508
                %v6510 = vld [vmem:[%s6408 + $0x190] sm:$0xff]
                %6511 = vst [vmem:[%s6409 + $0x190] sm:$0xff] %v6510
                %v6512 = vld [vmem:[%s6408 + $0x198] sm:$0xff]
                %6513 = vst [vmem:[%s6409 + $0x198] sm:$0xff] %v6512
                %v6514 = vld [vmem:[%s6408 + $0x1a0] sm:$0xff]
                %6515 = vst [vmem:[%s6409 + $0x1a0] sm:$0xff] %v6514
                %v6516 = vld [vmem:[%s6408 + $0x1a8] sm:$0xff]
                %6517 = vst [vmem:[%s6409 + $0x1a8] sm:$0xff] %v6516
                %v6518 = vld [vmem:[%s6408 + $0x1b0] sm:$0xff]
                %6519 = vst [vmem:[%s6409 + $0x1b0] sm:$0xff] %v6518
                %v6520 = vld [vmem:[%s6408 + $0x1b8] sm:$0xff]
                %6521 = vst [vmem:[%s6409 + $0x1b8] sm:$0xff] %v6520
                %v6522 = vld [vmem:[%s6408 + $0x1c0] sm:$0xff]
                %6523 = vst [vmem:[%s6409 + $0x1c0] sm:$0xff] %v6522
                %v6524 = vld [vmem:[%s6408 + $0x1c8] sm:$0xff]
                %6525 = vst [vmem:[%s6409 + $0x1c8] sm:$0xff] %v6524
                %v6526 = vld [vmem:[%s6408 + $0x1d0] sm:$0xff]
                %6527 = vst [vmem:[%s6409 + $0x1d0] sm:$0xff] %v6526
                %v6528 = vld [vmem:[%s6408 + $0x1d8] sm:$0xff]
                %6529 = vst [vmem:[%s6409 + $0x1d8] sm:$0xff] %v6528
                %v6530 = vld [vmem:[%s6408 + $0x1e0] sm:$0xff]
                %6531 = vst [vmem:[%s6409 + $0x1e0] sm:$0xff] %v6530
                %v6532 = vld [vmem:[%s6408 + $0x1e8] sm:$0xff]
                %6533 = vst [vmem:[%s6409 + $0x1e8] sm:$0xff] %v6532
                %v6534 = vld [vmem:[%s6408 + $0x1f0] sm:$0xff]
                %6535 = vst [vmem:[%s6409 + $0x1f0] sm:$0xff] %v6534
                %v6536 = vld [vmem:[%s6408 + $0x1f8] sm:$0xff]
                %6537 = vst [vmem:[%s6409 + $0x1f8] sm:$0xff] %v6536
                %s6538 = sadd.s32 1, %s6407
                %p6539 = scmp.ge.s32.totalorder %s6538, %s6400
                %s6540 = scalar_select %p6539, 0, %s6538
                %s6541 = smul.u32 %s6540, 512
                %s6542 = smul.u32 %s6540, 512
                %s6543 = scalar_lea.vmem %s6380, %s6541 [#allocation2]
                %s6544 = scalar_lea.vmem %s6391, %s6542
              $region57: #{selfnet_layer.1} parent=51 // loop_footer
                %s6404 = sadd.s32 %s6402, 1
              $region58: #{selfnet_layer.1} parent=51 // loop_footer_branch
                %6401 = sbr.rel target = $region54
              $region59: #{selfnet_layer.1} parent=51 // loop_exit
                _
              %s6545 = sshrl.u32 %s6387, 6
              %s6546 = sand.u32 %s6387, 63
              %s6547 = smul.u32 %s6545, 64
              %s6548 = smul.u32 8, %s6547
              %s6549 = scalar_lea.vmem %s6380, %s6548 [#allocation2]
              %s6550 = smul.u32 8, %s6547
              %s6551 = scalar_lea.vmem %s6391, %s6550
              // While loop
              $region60: #{selfnet_layer.1} parent=51 // loop_pre_header
                _
              $region61: #{selfnet_layer.1} parent=51 // loop_header
                %s6553 = sphi 0, %s6555
                %p6554 = scmp.ge.s32.totalorder %s6553, %s6546
                %s6558 = sphi 0, %s6565
                %s6559 = sphi %s6549, %s6568
                %s6560 = sphi %s6551, %s6569
              $region62: #{selfnet_layer.1} parent=51 // loop_header_branch
                %6557 = sbr.rel (%p6554) target = $region66
              $region63: #{selfnet_layer.1} parent=51 // loop_body
                %v6561 = vld [vmem:[%s6559] sm:$0xff]
                %6562 = vst [vmem:[%s6560] sm:$0xff] %v6561
                %s6563 = sadd.s32 1, %s6558
                %p6564 = scmp.ge.s32.totalorder %s6563, %s6546
                %s6565 = scalar_select %p6564, 0, %s6563
                %s6566 = smul.u32 %s6565, 8
                %s6567 = smul.u32 %s6565, 8
                %s6568 = scalar_lea.vmem %s6549, %s6566 [#allocation2]
                %s6569 = scalar_lea.vmem %s6551, %s6567
              $region64: #{selfnet_layer.1} parent=51 // loop_footer
                %s6555 = sadd.s32 %s6553, 1
              $region65: #{selfnet_layer.1} parent=51 // loop_footer_branch
                %6552 = sbr.rel target = $region61
              $region66: #{selfnet_layer.1} parent=51 // loop_exit
                _
            $region52: #{selfnet_layer.1} parent=43 // pred_fallthru
              _
          $region44: #{selfnet_layer.1} parent=39 // pred_fallthru
            _
          %6744 = vnop
        $region40: #{selfnet_layer.1} parent=35 // pred_fallthru
          _
      $region36: #{selfnet_layer.1} parent=5 // pred_fallthru
        _
      %p6745 = scmp.le.s32.totalorder 2, %s10
      // Predicated region
      $region89: #{selfnet_layer.1} parent=5 // pred_check
        %p6746 = pneg %p6745
      $region90: #{selfnet_layer.1} parent=5 // pred_check_branch
        %6748 = sbr.rel (%p6746) target = $region92
      $region91: #{selfnet_layer.1} parent=5 // pred_region
        %s6749 = ssub.s32 %s10, 2
        // Predicated region
        $region93: #{selfnet_layer.1} parent=91 // pred_check
          %p6750 = pneg %p133
        $region94: #{selfnet_layer.1} parent=91 // pred_check_branch
          %6752 = sbr.rel (%p6750) target = $region96
        $region95: #{selfnet_layer.1} parent=91 // pred_region
          %s6753 = sand.u32 %s118, 1
          %s6754 = sand.u32 %s118, 1
          %s6755 = smul.addr %s6754, 1024
          %s6756 = scalar_lea.vmem [#allocation2], %s6755
        $region96: #{selfnet_layer.1} parent=91 // pred_fallthru
          _
      $region92: #{selfnet_layer.1} parent=5 // pred_fallthru
        _
    $region6: #{selfnet_layer.1} parent=1 // loop_footer
      %s14 = sadd.s32 1, %s10
    $region7: #{selfnet_layer.1} parent=1 // loop_footer_branch
      %9 = sbr.rel target = $region3
    $region8: #{selfnet_layer.1} parent=1 // loop_exit
      _

</llo_original>
